<compile_context>
chip_gen: v7x
topology: tpu7x:2x2x1
jax: 0.10.0
libtpu: 0.0.40
codegen_flags: <defaults>
</compile_context>

<pallas_src>
import functools

import jax
import jax.numpy as jnp
from jax import lax
from jax.experimental import pallas as pl
from jax.experimental.pallas import tpu as pltpu


_BATCH_PAD = 8     # pad batch to one full sublane tile
_UNROLL = 6        # partial unroll factor for the recurrence (T % _UNROLL == 0)

# Single-pass bf16 MXU with f32 accumulation, pinned explicitly.
_dot = functools.partial(jnp.dot, preferred_element_type=jnp.float32,
                         precision=lax.Precision.DEFAULT)


def _gates(g, H):
    """PyTorch LSTM gate order: i, f, g, o (all math stays f32)."""
    i = jax.nn.sigmoid(g[:, 0 * H:1 * H])
    f = jax.nn.sigmoid(g[:, 1 * H:2 * H])
    c_in = jnp.tanh(g[:, 2 * H:3 * H])
    o = jax.nn.sigmoid(g[:, 3 * H:4 * H])
    return i, f, c_in, o


def _fused_lstm_fc_kernel(x_ref, wih1_ref, whh1_ref, b1_ref,
                          wih2_ref, whh2_ref, b2_ref,
                          wfc1_hbm_ref, bfc1_ref, wfc2_ref, bfc2_ref,
                          out_ref,
                          xp_ref, wfc1_buf_ref, dma_sem):
    # x_ref:        (T*Bp, F)                 time-major, batch padded to Bp=8
    # wih1_ref:     (F, 4H)                   layer-1 input->gates
    # whh1_ref:     (H, 4H)                   layer-1 hidden->gates
    # b1_ref:       (1, 4H)                   layer-1 combined bias
    # wih2_ref:     (H, 4H)                   layer-2 input->gates
    # whh2_ref:     (H, 4H)                   layer-2 hidden->gates
    # b2_ref:       (1, 4H)                   layer-2 combined bias
    # wfc1_hbm_ref: (n_groups, UNROLL, H, M)  FC1 weight (bf16), left in HBM
    # bfc1_ref:     (1, M)
    # wfc2_ref:     (M, L_out)
    # bfc2_ref:     (1, L_out)
    # out_ref:      (Bp, L_out)
    # xp_ref:       (T*Bp, 4H) f32 scratch    hoisted x-projection
    # wfc1_buf_ref: (2, UNROLL, H, M) bf16    W_fc1 streaming double buffer
    n_groups, unroll, H, fc_mid = wfc1_hbm_ref.shape
    Bp = out_ref.shape[0]

    def start_chunk(g, slot):
        pltpu.make_async_copy(wfc1_hbm_ref.at[g], wfc1_buf_ref.at[slot],
                              dma_sem.at[slot]).start()

    def wait_chunk(slot):
        pltpu.make_async_copy(wfc1_hbm_ref.at[0], wfc1_buf_ref.at[slot],
                              dma_sem.at[slot]).wait()

    # (1) Kick off the first W_fc1 chunk now; later chunks are prefetched one
    #     group ahead from inside the recurrence, so the ~7.9 MiB bf16 stream
    #     hides behind the latency-bound loop.
    start_chunk(0, 0)

    # (2) Hoisted layer-1 input projection for ALL timesteps in ONE dot (one
    #     weight push, off the serial critical path).
    xp_ref[...] = _dot(x_ref[...], wih1_ref[...]) + b1_ref[...]

    # Hoist the layer-2 bias broadcast out of the recurrence.
    b2b = jnp.broadcast_to(b2_ref[...], (Bp, 4 * H))

    def cell(t, wfc1_t, carry):
        h1, c1, h2, c2, fc1 = carry
        # Layer-2 recurrent matmul only needs the carry (h2_{t-1}); issue it
        # first so it overlaps layer-1's matmul + EUP gate chain.
        g2a = _dot(h2, whh2_ref[...])
        # Layer 1.
        start = pl.multiple_of(t * Bp, Bp)
        g1 = xp_ref[pl.ds(start, Bp), :] + _dot(h1, whh1_ref[...])
        i1, f1, ci1, o1 = _gates(g1, H)
        c1 = f1 * c1 + i1 * ci1
        h1 = o1 * jnp.tanh(c1)
        # Layer 2.
        g2 = g2a + _dot(h1, wih2_ref[...]) + b2b
        i2, f2, ci2, o2 = _gates(g2, H)
        c2 = f2 * c2 + i2 * ci2
        h2 = o2 * jnp.tanh(c2)
        # Folded FC1 accumulation (bf16 weights, f32 accumulation): pure MXU
        # work with no carry dependence -> hides under the EUP gate chains.
        fc1 = fc1 + _dot(h2.astype(wfc1_t.dtype), wfc1_t)
        return h1, c1, h2, c2, fc1

    def group(g, carry):
        slot = g & 1
        wait_chunk(slot)

        # Prefetch next group's W_fc1 chunk into the other slot.
        @pl.when(g + 1 < n_groups)
        def _():
            start_chunk(g + 1, 1 - slot)

        # Partial unroll: straight-line code lets the scheduler interleave
        # layer1(t+1) with layer2(t) (data-independent) and hide the FC1 dots.
        for j in range(unroll):
            carry = cell(g * unroll + j, wfc1_buf_ref[slot, j], carry)
        return carry

    zero = jnp.zeros((Bp, H), jnp.float32)
    fc1_init = jnp.broadcast_to(bfc1_ref[...], (Bp, fc_mid))
    carry = lax.fori_loop(0, n_groups, group,
                          (zero, zero, zero, zero, fc1_init))

    # (3) FC2 head (FC1 already accumulated in the loop).
    out = _dot(carry[4], wfc2_ref[...]) + bfc2_ref[...]
    out_ref[...] = out.astype(out_ref.dtype)


def lstm_model_forward(x, params, length_out):
    """x: (B, T, F) -> (B, length_out, 1). Mirrors LSTM.forward (f32)."""
    B, T, F = x.shape
    H = params["w_hh1"].shape[0]
    fc_in, fc_mid = params["w_fc1"].shape
    assert fc_in == T * H, "fc1 expects seq_len * hidden == fc_in"
    assert T % _UNROLL == 0 and B <= _BATCH_PAD
    Bp = _BATCH_PAD
    n_groups = T // _UNROLL

    # One tiny layout fixup at the model boundary: pad batch to a sublane tile
    # and go time-major 2-D (T*Bp, F). Padded rows (B..Bp-1) see zero inputs ->
    # bounded bias-only values through sigmoid/tanh (no NaN/Inf); they are
    # sliced away below.
    x_p = jnp.zeros((Bp, T, F), jnp.float32).at[:B].set(x.astype(jnp.float32))
    x_tm = jnp.swapaxes(x_p, 0, 1).reshape(T * Bp, F)

    # FC1 weight viewed per (group, step) and stored bf16: halves the HBM
    # stream and the resident VMEM; accumulation stays f32 in-kernel.
    w_fc1 = params["w_fc1"].reshape(n_groups, _UNROLL, H, fc_mid)
    w_fc1 = w_fc1.astype(jnp.bfloat16)

    vmem = pl.BlockSpec(memory_space=pltpu.MemorySpace.VMEM)
    hbm = pl.BlockSpec(memory_space=pl.ANY)

    out = pl.pallas_call(
        _fused_lstm_fc_kernel,
        out_shape=jax.ShapeDtypeStruct((Bp, length_out), jnp.float32),
        in_specs=[vmem, vmem, vmem, vmem, vmem, vmem, vmem,
                  hbm, vmem, vmem, vmem],
        out_specs=vmem,
        scratch_shapes=[
            pltpu.VMEM((T * Bp, 4 * H), jnp.float32),           # x-projection
            pltpu.VMEM((2, _UNROLL, H, fc_mid), jnp.bfloat16),  # W_fc1 dbl buf
            pltpu.SemaphoreType.DMA((2,)),
        ],
        compiler_params=pltpu.CompilerParams(
            vmem_limit_bytes=24 * 1024 * 1024),
    )(x_tm,
      params["w_ih1"], params["w_hh1"], params["b1"].reshape(1, 4 * H),
      params["w_ih2"], params["w_hh2"], params["b2"].reshape(1, 4 * H),
      w_fc1, params["b_fc1"].reshape(1, fc_mid),
      params["w_fc2"], params["b_fc2"].reshape(1, length_out))

    return out[:B].reshape(B, length_out, 1)


# ----------------------------------------------------------------------------
# Pure-JAX reference for correctness checking.
# ----------------------------------------------------------------------------
def _lstm_ref(x, w_ih, w_hh, b):
    B = x.shape[0]
    H = w_hh.shape[0]

    def step(carry, x_t):
        h, c = carry
        gates = x_t @ w_ih + h @ w_hh + b
        i_g = jax.nn.sigmoid(gates[:, 0 * H:1 * H])
        f_g = jax.nn.sigmoid(gates[:, 1 * H:2 * H])
        g_g = jnp.tanh(gates[:, 2 * H:3 * H])
        o_g = jax.nn.sigmoid(gates[:, 3 * H:4 * H])
        c = f_g * c + i_g * g_g
        h = o_g * jnp.tanh(c)
        return (h, c), h

    h0 = jnp.zeros((B, H), x.dtype)
    c0 = jnp.zeros((B, H), x.dtype)
    _, hs = lax.scan(step, (h0, c0), jnp.swapaxes(x, 0, 1))
    return jnp.swapaxes(hs, 0, 1)


def _forward_ref(x, params, length_out):
    B = x.shape[0]
    h1 = _lstm_ref(x, params["w_ih1"], params["w_hh1"], params["b1"])
    h2 = _lstm_ref(h1, params["w_ih2"], params["w_hh2"], params["b2"])
    flat = h2.reshape(B, -1)
    f1 = flat @ params["w_fc1"] + params["b_fc1"]
    f2 = f1 @ params["w_fc2"] + params["b_fc2"]
    return f2.reshape(B, length_out, 1)


# ----------------------------------------------------------------------------
# Deterministic parameter construction (same shapes as the nn.Module __init__;
# LSTM weights stored transposed w.r.t. PyTorch, biases = b_ih + b_hh).
# ----------------------------------------------------------------------------
def init_params(key, feature_in, hidden, length_out, fc_in=7680, fc_mid=512):
    ks = jax.random.split(key, 10)
    u = lambda k, shape, s: jax.random.uniform(k, shape, jnp.float32, -s, s)
    s_h = 1.0 / float(jnp.sqrt(hidden))
    s_f1 = 1.0 / float(jnp.sqrt(fc_in))
    s_f2 = 1.0 / float(jnp.sqrt(fc_mid))
    return {
        # lstm1: nn.LSTM(feature_in, hidden)
        "w_ih1": u(ks[0], (feature_in, 4 * hidden), s_h),
        "w_hh1": u(ks[1], (hidden, 4 * hidden), s_h),
        "b1": u(ks[2], (4 * hidden,), s_h),
        # lstm2: nn.LSTM(hidden, hidden)
        "w_ih2": u(ks[3], (hidden, 4 * hidden), s_h),
        "w_hh2": u(ks[4], (hidden, 4 * hidden), s_h),
        "b2": u(ks[5], (4 * hidden,), s_h),
        # fc1: nn.Linear(7680, 512)
        "w_fc1": u(ks[6], (fc_in, fc_mid), s_f1),
        "b_fc1": u(ks[7], (fc_mid,), s_f1),
        # fc2: nn.Linear(512, length_out)
        "w_fc2": u(ks[8], (fc_mid, length_out), s_f2),
        "b_fc2": u(ks[9], (length_out,), s_f2),
    }


if __name__ == "__main__":
    # Shapes implied by the module: fc1 expects seq_len * num_hidden[0] == 7680.
    # hidden = 128 (lane-aligned) -> seq_len = 60.
    batch = 2
    seq_len = 60
    feature_in = 16
    num_hidden = [128, 128]
    length_out = 24

    key = jax.random.PRNGKey(0)
    k_params, k_x = jax.random.split(key)
    params = init_params(k_params, feature_in, num_hidden[0], length_out)
    x = jax.random.normal(k_x, (batch, seq_len, feature_in), jnp.float32)

    fwd = jax.jit(functools.partial(lstm_model_forward, length_out=length_out))
    out = jax.block_until_ready(fwd(x, params))
    assert out.shape == (batch, length_out, 1), out.shape

    ref = jax.block_until_ready(_forward_ref(x, params, length_out))
    # bf16 single-pass matmuls + bf16-stored W_fc1 vs. the f32 reference.
    assert jnp.allclose(out, ref, rtol=2e-2, atol=2e-2), (
        float(jnp.max(jnp.abs(out - ref)))
    )

    print("KERNEL_OK")
</pallas_src>

<mosaic_0001>
module attributes {stable_mosaic.version = 11 : i64} {
  func.func @_fused_lstm_fc_kernel(%arg0: memref<480x16xf32, #tpu.memory_space<vmem>>, %arg1: memref<16x512xf32, #tpu.memory_space<vmem>>, %arg2: memref<128x512xf32, #tpu.memory_space<vmem>>, %arg3: memref<1x512xf32, #tpu.memory_space<vmem>>, %arg4: memref<128x512xf32, #tpu.memory_space<vmem>>, %arg5: memref<128x512xf32, #tpu.memory_space<vmem>>, %arg6: memref<1x512xf32, #tpu.memory_space<vmem>>, %arg7: memref<10x6x128x512xbf16, #tpu.memory_space<any>>, %arg8: memref<1x512xf32, #tpu.memory_space<vmem>>, %arg9: memref<512x24xf32, #tpu.memory_space<vmem>>, %arg10: memref<1x24xf32, #tpu.memory_space<vmem>>, %arg11: memref<8x24xf32, #tpu.memory_space<vmem>>, %arg12: memref<480x512xf32, #tpu.memory_space<vmem>>, %arg13: memref<2x6x128x512xbf16, #tpu.memory_space<vmem>>, %arg14: memref<2x!tpu.dma_semaphore, #tpu.memory_space<semaphore_mem>>) attributes {dimension_semantics = [], scalar_prefetch = 0 : i64, scratch_operands = 3 : i64, tpu.core_type = #tpu.core_type<tc>} {
    %c0_i32 = arith.constant 0 : i32
    %c0_i32_0 = arith.constant 0 : i32
    %c0_i32_1 = arith.constant 0 : i32
    %c0_i32_2 = arith.constant 0 : i32
    %c0_i32_3 = arith.constant 0 : i32
    %c0_i32_4 = arith.constant 0 : i32
    %0 = tpu.memref_slice %arg7[%c0_i32, %c0_i32_2, %c0_i32_3, %c0_i32_4] : memref<10x6x128x512xbf16, #tpu.memory_space<any>> -> memref<1x6x128x512xbf16, #tpu.memory_space<any>>
    %1 = tpu.memref_squeeze %0 : memref<1x6x128x512xbf16, #tpu.memory_space<any>> -> memref<6x128x512xbf16, #tpu.memory_space<any>>
    %c0_i32_5 = arith.constant 0 : i32
    %c0_i32_6 = arith.constant 0 : i32
    %c0_i32_7 = arith.constant 0 : i32
    %2 = tpu.memref_slice %arg13[%c0_i32_0, %c0_i32_5, %c0_i32_6, %c0_i32_7] : memref<2x6x128x512xbf16, #tpu.memory_space<vmem>> -> memref<1x6x128x512xbf16, #tpu.memory_space<vmem>>
    %3 = tpu.memref_squeeze %2 : memref<1x6x128x512xbf16, #tpu.memory_space<vmem>> -> memref<6x128x512xbf16, #tpu.memory_space<vmem>>
    %4 = tpu.memref_slice %arg14[%c0_i32_1] : memref<2x!tpu.dma_semaphore, #tpu.memory_space<semaphore_mem>> -> memref<1x!tpu.dma_semaphore, #tpu.memory_space<semaphore_mem>>
    %5 = tpu.memref_squeeze %4 : memref<1x!tpu.dma_semaphore, #tpu.memory_space<semaphore_mem>> -> memref<!tpu.dma_semaphore, #tpu.memory_space<semaphore_mem>>
    tpu.enqueue_dma source(%1 : memref<6x128x512xbf16, #tpu.memory_space<any>>) target(%3 : memref<6x128x512xbf16, #tpu.memory_space<vmem>>) target_semaphore(%5 : memref<!tpu.dma_semaphore, #tpu.memory_space<semaphore_mem>>)
    %c0 = arith.constant 0 : index
    %c0_8 = arith.constant 0 : index
    %6 = vector.load %arg0[%c0, %c0_8] : memref<480x16xf32, #tpu.memory_space<vmem>>, vector<480x16xf32>
    %c0_9 = arith.constant 0 : index
    %c0_10 = arith.constant 0 : index
    %7 = vector.load %arg1[%c0_9, %c0_10] : memref<16x512xf32, #tpu.memory_space<vmem>>, vector<16x512xf32>
    %cst = arith.constant dense<0.000000e+00> : vector<480x512xf32>
    %8 = tpu.matmul %6, %7, %cst {dimension_numbers = #tpu.dot_dimension_numbers<[1], [0], [0], [1], [0, 0, 1, 1], [], []>} : vector<480x16xf32>, vector<16x512xf32>, vector<480x512xf32> -> vector<480x512xf32>
    %c0_11 = arith.constant 0 : index
    %c0_12 = arith.constant 0 : index
    %9 = vector.load %arg3[%c0_11, %c0_12] : memref<1x512xf32, #tpu.memory_space<vmem>>, vector<1x512xf32>
    %10 = vector.broadcast %9 : vector<1x512xf32> to vector<480x512xf32>
    %11 = arith.addf %8, %10 : vector<480x512xf32>
    %c0_13 = arith.constant 0 : index
    %c0_14 = arith.constant 0 : index
    %12 = vector.load %arg12[%c0_13, %c0_14] : memref<480x512xf32, #tpu.memory_space<vmem>>, vector<480x512xf32>
    tpu.vector_store %arg12[%c0_13, %c0_14], %11 {strides = array<i32>} : memref<480x512xf32, #tpu.memory_space<vmem>>, vector<480x512xf32>,
    %c0_15 = arith.constant 0 : index
    %c0_16 = arith.constant 0 : index
    %13 = vector.load %arg6[%c0_15, %c0_16] : memref<1x512xf32, #tpu.memory_space<vmem>>, vector<1x512xf32>
    %14 = vector.shape_cast %13 : vector<1x512xf32> to vector<1x512xf32>
    %15 = vector.broadcast %14 : vector<1x512xf32> to vector<8x512xf32>
    %cst_17 = arith.constant 0.000000e+00 : f32
    %16 = vector.broadcast %cst_17 : f32 to vector<8x128xf32>
    %c0_18 = arith.constant 0 : index
    %c0_19 = arith.constant 0 : index
    %17 = vector.load %arg8[%c0_18, %c0_19] : memref<1x512xf32, #tpu.memory_space<vmem>>, vector<1x512xf32>
    %18 = vector.shape_cast %17 : vector<1x512xf32> to vector<1x512xf32>
    %19 = vector.broadcast %18 : vector<1x512xf32> to vector<8x512xf32>
    %c0_i32_20 = arith.constant 0 : i32
    %c10_i32 = arith.constant 10 : i32
    %20 = arith.addi %c0_i32_20, %c10_i32 : i32
    %c1_i32 = arith.constant 1 : i32
    %21:5 = scf.for %arg15 = %c0_i32_20 to %20 step %c1_i32 iter_args(%arg16 = %16, %arg17 = %16, %arg18 = %16, %arg19 = %16, %arg20 = %19) -> (vector<8x128xf32>, vector<8x128xf32>, vector<8x128xf32>, vector<8x128xf32>, vector<8x512xf32>)  : i32 {
      %c1_i32_29 = arith.constant 1 : i32
      %28 = arith.andi %arg15, %c1_i32_29 : i32
      %c0_i32_30 = arith.constant 0 : i32
      %c0_i32_31 = arith.constant 0 : i32
      %c0_i32_32 = arith.constant 0 : i32
      %c0_i32_33 = arith.constant 0 : i32
      %29 = tpu.memref_slice %arg7[%c0_i32_30, %c0_i32_31, %c0_i32_32, %c0_i32_33] : memref<10x6x128x512xbf16, #tpu.memory_space<any>> -> memref<1x6x128x512xbf16, #tpu.memory_space<any>>
      %30 = tpu.memref_squeeze %29 : memref<1x6x128x512xbf16, #tpu.memory_space<any>> -> memref<6x128x512xbf16, #tpu.memory_space<any>>
      %c0_i32_34 = arith.constant 0 : i32
      %c0_i32_35 = arith.constant 0 : i32
      %c0_i32_36 = arith.constant 0 : i32
      %31 = tpu.memref_slice %arg13[%28, %c0_i32_34, %c0_i32_35, %c0_i32_36] : memref<2x6x128x512xbf16, #tpu.memory_space<vmem>> -> memref<1x6x128x512xbf16, #tpu.memory_space<vmem>>
      %32 = tpu.memref_squeeze %31 : memref<1x6x128x512xbf16, #tpu.memory_space<vmem>> -> memref<6x128x512xbf16, #tpu.memory_space<vmem>>
      %33 = tpu.memref_slice %arg14[%28] : memref<2x!tpu.dma_semaphore, #tpu.memory_space<semaphore_mem>> -> memref<1x!tpu.dma_semaphore, #tpu.memory_space<semaphore_mem>>
      %34 = tpu.memref_squeeze %33 : memref<1x!tpu.dma_semaphore, #tpu.memory_space<semaphore_mem>> -> memref<!tpu.dma_semaphore, #tpu.memory_space<semaphore_mem>>
      tpu.wait_dma2 semaphore(%34 : memref<!tpu.dma_semaphore, #tpu.memory_space<semaphore_mem>>) src(%30 : memref<6x128x512xbf16, #tpu.memory_space<any>>) dst(%32 : memref<6x128x512xbf16, #tpu.memory_space<vmem>>)
      %c1_i32_37 = arith.constant 1 : i32
      %35 = arith.addi %arg15, %c1_i32_37 : i32
      %c10_i32_38 = arith.constant 10 : i32
      %36 = arith.cmpi slt, %35, %c10_i32_38 : i32
      %37 = arith.extui %36 : i1 to i32
      %c0_i32_39 = arith.constant 0 : i32
      %38 = arith.cmpi ne, %37, %c0_i32_39 : i32
      scf.if %38 {
        %c1_i32_167 = arith.constant 1 : i32
        %465 = arith.addi %arg15, %c1_i32_167 : i32
        %c1_i32_168 = arith.constant 1 : i32
        %466 = arith.subi %c1_i32_168, %28 : i32
        %c0_i32_169 = arith.constant 0 : i32
        %c0_i32_170 = arith.constant 0 : i32
        %c0_i32_171 = arith.constant 0 : i32
        %467 = tpu.memref_slice %arg7[%465, %c0_i32_169, %c0_i32_170, %c0_i32_171] : memref<10x6x128x512xbf16, #tpu.memory_space<any>> -> memref<1x6x128x512xbf16, #tpu.memory_space<any>>
        %468 = tpu.memref_squeeze %467 : memref<1x6x128x512xbf16, #tpu.memory_space<any>> -> memref<6x128x512xbf16, #tpu.memory_space<any>>
        %c0_i32_172 = arith.constant 0 : i32
        %c0_i32_173 = arith.constant 0 : i32
        %c0_i32_174 = arith.constant 0 : i32
        %469 = tpu.memref_slice %arg13[%466, %c0_i32_172, %c0_i32_173, %c0_i32_174] : memref<2x6x128x512xbf16, #tpu.memory_space<vmem>> -> memref<1x6x128x512xbf16, #tpu.memory_space<vmem>>
        %470 = tpu.memref_squeeze %469 : memref<1x6x128x512xbf16, #tpu.memory_space<vmem>> -> memref<6x128x512xbf16, #tpu.memory_space<vmem>>
        %471 = tpu.memref_slice %arg14[%466] : memref<2x!tpu.dma_semaphore, #tpu.memory_space<semaphore_mem>> -> memref<1x!tpu.dma_semaphore, #tpu.memory_space<semaphore_mem>>
        %472 = tpu.memref_squeeze %471 : memref<1x!tpu.dma_semaphore, #tpu.memory_space<semaphore_mem>> -> memref<!tpu.dma_semaphore, #tpu.memory_space<semaphore_mem>>
        tpu.enqueue_dma source(%468 : memref<6x128x512xbf16, #tpu.memory_space<any>>) target(%470 : memref<6x128x512xbf16, #tpu.memory_space<vmem>>) target_semaphore(%472 : memref<!tpu.dma_semaphore, #tpu.memory_space<semaphore_mem>>)
      } else {
      }
      %c6_i32 = arith.constant 6 : i32
      %39 = arith.muli %arg15, %c6_i32 : i32
      %c0_i32_40 = arith.constant 0 : i32
      %40 = arith.addi %39, %c0_i32_40 : i32
      %41 = arith.index_cast %28 : i32 to index
      %c0_41 = arith.constant 0 : index
      %c0_42 = arith.constant 0 : index
      %c0_43 = arith.constant 0 : index
      %42 = vector.load %arg13[%41, %c0_41, %c0_42, %c0_43] : memref<2x6x128x512xbf16, #tpu.memory_space<vmem>>, vector<1x1x128x512xbf16>
      %43 = vector.shape_cast %42 : vector<1x1x128x512xbf16> to vector<128x512xbf16>
      %c0_44 = arith.constant 0 : index
      %c0_45 = arith.constant 0 : index
      %44 = vector.load %arg5[%c0_44, %c0_45] : memref<128x512xf32, #tpu.memory_space<vmem>>, vector<128x512xf32>
      %cst_46 = arith.constant dense<0.000000e+00> : vector<8x512xf32>
      %45 = tpu.matmul %arg18, %44, %cst_46 {dimension_numbers = #tpu.dot_dimension_numbers<[1], [0], [0], [1], [0, 0, 1, 1], [], []>} : vector<8x128xf32>, vector<128x512xf32>, vector<8x512xf32> -> vector<8x512xf32>
      %c8_i32 = arith.constant 8 : i32
      %46 = arith.muli %40, %c8_i32 : i32
      %47 = tpu.assume_multiple %46, 8 : i32
      %48 = arith.index_cast %47 : i32 to index
      %c0_47 = arith.constant 0 : index
      %49 = vector.load %arg12[%48, %c0_47] : memref<480x512xf32, #tpu.memory_space<vmem>>, vector<8x512xf32>
      %c0_48 = arith.constant 0 : index
      %c0_49 = arith.constant 0 : index
      %50 = vector.load %arg2[%c0_48, %c0_49] : memref<128x512xf32, #tpu.memory_space<vmem>>, vector<128x512xf32>
      %cst_50 = arith.constant dense<0.000000e+00> : vector<8x512xf32>
      %51 = tpu.matmul %arg16, %50, %cst_50 {dimension_numbers = #tpu.dot_dimension_numbers<[1], [0], [0], [1], [0, 0, 1, 1], [], []>} : vector<8x128xf32>, vector<128x512xf32>, vector<8x512xf32> -> vector<8x512xf32>
      %52 = arith.addf %49, %51 : vector<8x512xf32>
      %53 = vector.extract_strided_slice %52 {offsets = [0, 0], sizes = [8, 128], strides = [1, 1]} : vector<8x512xf32> to vector<8x128xf32>
      %54 = arith.negf %53 : vector<8x128xf32>
      %55 = math.exp %54 : vector<8x128xf32>
      %cst_51 = arith.constant 1.000000e+00 : f32
      %56 = vector.broadcast %cst_51 : f32 to vector<8x128xf32>
      %57 = arith.addf %56, %55 : vector<8x128xf32>
      %58 = arith.divf %56, %57 : vector<8x128xf32>
      %59 = vector.extract_strided_slice %52 {offsets = [0, 128], sizes = [8, 128], strides = [1, 1]} : vector<8x512xf32> to vector<8x128xf32>
      %60 = arith.negf %59 : vector<8x128xf32>
      %61 = math.exp %60 : vector<8x128xf32>
      %cst_52 = arith.constant 1.000000e+00 : f32
      %62 = vector.broadcast %cst_52 : f32 to vector<8x128xf32>
      %63 = arith.addf %62, %61 : vector<8x128xf32>
      %64 = arith.divf %62, %63 : vector<8x128xf32>
      %65 = vector.extract_strided_slice %52 {offsets = [0, 256], sizes = [8, 128], strides = [1, 1]} : vector<8x512xf32> to vector<8x128xf32>
      %66 = math.tanh %65 : vector<8x128xf32>
      %67 = vector.extract_strided_slice %52 {offsets = [0, 384], sizes = [8, 128], strides = [1, 1]} : vector<8x512xf32> to vector<8x128xf32>
      %68 = arith.negf %67 : vector<8x128xf32>
      %69 = math.exp %68 : vector<8x128xf32>
      %cst_53 = arith.constant 1.000000e+00 : f32
      %70 = vector.broadcast %cst_53 : f32 to vector<8x128xf32>
      %71 = arith.addf %70, %69 : vector<8x128xf32>
      %72 = arith.divf %70, %71 : vector<8x128xf32>
      %73 = arith.mulf %64, %arg17 : vector<8x128xf32>
      %74 = arith.mulf %58, %66 : vector<8x128xf32>
      %75 = arith.addf %73, %74 : vector<8x128xf32>
      %76 = math.tanh %75 : vector<8x128xf32>
      %77 = arith.mulf %72, %76 : vector<8x128xf32>
      %c0_54 = arith.constant 0 : index
      %c0_55 = arith.constant 0 : index
      %78 = vector.load %arg4[%c0_54, %c0_55] : memref<128x512xf32, #tpu.memory_space<vmem>>, vector<128x512xf32>
      %cst_56 = arith.constant dense<0.000000e+00> : vector<8x512xf32>
      %79 = tpu.matmul %77, %78, %cst_56 {dimension_numbers = #tpu.dot_dimension_numbers<[1], [0], [0], [1], [0, 0, 1, 1], [], []>} : vector<8x128xf32>, vector<128x512xf32>, vector<8x512xf32> -> vector<8x512xf32>
      %80 = arith.addf %45, %79 : vector<8x512xf32>
      %81 = arith.addf %80, %15 : vector<8x512xf32>
      %82 = vector.extract_strided_slice %81 {offsets = [0, 0], sizes = [8, 128], strides = [1, 1]} : vector<8x512xf32> to vector<8x128xf32>
      %83 = arith.negf %82 : vector<8x128xf32>
      %84 = math.exp %83 : vector<8x128xf32>
      %cst_57 = arith.constant 1.000000e+00 : f32
      %85 = vector.broadcast %cst_57 : f32 to vector<8x128xf32>
      %86 = arith.addf %85, %84 : vector<8x128xf32>
      %87 = arith.divf %85, %86 : vector<8x128xf32>
      %88 = vector.extract_strided_slice %81 {offsets = [0, 128], sizes = [8, 128], strides = [1, 1]} : vector<8x512xf32> to vector<8x128xf32>
      %89 = arith.negf %88 : vector<8x128xf32>
      %90 = math.exp %89 : vector<8x128xf32>
      %cst_58 = arith.constant 1.000000e+00 : f32
      %91 = vector.broadcast %cst_58 : f32 to vector<8x128xf32>
      %92 = arith.addf %91, %90 : vector<8x128xf32>
      %93 = arith.divf %91, %92 : vector<8x128xf32>
      %94 = vector.extract_strided_slice %81 {offsets = [0, 256], sizes = [8, 128], strides = [1, 1]} : vector<8x512xf32> to vector<8x128xf32>
      %95 = math.tanh %94 : vector<8x128xf32>
      %96 = vector.extract_strided_slice %81 {offsets = [0, 384], sizes = [8, 128], strides = [1, 1]} : vector<8x512xf32> to vector<8x128xf32>
      %97 = arith.negf %96 : vector<8x128xf32>
      %98 = math.exp %97 : vector<8x128xf32>
      %cst_59 = arith.constant 1.000000e+00 : f32
      %99 = vector.broadcast %cst_59 : f32 to vector<8x128xf32>
      %100 = arith.addf %99, %98 : vector<8x128xf32>
      %101 = arith.divf %99, %100 : vector<8x128xf32>
      %102 = arith.mulf %93, %arg19 : vector<8x128xf32>
      %103 = arith.mulf %87, %95 : vector<8x128xf32>
      %104 = arith.addf %102, %103 : vector<8x128xf32>
      %105 = math.tanh %104 : vector<8x128xf32>
      %106 = arith.mulf %101, %105 : vector<8x128xf32>
      %107 = arith.truncf %106 : vector<8x128xf32> to vector<8x128xbf16>
      %cst_60 = arith.constant dense<0.000000e+00> : vector<8x512xf32>
      %108 = tpu.matmul %107, %43, %cst_60 {dimension_numbers = #tpu.dot_dimension_numbers<[1], [0], [0], [1], [0, 0, 1, 1], [], []>} : vector<8x128xbf16>, vector<128x512xbf16>, vector<8x512xf32> -> vector<8x512xf32>
      %109 = arith.addf %arg20, %108 : vector<8x512xf32>
      %c6_i32_61 = arith.constant 6 : i32
      %110 = arith.muli %arg15, %c6_i32_61 : i32
      %c1_i32_62 = arith.constant 1 : i32
      %111 = arith.addi %110, %c1_i32_62 : i32
      %112 = arith.index_cast %28 : i32 to index
      %c1 = arith.constant 1 : index
      %c0_63 = arith.constant 0 : index
      %c0_64 = arith.constant 0 : index
      %113 = vector.load %arg13[%112, %c1, %c0_63, %c0_64] : memref<2x6x128x512xbf16, #tpu.memory_space<vmem>>, vector<1x1x128x512xbf16>
      %114 = vector.shape_cast %113 : vector<1x1x128x512xbf16> to vector<128x512xbf16>
      %c0_65 = arith.constant 0 : index
      %c0_66 = arith.constant 0 : index
      %115 = vector.load %arg5[%c0_65, %c0_66] : memref<128x512xf32, #tpu.memory_space<vmem>>, vector<128x512xf32>
      %cst_67 = arith.constant dense<0.000000e+00> : vector<8x512xf32>
      %116 = tpu.matmul %106, %115, %cst_67 {dimension_numbers = #tpu.dot_dimension_numbers<[1], [0], [0], [1], [0, 0, 1, 1], [], []>} : vector<8x128xf32>, vector<128x512xf32>, vector<8x512xf32> -> vector<8x512xf32>
      %c8_i32_68 = arith.constant 8 : i32
      %117 = arith.muli %111, %c8_i32_68 : i32
      %118 = tpu.assume_multiple %117, 8 : i32
      %119 = arith.index_cast %118 : i32 to index
      %c0_69 = arith.constant 0 : index
      %120 = vector.load %arg12[%119, %c0_69] : memref<480x512xf32, #tpu.memory_space<vmem>>, vector<8x512xf32>
      %c0_70 = arith.constant 0 : index
      %c0_71 = arith.constant 0 : index
      %121 = vector.load %arg2[%c0_70, %c0_71] : memref<128x512xf32, #tpu.memory_space<vmem>>, vector<128x512xf32>
      %cst_72 = arith.constant dense<0.000000e+00> : vector<8x512xf32>
      %122 = tpu.matmul %77, %121, %cst_72 {dimension_numbers = #tpu.dot_dimension_numbers<[1], [0], [0], [1], [0, 0, 1, 1], [], []>} : vector<8x128xf32>, vector<128x512xf32>, vector<8x512xf32> -> vector<8x512xf32>
      %123 = arith.addf %120, %122 : vector<8x512xf32>
      %124 = vector.extract_strided_slice %123 {offsets = [0, 0], sizes = [8, 128], strides = [1, 1]} : vector<8x512xf32> to vector<8x128xf32>
      %125 = arith.negf %124 : vector<8x128xf32>
      %126 = math.exp %125 : vector<8x128xf32>
      %cst_73 = arith.constant 1.000000e+00 : f32
      %127 = vector.broadcast %cst_73 : f32 to vector<8x128xf32>
      %128 = arith.addf %127, %126 : vector<8x128xf32>
      %129 = arith.divf %127, %128 : vector<8x128xf32>
      %130 = vector.extract_strided_slice %123 {offsets = [0, 128], sizes = [8, 128], strides = [1, 1]} : vector<8x512xf32> to vector<8x128xf32>
      %131 = arith.negf %130 : vector<8x128xf32>
      %132 = math.exp %131 : vector<8x128xf32>
      %cst_74 = arith.constant 1.000000e+00 : f32
      %133 = vector.broadcast %cst_74 : f32 to vector<8x128xf32>
      %134 = arith.addf %133, %132 : vector<8x128xf32>
      %135 = arith.divf %133, %134 : vector<8x128xf32>
      %136 = vector.extract_strided_slice %123 {offsets = [0, 256], sizes = [8, 128], strides = [1, 1]} : vector<8x512xf32> to vector<8x128xf32>
      %137 = math.tanh %136 : vector<8x128xf32>
      %138 = vector.extract_strided_slice %123 {offsets = [0, 384], sizes = [8, 128], strides = [1, 1]} : vector<8x512xf32> to vector<8x128xf32>
      %139 = arith.negf %138 : vector<8x128xf32>
      %140 = math.exp %139 : vector<8x128xf32>
      %cst_75 = arith.constant 1.000000e+00 : f32
      %141 = vector.broadcast %cst_75 : f32 to vector<8x128xf32>
      %142 = arith.addf %141, %140 : vector<8x128xf32>
      %143 = arith.divf %141, %142 : vector<8x128xf32>
      %144 = arith.mulf %135, %75 : vector<8x128xf32>
      %145 = arith.mulf %129, %137 : vector<8x128xf32>
      %146 = arith.addf %144, %145 : vector<8x128xf32>
      %147 = math.tanh %146 : vector<8x128xf32>
      %148 = arith.mulf %143, %147 : vector<8x128xf32>
      %c0_76 = arith.constant 0 : index
      %c0_77 = arith.constant 0 : index
      %149 = vector.load %arg4[%c0_76, %c0_77] : memref<128x512xf32, #tpu.memory_space<vmem>>, vector<128x512xf32>
      %cst_78 = arith.constant dense<0.000000e+00> : vector<8x512xf32>
      %150 = tpu.matmul %148, %149, %cst_78 {dimension_numbers = #tpu.dot_dimension_numbers<[1], [0], [0], [1], [0, 0, 1, 1], [], []>} : vector<8x128xf32>, vector<128x512xf32>, vector<8x512xf32> -> vector<8x512xf32>
      %151 = arith.addf %116, %150 : vector<8x512xf32>
      %152 = arith.addf %151, %15 : vector<8x512xf32>
      %153 = vector.extract_strided_slice %152 {offsets = [0, 0], sizes = [8, 128], strides = [1, 1]} : vector<8x512xf32> to vector<8x128xf32>
      %154 = arith.negf %153 : vector<8x128xf32>
      %155 = math.exp %154 : vector<8x128xf32>
      %cst_79 = arith.constant 1.000000e+00 : f32
      %156 = vector.broadcast %cst_79 : f32 to vector<8x128xf32>
      %157 = arith.addf %156, %155 : vector<8x128xf32>
      %158 = arith.divf %156, %157 : vector<8x128xf32>
      %159 = vector.extract_strided_slice %152 {offsets = [0, 128], sizes = [8, 128], strides = [1, 1]} : vector<8x512xf32> to vector<8x128xf32>
      %160 = arith.negf %159 : vector<8x128xf32>
      %161 = math.exp %160 : vector<8x128xf32>
      %cst_80 = arith.constant 1.000000e+00 : f32
      %162 = vector.broadcast %cst_80 : f32 to vector<8x128xf32>
      %163 = arith.addf %162, %161 : vector<8x128xf32>
      %164 = arith.divf %162, %163 : vector<8x128xf32>
      %165 = vector.extract_strided_slice %152 {offsets = [0, 256], sizes = [8, 128], strides = [1, 1]} : vector<8x512xf32> to vector<8x128xf32>
      %166 = math.tanh %165 : vector<8x128xf32>
      %167 = vector.extract_strided_slice %152 {offsets = [0, 384], sizes = [8, 128], strides = [1, 1]} : vector<8x512xf32> to vector<8x128xf32>
      %168 = arith.negf %167 : vector<8x128xf32>
      %169 = math.exp %168 : vector<8x128xf32>
      %cst_81 = arith.constant 1.000000e+00 : f32
      %170 = vector.broadcast %cst_81 : f32 to vector<8x128xf32>
      %171 = arith.addf %170, %169 : vector<8x128xf32>
      %172 = arith.divf %170, %171 : vector<8x128xf32>
      %173 = arith.mulf %164, %104 : vector<8x128xf32>
      %174 = arith.mulf %158, %166 : vector<8x128xf32>
      %175 = arith.addf %173, %174 : vector<8x128xf32>
      %176 = math.tanh %175 : vector<8x128xf32>
      %177 = arith.mulf %172, %176 : vector<8x128xf32>
      %178 = arith.truncf %177 : vector<8x128xf32> to vector<8x128xbf16>
      %cst_82 = arith.constant dense<0.000000e+00> : vector<8x512xf32>
      %179 = tpu.matmul %178, %114, %cst_82 {dimension_numbers = #tpu.dot_dimension_numbers<[1], [0], [0], [1], [0, 0, 1, 1], [], []>} : vector<8x128xbf16>, vector<128x512xbf16>, vector<8x512xf32> -> vector<8x512xf32>
      %180 = arith.addf %109, %179 : vector<8x512xf32>
      %c6_i32_83 = arith.constant 6 : i32
      %181 = arith.muli %arg15, %c6_i32_83 : i32
      %c2_i32 = arith.constant 2 : i32
      %182 = arith.addi %181, %c2_i32 : i32
      %183 = arith.index_cast %28 : i32 to index
      %c2 = arith.constant 2 : index
      %c0_84 = arith.constant 0 : index
      %c0_85 = arith.constant 0 : index
      %184 = vector.load %arg13[%183, %c2, %c0_84, %c0_85] : memref<2x6x128x512xbf16, #tpu.memory_space<vmem>>, vector<1x1x128x512xbf16>
      %185 = vector.shape_cast %184 : vector<1x1x128x512xbf16> to vector<128x512xbf16>
      %c0_86 = arith.constant 0 : index
      %c0_87 = arith.constant 0 : index
      %186 = vector.load %arg5[%c0_86, %c0_87] : memref<128x512xf32, #tpu.memory_space<vmem>>, vector<128x512xf32>
      %cst_88 = arith.constant dense<0.000000e+00> : vector<8x512xf32>
      %187 = tpu.matmul %177, %186, %cst_88 {dimension_numbers = #tpu.dot_dimension_numbers<[1], [0], [0], [1], [0, 0, 1, 1], [], []>} : vector<8x128xf32>, vector<128x512xf32>, vector<8x512xf32> -> vector<8x512xf32>
      %c8_i32_89 = arith.constant 8 : i32
      %188 = arith.muli %182, %c8_i32_89 : i32
      %189 = tpu.assume_multiple %188, 8 : i32
      %190 = arith.index_cast %189 : i32 to index
      %c0_90 = arith.constant 0 : index
      %191 = vector.load %arg12[%190, %c0_90] : memref<480x512xf32, #tpu.memory_space<vmem>>, vector<8x512xf32>
      %c0_91 = arith.constant 0 : index
      %c0_92 = arith.constant 0 : index
      %192 = vector.load %arg2[%c0_91, %c0_92] : memref<128x512xf32, #tpu.memory_space<vmem>>, vector<128x512xf32>
      %cst_93 = arith.constant dense<0.000000e+00> : vector<8x512xf32>
      %193 = tpu.matmul %148, %192, %cst_93 {dimension_numbers = #tpu.dot_dimension_numbers<[1], [0], [0], [1], [0, 0, 1, 1], [], []>} : vector<8x128xf32>, vector<128x512xf32>, vector<8x512xf32> -> vector<8x512xf32>
      %194 = arith.addf %191, %193 : vector<8x512xf32>
      %195 = vector.extract_strided_slice %194 {offsets = [0, 0], sizes = [8, 128], strides = [1, 1]} : vector<8x512xf32> to vector<8x128xf32>
      %196 = arith.negf %195 : vector<8x128xf32>
      %197 = math.exp %196 : vector<8x128xf32>
      %cst_94 = arith.constant 1.000000e+00 : f32
      %198 = vector.broadcast %cst_94 : f32 to vector<8x128xf32>
      %199 = arith.addf %198, %197 : vector<8x128xf32>
      %200 = arith.divf %198, %199 : vector<8x128xf32>
      %201 = vector.extract_strided_slice %194 {offsets = [0, 128], sizes = [8, 128], strides = [1, 1]} : vector<8x512xf32> to vector<8x128xf32>
      %202 = arith.negf %201 : vector<8x128xf32>
      %203 = math.exp %202 : vector<8x128xf32>
      %cst_95 = arith.constant 1.000000e+00 : f32
      %204 = vector.broadcast %cst_95 : f32 to vector<8x128xf32>
      %205 = arith.addf %204, %203 : vector<8x128xf32>
      %206 = arith.divf %204, %205 : vector<8x128xf32>
      %207 = vector.extract_strided_slice %194 {offsets = [0, 256], sizes = [8, 128], strides = [1, 1]} : vector<8x512xf32> to vector<8x128xf32>
      %208 = math.tanh %207 : vector<8x128xf32>
      %209 = vector.extract_strided_slice %194 {offsets = [0, 384], sizes = [8, 128], strides = [1, 1]} : vector<8x512xf32> to vector<8x128xf32>
      %210 = arith.negf %209 : vector<8x128xf32>
      %211 = math.exp %210 : vector<8x128xf32>
      %cst_96 = arith.constant 1.000000e+00 : f32
      %212 = vector.broadcast %cst_96 : f32 to vector<8x128xf32>
      %213 = arith.addf %212, %211 : vector<8x128xf32>
      %214 = arith.divf %212, %213 : vector<8x128xf32>
      %215 = arith.mulf %206, %146 : vector<8x128xf32>
      %216 = arith.mulf %200, %208 : vector<8x128xf32>
      %217 = arith.addf %215, %216 : vector<8x128xf32>
      %218 = math.tanh %217 : vector<8x128xf32>
      %219 = arith.mulf %214, %218 : vector<8x128xf32>
      %c0_97 = arith.constant 0 : index
      %c0_98 = arith.constant 0 : index
      %220 = vector.load %arg4[%c0_97, %c0_98] : memref<128x512xf32, #tpu.memory_space<vmem>>, vector<128x512xf32>
      %cst_99 = arith.constant dense<0.000000e+00> : vector<8x512xf32>
      %221 = tpu.matmul %219, %220, %cst_99 {dimension_numbers = #tpu.dot_dimension_numbers<[1], [0], [0], [1], [0, 0, 1, 1], [], []>} : vector<8x128xf32>, vector<128x512xf32>, vector<8x512xf32> -> vector<8x512xf32>
      %222 = arith.addf %187, %221 : vector<8x512xf32>
      %223 = arith.addf %222, %15 : vector<8x512xf32>
      %224 = vector.extract_strided_slice %223 {offsets = [0, 0], sizes = [8, 128], strides = [1, 1]} : vector<8x512xf32> to vector<8x128xf32>
      %225 = arith.negf %224 : vector<8x128xf32>
      %226 = math.exp %225 : vector<8x128xf32>
      %cst_100 = arith.constant 1.000000e+00 : f32
      %227 = vector.broadcast %cst_100 : f32 to vector<8x128xf32>
      %228 = arith.addf %227, %226 : vector<8x128xf32>
      %229 = arith.divf %227, %228 : vector<8x128xf32>
      %230 = vector.extract_strided_slice %223 {offsets = [0, 128], sizes = [8, 128], strides = [1, 1]} : vector<8x512xf32> to vector<8x128xf32>
      %231 = arith.negf %230 : vector<8x128xf32>
      %232 = math.exp %231 : vector<8x128xf32>
      %cst_101 = arith.constant 1.000000e+00 : f32
      %233 = vector.broadcast %cst_101 : f32 to vector<8x128xf32>
      %234 = arith.addf %233, %232 : vector<8x128xf32>
      %235 = arith.divf %233, %234 : vector<8x128xf32>
      %236 = vector.extract_strided_slice %223 {offsets = [0, 256], sizes = [8, 128], strides = [1, 1]} : vector<8x512xf32> to vector<8x128xf32>
      %237 = math.tanh %236 : vector<8x128xf32>
      %238 = vector.extract_strided_slice %223 {offsets = [0, 384], sizes = [8, 128], strides = [1, 1]} : vector<8x512xf32> to vector<8x128xf32>
      %239 = arith.negf %238 : vector<8x128xf32>
      %240 = math.exp %239 : vector<8x128xf32>
      %cst_102 = arith.constant 1.000000e+00 : f32
      %241 = vector.broadcast %cst_102 : f32 to vector<8x128xf32>
      %242 = arith.addf %241, %240 : vector<8x128xf32>
      %243 = arith.divf %241, %242 : vector<8x128xf32>
      %244 = arith.mulf %235, %175 : vector<8x128xf32>
      %245 = arith.mulf %229, %237 : vector<8x128xf32>
      %246 = arith.addf %244, %245 : vector<8x128xf32>
      %247 = math.tanh %246 : vector<8x128xf32>
      %248 = arith.mulf %243, %247 : vector<8x128xf32>
      %249 = arith.truncf %248 : vector<8x128xf32> to vector<8x128xbf16>
      %cst_103 = arith.constant dense<0.000000e+00> : vector<8x512xf32>
      %250 = tpu.matmul %249, %185, %cst_103 {dimension_numbers = #tpu.dot_dimension_numbers<[1], [0], [0], [1], [0, 0, 1, 1], [], []>} : vector<8x128xbf16>, vector<128x512xbf16>, vector<8x512xf32> -> vector<8x512xf32>
      %251 = arith.addf %180, %250 : vector<8x512xf32>
      %c6_i32_104 = arith.constant 6 : i32
      %252 = arith.muli %arg15, %c6_i32_104 : i32
      %c3_i32 = arith.constant 3 : i32
      %253 = arith.addi %252, %c3_i32 : i32
      %254 = arith.index_cast %28 : i32 to index
      %c3 = arith.constant 3 : index
      %c0_105 = arith.constant 0 : index
      %c0_106 = arith.constant 0 : index
      %255 = vector.load %arg13[%254, %c3, %c0_105, %c0_106] : memref<2x6x128x512xbf16, #tpu.memory_space<vmem>>, vector<1x1x128x512xbf16>
      %256 = vector.shape_cast %255 : vector<1x1x128x512xbf16> to vector<128x512xbf16>
      %c0_107 = arith.constant 0 : index
      %c0_108 = arith.constant 0 : index
      %257 = vector.load %arg5[%c0_107, %c0_108] : memref<128x512xf32, #tpu.memory_space<vmem>>, vector<128x512xf32>
      %cst_109 = arith.constant dense<0.000000e+00> : vector<8x512xf32>
      %258 = tpu.matmul %248, %257, %cst_109 {dimension_numbers = #tpu.dot_dimension_numbers<[1], [0], [0], [1], [0, 0, 1, 1], [], []>} : vector<8x128xf32>, vector<128x512xf32>, vector<8x512xf32> -> vector<8x512xf32>
      %c8_i32_110 = arith.constant 8 : i32
      %259 = arith.muli %253, %c8_i32_110 : i32
      %260 = tpu.assume_multiple %259, 8 : i32
      %261 = arith.index_cast %260 : i32 to index
      %c0_111 = arith.constant 0 : index
      %262 = vector.load %arg12[%261, %c0_111] : memref<480x512xf32, #tpu.memory_space<vmem>>, vector<8x512xf32>
      %c0_112 = arith.constant 0 : index
      %c0_113 = arith.constant 0 : index
      %263 = vector.load %arg2[%c0_112, %c0_113] : memref<128x512xf32, #tpu.memory_space<vmem>>, vector<128x512xf32>
      %cst_114 = arith.constant dense<0.000000e+00> : vector<8x512xf32>
      %264 = tpu.matmul %219, %263, %cst_114 {dimension_numbers = #tpu.dot_dimension_numbers<[1], [0], [0], [1], [0, 0, 1, 1], [], []>} : vector<8x128xf32>, vector<128x512xf32>, vector<8x512xf32> -> vector<8x512xf32>
      %265 = arith.addf %262, %264 : vector<8x512xf32>
      %266 = vector.extract_strided_slice %265 {offsets = [0, 0], sizes = [8, 128], strides = [1, 1]} : vector<8x512xf32> to vector<8x128xf32>
      %267 = arith.negf %266 : vector<8x128xf32>
      %268 = math.exp %267 : vector<8x128xf32>
      %cst_115 = arith.constant 1.000000e+00 : f32
      %269 = vector.broadcast %cst_115 : f32 to vector<8x128xf32>
      %270 = arith.addf %269, %268 : vector<8x128xf32>
      %271 = arith.divf %269, %270 : vector<8x128xf32>
      %272 = vector.extract_strided_slice %265 {offsets = [0, 128], sizes = [8, 128], strides = [1, 1]} : vector<8x512xf32> to vector<8x128xf32>
      %273 = arith.negf %272 : vector<8x128xf32>
      %274 = math.exp %273 : vector<8x128xf32>
      %cst_116 = arith.constant 1.000000e+00 : f32
      %275 = vector.broadcast %cst_116 : f32 to vector<8x128xf32>
      %276 = arith.addf %275, %274 : vector<8x128xf32>
      %277 = arith.divf %275, %276 : vector<8x128xf32>
      %278 = vector.extract_strided_slice %265 {offsets = [0, 256], sizes = [8, 128], strides = [1, 1]} : vector<8x512xf32> to vector<8x128xf32>
      %279 = math.tanh %278 : vector<8x128xf32>
      %280 = vector.extract_strided_slice %265 {offsets = [0, 384], sizes = [8, 128], strides = [1, 1]} : vector<8x512xf32> to vector<8x128xf32>
      %281 = arith.negf %280 : vector<8x128xf32>
      %282 = math.exp %281 : vector<8x128xf32>
      %cst_117 = arith.constant 1.000000e+00 : f32
      %283 = vector.broadcast %cst_117 : f32 to vector<8x128xf32>
      %284 = arith.addf %283, %282 : vector<8x128xf32>
      %285 = arith.divf %283, %284 : vector<8x128xf32>
      %286 = arith.mulf %277, %217 : vector<8x128xf32>
      %287 = arith.mulf %271, %279 : vector<8x128xf32>
      %288 = arith.addf %286, %287 : vector<8x128xf32>
      %289 = math.tanh %288 : vector<8x128xf32>
      %290 = arith.mulf %285, %289 : vector<8x128xf32>
      %c0_118 = arith.constant 0 : index
      %c0_119 = arith.constant 0 : index
      %291 = vector.load %arg4[%c0_118, %c0_119] : memref<128x512xf32, #tpu.memory_space<vmem>>, vector<128x512xf32>
      %cst_120 = arith.constant dense<0.000000e+00> : vector<8x512xf32>
      %292 = tpu.matmul %290, %291, %cst_120 {dimension_numbers = #tpu.dot_dimension_numbers<[1], [0], [0], [1], [0, 0, 1, 1], [], []>} : vector<8x128xf32>, vector<128x512xf32>, vector<8x512xf32> -> vector<8x512xf32>
      %293 = arith.addf %258, %292 : vector<8x512xf32>
      %294 = arith.addf %293, %15 : vector<8x512xf32>
      %295 = vector.extract_strided_slice %294 {offsets = [0, 0], sizes = [8, 128], strides = [1, 1]} : vector<8x512xf32> to vector<8x128xf32>
      %296 = arith.negf %295 : vector<8x128xf32>
      %297 = math.exp %296 : vector<8x128xf32>
      %cst_121 = arith.constant 1.000000e+00 : f32
      %298 = vector.broadcast %cst_121 : f32 to vector<8x128xf32>
      %299 = arith.addf %298, %297 : vector<8x128xf32>
      %300 = arith.divf %298, %299 : vector<8x128xf32>
      %301 = vector.extract_strided_slice %294 {offsets = [0, 128], sizes = [8, 128], strides = [1, 1]} : vector<8x512xf32> to vector<8x128xf32>
      %302 = arith.negf %301 : vector<8x128xf32>
      %303 = math.exp %302 : vector<8x128xf32>
      %cst_122 = arith.constant 1.000000e+00 : f32
      %304 = vector.broadcast %cst_122 : f32 to vector<8x128xf32>
      %305 = arith.addf %304, %303 : vector<8x128xf32>
      %306 = arith.divf %304, %305 : vector<8x128xf32>
      %307 = vector.extract_strided_slice %294 {offsets = [0, 256], sizes = [8, 128], strides = [1, 1]} : vector<8x512xf32> to vector<8x128xf32>
      %308 = math.tanh %307 : vector<8x128xf32>
      %309 = vector.extract_strided_slice %294 {offsets = [0, 384], sizes = [8, 128], strides = [1, 1]} : vector<8x512xf32> to vector<8x128xf32>
      %310 = arith.negf %309 : vector<8x128xf32>
      %311 = math.exp %310 : vector<8x128xf32>
      %cst_123 = arith.constant 1.000000e+00 : f32
      %312 = vector.broadcast %cst_123 : f32 to vector<8x128xf32>
      %313 = arith.addf %312, %311 : vector<8x128xf32>
      %314 = arith.divf %312, %313 : vector<8x128xf32>
      %315 = arith.mulf %306, %246 : vector<8x128xf32>
      %316 = arith.mulf %300, %308 : vector<8x128xf32>
      %317 = arith.addf %315, %316 : vector<8x128xf32>
      %318 = math.tanh %317 : vector<8x128xf32>
      %319 = arith.mulf %314, %318 : vector<8x128xf32>
      %320 = arith.truncf %319 : vector<8x128xf32> to vector<8x128xbf16>
      %cst_124 = arith.constant dense<0.000000e+00> : vector<8x512xf32>
      %321 = tpu.matmul %320, %256, %cst_124 {dimension_numbers = #tpu.dot_dimension_numbers<[1], [0], [0], [1], [0, 0, 1, 1], [], []>} : vector<8x128xbf16>, vector<128x512xbf16>, vector<8x512xf32> -> vector<8x512xf32>
      %322 = arith.addf %251, %321 : vector<8x512xf32>
      %c6_i32_125 = arith.constant 6 : i32
      %323 = arith.muli %arg15, %c6_i32_125 : i32
      %c4_i32 = arith.constant 4 : i32
      %324 = arith.addi %323, %c4_i32 : i32
      %325 = arith.index_cast %28 : i32 to index
      %c4 = arith.constant 4 : index
      %c0_126 = arith.constant 0 : index
      %c0_127 = arith.constant 0 : index
      %326 = vector.load %arg13[%325, %c4, %c0_126, %c0_127] : memref<2x6x128x512xbf16, #tpu.memory_space<vmem>>, vector<1x1x128x512xbf16>
      %327 = vector.shape_cast %326 : vector<1x1x128x512xbf16> to vector<128x512xbf16>
      %c0_128 = arith.constant 0 : index
      %c0_129 = arith.constant 0 : index
      %328 = vector.load %arg5[%c0_128, %c0_129] : memref<128x512xf32, #tpu.memory_space<vmem>>, vector<128x512xf32>
      %cst_130 = arith.constant dense<0.000000e+00> : vector<8x512xf32>
      %329 = tpu.matmul %319, %328, %cst_130 {dimension_numbers = #tpu.dot_dimension_numbers<[1], [0], [0], [1], [0, 0, 1, 1], [], []>} : vector<8x128xf32>, vector<128x512xf32>, vector<8x512xf32> -> vector<8x512xf32>
      %c8_i32_131 = arith.constant 8 : i32
      %330 = arith.muli %324, %c8_i32_131 : i32
      %331 = tpu.assume_multiple %330, 8 : i32
      %332 = arith.index_cast %331 : i32 to index
      %c0_132 = arith.constant 0 : index
      %333 = vector.load %arg12[%332, %c0_132] : memref<480x512xf32, #tpu.memory_space<vmem>>, vector<8x512xf32>
      %c0_133 = arith.constant 0 : index
      %c0_134 = arith.constant 0 : index
      %334 = vector.load %arg2[%c0_133, %c0_134] : memref<128x512xf32, #tpu.memory_space<vmem>>, vector<128x512xf32>
      %cst_135 = arith.constant dense<0.000000e+00> : vector<8x512xf32>
      %335 = tpu.matmul %290, %334, %cst_135 {dimension_numbers = #tpu.dot_dimension_numbers<[1], [0], [0], [1], [0, 0, 1, 1], [], []>} : vector<8x128xf32>, vector<128x512xf32>, vector<8x512xf32> -> vector<8x512xf32>
      %336 = arith.addf %333, %335 : vector<8x512xf32>
      %337 = vector.extract_strided_slice %336 {offsets = [0, 0], sizes = [8, 128], strides = [1, 1]} : vector<8x512xf32> to vector<8x128xf32>
      %338 = arith.negf %337 : vector<8x128xf32>
      %339 = math.exp %338 : vector<8x128xf32>
      %cst_136 = arith.constant 1.000000e+00 : f32
      %340 = vector.broadcast %cst_136 : f32 to vector<8x128xf32>
      %341 = arith.addf %340, %339 : vector<8x128xf32>
      %342 = arith.divf %340, %341 : vector<8x128xf32>
      %343 = vector.extract_strided_slice %336 {offsets = [0, 128], sizes = [8, 128], strides = [1, 1]} : vector<8x512xf32> to vector<8x128xf32>
      %344 = arith.negf %343 : vector<8x128xf32>
      %345 = math.exp %344 : vector<8x128xf32>
      %cst_137 = arith.constant 1.000000e+00 : f32
      %346 = vector.broadcast %cst_137 : f32 to vector<8x128xf32>
      %347 = arith.addf %346, %345 : vector<8x128xf32>
      %348 = arith.divf %346, %347 : vector<8x128xf32>
      %349 = vector.extract_strided_slice %336 {offsets = [0, 256], sizes = [8, 128], strides = [1, 1]} : vector<8x512xf32> to vector<8x128xf32>
      %350 = math.tanh %349 : vector<8x128xf32>
      %351 = vector.extract_strided_slice %336 {offsets = [0, 384], sizes = [8, 128], strides = [1, 1]} : vector<8x512xf32> to vector<8x128xf32>
      %352 = arith.negf %351 : vector<8x128xf32>
      %353 = math.exp %352 : vector<8x128xf32>
      %cst_138 = arith.constant 1.000000e+00 : f32
      %354 = vector.broadcast %cst_138 : f32 to vector<8x128xf32>
      %355 = arith.addf %354, %353 : vector<8x128xf32>
      %356 = arith.divf %354, %355 : vector<8x128xf32>
      %357 = arith.mulf %348, %288 : vector<8x128xf32>
      %358 = arith.mulf %342, %350 : vector<8x128xf32>
      %359 = arith.addf %357, %358 : vector<8x128xf32>
      %360 = math.tanh %359 : vector<8x128xf32>
      %361 = arith.mulf %356, %360 : vector<8x128xf32>
      %c0_139 = arith.constant 0 : index
      %c0_140 = arith.constant 0 : index
      %362 = vector.load %arg4[%c0_139, %c0_140] : memref<128x512xf32, #tpu.memory_space<vmem>>, vector<128x512xf32>
      %cst_141 = arith.constant dense<0.000000e+00> : vector<8x512xf32>
      %363 = tpu.matmul %361, %362, %cst_141 {dimension_numbers = #tpu.dot_dimension_numbers<[1], [0], [0], [1], [0, 0, 1, 1], [], []>} : vector<8x128xf32>, vector<128x512xf32>, vector<8x512xf32> -> vector<8x512xf32>
      %364 = arith.addf %329, %363 : vector<8x512xf32>
      %365 = arith.addf %364, %15 : vector<8x512xf32>
      %366 = vector.extract_strided_slice %365 {offsets = [0, 0], sizes = [8, 128], strides = [1, 1]} : vector<8x512xf32> to vector<8x128xf32>
      %367 = arith.negf %366 : vector<8x128xf32>
      %368 = math.exp %367 : vector<8x128xf32>
      %cst_142 = arith.constant 1.000000e+00 : f32
      %369 = vector.broadcast %cst_142 : f32 to vector<8x128xf32>
      %370 = arith.addf %369, %368 : vector<8x128xf32>
      %371 = arith.divf %369, %370 : vector<8x128xf32>
      %372 = vector.extract_strided_slice %365 {offsets = [0, 128], sizes = [8, 128], strides = [1, 1]} : vector<8x512xf32> to vector<8x128xf32>
      %373 = arith.negf %372 : vector<8x128xf32>
      %374 = math.exp %373 : vector<8x128xf32>
      %cst_143 = arith.constant 1.000000e+00 : f32
      %375 = vector.broadcast %cst_143 : f32 to vector<8x128xf32>
      %376 = arith.addf %375, %374 : vector<8x128xf32>
      %377 = arith.divf %375, %376 : vector<8x128xf32>
      %378 = vector.extract_strided_slice %365 {offsets = [0, 256], sizes = [8, 128], strides = [1, 1]} : vector<8x512xf32> to vector<8x128xf32>
      %379 = math.tanh %378 : vector<8x128xf32>
      %380 = vector.extract_strided_slice %365 {offsets = [0, 384], sizes = [8, 128], strides = [1, 1]} : vector<8x512xf32> to vector<8x128xf32>
      %381 = arith.negf %380 : vector<8x128xf32>
      %382 = math.exp %381 : vector<8x128xf32>
      %cst_144 = arith.constant 1.000000e+00 : f32
      %383 = vector.broadcast %cst_144 : f32 to vector<8x128xf32>
      %384 = arith.addf %383, %382 : vector<8x128xf32>
      %385 = arith.divf %383, %384 : vector<8x128xf32>
      %386 = arith.mulf %377, %317 : vector<8x128xf32>
      %387 = arith.mulf %371, %379 : vector<8x128xf32>
      %388 = arith.addf %386, %387 : vector<8x128xf32>
      %389 = math.tanh %388 : vector<8x128xf32>
      %390 = arith.mulf %385, %389 : vector<8x128xf32>
      %391 = arith.truncf %390 : vector<8x128xf32> to vector<8x128xbf16>
      %cst_145 = arith.constant dense<0.000000e+00> : vector<8x512xf32>
      %392 = tpu.matmul %391, %327, %cst_145 {dimension_numbers = #tpu.dot_dimension_numbers<[1], [0], [0], [1], [0, 0, 1, 1], [], []>} : vector<8x128xbf16>, vector<128x512xbf16>, vector<8x512xf32> -> vector<8x512xf32>
      %393 = arith.addf %322, %392 : vector<8x512xf32>
      %c6_i32_146 = arith.constant 6 : i32
      %394 = arith.muli %arg15, %c6_i32_146 : i32
      %c5_i32 = arith.constant 5 : i32
      %395 = arith.addi %394, %c5_i32 : i32
      %396 = arith.index_cast %28 : i32 to index
      %c5 = arith.constant 5 : index
      %c0_147 = arith.constant 0 : index
      %c0_148 = arith.constant 0 : index
      %397 = vector.load %arg13[%396, %c5, %c0_147, %c0_148] : memref<2x6x128x512xbf16, #tpu.memory_space<vmem>>, vector<1x1x128x512xbf16>
      %398 = vector.shape_cast %397 : vector<1x1x128x512xbf16> to vector<128x512xbf16>
      %c0_149 = arith.constant 0 : index
      %c0_150 = arith.constant 0 : index
      %399 = vector.load %arg5[%c0_149, %c0_150] : memref<128x512xf32, #tpu.memory_space<vmem>>, vector<128x512xf32>
      %cst_151 = arith.constant dense<0.000000e+00> : vector<8x512xf32>
      %400 = tpu.matmul %390, %399, %cst_151 {dimension_numbers = #tpu.dot_dimension_numbers<[1], [0], [0], [1], [0, 0, 1, 1], [], []>} : vector<8x128xf32>, vector<128x512xf32>, vector<8x512xf32> -> vector<8x512xf32>
      %c8_i32_152 = arith.constant 8 : i32
      %401 = arith.muli %395, %c8_i32_152 : i32
      %402 = tpu.assume_multiple %401, 8 : i32
      %403 = arith.index_cast %402 : i32 to index
      %c0_153 = arith.constant 0 : index
      %404 = vector.load %arg12[%403, %c0_153] : memref<480x512xf32, #tpu.memory_space<vmem>>, vector<8x512xf32>
      %c0_154 = arith.constant 0 : index
      %c0_155 = arith.constant 0 : index
      %405 = vector.load %arg2[%c0_154, %c0_155] : memref<128x512xf32, #tpu.memory_space<vmem>>, vector<128x512xf32>
      %cst_156 = arith.constant dense<0.000000e+00> : vector<8x512xf32>
      %406 = tpu.matmul %361, %405, %cst_156 {dimension_numbers = #tpu.dot_dimension_numbers<[1], [0], [0], [1], [0, 0, 1, 1], [], []>} : vector<8x128xf32>, vector<128x512xf32>, vector<8x512xf32> -> vector<8x512xf32>
      %407 = arith.addf %404, %406 : vector<8x512xf32>
      %408 = vector.extract_strided_slice %407 {offsets = [0, 0], sizes = [8, 128], strides = [1, 1]} : vector<8x512xf32> to vector<8x128xf32>
      %409 = arith.negf %408 : vector<8x128xf32>
      %410 = math.exp %409 : vector<8x128xf32>
      %cst_157 = arith.constant 1.000000e+00 : f32
      %411 = vector.broadcast %cst_157 : f32 to vector<8x128xf32>
      %412 = arith.addf %411, %410 : vector<8x128xf32>
      %413 = arith.divf %411, %412 : vector<8x128xf32>
      %414 = vector.extract_strided_slice %407 {offsets = [0, 128], sizes = [8, 128], strides = [1, 1]} : vector<8x512xf32> to vector<8x128xf32>
      %415 = arith.negf %414 : vector<8x128xf32>
      %416 = math.exp %415 : vector<8x128xf32>
      %cst_158 = arith.constant 1.000000e+00 : f32
      %417 = vector.broadcast %cst_158 : f32 to vector<8x128xf32>
      %418 = arith.addf %417, %416 : vector<8x128xf32>
      %419 = arith.divf %417, %418 : vector<8x128xf32>
      %420 = vector.extract_strided_slice %407 {offsets = [0, 256], sizes = [8, 128], strides = [1, 1]} : vector<8x512xf32> to vector<8x128xf32>
      %421 = math.tanh %420 : vector<8x128xf32>
      %422 = vector.extract_strided_slice %407 {offsets = [0, 384], sizes = [8, 128], strides = [1, 1]} : vector<8x512xf32> to vector<8x128xf32>
      %423 = arith.negf %422 : vector<8x128xf32>
      %424 = math.exp %423 : vector<8x128xf32>
      %cst_159 = arith.constant 1.000000e+00 : f32
      %425 = vector.broadcast %cst_159 : f32 to vector<8x128xf32>
      %426 = arith.addf %425, %424 : vector<8x128xf32>
      %427 = arith.divf %425, %426 : vector<8x128xf32>
      %428 = arith.mulf %419, %359 : vector<8x128xf32>
      %429 = arith.mulf %413, %421 : vector<8x128xf32>
      %430 = arith.addf %428, %429 : vector<8x128xf32>
      %431 = math.tanh %430 : vector<8x128xf32>
      %432 = arith.mulf %427, %431 : vector<8x128xf32>
      %c0_160 = arith.constant 0 : index
      %c0_161 = arith.constant 0 : index
      %433 = vector.load %arg4[%c0_160, %c0_161] : memref<128x512xf32, #tpu.memory_space<vmem>>, vector<128x512xf32>
      %cst_162 = arith.constant dense<0.000000e+00> : vector<8x512xf32>
      %434 = tpu.matmul %432, %433, %cst_162 {dimension_numbers = #tpu.dot_dimension_numbers<[1], [0], [0], [1], [0, 0, 1, 1], [], []>} : vector<8x128xf32>, vector<128x512xf32>, vector<8x512xf32> -> vector<8x512xf32>
      %435 = arith.addf %400, %434 : vector<8x512xf32>
      %436 = arith.addf %435, %15 : vector<8x512xf32>
      %437 = vector.extract_strided_slice %436 {offsets = [0, 0], sizes = [8, 128], strides = [1, 1]} : vector<8x512xf32> to vector<8x128xf32>
      %438 = arith.negf %437 : vector<8x128xf32>
      %439 = math.exp %438 : vector<8x128xf32>
      %cst_163 = arith.constant 1.000000e+00 : f32
      %440 = vector.broadcast %cst_163 : f32 to vector<8x128xf32>
      %441 = arith.addf %440, %439 : vector<8x128xf32>
      %442 = arith.divf %440, %441 : vector<8x128xf32>
      %443 = vector.extract_strided_slice %436 {offsets = [0, 128], sizes = [8, 128], strides = [1, 1]} : vector<8x512xf32> to vector<8x128xf32>
      %444 = arith.negf %443 : vector<8x128xf32>
      %445 = math.exp %444 : vector<8x128xf32>
      %cst_164 = arith.constant 1.000000e+00 : f32
      %446 = vector.broadcast %cst_164 : f32 to vector<8x128xf32>
      %447 = arith.addf %446, %445 : vector<8x128xf32>
      %448 = arith.divf %446, %447 : vector<8x128xf32>
      %449 = vector.extract_strided_slice %436 {offsets = [0, 256], sizes = [8, 128], strides = [1, 1]} : vector<8x512xf32> to vector<8x128xf32>
      %450 = math.tanh %449 : vector<8x128xf32>
      %451 = vector.extract_strided_slice %436 {offsets = [0, 384], sizes = [8, 128], strides = [1, 1]} : vector<8x512xf32> to vector<8x128xf32>
      %452 = arith.negf %451 : vector<8x128xf32>
      %453 = math.exp %452 : vector<8x128xf32>
      %cst_165 = arith.constant 1.000000e+00 : f32
      %454 = vector.broadcast %cst_165 : f32 to vector<8x128xf32>
      %455 = arith.addf %454, %453 : vector<8x128xf32>
      %456 = arith.divf %454, %455 : vector<8x128xf32>
      %457 = arith.mulf %448, %388 : vector<8x128xf32>
      %458 = arith.mulf %442, %450 : vector<8x128xf32>
      %459 = arith.addf %457, %458 : vector<8x128xf32>
      %460 = math.tanh %459 : vector<8x128xf32>
      %461 = arith.mulf %456, %460 : vector<8x128xf32>
      %462 = arith.truncf %461 : vector<8x128xf32> to vector<8x128xbf16>
      %cst_166 = arith.constant dense<0.000000e+00> : vector<8x512xf32>
      %463 = tpu.matmul %462, %398, %cst_166 {dimension_numbers = #tpu.dot_dimension_numbers<[1], [0], [0], [1], [0, 0, 1, 1], [], []>} : vector<8x128xbf16>, vector<128x512xbf16>, vector<8x512xf32> -> vector<8x512xf32>
      %464 = arith.addf %393, %463 : vector<8x512xf32>
      scf.yield %432, %430, %461, %459, %464 : vector<8x128xf32>, vector<8x128xf32>, vector<8x128xf32>, vector<8x128xf32>, vector<8x512xf32>
    }
    %c10_i32_21 = arith.constant 10 : i32
    %c0_22 = arith.constant 0 : index
    %c0_23 = arith.constant 0 : index
    %22 = vector.load %arg9[%c0_22, %c0_23] : memref<512x24xf32, #tpu.memory_space<vmem>>, vector<512x24xf32>
    %cst_24 = arith.constant dense<0.000000e+00> : vector<8x24xf32>
    %23 = tpu.matmul %21#4, %22, %cst_24 {dimension_numbers = #tpu.dot_dimension_numbers<[1], [0], [0], [1], [0, 0, 1, 1], [], []>} : vector<8x512xf32>, vector<512x24xf32>, vector<8x24xf32> -> vector<8x24xf32>
    %c0_25 = arith.constant 0 : index
    %c0_26 = arith.constant 0 : index
    %24 = vector.load %arg10[%c0_25, %c0_26] : memref<1x24xf32, #tpu.memory_space<vmem>>, vector<1x24xf32>
    %25 = vector.broadcast %24 : vector<1x24xf32> to vector<8x24xf32>
    %26 = arith.addf %23, %25 : vector<8x24xf32>
    %c0_27 = arith.constant 0 : index
    %c0_28 = arith.constant 0 : index
    %27 = vector.load %arg11[%c0_27, %c0_28] : memref<8x24xf32, #tpu.memory_space<vmem>>, vector<8x24xf32>
    tpu.vector_store %arg11[%c0_27, %c0_28], %26 {strides = array<i32>} : memref<8x24xf32, #tpu.memory_space<vmem>>, vector<8x24xf32>,
    return
  }
}

</mosaic_0001>

<llo_original>
// kernel: lstm_model_forward.1
$region0: #{lstm_model_forward.1}
  #allocation0 [shape = 'u32[]', space=smem, size = 0x4, offset = 0x4, fixed_abs, tag = 'smem constant byte address 0x4 - core index']
  #allocation1 [shape = 'u32[144,128]{1,0:T(1,128)}', space=vmem, size = 0x12000, scoped, tag = 'internal scratch']
  #allocation2 [shape = 'f32[480,512]{1,0:T(8,128)}', space=vmem, size = 0xf0000, scoped, tag = 'scratch operand']
  #allocation3 [shape = 'bf16[2,6,128,512]{3,2,1,0:T(16,128)(2,1)}', space=vmem, size = 0x180000, scoped, tag = 'scratch operand']
  #allocation4 [shape = 's32[2]{0}', space=sflag, size = 0x8, scoped, tag = 'scratch operand']
  #allocation5 [shape = 's32[]', space=sflag, size = 0x4, offset = 0, fixed_abs, tag = 'sflag constant byte address 0x0 - dummy sync flag']
  #allocation6 [shape = 's32[]', space=sflag, size = 0x4, offset = 0, fixed_abs, tag = 'sflag constant byte address 0x0 - dummy sync flag']
  %s0 = inlined_call_operand.vmem [shape: f32[480,16], index: 0, kind: input, shape index: {}]
  %s1 = inlined_call_operand.vmem [shape: f32[16,512], index: 1, kind: input, shape index: {}]
  %s2 = inlined_call_operand.vmem [shape: f32[128,512], index: 2, kind: input, shape index: {}]
  %s3 = inlined_call_operand.vmem [shape: f32[1,512], index: 3, kind: input, shape index: {}]
  %s4 = inlined_call_operand.vmem [shape: f32[128,512], index: 4, kind: input, shape index: {}]
  %s5 = inlined_call_operand.vmem [shape: f32[128,512], index: 5, kind: input, shape index: {}]
  %s6 = inlined_call_operand.vmem [shape: f32[1,512], index: 6, kind: input, shape index: {}]
  %s7 = inlined_call_operand.vmem [shape: bf16[10,6,128,512], index: 7, kind: input, shape index: {}]
  %s8 = inlined_call_operand.vmem [shape: f32[1,512], index: 8, kind: input, shape index: {}]
  %s9 = inlined_call_operand.vmem [shape: f32[512,24], index: 9, kind: input, shape index: {}]
  %s10 = inlined_call_operand.vmem [shape: f32[1,24], index: 10, kind: input, shape index: {}]
  %s11 = inlined_call_operand.vmem [shape: f32[8,24], index: 11, kind: output, shape index: {}]
  %s12 = sld [smem:[#allocation0]]
  $region135: #{lstm_model_forward.1} parent=0
    _
  %s14 = ssub.s32 1, %s12
  %s15 = scalar_select 0, %s14, %s12
  // Predicated region
  $region2: #{lstm_model_forward.1} parent=0 // pred_check
    _
  $region3: #{lstm_model_forward.1} parent=0 // pred_check_branch
    %17 = sbr.rel (0) target = $region5
  $region4: #{lstm_model_forward.1} parent=0 // pred_region
    _
  $region5: #{lstm_model_forward.1} parent=0 // pred_fallthru
    _
  // Predicated region
  $region6: #{lstm_model_forward.1} parent=0 // pred_check
    _
  $region7: #{lstm_model_forward.1} parent=0 // pred_check_branch
    %19 = sbr.rel (0) target = $region9
  $region8: #{lstm_model_forward.1} parent=0 // pred_region
    _
  $region9: #{lstm_model_forward.1} parent=0 // pred_fallthru
    _
  // Predicated region
  $region10: #{lstm_model_forward.1} parent=0 // pred_check
    _
  $region11: #{lstm_model_forward.1} parent=0 // pred_check_branch
    %21 = sbr.rel (0) target = $region13
  $region12: #{lstm_model_forward.1} parent=0 // pred_region
    _
  $region13: #{lstm_model_forward.1} parent=0 // pred_fallthru
    _
  // Predicated region
  $region14: #{lstm_model_forward.1} parent=0 // pred_check
    _
  $region15: #{lstm_model_forward.1} parent=0 // pred_check_branch
    %23 = sbr.rel (0) target = $region17
  $region16: #{lstm_model_forward.1} parent=0 // pred_region
    _
  $region17: #{lstm_model_forward.1} parent=0 // pred_fallthru
    _
  // Predicated region
  $region18: #{lstm_model_forward.1} parent=0 // pred_check
    _
  $region19: #{lstm_model_forward.1} parent=0 // pred_check_branch
    %25 = sbr.rel (0) target = $region21
  $region20: #{lstm_model_forward.1} parent=0 // pred_region
    _
  $region21: #{lstm_model_forward.1} parent=0 // pred_fallthru
    _
  // Predicated region
  $region22: #{lstm_model_forward.1} parent=0 // pred_check
    _
  $region23: #{lstm_model_forward.1} parent=0 // pred_check_branch
    %27 = sbr.rel (0) target = $region25
  $region24: #{lstm_model_forward.1} parent=0 // pred_region
    _
  $region25: #{lstm_model_forward.1} parent=0 // pred_fallthru
    _
  // Predicated region
  $region26: #{lstm_model_forward.1} parent=0 // pred_check
    _
  $region27: #{lstm_model_forward.1} parent=0 // pred_check_branch
    %29 = sbr.rel (0) target = $region29
  $region28: #{lstm_model_forward.1} parent=0 // pred_region
    _
  $region29: #{lstm_model_forward.1} parent=0 // pred_fallthru
    _
  // Predicated region
  $region30: #{lstm_model_forward.1} parent=0 // pred_check
    _
  $region31: #{lstm_model_forward.1} parent=0 // pred_check_branch
    %31 = sbr.rel (0) target = $region33
  $region32: #{lstm_model_forward.1} parent=0 // pred_region
    _
  $region33: #{lstm_model_forward.1} parent=0 // pred_fallthru
    _
  // Predicated region
  $region34: #{lstm_model_forward.1} parent=0 // pred_check
    _
  $region35: #{lstm_model_forward.1} parent=0 // pred_check_branch
    %33 = sbr.rel (0) target = $region37
  $region36: #{lstm_model_forward.1} parent=0 // pred_region
    _
  $region37: #{lstm_model_forward.1} parent=0 // pred_fallthru
    _
  // Predicated region
  $region38: #{lstm_model_forward.1} parent=0 // pred_check
    _
  $region39: #{lstm_model_forward.1} parent=0 // pred_check_branch
    %35 = sbr.rel (0) target = $region41
  $region40: #{lstm_model_forward.1} parent=0 // pred_region
    _
  $region41: #{lstm_model_forward.1} parent=0 // pred_fallthru
    _
  %p38 = scmp.lt.u32.totalorder 4, 8
  %p39 = pneg %p38
  // Predicated region
  $region42: #{lstm_model_forward.1} parent=0 // pred_check
    _
  $region43: #{lstm_model_forward.1} parent=0 // pred_check_branch
    %41 = sbr.rel (%p38) target = $region45
  $region44: #{lstm_model_forward.1} parent=0 // pred_region
    %s822 = sand.u32 4, 7
    %p823 = scmp.eq.s32.totalorder %s822, 0
    %p824 = pneg %p823
    // Predicated region
    $region57: #{lstm_model_forward.1} parent=44 // pred_check
      _
    $region58: #{lstm_model_forward.1} parent=44 // pred_check_branch
      %826 = sbr.rel (%p823) target = $region60
    $region59: #{lstm_model_forward.1} parent=44 // pred_region
      %s827 = sand.u32 4, 7
      %s828 = ssub.s32 4, %s827
      %s829 = scalar_lea.vmem %s7, %s828
      %s830 = ssub.s32 4, %s827
      %s831 = scalar_lea.vmem [#allocation3], %s830
      loop: start=0, step=1, limit=1
      $region61: #{lstm_model_forward.1} parent=59 // loop_pre_header
        _
      $region62: #{lstm_model_forward.1} parent=59 // loop_header
        %s833 = sphi 0, %s837
        %p834 = scmp.ge.s32.totalorder %s833, 1
        %s838 = sphi %s7, %s7
        %s839 = sphi [#allocation3], [#allocation3]
      $region63: #{lstm_model_forward.1} parent=59 // loop_header_branch
        %836 = sbr.rel (%p834) target = $region67
      $region64: #{lstm_model_forward.1} parent=59 // loop_body
        _
      $region65: #{lstm_model_forward.1} parent=59 // loop_footer
        %s837 = sadd.s32 1, %s833
      $region66: #{lstm_model_forward.1} parent=59 // loop_footer_branch
        %832 = sbr.rel target = $region62
      $region67: #{lstm_model_forward.1} parent=59 // loop_exit
        _
      %s840 = sshllo.u32 0, %s827
      loop: start=0, step=1, limit=1
      $region68: #{lstm_model_forward.1} parent=59 // loop_pre_header
        _
      $region69: #{lstm_model_forward.1} parent=59 // loop_header
        %s842 = sphi 0, %s846
        %p843 = scmp.ge.s32.totalorder %s842, 1
        %s847 = sphi %s829, %s829
        %s848 = sphi %s831, %s831
      $region70: #{lstm_model_forward.1} parent=59 // loop_header_branch
        %845 = sbr.rel (%p843) target = $region74
      $region71: #{lstm_model_forward.1} parent=59 // loop_body
        %v849 = vld [vmem:[%s847] sm:%s840]
        %850 = vst [vmem:[%s848] sm:%s840] %v849
        %v851 = vld [vmem:[%s847 + $0x10] sm:%s840]
        %852 = vst [vmem:[%s848 + $0x4] sm:%s840] %v851
        %v853 = vld [vmem:[%s847 + $0x4] sm:%s840]
        %854 = vst [vmem:[%s848 + $0x8] sm:%s840] %v853
        %v855 = vld [vmem:[%s847 + $0x14] sm:%s840]
        %856 = vst [vmem:[%s848 + $0xc] sm:%s840] %v855
        %v857 = vld [vmem:[%s847 + $0x8] sm:%s840]
        %858 = vst [vmem:[%s848 + $0x10] sm:%s840] %v857
        %v859 = vld [vmem:[%s847 + $0x18] sm:%s840]
        %860 = vst [vmem:[%s848 + $0x14] sm:%s840] %v859
        %v861 = vld [vmem:[%s847 + $0xc] sm:%s840]
        %862 = vst [vmem:[%s848 + $0x18] sm:%s840] %v861
        %v863 = vld [vmem:[%s847 + $0x1c] sm:%s840]
        %864 = vst [vmem:[%s848 + $0x1c] sm:%s840] %v863
        %v865 = vld [vmem:[%s847 + $0x20] sm:%s840]
        %866 = vst [vmem:[%s848 + $0x20] sm:%s840] %v865
        %v867 = vld [vmem:[%s847 + $0x30] sm:%s840]
        %868 = vst [vmem:[%s848 + $0x24] sm:%s840] %v867
        %v869 = vld [vmem:[%s847 + $0x24] sm:%s840]
        %870 = vst [vmem:[%s848 + $0x28] sm:%s840] %v869
        %v871 = vld [vmem:[%s847 + $0x34] sm:%s840]
        %872 = vst [vmem:[%s848 + $0x2c] sm:%s840] %v871
        %v873 = vld [vmem:[%s847 + $0x28] sm:%s840]
        %874 = vst [vmem:[%s848 + $0x30] sm:%s840] %v873
        %v875 = vld [vmem:[%s847 + $0x38] sm:%s840]
        %876 = vst [vmem:[%s848 + $0x34] sm:%s840] %v875
        %v877 = vld [vmem:[%s847 + $0x2c] sm:%s840]
        %878 = vst [vmem:[%s848 + $0x38] sm:%s840] %v877
        %v879 = vld [vmem:[%s847 + $0x3c] sm:%s840]
        %880 = vst [vmem:[%s848 + $0x3c] sm:%s840] %v879
        %v881 = vld [vmem:[%s847 + $0x40] sm:%s840]
        %882 = vst [vmem:[%s848 + $0x40] sm:%s840] %v881
        %v883 = vld [vmem:[%s847 + $0x50] sm:%s840]
        %884 = vst [vmem:[%s848 + $0x44] sm:%s840] %v883
        %v885 = vld [vmem:[%s847 + $0x44] sm:%s840]
        %886 = vst [vmem:[%s848 + $0x48] sm:%s840] %v885
        %v887 = vld [vmem:[%s847 + $0x54] sm:%s840]
        %888 = vst [vmem:[%s848 + $0x4c] sm:%s840] %v887
        %v889 = vld [vmem:[%s847 + $0x48] sm:%s840]
        %890 = vst [vmem:[%s848 + $0x50] sm:%s840] %v889
        %v891 = vld [vmem:[%s847 + $0x58] sm:%s840]
        %892 = vst [vmem:[%s848 + $0x54] sm:%s840] %v891
        %v893 = vld [vmem:[%s847 + $0x4c] sm:%s840]
        %894 = vst [vmem:[%s848 + $0x58] sm:%s840] %v893
        %v895 = vld [vmem:[%s847 + $0x5c] sm:%s840]
        %896 = vst [vmem:[%s848 + $0x5c] sm:%s840] %v895
        %v897 = vld [vmem:[%s847 + $0x60] sm:%s840]
        %898 = vst [vmem:[%s848 + $0x60] sm:%s840] %v897
        %v899 = vld [vmem:[%s847 + $0x70] sm:%s840]
        %900 = vst [vmem:[%s848 + $0x64] sm:%s840] %v899
        %v901 = vld [vmem:[%s847 + $0x64] sm:%s840]
        %902 = vst [vmem:[%s848 + $0x68] sm:%s840] %v901
        %v903 = vld [vmem:[%s847 + $0x74] sm:%s840]
        %904 = vst [vmem:[%s848 + $0x6c] sm:%s840] %v903
        %v905 = vld [vmem:[%s847 + $0x68] sm:%s840]
        %906 = vst [vmem:[%s848 + $0x70] sm:%s840] %v905
        %v907 = vld [vmem:[%s847 + $0x78] sm:%s840]
        %908 = vst [vmem:[%s848 + $0x74] sm:%s840] %v907
        %v909 = vld [vmem:[%s847 + $0x6c] sm:%s840]
        %910 = vst [vmem:[%s848 + $0x78] sm:%s840] %v909
        %v911 = vld [vmem:[%s847 + $0x7c] sm:%s840]
        %912 = vst [vmem:[%s848 + $0x7c] sm:%s840] %v911
        %v913 = vld [vmem:[%s847 + $0x80] sm:%s840]
        %914 = vst [vmem:[%s848 + $0x80] sm:%s840] %v913
        %v915 = vld [vmem:[%s847 + $0x90] sm:%s840]
        %916 = vst [vmem:[%s848 + $0x84] sm:%s840] %v915
        %v917 = vld [vmem:[%s847 + $0x84] sm:%s840]
        %918 = vst [vmem:[%s848 + $0x88] sm:%s840] %v917
        %v919 = vld [vmem:[%s847 + $0x94] sm:%s840]
        %920 = vst [vmem:[%s848 + $0x8c] sm:%s840] %v919
        %v921 = vld [vmem:[%s847 + $0x88] sm:%s840]
        %922 = vst [vmem:[%s848 + $0x90] sm:%s840] %v921
        %v923 = vld [vmem:[%s847 + $0x98] sm:%s840]
        %924 = vst [vmem:[%s848 + $0x94] sm:%s840] %v923
        %v925 = vld [vmem:[%s847 + $0x8c] sm:%s840]
        %926 = vst [vmem:[%s848 + $0x98] sm:%s840] %v925
        %v927 = vld [vmem:[%s847 + $0x9c] sm:%s840]
        %928 = vst [vmem:[%s848 + $0x9c] sm:%s840] %v927
        %v929 = vld [vmem:[%s847 + $0xa0] sm:%s840]
        %930 = vst [vmem:[%s848 + $0xa0] sm:%s840] %v929
        %v931 = vld [vmem:[%s847 + $0xb0] sm:%s840]
        %932 = vst [vmem:[%s848 + $0xa4] sm:%s840] %v931
        %v933 = vld [vmem:[%s847 + $0xa4] sm:%s840]
        %934 = vst [vmem:[%s848 + $0xa8] sm:%s840] %v933
        %v935 = vld [vmem:[%s847 + $0xb4] sm:%s840]
        %936 = vst [vmem:[%s848 + $0xac] sm:%s840] %v935
        %v937 = vld [vmem:[%s847 + $0xa8] sm:%s840]
        %938 = vst [vmem:[%s848 + $0xb0] sm:%s840] %v937
        %v939 = vld [vmem:[%s847 + $0xb8] sm:%s840]
        %940 = vst [vmem:[%s848 + $0xb4] sm:%s840] %v939
        %v941 = vld [vmem:[%s847 + $0xac] sm:%s840]
        %942 = vst [vmem:[%s848 + $0xb8] sm:%s840] %v941
        %v943 = vld [vmem:[%s847 + $0xbc] sm:%s840]
        %944 = vst [vmem:[%s848 + $0xbc] sm:%s840] %v943
        %v945 = vld [vmem:[%s847 + $0xc0] sm:%s840]
        %946 = vst [vmem:[%s848 + $0xc0] sm:%s840] %v945
        %v947 = vld [vmem:[%s847 + $0xd0] sm:%s840]
        %948 = vst [vmem:[%s848 + $0xc4] sm:%s840] %v947
        %v949 = vld [vmem:[%s847 + $0xc4] sm:%s840]
        %950 = vst [vmem:[%s848 + $0xc8] sm:%s840] %v949
        %v951 = vld [vmem:[%s847 + $0xd4] sm:%s840]
        %952 = vst [vmem:[%s848 + $0xcc] sm:%s840] %v951
        %v953 = vld [vmem:[%s847 + $0xc8] sm:%s840]
        %954 = vst [vmem:[%s848 + $0xd0] sm:%s840] %v953
        %v955 = vld [vmem:[%s847 + $0xd8] sm:%s840]
        %956 = vst [vmem:[%s848 + $0xd4] sm:%s840] %v955
        %v957 = vld [vmem:[%s847 + $0xcc] sm:%s840]
        %958 = vst [vmem:[%s848 + $0xd8] sm:%s840] %v957
        %v959 = vld [vmem:[%s847 + $0xdc] sm:%s840]
        %960 = vst [vmem:[%s848 + $0xdc] sm:%s840] %v959
        %v961 = vld [vmem:[%s847 + $0xe0] sm:%s840]
        %962 = vst [vmem:[%s848 + $0xe0] sm:%s840] %v961
        %v963 = vld [vmem:[%s847 + $0xf0] sm:%s840]
        %964 = vst [vmem:[%s848 + $0xe4] sm:%s840] %v963
        %v965 = vld [vmem:[%s847 + $0xe4] sm:%s840]
        %966 = vst [vmem:[%s848 + $0xe8] sm:%s840] %v965
        %v967 = vld [vmem:[%s847 + $0xf4] sm:%s840]
        %968 = vst [vmem:[%s848 + $0xec] sm:%s840] %v967
        %v969 = vld [vmem:[%s847 + $0xe8] sm:%s840]
        %970 = vst [vmem:[%s848 + $0xf0] sm:%s840] %v969
        %v971 = vld [vmem:[%s847 + $0xf8] sm:%s840]
        %972 = vst [vmem:[%s848 + $0xf4] sm:%s840] %v971
        %v973 = vld [vmem:[%s847 + $0xec] sm:%s840]
        %974 = vst [vmem:[%s848 + $0xf8] sm:%s840] %v973
        %v975 = vld [vmem:[%s847 + $0xfc] sm:%s840]
        %976 = vst [vmem:[%s848 + $0xfc] sm:%s840] %v975
        %v977 = vld [vmem:[%s847 + $0x100] sm:%s840]
        %978 = vst [vmem:[%s848 + $0x100] sm:%s840] %v977
        %v979 = vld [vmem:[%s847 + $0x110] sm:%s840]
        %980 = vst [vmem:[%s848 + $0x104] sm:%s840] %v979
        %v981 = vld [vmem:[%s847 + $0x104] sm:%s840]
        %982 = vst [vmem:[%s848 + $0x108] sm:%s840] %v981
        %v983 = vld [vmem:[%s847 + $0x114] sm:%s840]
        %984 = vst [vmem:[%s848 + $0x10c] sm:%s840] %v983
        %v985 = vld [vmem:[%s847 + $0x108] sm:%s840]
        %986 = vst [vmem:[%s848 + $0x110] sm:%s840] %v985
        %v987 = vld [vmem:[%s847 + $0x118] sm:%s840]
        %988 = vst [vmem:[%s848 + $0x114] sm:%s840] %v987
        %v989 = vld [vmem:[%s847 + $0x10c] sm:%s840]
        %990 = vst [vmem:[%s848 + $0x118] sm:%s840] %v989
        %v991 = vld [vmem:[%s847 + $0x11c] sm:%s840]
        %992 = vst [vmem:[%s848 + $0x11c] sm:%s840] %v991
        %v993 = vld [vmem:[%s847 + $0x120] sm:%s840]
        %994 = vst [vmem:[%s848 + $0x120] sm:%s840] %v993
        %v995 = vld [vmem:[%s847 + $0x130] sm:%s840]
        %996 = vst [vmem:[%s848 + $0x124] sm:%s840] %v995
        %v997 = vld [vmem:[%s847 + $0x124] sm:%s840]
        %998 = vst [vmem:[%s848 + $0x128] sm:%s840] %v997
        %v999 = vld [vmem:[%s847 + $0x134] sm:%s840]
        %1000 = vst [vmem:[%s848 + $0x12c] sm:%s840] %v999
        %v1001 = vld [vmem:[%s847 + $0x128] sm:%s840]
        %1002 = vst [vmem:[%s848 + $0x130] sm:%s840] %v1001
        %v1003 = vld [vmem:[%s847 + $0x138] sm:%s840]
        %1004 = vst [vmem:[%s848 + $0x134] sm:%s840] %v1003
        %v1005 = vld [vmem:[%s847 + $0x12c] sm:%s840]
        %1006 = vst [vmem:[%s848 + $0x138] sm:%s840] %v1005
        %v1007 = vld [vmem:[%s847 + $0x13c] sm:%s840]
        %1008 = vst [vmem:[%s848 + $0x13c] sm:%s840] %v1007
        %v1009 = vld [vmem:[%s847 + $0x140] sm:%s840]
        %1010 = vst [vmem:[%s848 + $0x140] sm:%s840] %v1009
        %v1011 = vld [vmem:[%s847 + $0x150] sm:%s840]
        %1012 = vst [vmem:[%s848 + $0x144] sm:%s840] %v1011
        %v1013 = vld [vmem:[%s847 + $0x144] sm:%s840]
        %1014 = vst [vmem:[%s848 + $0x148] sm:%s840] %v1013
        %v1015 = vld [vmem:[%s847 + $0x154] sm:%s840]
        %1016 = vst [vmem:[%s848 + $0x14c] sm:%s840] %v1015
        %v1017 = vld [vmem:[%s847 + $0x148] sm:%s840]
        %1018 = vst [vmem:[%s848 + $0x150] sm:%s840] %v1017
        %v1019 = vld [vmem:[%s847 + $0x158] sm:%s840]
        %1020 = vst [vmem:[%s848 + $0x154] sm:%s840] %v1019
        %v1021 = vld [vmem:[%s847 + $0x14c] sm:%s840]
        %1022 = vst [vmem:[%s848 + $0x158] sm:%s840] %v1021
        %v1023 = vld [vmem:[%s847 + $0x15c] sm:%s840]
        %1024 = vst [vmem:[%s848 + $0x15c] sm:%s840] %v1023
        %v1025 = vld [vmem:[%s847 + $0x160] sm:%s840]
        %1026 = vst [vmem:[%s848 + $0x160] sm:%s840] %v1025
        %v1027 = vld [vmem:[%s847 + $0x170] sm:%s840]
        %1028 = vst [vmem:[%s848 + $0x164] sm:%s840] %v1027
        %v1029 = vld [vmem:[%s847 + $0x164] sm:%s840]
        %1030 = vst [vmem:[%s848 + $0x168] sm:%s840] %v1029
        %v1031 = vld [vmem:[%s847 + $0x174] sm:%s840]
        %1032 = vst [vmem:[%s848 + $0x16c] sm:%s840] %v1031
        %v1033 = vld [vmem:[%s847 + $0x168] sm:%s840]
        %1034 = vst [vmem:[%s848 + $0x170] sm:%s840] %v1033
        %v1035 = vld [vmem:[%s847 + $0x178] sm:%s840]
        %1036 = vst [vmem:[%s848 + $0x174] sm:%s840] %v1035
        %v1037 = vld [vmem:[%s847 + $0x16c] sm:%s840]
        %1038 = vst [vmem:[%s848 + $0x178] sm:%s840] %v1037
        %v1039 = vld [vmem:[%s847 + $0x17c] sm:%s840]
        %1040 = vst [vmem:[%s848 + $0x17c] sm:%s840] %v1039
        %v1041 = vld [vmem:[%s847 + $0x180] sm:%s840]
        %1042 = vst [vmem:[%s848 + $0x180] sm:%s840] %v1041
        %v1043 = vld [vmem:[%s847 + $0x190] sm:%s840]
        %1044 = vst [vmem:[%s848 + $0x184] sm:%s840] %v1043
        %v1045 = vld [vmem:[%s847 + $0x184] sm:%s840]
        %1046 = vst [vmem:[%s848 + $0x188] sm:%s840] %v1045
        %v1047 = vld [vmem:[%s847 + $0x194] sm:%s840]
        %1048 = vst [vmem:[%s848 + $0x18c] sm:%s840] %v1047
        %v1049 = vld [vmem:[%s847 + $0x188] sm:%s840]
        %1050 = vst [vmem:[%s848 + $0x190] sm:%s840] %v1049
        %v1051 = vld [vmem:[%s847 + $0x198] sm:%s840]
        %1052 = vst [vmem:[%s848 + $0x194] sm:%s840] %v1051
        %v1053 = vld [vmem:[%s847 + $0x18c] sm:%s840]
        %1054 = vst [vmem:[%s848 + $0x198] sm:%s840] %v1053
        %v1055 = vld [vmem:[%s847 + $0x19c] sm:%s840]
        %1056 = vst [vmem:[%s848 + $0x19c] sm:%s840] %v1055
        %v1057 = vld [vmem:[%s847 + $0x1a0] sm:%s840]
        %1058 = vst [vmem:[%s848 + $0x1a0] sm:%s840] %v1057
        %v1059 = vld [vmem:[%s847 + $0x1b0] sm:%s840]
        %1060 = vst [vmem:[%s848 + $0x1a4] sm:%s840] %v1059
        %v1061 = vld [vmem:[%s847 + $0x1a4] sm:%s840]
        %1062 = vst [vmem:[%s848 + $0x1a8] sm:%s840] %v1061
        %v1063 = vld [vmem:[%s847 + $0x1b4] sm:%s840]
        %1064 = vst [vmem:[%s848 + $0x1ac] sm:%s840] %v1063
        %v1065 = vld [vmem:[%s847 + $0x1a8] sm:%s840]
        %1066 = vst [vmem:[%s848 + $0x1b0] sm:%s840] %v1065
        %v1067 = vld [vmem:[%s847 + $0x1b8] sm:%s840]
        %1068 = vst [vmem:[%s848 + $0x1b4] sm:%s840] %v1067
        %v1069 = vld [vmem:[%s847 + $0x1ac] sm:%s840]
        %1070 = vst [vmem:[%s848 + $0x1b8] sm:%s840] %v1069
        %v1071 = vld [vmem:[%s847 + $0x1bc] sm:%s840]
        %1072 = vst [vmem:[%s848 + $0x1bc] sm:%s840] %v1071
        %v1073 = vld [vmem:[%s847 + $0x1c0] sm:%s840]
        %1074 = vst [vmem:[%s848 + $0x1c0] sm:%s840] %v1073
        %v1075 = vld [vmem:[%s847 + $0x1d0] sm:%s840]
        %1076 = vst [vmem:[%s848 + $0x1c4] sm:%s840] %v1075
        %v1077 = vld [vmem:[%s847 + $0x1c4] sm:%s840]
        %1078 = vst [vmem:[%s848 + $0x1c8] sm:%s840] %v1077
        %v1079 = vld [vmem:[%s847 + $0x1d4] sm:%s840]
        %1080 = vst [vmem:[%s848 + $0x1cc] sm:%s840] %v1079
        %v1081 = vld [vmem:[%s847 + $0x1c8] sm:%s840]
        %1082 = vst [vmem:[%s848 + $0x1d0] sm:%s840] %v1081
        %v1083 = vld [vmem:[%s847 + $0x1d8] sm:%s840]
        %1084 = vst [vmem:[%s848 + $0x1d4] sm:%s840] %v1083
        %v1085 = vld [vmem:[%s847 + $0x1cc] sm:%s840]
        %1086 = vst [vmem:[%s848 + $0x1d8] sm:%s840] %v1085
        %v1087 = vld [vmem:[%s847 + $0x1dc] sm:%s840]
        %1088 = vst [vmem:[%s848 + $0x1dc] sm:%s840] %v1087
        %v1089 = vld [vmem:[%s847 + $0x1e0] sm:%s840]
        %1090 = vst [vmem:[%s848 + $0x1e0] sm:%s840] %v1089
        %v1091 = vld [vmem:[%s847 + $0x1f0] sm:%s840]
        %1092 = vst [vmem:[%s848 + $0x1e4] sm:%s840] %v1091
        %v1093 = vld [vmem:[%s847 + $0x1e4] sm:%s840]
        %1094 = vst [vmem:[%s848 + $0x1e8] sm:%s840] %v1093
        %v1095 = vld [vmem:[%s847 + $0x1f4] sm:%s840]
        %1096 = vst [vmem:[%s848 + $0x1ec] sm:%s840] %v1095
        %v1097 = vld [vmem:[%s847 + $0x1e8] sm:%s840]
        %1098 = vst [vmem:[%s848 + $0x1f0] sm:%s840] %v1097
        %v1099 = vld [vmem:[%s847 + $0x1f8] sm:%s840]
        %1100 = vst [vmem:[%s848 + $0x1f4] sm:%s840] %v1099
        %v1101 = vld [vmem:[%s847 + $0x1ec] sm:%s840]
        %1102 = vst [vmem:[%s848 + $0x1f8] sm:%s840] %v1101
        %v1103 = vld [vmem:[%s847 + $0x1fc] sm:%s840]
        %1104 = vst [vmem:[%s848 + $0x1fc] sm:%s840] %v1103
        %v1105 = vld [vmem:[%s847 + $0x200] sm:%s840]
        %1106 = vst [vmem:[%s848 + $0x200] sm:%s840] %v1105
        %v1107 = vld [vmem:[%s847 + $0x210] sm:%s840]
        %1108 = vst [vmem:[%s848 + $0x204] sm:%s840] %v1107
        %v1109 = vld [vmem:[%s847 + $0x204] sm:%s840]
        %1110 = vst [vmem:[%s848 + $0x208] sm:%s840] %v1109
        %v1111 = vld [vmem:[%s847 + $0x214] sm:%s840]
        %1112 = vst [vmem:[%s848 + $0x20c] sm:%s840] %v1111
        %v1113 = vld [vmem:[%s847 + $0x208] sm:%s840]
        %1114 = vst [vmem:[%s848 + $0x210] sm:%s840] %v1113
        %v1115 = vld [vmem:[%s847 + $0x218] sm:%s840]
        %1116 = vst [vmem:[%s848 + $0x214] sm:%s840] %v1115
        %v1117 = vld [vmem:[%s847 + $0x20c] sm:%s840]
        %1118 = vst [vmem:[%s848 + $0x218] sm:%s840] %v1117
        %v1119 = vld [vmem:[%s847 + $0x21c] sm:%s840]
        %1120 = vst [vmem:[%s848 + $0x21c] sm:%s840] %v1119
        %v1121 = vld [vmem:[%s847 + $0x220] sm:%s840]
        %1122 = vst [vmem:[%s848 + $0x220] sm:%s840] %v1121
        %v1123 = vld [vmem:[%s847 + $0x230] sm:%s840]
        %1124 = vst [vmem:[%s848 + $0x224] sm:%s840] %v1123
        %v1125 = vld [vmem:[%s847 + $0x224] sm:%s840]
        %1126 = vst [vmem:[%s848 + $0x228] sm:%s840] %v1125
        %v1127 = vld [vmem:[%s847 + $0x234] sm:%s840]
        %1128 = vst [vmem:[%s848 + $0x22c] sm:%s840] %v1127
        %v1129 = vld [vmem:[%s847 + $0x228] sm:%s840]
        %1130 = vst [vmem:[%s848 + $0x230] sm:%s840] %v1129
        %v1131 = vld [vmem:[%s847 + $0x238] sm:%s840]
        %1132 = vst [vmem:[%s848 + $0x234] sm:%s840] %v1131
        %v1133 = vld [vmem:[%s847 + $0x22c] sm:%s840]
        %1134 = vst [vmem:[%s848 + $0x238] sm:%s840] %v1133
        %v1135 = vld [vmem:[%s847 + $0x23c] sm:%s840]
        %1136 = vst [vmem:[%s848 + $0x23c] sm:%s840] %v1135
        %v1137 = vld [vmem:[%s847 + $0x240] sm:%s840]
        %1138 = vst [vmem:[%s848 + $0x240] sm:%s840] %v1137
        %v1139 = vld [vmem:[%s847 + $0x250] sm:%s840]
        %1140 = vst [vmem:[%s848 + $0x244] sm:%s840] %v1139
        %v1141 = vld [vmem:[%s847 + $0x244] sm:%s840]
        %1142 = vst [vmem:[%s848 + $0x248] sm:%s840] %v1141
        %v1143 = vld [vmem:[%s847 + $0x254] sm:%s840]
        %1144 = vst [vmem:[%s848 + $0x24c] sm:%s840] %v1143
        %v1145 = vld [vmem:[%s847 + $0x248] sm:%s840]
        %1146 = vst [vmem:[%s848 + $0x250] sm:%s840] %v1145
        %v1147 = vld [vmem:[%s847 + $0x258] sm:%s840]
        %1148 = vst [vmem:[%s848 + $0x254] sm:%s840] %v1147
        %v1149 = vld [vmem:[%s847 + $0x24c] sm:%s840]
        %1150 = vst [vmem:[%s848 + $0x258] sm:%s840] %v1149
        %v1151 = vld [vmem:[%s847 + $0x25c] sm:%s840]
        %1152 = vst [vmem:[%s848 + $0x25c] sm:%s840] %v1151
        %v1153 = vld [vmem:[%s847 + $0x260] sm:%s840]
        %1154 = vst [vmem:[%s848 + $0x260] sm:%s840] %v1153
        %v1155 = vld [vmem:[%s847 + $0x270] sm:%s840]
        %1156 = vst [vmem:[%s848 + $0x264] sm:%s840] %v1155
        %v1157 = vld [vmem:[%s847 + $0x264] sm:%s840]
        %1158 = vst [vmem:[%s848 + $0x268] sm:%s840] %v1157
        %v1159 = vld [vmem:[%s847 + $0x274] sm:%s840]
        %1160 = vst [vmem:[%s848 + $0x26c] sm:%s840] %v1159
        %v1161 = vld [vmem:[%s847 + $0x268] sm:%s840]
        %1162 = vst [vmem:[%s848 + $0x270] sm:%s840] %v1161
        %v1163 = vld [vmem:[%s847 + $0x278] sm:%s840]
        %1164 = vst [vmem:[%s848 + $0x274] sm:%s840] %v1163
        %v1165 = vld [vmem:[%s847 + $0x26c] sm:%s840]
        %1166 = vst [vmem:[%s848 + $0x278] sm:%s840] %v1165
        %v1167 = vld [vmem:[%s847 + $0x27c] sm:%s840]
        %1168 = vst [vmem:[%s848 + $0x27c] sm:%s840] %v1167
        %v1169 = vld [vmem:[%s847 + $0x280] sm:%s840]
        %1170 = vst [vmem:[%s848 + $0x280] sm:%s840] %v1169
        %v1171 = vld [vmem:[%s847 + $0x290] sm:%s840]
        %1172 = vst [vmem:[%s848 + $0x284] sm:%s840] %v1171
        %v1173 = vld [vmem:[%s847 + $0x284] sm:%s840]
        %1174 = vst [vmem:[%s848 + $0x288] sm:%s840] %v1173
        %v1175 = vld [vmem:[%s847 + $0x294] sm:%s840]
        %1176 = vst [vmem:[%s848 + $0x28c] sm:%s840] %v1175
        %v1177 = vld [vmem:[%s847 + $0x288] sm:%s840]
        %1178 = vst [vmem:[%s848 + $0x290] sm:%s840] %v1177
        %v1179 = vld [vmem:[%s847 + $0x298] sm:%s840]
        %1180 = vst [vmem:[%s848 + $0x294] sm:%s840] %v1179
        %v1181 = vld [vmem:[%s847 + $0x28c] sm:%s840]
        %1182 = vst [vmem:[%s848 + $0x298] sm:%s840] %v1181
        %v1183 = vld [vmem:[%s847 + $0x29c] sm:%s840]
        %1184 = vst [vmem:[%s848 + $0x29c] sm:%s840] %v1183
        %v1185 = vld [vmem:[%s847 + $0x2a0] sm:%s840]
        %1186 = vst [vmem:[%s848 + $0x2a0] sm:%s840] %v1185
        %v1187 = vld [vmem:[%s847 + $0x2b0] sm:%s840]
        %1188 = vst [vmem:[%s848 + $0x2a4] sm:%s840] %v1187
        %v1189 = vld [vmem:[%s847 + $0x2a4] sm:%s840]
        %1190 = vst [vmem:[%s848 + $0x2a8] sm:%s840] %v1189
        %v1191 = vld [vmem:[%s847 + $0x2b4] sm:%s840]
        %1192 = vst [vmem:[%s848 + $0x2ac] sm:%s840] %v1191
        %v1193 = vld [vmem:[%s847 + $0x2a8] sm:%s840]
        %1194 = vst [vmem:[%s848 + $0x2b0] sm:%s840] %v1193
        %v1195 = vld [vmem:[%s847 + $0x2b8] sm:%s840]
        %1196 = vst [vmem:[%s848 + $0x2b4] sm:%s840] %v1195
        %v1197 = vld [vmem:[%s847 + $0x2ac] sm:%s840]
        %1198 = vst [vmem:[%s848 + $0x2b8] sm:%s840] %v1197
        %v1199 = vld [vmem:[%s847 + $0x2bc] sm:%s840]
        %1200 = vst [vmem:[%s848 + $0x2bc] sm:%s840] %v1199
        %v1201 = vld [vmem:[%s847 + $0x2c0] sm:%s840]
        %1202 = vst [vmem:[%s848 + $0x2c0] sm:%s840] %v1201
        %v1203 = vld [vmem:[%s847 + $0x2d0] sm:%s840]
        %1204 = vst [vmem:[%s848 + $0x2c4] sm:%s840] %v1203
        %v1205 = vld [vmem:[%s847 + $0x2c4] sm:%s840]
        %1206 = vst [vmem:[%s848 + $0x2c8] sm:%s840] %v1205
        %v1207 = vld [vmem:[%s847 + $0x2d4] sm:%s840]
        %1208 = vst [vmem:[%s848 + $0x2cc] sm:%s840] %v1207
        %v1209 = vld [vmem:[%s847 + $0x2c8] sm:%s840]
        %1210 = vst [vmem:[%s848 + $0x2d0] sm:%s840] %v1209
        %v1211 = vld [vmem:[%s847 + $0x2d8] sm:%s840]
        %1212 = vst [vmem:[%s848 + $0x2d4] sm:%s840] %v1211
        %v1213 = vld [vmem:[%s847 + $0x2cc] sm:%s840]
        %1214 = vst [vmem:[%s848 + $0x2d8] sm:%s840] %v1213
        %v1215 = vld [vmem:[%s847 + $0x2dc] sm:%s840]
        %1216 = vst [vmem:[%s848 + $0x2dc] sm:%s840] %v1215
        %v1217 = vld [vmem:[%s847 + $0x2e0] sm:%s840]
        %1218 = vst [vmem:[%s848 + $0x2e0] sm:%s840] %v1217
        %v1219 = vld [vmem:[%s847 + $0x2f0] sm:%s840]
        %1220 = vst [vmem:[%s848 + $0x2e4] sm:%s840] %v1219
        %v1221 = vld [vmem:[%s847 + $0x2e4] sm:%s840]
        %1222 = vst [vmem:[%s848 + $0x2e8] sm:%s840] %v1221
        %v1223 = vld [vmem:[%s847 + $0x2f4] sm:%s840]
        %1224 = vst [vmem:[%s848 + $0x2ec] sm:%s840] %v1223
        %v1225 = vld [vmem:[%s847 + $0x2e8] sm:%s840]
        %1226 = vst [vmem:[%s848 + $0x2f0] sm:%s840] %v1225
        %v1227 = vld [vmem:[%s847 + $0x2f8] sm:%s840]
        %1228 = vst [vmem:[%s848 + $0x2f4] sm:%s840] %v1227
        %v1229 = vld [vmem:[%s847 + $0x2ec] sm:%s840]
        %1230 = vst [vmem:[%s848 + $0x2f8] sm:%s840] %v1229
        %v1231 = vld [vmem:[%s847 + $0x2fc] sm:%s840]
        %1232 = vst [vmem:[%s848 + $0x2fc] sm:%s840] %v1231
        %v1233 = vld [vmem:[%s847 + $0x300] sm:%s840]
        %1234 = vst [vmem:[%s848 + $0x300] sm:%s840] %v1233
        %v1235 = vld [vmem:[%s847 + $0x310] sm:%s840]
        %1236 = vst [vmem:[%s848 + $0x304] sm:%s840] %v1235
        %v1237 = vld [vmem:[%s847 + $0x304] sm:%s840]
        %1238 = vst [vmem:[%s848 + $0x308] sm:%s840] %v1237
        %v1239 = vld [vmem:[%s847 + $0x314] sm:%s840]
        %1240 = vst [vmem:[%s848 + $0x30c] sm:%s840] %v1239
        %v1241 = vld [vmem:[%s847 + $0x308] sm:%s840]
        %1242 = vst [vmem:[%s848 + $0x310] sm:%s840] %v1241
        %v1243 = vld [vmem:[%s847 + $0x318] sm:%s840]
        %1244 = vst [vmem:[%s848 + $0x314] sm:%s840] %v1243
        %v1245 = vld [vmem:[%s847 + $0x30c] sm:%s840]
        %1246 = vst [vmem:[%s848 + $0x318] sm:%s840] %v1245
        %v1247 = vld [vmem:[%s847 + $0x31c] sm:%s840]
        %1248 = vst [vmem:[%s848 + $0x31c] sm:%s840] %v1247
        %v1249 = vld [vmem:[%s847 + $0x320] sm:%s840]
        %1250 = vst [vmem:[%s848 + $0x320] sm:%s840] %v1249
        %v1251 = vld [vmem:[%s847 + $0x330] sm:%s840]
        %1252 = vst [vmem:[%s848 + $0x324] sm:%s840] %v1251
        %v1253 = vld [vmem:[%s847 + $0x324] sm:%s840]
        %1254 = vst [vmem:[%s848 + $0x328] sm:%s840] %v1253
        %v1255 = vld [vmem:[%s847 + $0x334] sm:%s840]
        %1256 = vst [vmem:[%s848 + $0x32c] sm:%s840] %v1255
        %v1257 = vld [vmem:[%s847 + $0x328] sm:%s840]
        %1258 = vst [vmem:[%s848 + $0x330] sm:%s840] %v1257
        %v1259 = vld [vmem:[%s847 + $0x338] sm:%s840]
        %1260 = vst [vmem:[%s848 + $0x334] sm:%s840] %v1259
        %v1261 = vld [vmem:[%s847 + $0x32c] sm:%s840]
        %1262 = vst [vmem:[%s848 + $0x338] sm:%s840] %v1261
        %v1263 = vld [vmem:[%s847 + $0x33c] sm:%s840]
        %1264 = vst [vmem:[%s848 + $0x33c] sm:%s840] %v1263
        %v1265 = vld [vmem:[%s847 + $0x340] sm:%s840]
        %1266 = vst [vmem:[%s848 + $0x340] sm:%s840] %v1265
        %v1267 = vld [vmem:[%s847 + $0x350] sm:%s840]
        %1268 = vst [vmem:[%s848 + $0x344] sm:%s840] %v1267
        %v1269 = vld [vmem:[%s847 + $0x344] sm:%s840]
        %1270 = vst [vmem:[%s848 + $0x348] sm:%s840] %v1269
        %v1271 = vld [vmem:[%s847 + $0x354] sm:%s840]
        %1272 = vst [vmem:[%s848 + $0x34c] sm:%s840] %v1271
        %v1273 = vld [vmem:[%s847 + $0x348] sm:%s840]
        %1274 = vst [vmem:[%s848 + $0x350] sm:%s840] %v1273
        %v1275 = vld [vmem:[%s847 + $0x358] sm:%s840]
        %1276 = vst [vmem:[%s848 + $0x354] sm:%s840] %v1275
        %v1277 = vld [vmem:[%s847 + $0x34c] sm:%s840]
        %1278 = vst [vmem:[%s848 + $0x358] sm:%s840] %v1277
        %v1279 = vld [vmem:[%s847 + $0x35c] sm:%s840]
        %1280 = vst [vmem:[%s848 + $0x35c] sm:%s840] %v1279
        %v1281 = vld [vmem:[%s847 + $0x360] sm:%s840]
        %1282 = vst [vmem:[%s848 + $0x360] sm:%s840] %v1281
        %v1283 = vld [vmem:[%s847 + $0x370] sm:%s840]
        %1284 = vst [vmem:[%s848 + $0x364] sm:%s840] %v1283
        %v1285 = vld [vmem:[%s847 + $0x364] sm:%s840]
        %1286 = vst [vmem:[%s848 + $0x368] sm:%s840] %v1285
        %v1287 = vld [vmem:[%s847 + $0x374] sm:%s840]
        %1288 = vst [vmem:[%s848 + $0x36c] sm:%s840] %v1287
        %v1289 = vld [vmem:[%s847 + $0x368] sm:%s840]
        %1290 = vst [vmem:[%s848 + $0x370] sm:%s840] %v1289
        %v1291 = vld [vmem:[%s847 + $0x378] sm:%s840]
        %1292 = vst [vmem:[%s848 + $0x374] sm:%s840] %v1291
        %v1293 = vld [vmem:[%s847 + $0x36c] sm:%s840]
        %1294 = vst [vmem:[%s848 + $0x378] sm:%s840] %v1293
        %v1295 = vld [vmem:[%s847 + $0x37c] sm:%s840]
        %1296 = vst [vmem:[%s848 + $0x37c] sm:%s840] %v1295
        %v1297 = vld [vmem:[%s847 + $0x380] sm:%s840]
        %1298 = vst [vmem:[%s848 + $0x380] sm:%s840] %v1297
        %v1299 = vld [vmem:[%s847 + $0x390] sm:%s840]
        %1300 = vst [vmem:[%s848 + $0x384] sm:%s840] %v1299
        %v1301 = vld [vmem:[%s847 + $0x384] sm:%s840]
        %1302 = vst [vmem:[%s848 + $0x388] sm:%s840] %v1301
        %v1303 = vld [vmem:[%s847 + $0x394] sm:%s840]
        %1304 = vst [vmem:[%s848 + $0x38c] sm:%s840] %v1303
        %v1305 = vld [vmem:[%s847 + $0x388] sm:%s840]
        %1306 = vst [vmem:[%s848 + $0x390] sm:%s840] %v1305
        %v1307 = vld [vmem:[%s847 + $0x398] sm:%s840]
        %1308 = vst [vmem:[%s848 + $0x394] sm:%s840] %v1307
        %v1309 = vld [vmem:[%s847 + $0x38c] sm:%s840]
        %1310 = vst [vmem:[%s848 + $0x398] sm:%s840] %v1309
        %v1311 = vld [vmem:[%s847 + $0x39c] sm:%s840]
        %1312 = vst [vmem:[%s848 + $0x39c] sm:%s840] %v1311
        %v1313 = vld [vmem:[%s847 + $0x3a0] sm:%s840]
        %1314 = vst [vmem:[%s848 + $0x3a0] sm:%s840] %v1313
        %v1315 = vld [vmem:[%s847 + $0x3b0] sm:%s840]
        %1316 = vst [vmem:[%s848 + $0x3a4] sm:%s840] %v1315
        %v1317 = vld [vmem:[%s847 + $0x3a4] sm:%s840]
        %1318 = vst [vmem:[%s848 + $0x3a8] sm:%s840] %v1317
        %v1319 = vld [vmem:[%s847 + $0x3b4] sm:%s840]
        %1320 = vst [vmem:[%s848 + $0x3ac] sm:%s840] %v1319
        %v1321 = vld [vmem:[%s847 + $0x3a8] sm:%s840]
        %1322 = vst [vmem:[%s848 + $0x3b0] sm:%s840] %v1321
        %v1323 = vld [vmem:[%s847 + $0x3b8] sm:%s840]
        %1324 = vst [vmem:[%s848 + $0x3b4] sm:%s840] %v1323
        %v1325 = vld [vmem:[%s847 + $0x3ac] sm:%s840]
        %1326 = vst [vmem:[%s848 + $0x3b8] sm:%s840] %v1325
        %v1327 = vld [vmem:[%s847 + $0x3bc] sm:%s840]
        %1328 = vst [vmem:[%s848 + $0x3bc] sm:%s840] %v1327
        %v1329 = vld [vmem:[%s847 + $0x3c0] sm:%s840]
        %1330 = vst [vmem:[%s848 + $0x3c0] sm:%s840] %v1329
        %v1331 = vld [vmem:[%s847 + $0x3d0] sm:%s840]
        %1332 = vst [vmem:[%s848 + $0x3c4] sm:%s840] %v1331
        %v1333 = vld [vmem:[%s847 + $0x3c4] sm:%s840]
        %1334 = vst [vmem:[%s848 + $0x3c8] sm:%s840] %v1333
        %v1335 = vld [vmem:[%s847 + $0x3d4] sm:%s840]
        %1336 = vst [vmem:[%s848 + $0x3cc] sm:%s840] %v1335
        %v1337 = vld [vmem:[%s847 + $0x3c8] sm:%s840]
        %1338 = vst [vmem:[%s848 + $0x3d0] sm:%s840] %v1337
        %v1339 = vld [vmem:[%s847 + $0x3d8] sm:%s840]
        %1340 = vst [vmem:[%s848 + $0x3d4] sm:%s840] %v1339
        %v1341 = vld [vmem:[%s847 + $0x3cc] sm:%s840]
        %1342 = vst [vmem:[%s848 + $0x3d8] sm:%s840] %v1341
        %v1343 = vld [vmem:[%s847 + $0x3dc] sm:%s840]
        %1344 = vst [vmem:[%s848 + $0x3dc] sm:%s840] %v1343
        %v1345 = vld [vmem:[%s847 + $0x3e0] sm:%s840]
        %1346 = vst [vmem:[%s848 + $0x3e0] sm:%s840] %v1345
        %v1347 = vld [vmem:[%s847 + $0x3f0] sm:%s840]
        %1348 = vst [vmem:[%s848 + $0x3e4] sm:%s840] %v1347
        %v1349 = vld [vmem:[%s847 + $0x3e4] sm:%s840]
        %1350 = vst [vmem:[%s848 + $0x3e8] sm:%s840] %v1349
        %v1351 = vld [vmem:[%s847 + $0x3f4] sm:%s840]
        %1352 = vst [vmem:[%s848 + $0x3ec] sm:%s840] %v1351
        %v1353 = vld [vmem:[%s847 + $0x3e8] sm:%s840]
        %1354 = vst [vmem:[%s848 + $0x3f0] sm:%s840] %v1353
        %v1355 = vld [vmem:[%s847 + $0x3f8] sm:%s840]
        %1356 = vst [vmem:[%s848 + $0x3f4] sm:%s840] %v1355
        %v1357 = vld [vmem:[%s847 + $0x3ec] sm:%s840]
        %1358 = vst [vmem:[%s848 + $0x3f8] sm:%s840] %v1357
        %v1359 = vld [vmem:[%s847 + $0x3fc] sm:%s840]
        %1360 = vst [vmem:[%s848 + $0x3fc] sm:%s840] %v1359
        %v1361 = vld [vmem:[%s847 + $0x400] sm:%s840]
        %1362 = vst [vmem:[%s848 + $0x400] sm:%s840] %v1361
        %v1363 = vld [vmem:[%s847 + $0x410] sm:%s840]
        %1364 = vst [vmem:[%s848 + $0x404] sm:%s840] %v1363
        %v1365 = vld [vmem:[%s847 + $0x404] sm:%s840]
        %1366 = vst [vmem:[%s848 + $0x408] sm:%s840] %v1365
        %v1367 = vld [vmem:[%s847 + $0x414] sm:%s840]
        %1368 = vst [vmem:[%s848 + $0x40c] sm:%s840] %v1367
        %v1369 = vld [vmem:[%s847 + $0x408] sm:%s840]
        %1370 = vst [vmem:[%s848 + $0x410] sm:%s840] %v1369
        %v1371 = vld [vmem:[%s847 + $0x418] sm:%s840]
        %1372 = vst [vmem:[%s848 + $0x414] sm:%s840] %v1371
        %v1373 = vld [vmem:[%s847 + $0x40c] sm:%s840]
        %1374 = vst [vmem:[%s848 + $0x418] sm:%s840] %v1373
        %v1375 = vld [vmem:[%s847 + $0x41c] sm:%s840]
        %1376 = vst [vmem:[%s848 + $0x41c] sm:%s840] %v1375
        %v1377 = vld [vmem:[%s847 + $0x420] sm:%s840]
        %1378 = vst [vmem:[%s848 + $0x420] sm:%s840] %v1377
        %v1379 = vld [vmem:[%s847 + $0x430] sm:%s840]
        %1380 = vst [vmem:[%s848 + $0x424] sm:%s840] %v1379
        %v1381 = vld [vmem:[%s847 + $0x424] sm:%s840]
        %1382 = vst [vmem:[%s848 + $0x428] sm:%s840] %v1381
        %v1383 = vld [vmem:[%s847 + $0x434] sm:%s840]
        %1384 = vst [vmem:[%s848 + $0x42c] sm:%s840] %v1383
        %v1385 = vld [vmem:[%s847 + $0x428] sm:%s840]
        %1386 = vst [vmem:[%s848 + $0x430] sm:%s840] %v1385
        %v1387 = vld [vmem:[%s847 + $0x438] sm:%s840]
        %1388 = vst [vmem:[%s848 + $0x434] sm:%s840] %v1387
        %v1389 = vld [vmem:[%s847 + $0x42c] sm:%s840]
        %1390 = vst [vmem:[%s848 + $0x438] sm:%s840] %v1389
        %v1391 = vld [vmem:[%s847 + $0x43c] sm:%s840]
        %1392 = vst [vmem:[%s848 + $0x43c] sm:%s840] %v1391
        %v1393 = vld [vmem:[%s847 + $0x440] sm:%s840]
        %1394 = vst [vmem:[%s848 + $0x440] sm:%s840] %v1393
        %v1395 = vld [vmem:[%s847 + $0x450] sm:%s840]
        %1396 = vst [vmem:[%s848 + $0x444] sm:%s840] %v1395
        %v1397 = vld [vmem:[%s847 + $0x444] sm:%s840]
        %1398 = vst [vmem:[%s848 + $0x448] sm:%s840] %v1397
        %v1399 = vld [vmem:[%s847 + $0x454] sm:%s840]
        %1400 = vst [vmem:[%s848 + $0x44c] sm:%s840] %v1399
        %v1401 = vld [vmem:[%s847 + $0x448] sm:%s840]
        %1402 = vst [vmem:[%s848 + $0x450] sm:%s840] %v1401
        %v1403 = vld [vmem:[%s847 + $0x458] sm:%s840]
        %1404 = vst [vmem:[%s848 + $0x454] sm:%s840] %v1403
        %v1405 = vld [vmem:[%s847 + $0x44c] sm:%s840]
        %1406 = vst [vmem:[%s848 + $0x458] sm:%s840] %v1405
        %v1407 = vld [vmem:[%s847 + $0x45c] sm:%s840]
        %1408 = vst [vmem:[%s848 + $0x45c] sm:%s840] %v1407
        %v1409 = vld [vmem:[%s847 + $0x460] sm:%s840]
        %1410 = vst [vmem:[%s848 + $0x460] sm:%s840] %v1409
        %v1411 = vld [vmem:[%s847 + $0x470] sm:%s840]
        %1412 = vst [vmem:[%s848 + $0x464] sm:%s840] %v1411
        %v1413 = vld [vmem:[%s847 + $0x464] sm:%s840]
        %1414 = vst [vmem:[%s848 + $0x468] sm:%s840] %v1413
        %v1415 = vld [vmem:[%s847 + $0x474] sm:%s840]
        %1416 = vst [vmem:[%s848 + $0x46c] sm:%s840] %v1415
        %v1417 = vld [vmem:[%s847 + $0x468] sm:%s840]
        %1418 = vst [vmem:[%s848 + $0x470] sm:%s840] %v1417
        %v1419 = vld [vmem:[%s847 + $0x478] sm:%s840]
        %1420 = vst [vmem:[%s848 + $0x474] sm:%s840] %v1419
        %v1421 = vld [vmem:[%s847 + $0x46c] sm:%s840]
        %1422 = vst [vmem:[%s848 + $0x478] sm:%s840] %v1421
        %v1423 = vld [vmem:[%s847 + $0x47c] sm:%s840]
        %1424 = vst [vmem:[%s848 + $0x47c] sm:%s840] %v1423
        %v1425 = vld [vmem:[%s847 + $0x480] sm:%s840]
        %1426 = vst [vmem:[%s848 + $0x480] sm:%s840] %v1425
        %v1427 = vld [vmem:[%s847 + $0x490] sm:%s840]
        %1428 = vst [vmem:[%s848 + $0x484] sm:%s840] %v1427
        %v1429 = vld [vmem:[%s847 + $0x484] sm:%s840]
        %1430 = vst [vmem:[%s848 + $0x488] sm:%s840] %v1429
        %v1431 = vld [vmem:[%s847 + $0x494] sm:%s840]
        %1432 = vst [vmem:[%s848 + $0x48c] sm:%s840] %v1431
        %v1433 = vld [vmem:[%s847 + $0x488] sm:%s840]
        %1434 = vst [vmem:[%s848 + $0x490] sm:%s840] %v1433
        %v1435 = vld [vmem:[%s847 + $0x498] sm:%s840]
        %1436 = vst [vmem:[%s848 + $0x494] sm:%s840] %v1435
        %v1437 = vld [vmem:[%s847 + $0x48c] sm:%s840]
        %1438 = vst [vmem:[%s848 + $0x498] sm:%s840] %v1437
        %v1439 = vld [vmem:[%s847 + $0x49c] sm:%s840]
        %1440 = vst [vmem:[%s848 + $0x49c] sm:%s840] %v1439
        %v1441 = vld [vmem:[%s847 + $0x4a0] sm:%s840]
        %1442 = vst [vmem:[%s848 + $0x4a0] sm:%s840] %v1441
        %v1443 = vld [vmem:[%s847 + $0x4b0] sm:%s840]
        %1444 = vst [vmem:[%s848 + $0x4a4] sm:%s840] %v1443
        %v1445 = vld [vmem:[%s847 + $0x4a4] sm:%s840]
        %1446 = vst [vmem:[%s848 + $0x4a8] sm:%s840] %v1445
        %v1447 = vld [vmem:[%s847 + $0x4b4] sm:%s840]
        %1448 = vst [vmem:[%s848 + $0x4ac] sm:%s840] %v1447
        %v1449 = vld [vmem:[%s847 + $0x4a8] sm:%s840]
        %1450 = vst [vmem:[%s848 + $0x4b0] sm:%s840] %v1449
        %v1451 = vld [vmem:[%s847 + $0x4b8] sm:%s840]
        %1452 = vst [vmem:[%s848 + $0x4b4] sm:%s840] %v1451
        %v1453 = vld [vmem:[%s847 + $0x4ac] sm:%s840]
        %1454 = vst [vmem:[%s848 + $0x4b8] sm:%s840] %v1453
        %v1455 = vld [vmem:[%s847 + $0x4bc] sm:%s840]
        %1456 = vst [vmem:[%s848 + $0x4bc] sm:%s840] %v1455
        %v1457 = vld [vmem:[%s847 + $0x4c0] sm:%s840]
        %1458 = vst [vmem:[%s848 + $0x4c0] sm:%s840] %v1457
        %v1459 = vld [vmem:[%s847 + $0x4d0] sm:%s840]
        %1460 = vst [vmem:[%s848 + $0x4c4] sm:%s840] %v1459
        %v1461 = vld [vmem:[%s847 + $0x4c4] sm:%s840]
        %1462 = vst [vmem:[%s848 + $0x4c8] sm:%s840] %v1461
        %v1463 = vld [vmem:[%s847 + $0x4d4] sm:%s840]
        %1464 = vst [vmem:[%s848 + $0x4cc] sm:%s840] %v1463
        %v1465 = vld [vmem:[%s847 + $0x4c8] sm:%s840]
        %1466 = vst [vmem:[%s848 + $0x4d0] sm:%s840] %v1465
        %v1467 = vld [vmem:[%s847 + $0x4d8] sm:%s840]
        %1468 = vst [vmem:[%s848 + $0x4d4] sm:%s840] %v1467
        %v1469 = vld [vmem:[%s847 + $0x4cc] sm:%s840]
        %1470 = vst [vmem:[%s848 + $0x4d8] sm:%s840] %v1469
        %v1471 = vld [vmem:[%s847 + $0x4dc] sm:%s840]
        %1472 = vst [vmem:[%s848 + $0x4dc] sm:%s840] %v1471
        %v1473 = vld [vmem:[%s847 + $0x4e0] sm:%s840]
        %1474 = vst [vmem:[%s848 + $0x4e0] sm:%s840] %v1473
        %v1475 = vld [vmem:[%s847 + $0x4f0] sm:%s840]
        %1476 = vst [vmem:[%s848 + $0x4e4] sm:%s840] %v1475
        %v1477 = vld [vmem:[%s847 + $0x4e4] sm:%s840]
        %1478 = vst [vmem:[%s848 + $0x4e8] sm:%s840] %v1477
        %v1479 = vld [vmem:[%s847 + $0x4f4] sm:%s840]
        %1480 = vst [vmem:[%s848 + $0x4ec] sm:%s840] %v1479
        %v1481 = vld [vmem:[%s847 + $0x4e8] sm:%s840]
        %1482 = vst [vmem:[%s848 + $0x4f0] sm:%s840] %v1481
        %v1483 = vld [vmem:[%s847 + $0x4f8] sm:%s840]
        %1484 = vst [vmem:[%s848 + $0x4f4] sm:%s840] %v1483
        %v1485 = vld [vmem:[%s847 + $0x4ec] sm:%s840]
        %1486 = vst [vmem:[%s848 + $0x4f8] sm:%s840] %v1485
        %v1487 = vld [vmem:[%s847 + $0x4fc] sm:%s840]
        %1488 = vst [vmem:[%s848 + $0x4fc] sm:%s840] %v1487
        %v1489 = vld [vmem:[%s847 + $0x500] sm:%s840]
        %1490 = vst [vmem:[%s848 + $0x500] sm:%s840] %v1489
        %v1491 = vld [vmem:[%s847 + $0x510] sm:%s840]
        %1492 = vst [vmem:[%s848 + $0x504] sm:%s840] %v1491
        %v1493 = vld [vmem:[%s847 + $0x504] sm:%s840]
        %1494 = vst [vmem:[%s848 + $0x508] sm:%s840] %v1493
        %v1495 = vld [vmem:[%s847 + $0x514] sm:%s840]
        %1496 = vst [vmem:[%s848 + $0x50c] sm:%s840] %v1495
        %v1497 = vld [vmem:[%s847 + $0x508] sm:%s840]
        %1498 = vst [vmem:[%s848 + $0x510] sm:%s840] %v1497
        %v1499 = vld [vmem:[%s847 + $0x518] sm:%s840]
        %1500 = vst [vmem:[%s848 + $0x514] sm:%s840] %v1499
        %v1501 = vld [vmem:[%s847 + $0x50c] sm:%s840]
        %1502 = vst [vmem:[%s848 + $0x518] sm:%s840] %v1501
        %v1503 = vld [vmem:[%s847 + $0x51c] sm:%s840]
        %1504 = vst [vmem:[%s848 + $0x51c] sm:%s840] %v1503
        %v1505 = vld [vmem:[%s847 + $0x520] sm:%s840]
        %1506 = vst [vmem:[%s848 + $0x520] sm:%s840] %v1505
        %v1507 = vld [vmem:[%s847 + $0x530] sm:%s840]
        %1508 = vst [vmem:[%s848 + $0x524] sm:%s840] %v1507
        %v1509 = vld [vmem:[%s847 + $0x524] sm:%s840]
        %1510 = vst [vmem:[%s848 + $0x528] sm:%s840] %v1509
        %v1511 = vld [vmem:[%s847 + $0x534] sm:%s840]
        %1512 = vst [vmem:[%s848 + $0x52c] sm:%s840] %v1511
        %v1513 = vld [vmem:[%s847 + $0x528] sm:%s840]
        %1514 = vst [vmem:[%s848 + $0x530] sm:%s840] %v1513
        %v1515 = vld [vmem:[%s847 + $0x538] sm:%s840]
        %1516 = vst [vmem:[%s848 + $0x534] sm:%s840] %v1515
        %v1517 = vld [vmem:[%s847 + $0x52c] sm:%s840]
        %1518 = vst [vmem:[%s848 + $0x538] sm:%s840] %v1517
        %v1519 = vld [vmem:[%s847 + $0x53c] sm:%s840]
        %1520 = vst [vmem:[%s848 + $0x53c] sm:%s840] %v1519
        %v1521 = vld [vmem:[%s847 + $0x540] sm:%s840]
        %1522 = vst [vmem:[%s848 + $0x540] sm:%s840] %v1521
        %v1523 = vld [vmem:[%s847 + $0x550] sm:%s840]
        %1524 = vst [vmem:[%s848 + $0x544] sm:%s840] %v1523
        %v1525 = vld [vmem:[%s847 + $0x544] sm:%s840]
        %1526 = vst [vmem:[%s848 + $0x548] sm:%s840] %v1525
        %v1527 = vld [vmem:[%s847 + $0x554] sm:%s840]
        %1528 = vst [vmem:[%s848 + $0x54c] sm:%s840] %v1527
        %v1529 = vld [vmem:[%s847 + $0x548] sm:%s840]
        %1530 = vst [vmem:[%s848 + $0x550] sm:%s840] %v1529
        %v1531 = vld [vmem:[%s847 + $0x558] sm:%s840]
        %1532 = vst [vmem:[%s848 + $0x554] sm:%s840] %v1531
        %v1533 = vld [vmem:[%s847 + $0x54c] sm:%s840]
        %1534 = vst [vmem:[%s848 + $0x558] sm:%s840] %v1533
        %v1535 = vld [vmem:[%s847 + $0x55c] sm:%s840]
        %1536 = vst [vmem:[%s848 + $0x55c] sm:%s840] %v1535
        %v1537 = vld [vmem:[%s847 + $0x560] sm:%s840]
        %1538 = vst [vmem:[%s848 + $0x560] sm:%s840] %v1537
        %v1539 = vld [vmem:[%s847 + $0x570] sm:%s840]
        %1540 = vst [vmem:[%s848 + $0x564] sm:%s840] %v1539
        %v1541 = vld [vmem:[%s847 + $0x564] sm:%s840]
        %1542 = vst [vmem:[%s848 + $0x568] sm:%s840] %v1541
        %v1543 = vld [vmem:[%s847 + $0x574] sm:%s840]
        %1544 = vst [vmem:[%s848 + $0x56c] sm:%s840] %v1543
        %v1545 = vld [vmem:[%s847 + $0x568] sm:%s840]
        %1546 = vst [vmem:[%s848 + $0x570] sm:%s840] %v1545
        %v1547 = vld [vmem:[%s847 + $0x578] sm:%s840]
        %1548 = vst [vmem:[%s848 + $0x574] sm:%s840] %v1547
        %v1549 = vld [vmem:[%s847 + $0x56c] sm:%s840]
        %1550 = vst [vmem:[%s848 + $0x578] sm:%s840] %v1549
        %v1551 = vld [vmem:[%s847 + $0x57c] sm:%s840]
        %1552 = vst [vmem:[%s848 + $0x57c] sm:%s840] %v1551
        %v1553 = vld [vmem:[%s847 + $0x580] sm:%s840]
        %1554 = vst [vmem:[%s848 + $0x580] sm:%s840] %v1553
        %v1555 = vld [vmem:[%s847 + $0x590] sm:%s840]
        %1556 = vst [vmem:[%s848 + $0x584] sm:%s840] %v1555
        %v1557 = vld [vmem:[%s847 + $0x584] sm:%s840]
        %1558 = vst [vmem:[%s848 + $0x588] sm:%s840] %v1557
        %v1559 = vld [vmem:[%s847 + $0x594] sm:%s840]
        %1560 = vst [vmem:[%s848 + $0x58c] sm:%s840] %v1559
        %v1561 = vld [vmem:[%s847 + $0x588] sm:%s840]
        %1562 = vst [vmem:[%s848 + $0x590] sm:%s840] %v1561
        %v1563 = vld [vmem:[%s847 + $0x598] sm:%s840]
        %1564 = vst [vmem:[%s848 + $0x594] sm:%s840] %v1563
        %v1565 = vld [vmem:[%s847 + $0x58c] sm:%s840]
        %1566 = vst [vmem:[%s848 + $0x598] sm:%s840] %v1565
        %v1567 = vld [vmem:[%s847 + $0x59c] sm:%s840]
        %1568 = vst [vmem:[%s848 + $0x59c] sm:%s840] %v1567
        %v1569 = vld [vmem:[%s847 + $0x5a0] sm:%s840]
        %1570 = vst [vmem:[%s848 + $0x5a0] sm:%s840] %v1569
        %v1571 = vld [vmem:[%s847 + $0x5b0] sm:%s840]
        %1572 = vst [vmem:[%s848 + $0x5a4] sm:%s840] %v1571
        %v1573 = vld [vmem:[%s847 + $0x5a4] sm:%s840]
        %1574 = vst [vmem:[%s848 + $0x5a8] sm:%s840] %v1573
        %v1575 = vld [vmem:[%s847 + $0x5b4] sm:%s840]
        %1576 = vst [vmem:[%s848 + $0x5ac] sm:%s840] %v1575
        %v1577 = vld [vmem:[%s847 + $0x5a8] sm:%s840]
        %1578 = vst [vmem:[%s848 + $0x5b0] sm:%s840] %v1577
        %v1579 = vld [vmem:[%s847 + $0x5b8] sm:%s840]
        %1580 = vst [vmem:[%s848 + $0x5b4] sm:%s840] %v1579
        %v1581 = vld [vmem:[%s847 + $0x5ac] sm:%s840]
        %1582 = vst [vmem:[%s848 + $0x5b8] sm:%s840] %v1581
        %v1583 = vld [vmem:[%s847 + $0x5bc] sm:%s840]
        %1584 = vst [vmem:[%s848 + $0x5bc] sm:%s840] %v1583
        %v1585 = vld [vmem:[%s847 + $0x5c0] sm:%s840]
        %1586 = vst [vmem:[%s848 + $0x5c0] sm:%s840] %v1585
        %v1587 = vld [vmem:[%s847 + $0x5d0] sm:%s840]
        %1588 = vst [vmem:[%s848 + $0x5c4] sm:%s840] %v1587
        %v1589 = vld [vmem:[%s847 + $0x5c4] sm:%s840]
        %1590 = vst [vmem:[%s848 + $0x5c8] sm:%s840] %v1589
        %v1591 = vld [vmem:[%s847 + $0x5d4] sm:%s840]
        %1592 = vst [vmem:[%s848 + $0x5cc] sm:%s840] %v1591
        %v1593 = vld [vmem:[%s847 + $0x5c8] sm:%s840]
        %1594 = vst [vmem:[%s848 + $0x5d0] sm:%s840] %v1593
        %v1595 = vld [vmem:[%s847 + $0x5d8] sm:%s840]
        %1596 = vst [vmem:[%s848 + $0x5d4] sm:%s840] %v1595
        %v1597 = vld [vmem:[%s847 + $0x5cc] sm:%s840]
        %1598 = vst [vmem:[%s848 + $0x5d8] sm:%s840] %v1597
        %v1599 = vld [vmem:[%s847 + $0x5dc] sm:%s840]
        %1600 = vst [vmem:[%s848 + $0x5dc] sm:%s840] %v1599
        %v1601 = vld [vmem:[%s847 + $0x5e0] sm:%s840]
        %1602 = vst [vmem:[%s848 + $0x5e0] sm:%s840] %v1601
        %v1603 = vld [vmem:[%s847 + $0x5f0] sm:%s840]
        %1604 = vst [vmem:[%s848 + $0x5e4] sm:%s840] %v1603
        %v1605 = vld [vmem:[%s847 + $0x5e4] sm:%s840]
        %1606 = vst [vmem:[%s848 + $0x5e8] sm:%s840] %v1605
        %v1607 = vld [vmem:[%s847 + $0x5f4] sm:%s840]
        %1608 = vst [vmem:[%s848 + $0x5ec] sm:%s840] %v1607
        %v1609 = vld [vmem:[%s847 + $0x5e8] sm:%s840]
        %1610 = vst [vmem:[%s848 + $0x5f0] sm:%s840] %v1609
        %v1611 = vld [vmem:[%s847 + $0x5f8] sm:%s840]
        %1612 = vst [vmem:[%s848 + $0x5f4] sm:%s840] %v1611
        %v1613 = vld [vmem:[%s847 + $0x5ec] sm:%s840]
        %1614 = vst [vmem:[%s848 + $0x5f8] sm:%s840] %v1613
        %v1615 = vld [vmem:[%s847 + $0x5fc] sm:%s840]
        %1616 = vst [vmem:[%s848 + $0x5fc] sm:%s840] %v1615
      $region72: #{lstm_model_forward.1} parent=59 // loop_footer
        %s846 = sadd.s32 1, %s842
      $region73: #{lstm_model_forward.1} parent=59 // loop_footer_branch
        %841 = sbr.rel target = $region69
      $region74: #{lstm_model_forward.1} parent=59 // loop_exit
        _
    $region60: #{lstm_model_forward.1} parent=44 // pred_fallthru
      _
  $region45: #{lstm_model_forward.1} parent=0 // pred_fallthru
    _
  // Predicated region
  $region46: #{lstm_model_forward.1} parent=0 // pred_check
    %p42 = pneg %p38
  $region47: #{lstm_model_forward.1} parent=0 // pred_check_branch
    %44 = sbr.rel (%p42) target = $region49
  $region48: #{lstm_model_forward.1} parent=0 // pred_region
    %s45 = sshllo.u32 0, 4
    loop: start=0, step=1, limit=1
    $region50: #{lstm_model_forward.1} parent=48 // loop_pre_header
      _
    $region51: #{lstm_model_forward.1} parent=48 // loop_header
      %s47 = sphi 0, %s51
      %p48 = scmp.ge.s32.totalorder %s47, 1
      %s52 = sphi %s7, %s7
      %s53 = sphi [#allocation3], [#allocation3]
    $region52: #{lstm_model_forward.1} parent=48 // loop_header_branch
      %50 = sbr.rel (%p48) target = $region56
    $region53: #{lstm_model_forward.1} parent=48 // loop_body
      %v54 = vld [vmem:[%s52] sm:%s45]
      %55 = vst [vmem:[%s53] sm:%s45] %v54
      %v56 = vld [vmem:[%s52 + $0x10] sm:%s45]
      %57 = vst [vmem:[%s53 + $0x4] sm:%s45] %v56
      %v58 = vld [vmem:[%s52 + $0x4] sm:%s45]
      %59 = vst [vmem:[%s53 + $0x8] sm:%s45] %v58
      %v60 = vld [vmem:[%s52 + $0x14] sm:%s45]
      %61 = vst [vmem:[%s53 + $0xc] sm:%s45] %v60
      %v62 = vld [vmem:[%s52 + $0x8] sm:%s45]
      %63 = vst [vmem:[%s53 + $0x10] sm:%s45] %v62
      %v64 = vld [vmem:[%s52 + $0x18] sm:%s45]
      %65 = vst [vmem:[%s53 + $0x14] sm:%s45] %v64
      %v66 = vld [vmem:[%s52 + $0xc] sm:%s45]
      %67 = vst [vmem:[%s53 + $0x18] sm:%s45] %v66
      %v68 = vld [vmem:[%s52 + $0x1c] sm:%s45]
      %69 = vst [vmem:[%s53 + $0x1c] sm:%s45] %v68
      %v70 = vld [vmem:[%s52 + $0x20] sm:%s45]
      %71 = vst [vmem:[%s53 + $0x20] sm:%s45] %v70
      %v72 = vld [vmem:[%s52 + $0x30] sm:%s45]
      %73 = vst [vmem:[%s53 + $0x24] sm:%s45] %v72
      %v74 = vld [vmem:[%s52 + $0x24] sm:%s45]
      %75 = vst [vmem:[%s53 + $0x28] sm:%s45] %v74
      %v76 = vld [vmem:[%s52 + $0x34] sm:%s45]
      %77 = vst [vmem:[%s53 + $0x2c] sm:%s45] %v76
      %v78 = vld [vmem:[%s52 + $0x28] sm:%s45]
      %79 = vst [vmem:[%s53 + $0x30] sm:%s45] %v78
      %v80 = vld [vmem:[%s52 + $0x38] sm:%s45]
      %81 = vst [vmem:[%s53 + $0x34] sm:%s45] %v80
      %v82 = vld [vmem:[%s52 + $0x2c] sm:%s45]
      %83 = vst [vmem:[%s53 + $0x38] sm:%s45] %v82
      %v84 = vld [vmem:[%s52 + $0x3c] sm:%s45]
      %85 = vst [vmem:[%s53 + $0x3c] sm:%s45] %v84
      %v86 = vld [vmem:[%s52 + $0x40] sm:%s45]
      %87 = vst [vmem:[%s53 + $0x40] sm:%s45] %v86
      %v88 = vld [vmem:[%s52 + $0x50] sm:%s45]
      %89 = vst [vmem:[%s53 + $0x44] sm:%s45] %v88
      %v90 = vld [vmem:[%s52 + $0x44] sm:%s45]
      %91 = vst [vmem:[%s53 + $0x48] sm:%s45] %v90
      %v92 = vld [vmem:[%s52 + $0x54] sm:%s45]
      %93 = vst [vmem:[%s53 + $0x4c] sm:%s45] %v92
      %v94 = vld [vmem:[%s52 + $0x48] sm:%s45]
      %95 = vst [vmem:[%s53 + $0x50] sm:%s45] %v94
      %v96 = vld [vmem:[%s52 + $0x58] sm:%s45]
      %97 = vst [vmem:[%s53 + $0x54] sm:%s45] %v96
      %v98 = vld [vmem:[%s52 + $0x4c] sm:%s45]
      %99 = vst [vmem:[%s53 + $0x58] sm:%s45] %v98
      %v100 = vld [vmem:[%s52 + $0x5c] sm:%s45]
      %101 = vst [vmem:[%s53 + $0x5c] sm:%s45] %v100
      %v102 = vld [vmem:[%s52 + $0x60] sm:%s45]
      %103 = vst [vmem:[%s53 + $0x60] sm:%s45] %v102
      %v104 = vld [vmem:[%s52 + $0x70] sm:%s45]
      %105 = vst [vmem:[%s53 + $0x64] sm:%s45] %v104
      %v106 = vld [vmem:[%s52 + $0x64] sm:%s45]
      %107 = vst [vmem:[%s53 + $0x68] sm:%s45] %v106
      %v108 = vld [vmem:[%s52 + $0x74] sm:%s45]
      %109 = vst [vmem:[%s53 + $0x6c] sm:%s45] %v108
      %v110 = vld [vmem:[%s52 + $0x68] sm:%s45]
      %111 = vst [vmem:[%s53 + $0x70] sm:%s45] %v110
      %v112 = vld [vmem:[%s52 + $0x78] sm:%s45]
      %113 = vst [vmem:[%s53 + $0x74] sm:%s45] %v112
      %v114 = vld [vmem:[%s52 + $0x6c] sm:%s45]
      %115 = vst [vmem:[%s53 + $0x78] sm:%s45] %v114
      %v116 = vld [vmem:[%s52 + $0x7c] sm:%s45]
      %117 = vst [vmem:[%s53 + $0x7c] sm:%s45] %v116
      %v118 = vld [vmem:[%s52 + $0x80] sm:%s45]
      %119 = vst [vmem:[%s53 + $0x80] sm:%s45] %v118
      %v120 = vld [vmem:[%s52 + $0x90] sm:%s45]
      %121 = vst [vmem:[%s53 + $0x84] sm:%s45] %v120
      %v122 = vld [vmem:[%s52 + $0x84] sm:%s45]
      %123 = vst [vmem:[%s53 + $0x88] sm:%s45] %v122
      %v124 = vld [vmem:[%s52 + $0x94] sm:%s45]
      %125 = vst [vmem:[%s53 + $0x8c] sm:%s45] %v124
      %v126 = vld [vmem:[%s52 + $0x88] sm:%s45]
      %127 = vst [vmem:[%s53 + $0x90] sm:%s45] %v126
      %v128 = vld [vmem:[%s52 + $0x98] sm:%s45]
      %129 = vst [vmem:[%s53 + $0x94] sm:%s45] %v128
      %v130 = vld [vmem:[%s52 + $0x8c] sm:%s45]
      %131 = vst [vmem:[%s53 + $0x98] sm:%s45] %v130
      %v132 = vld [vmem:[%s52 + $0x9c] sm:%s45]
      %133 = vst [vmem:[%s53 + $0x9c] sm:%s45] %v132
      %v134 = vld [vmem:[%s52 + $0xa0] sm:%s45]
      %135 = vst [vmem:[%s53 + $0xa0] sm:%s45] %v134
      %v136 = vld [vmem:[%s52 + $0xb0] sm:%s45]
      %137 = vst [vmem:[%s53 + $0xa4] sm:%s45] %v136
      %v138 = vld [vmem:[%s52 + $0xa4] sm:%s45]
      %139 = vst [vmem:[%s53 + $0xa8] sm:%s45] %v138
      %v140 = vld [vmem:[%s52 + $0xb4] sm:%s45]
      %141 = vst [vmem:[%s53 + $0xac] sm:%s45] %v140
      %v142 = vld [vmem:[%s52 + $0xa8] sm:%s45]
      %143 = vst [vmem:[%s53 + $0xb0] sm:%s45] %v142
      %v144 = vld [vmem:[%s52 + $0xb8] sm:%s45]
      %145 = vst [vmem:[%s53 + $0xb4] sm:%s45] %v144
      %v146 = vld [vmem:[%s52 + $0xac] sm:%s45]
      %147 = vst [vmem:[%s53 + $0xb8] sm:%s45] %v146
      %v148 = vld [vmem:[%s52 + $0xbc] sm:%s45]
      %149 = vst [vmem:[%s53 + $0xbc] sm:%s45] %v148
      %v150 = vld [vmem:[%s52 + $0xc0] sm:%s45]
      %151 = vst [vmem:[%s53 + $0xc0] sm:%s45] %v150
      %v152 = vld [vmem:[%s52 + $0xd0] sm:%s45]
      %153 = vst [vmem:[%s53 + $0xc4] sm:%s45] %v152
      %v154 = vld [vmem:[%s52 + $0xc4] sm:%s45]
      %155 = vst [vmem:[%s53 + $0xc8] sm:%s45] %v154
      %v156 = vld [vmem:[%s52 + $0xd4] sm:%s45]
      %157 = vst [vmem:[%s53 + $0xcc] sm:%s45] %v156
      %v158 = vld [vmem:[%s52 + $0xc8] sm:%s45]
      %159 = vst [vmem:[%s53 + $0xd0] sm:%s45] %v158
      %v160 = vld [vmem:[%s52 + $0xd8] sm:%s45]
      %161 = vst [vmem:[%s53 + $0xd4] sm:%s45] %v160
      %v162 = vld [vmem:[%s52 + $0xcc] sm:%s45]
      %163 = vst [vmem:[%s53 + $0xd8] sm:%s45] %v162
      %v164 = vld [vmem:[%s52 + $0xdc] sm:%s45]
      %165 = vst [vmem:[%s53 + $0xdc] sm:%s45] %v164
      %v166 = vld [vmem:[%s52 + $0xe0] sm:%s45]
      %167 = vst [vmem:[%s53 + $0xe0] sm:%s45] %v166
      %v168 = vld [vmem:[%s52 + $0xf0] sm:%s45]
      %169 = vst [vmem:[%s53 + $0xe4] sm:%s45] %v168
      %v170 = vld [vmem:[%s52 + $0xe4] sm:%s45]
      %171 = vst [vmem:[%s53 + $0xe8] sm:%s45] %v170
      %v172 = vld [vmem:[%s52 + $0xf4] sm:%s45]
      %173 = vst [vmem:[%s53 + $0xec] sm:%s45] %v172
      %v174 = vld [vmem:[%s52 + $0xe8] sm:%s45]
      %175 = vst [vmem:[%s53 + $0xf0] sm:%s45] %v174
      %v176 = vld [vmem:[%s52 + $0xf8] sm:%s45]
      %177 = vst [vmem:[%s53 + $0xf4] sm:%s45] %v176
      %v178 = vld [vmem:[%s52 + $0xec] sm:%s45]
      %179 = vst [vmem:[%s53 + $0xf8] sm:%s45] %v178
      %v180 = vld [vmem:[%s52 + $0xfc] sm:%s45]
      %181 = vst [vmem:[%s53 + $0xfc] sm:%s45] %v180
      %v182 = vld [vmem:[%s52 + $0x100] sm:%s45]
      %183 = vst [vmem:[%s53 + $0x100] sm:%s45] %v182
      %v184 = vld [vmem:[%s52 + $0x110] sm:%s45]
      %185 = vst [vmem:[%s53 + $0x104] sm:%s45] %v184
      %v186 = vld [vmem:[%s52 + $0x104] sm:%s45]
      %187 = vst [vmem:[%s53 + $0x108] sm:%s45] %v186
      %v188 = vld [vmem:[%s52 + $0x114] sm:%s45]
      %189 = vst [vmem:[%s53 + $0x10c] sm:%s45] %v188
      %v190 = vld [vmem:[%s52 + $0x108] sm:%s45]
      %191 = vst [vmem:[%s53 + $0x110] sm:%s45] %v190
      %v192 = vld [vmem:[%s52 + $0x118] sm:%s45]
      %193 = vst [vmem:[%s53 + $0x114] sm:%s45] %v192
      %v194 = vld [vmem:[%s52 + $0x10c] sm:%s45]
      %195 = vst [vmem:[%s53 + $0x118] sm:%s45] %v194
      %v196 = vld [vmem:[%s52 + $0x11c] sm:%s45]
      %197 = vst [vmem:[%s53 + $0x11c] sm:%s45] %v196
      %v198 = vld [vmem:[%s52 + $0x120] sm:%s45]
      %199 = vst [vmem:[%s53 + $0x120] sm:%s45] %v198
      %v200 = vld [vmem:[%s52 + $0x130] sm:%s45]
      %201 = vst [vmem:[%s53 + $0x124] sm:%s45] %v200
      %v202 = vld [vmem:[%s52 + $0x124] sm:%s45]
      %203 = vst [vmem:[%s53 + $0x128] sm:%s45] %v202
      %v204 = vld [vmem:[%s52 + $0x134] sm:%s45]
      %205 = vst [vmem:[%s53 + $0x12c] sm:%s45] %v204
      %v206 = vld [vmem:[%s52 + $0x128] sm:%s45]
      %207 = vst [vmem:[%s53 + $0x130] sm:%s45] %v206
      %v208 = vld [vmem:[%s52 + $0x138] sm:%s45]
      %209 = vst [vmem:[%s53 + $0x134] sm:%s45] %v208
      %v210 = vld [vmem:[%s52 + $0x12c] sm:%s45]
      %211 = vst [vmem:[%s53 + $0x138] sm:%s45] %v210
      %v212 = vld [vmem:[%s52 + $0x13c] sm:%s45]
      %213 = vst [vmem:[%s53 + $0x13c] sm:%s45] %v212
      %v214 = vld [vmem:[%s52 + $0x140] sm:%s45]
      %215 = vst [vmem:[%s53 + $0x140] sm:%s45] %v214
      %v216 = vld [vmem:[%s52 + $0x150] sm:%s45]
      %217 = vst [vmem:[%s53 + $0x144] sm:%s45] %v216
      %v218 = vld [vmem:[%s52 + $0x144] sm:%s45]
      %219 = vst [vmem:[%s53 + $0x148] sm:%s45] %v218
      %v220 = vld [vmem:[%s52 + $0x154] sm:%s45]
      %221 = vst [vmem:[%s53 + $0x14c] sm:%s45] %v220
      %v222 = vld [vmem:[%s52 + $0x148] sm:%s45]
      %223 = vst [vmem:[%s53 + $0x150] sm:%s45] %v222
      %v224 = vld [vmem:[%s52 + $0x158] sm:%s45]
      %225 = vst [vmem:[%s53 + $0x154] sm:%s45] %v224
      %v226 = vld [vmem:[%s52 + $0x14c] sm:%s45]
      %227 = vst [vmem:[%s53 + $0x158] sm:%s45] %v226
      %v228 = vld [vmem:[%s52 + $0x15c] sm:%s45]
      %229 = vst [vmem:[%s53 + $0x15c] sm:%s45] %v228
      %v230 = vld [vmem:[%s52 + $0x160] sm:%s45]
      %231 = vst [vmem:[%s53 + $0x160] sm:%s45] %v230
      %v232 = vld [vmem:[%s52 + $0x170] sm:%s45]
      %233 = vst [vmem:[%s53 + $0x164] sm:%s45] %v232
      %v234 = vld [vmem:[%s52 + $0x164] sm:%s45]
      %235 = vst [vmem:[%s53 + $0x168] sm:%s45] %v234
      %v236 = vld [vmem:[%s52 + $0x174] sm:%s45]
      %237 = vst [vmem:[%s53 + $0x16c] sm:%s45] %v236
      %v238 = vld [vmem:[%s52 + $0x168] sm:%s45]
      %239 = vst [vmem:[%s53 + $0x170] sm:%s45] %v238
      %v240 = vld [vmem:[%s52 + $0x178] sm:%s45]
      %241 = vst [vmem:[%s53 + $0x174] sm:%s45] %v240
      %v242 = vld [vmem:[%s52 + $0x16c] sm:%s45]
      %243 = vst [vmem:[%s53 + $0x178] sm:%s45] %v242
      %v244 = vld [vmem:[%s52 + $0x17c] sm:%s45]
      %245 = vst [vmem:[%s53 + $0x17c] sm:%s45] %v244
      %v246 = vld [vmem:[%s52 + $0x180] sm:%s45]
      %247 = vst [vmem:[%s53 + $0x180] sm:%s45] %v246
      %v248 = vld [vmem:[%s52 + $0x190] sm:%s45]
      %249 = vst [vmem:[%s53 + $0x184] sm:%s45] %v248
      %v250 = vld [vmem:[%s52 + $0x184] sm:%s45]
      %251 = vst [vmem:[%s53 + $0x188] sm:%s45] %v250
      %v252 = vld [vmem:[%s52 + $0x194] sm:%s45]
      %253 = vst [vmem:[%s53 + $0x18c] sm:%s45] %v252
      %v254 = vld [vmem:[%s52 + $0x188] sm:%s45]
      %255 = vst [vmem:[%s53 + $0x190] sm:%s45] %v254
      %v256 = vld [vmem:[%s52 + $0x198] sm:%s45]
      %257 = vst [vmem:[%s53 + $0x194] sm:%s45] %v256
      %v258 = vld [vmem:[%s52 + $0x18c] sm:%s45]
      %259 = vst [vmem:[%s53 + $0x198] sm:%s45] %v258
      %v260 = vld [vmem:[%s52 + $0x19c] sm:%s45]
      %261 = vst [vmem:[%s53 + $0x19c] sm:%s45] %v260
      %v262 = vld [vmem:[%s52 + $0x1a0] sm:%s45]
      %263 = vst [vmem:[%s53 + $0x1a0] sm:%s45] %v262
      %v264 = vld [vmem:[%s52 + $0x1b0] sm:%s45]
      %265 = vst [vmem:[%s53 + $0x1a4] sm:%s45] %v264
      %v266 = vld [vmem:[%s52 + $0x1a4] sm:%s45]
      %267 = vst [vmem:[%s53 + $0x1a8] sm:%s45] %v266
      %v268 = vld [vmem:[%s52 + $0x1b4] sm:%s45]
      %269 = vst [vmem:[%s53 + $0x1ac] sm:%s45] %v268
      %v270 = vld [vmem:[%s52 + $0x1a8] sm:%s45]
      %271 = vst [vmem:[%s53 + $0x1b0] sm:%s45] %v270
      %v272 = vld [vmem:[%s52 + $0x1b8] sm:%s45]
      %273 = vst [vmem:[%s53 + $0x1b4] sm:%s45] %v272
      %v274 = vld [vmem:[%s52 + $0x1ac] sm:%s45]
      %275 = vst [vmem:[%s53 + $0x1b8] sm:%s45] %v274
      %v276 = vld [vmem:[%s52 + $0x1bc] sm:%s45]
      %277 = vst [vmem:[%s53 + $0x1bc] sm:%s45] %v276
      %v278 = vld [vmem:[%s52 + $0x1c0] sm:%s45]
      %279 = vst [vmem:[%s53 + $0x1c0] sm:%s45] %v278
      %v280 = vld [vmem:[%s52 + $0x1d0] sm:%s45]
      %281 = vst [vmem:[%s53 + $0x1c4] sm:%s45] %v280
      %v282 = vld [vmem:[%s52 + $0x1c4] sm:%s45]
      %283 = vst [vmem:[%s53 + $0x1c8] sm:%s45] %v282
      %v284 = vld [vmem:[%s52 + $0x1d4] sm:%s45]
      %285 = vst [vmem:[%s53 + $0x1cc] sm:%s45] %v284
      %v286 = vld [vmem:[%s52 + $0x1c8] sm:%s45]
      %287 = vst [vmem:[%s53 + $0x1d0] sm:%s45] %v286
      %v288 = vld [vmem:[%s52 + $0x1d8] sm:%s45]
      %289 = vst [vmem:[%s53 + $0x1d4] sm:%s45] %v288
      %v290 = vld [vmem:[%s52 + $0x1cc] sm:%s45]
      %291 = vst [vmem:[%s53 + $0x1d8] sm:%s45] %v290
      %v292 = vld [vmem:[%s52 + $0x1dc] sm:%s45]
      %293 = vst [vmem:[%s53 + $0x1dc] sm:%s45] %v292
      %v294 = vld [vmem:[%s52 + $0x1e0] sm:%s45]
      %295 = vst [vmem:[%s53 + $0x1e0] sm:%s45] %v294
      %v296 = vld [vmem:[%s52 + $0x1f0] sm:%s45]
      %297 = vst [vmem:[%s53 + $0x1e4] sm:%s45] %v296
      %v298 = vld [vmem:[%s52 + $0x1e4] sm:%s45]
      %299 = vst [vmem:[%s53 + $0x1e8] sm:%s45] %v298
      %v300 = vld [vmem:[%s52 + $0x1f4] sm:%s45]
      %301 = vst [vmem:[%s53 + $0x1ec] sm:%s45] %v300
      %v302 = vld [vmem:[%s52 + $0x1e8] sm:%s45]
      %303 = vst [vmem:[%s53 + $0x1f0] sm:%s45] %v302
      %v304 = vld [vmem:[%s52 + $0x1f8] sm:%s45]
      %305 = vst [vmem:[%s53 + $0x1f4] sm:%s45] %v304
      %v306 = vld [vmem:[%s52 + $0x1ec] sm:%s45]
      %307 = vst [vmem:[%s53 + $0x1f8] sm:%s45] %v306
      %v308 = vld [vmem:[%s52 + $0x1fc] sm:%s45]
      %309 = vst [vmem:[%s53 + $0x1fc] sm:%s45] %v308
      %v310 = vld [vmem:[%s52 + $0x200] sm:%s45]
      %311 = vst [vmem:[%s53 + $0x200] sm:%s45] %v310
      %v312 = vld [vmem:[%s52 + $0x210] sm:%s45]
      %313 = vst [vmem:[%s53 + $0x204] sm:%s45] %v312
      %v314 = vld [vmem:[%s52 + $0x204] sm:%s45]
      %315 = vst [vmem:[%s53 + $0x208] sm:%s45] %v314
      %v316 = vld [vmem:[%s52 + $0x214] sm:%s45]
      %317 = vst [vmem:[%s53 + $0x20c] sm:%s45] %v316
      %v318 = vld [vmem:[%s52 + $0x208] sm:%s45]
      %319 = vst [vmem:[%s53 + $0x210] sm:%s45] %v318
      %v320 = vld [vmem:[%s52 + $0x218] sm:%s45]
      %321 = vst [vmem:[%s53 + $0x214] sm:%s45] %v320
      %v322 = vld [vmem:[%s52 + $0x20c] sm:%s45]
      %323 = vst [vmem:[%s53 + $0x218] sm:%s45] %v322
      %v324 = vld [vmem:[%s52 + $0x21c] sm:%s45]
      %325 = vst [vmem:[%s53 + $0x21c] sm:%s45] %v324
      %v326 = vld [vmem:[%s52 + $0x220] sm:%s45]
      %327 = vst [vmem:[%s53 + $0x220] sm:%s45] %v326
      %v328 = vld [vmem:[%s52 + $0x230] sm:%s45]
      %329 = vst [vmem:[%s53 + $0x224] sm:%s45] %v328
      %v330 = vld [vmem:[%s52 + $0x224] sm:%s45]
      %331 = vst [vmem:[%s53 + $0x228] sm:%s45] %v330
      %v332 = vld [vmem:[%s52 + $0x234] sm:%s45]
      %333 = vst [vmem:[%s53 + $0x22c] sm:%s45] %v332
      %v334 = vld [vmem:[%s52 + $0x228] sm:%s45]
      %335 = vst [vmem:[%s53 + $0x230] sm:%s45] %v334
      %v336 = vld [vmem:[%s52 + $0x238] sm:%s45]
      %337 = vst [vmem:[%s53 + $0x234] sm:%s45] %v336
      %v338 = vld [vmem:[%s52 + $0x22c] sm:%s45]
      %339 = vst [vmem:[%s53 + $0x238] sm:%s45] %v338
      %v340 = vld [vmem:[%s52 + $0x23c] sm:%s45]
      %341 = vst [vmem:[%s53 + $0x23c] sm:%s45] %v340
      %v342 = vld [vmem:[%s52 + $0x240] sm:%s45]
      %343 = vst [vmem:[%s53 + $0x240] sm:%s45] %v342
      %v344 = vld [vmem:[%s52 + $0x250] sm:%s45]
      %345 = vst [vmem:[%s53 + $0x244] sm:%s45] %v344
      %v346 = vld [vmem:[%s52 + $0x244] sm:%s45]
      %347 = vst [vmem:[%s53 + $0x248] sm:%s45] %v346
      %v348 = vld [vmem:[%s52 + $0x254] sm:%s45]
      %349 = vst [vmem:[%s53 + $0x24c] sm:%s45] %v348
      %v350 = vld [vmem:[%s52 + $0x248] sm:%s45]
      %351 = vst [vmem:[%s53 + $0x250] sm:%s45] %v350
      %v352 = vld [vmem:[%s52 + $0x258] sm:%s45]
      %353 = vst [vmem:[%s53 + $0x254] sm:%s45] %v352
      %v354 = vld [vmem:[%s52 + $0x24c] sm:%s45]
      %355 = vst [vmem:[%s53 + $0x258] sm:%s45] %v354
      %v356 = vld [vmem:[%s52 + $0x25c] sm:%s45]
      %357 = vst [vmem:[%s53 + $0x25c] sm:%s45] %v356
      %v358 = vld [vmem:[%s52 + $0x260] sm:%s45]
      %359 = vst [vmem:[%s53 + $0x260] sm:%s45] %v358
      %v360 = vld [vmem:[%s52 + $0x270] sm:%s45]
      %361 = vst [vmem:[%s53 + $0x264] sm:%s45] %v360
      %v362 = vld [vmem:[%s52 + $0x264] sm:%s45]
      %363 = vst [vmem:[%s53 + $0x268] sm:%s45] %v362
      %v364 = vld [vmem:[%s52 + $0x274] sm:%s45]
      %365 = vst [vmem:[%s53 + $0x26c] sm:%s45] %v364
      %v366 = vld [vmem:[%s52 + $0x268] sm:%s45]
      %367 = vst [vmem:[%s53 + $0x270] sm:%s45] %v366
      %v368 = vld [vmem:[%s52 + $0x278] sm:%s45]
      %369 = vst [vmem:[%s53 + $0x274] sm:%s45] %v368
      %v370 = vld [vmem:[%s52 + $0x26c] sm:%s45]
      %371 = vst [vmem:[%s53 + $0x278] sm:%s45] %v370
      %v372 = vld [vmem:[%s52 + $0x27c] sm:%s45]
      %373 = vst [vmem:[%s53 + $0x27c] sm:%s45] %v372
      %v374 = vld [vmem:[%s52 + $0x280] sm:%s45]
      %375 = vst [vmem:[%s53 + $0x280] sm:%s45] %v374
      %v376 = vld [vmem:[%s52 + $0x290] sm:%s45]
      %377 = vst [vmem:[%s53 + $0x284] sm:%s45] %v376
      %v378 = vld [vmem:[%s52 + $0x284] sm:%s45]
      %379 = vst [vmem:[%s53 + $0x288] sm:%s45] %v378
      %v380 = vld [vmem:[%s52 + $0x294] sm:%s45]
      %381 = vst [vmem:[%s53 + $0x28c] sm:%s45] %v380
      %v382 = vld [vmem:[%s52 + $0x288] sm:%s45]
      %383 = vst [vmem:[%s53 + $0x290] sm:%s45] %v382
      %v384 = vld [vmem:[%s52 + $0x298] sm:%s45]
      %385 = vst [vmem:[%s53 + $0x294] sm:%s45] %v384
      %v386 = vld [vmem:[%s52 + $0x28c] sm:%s45]
      %387 = vst [vmem:[%s53 + $0x298] sm:%s45] %v386
      %v388 = vld [vmem:[%s52 + $0x29c] sm:%s45]
      %389 = vst [vmem:[%s53 + $0x29c] sm:%s45] %v388
      %v390 = vld [vmem:[%s52 + $0x2a0] sm:%s45]
      %391 = vst [vmem:[%s53 + $0x2a0] sm:%s45] %v390
      %v392 = vld [vmem:[%s52 + $0x2b0] sm:%s45]
      %393 = vst [vmem:[%s53 + $0x2a4] sm:%s45] %v392
      %v394 = vld [vmem:[%s52 + $0x2a4] sm:%s45]
      %395 = vst [vmem:[%s53 + $0x2a8] sm:%s45] %v394
      %v396 = vld [vmem:[%s52 + $0x2b4] sm:%s45]
      %397 = vst [vmem:[%s53 + $0x2ac] sm:%s45] %v396
      %v398 = vld [vmem:[%s52 + $0x2a8] sm:%s45]
      %399 = vst [vmem:[%s53 + $0x2b0] sm:%s45] %v398
      %v400 = vld [vmem:[%s52 + $0x2b8] sm:%s45]
      %401 = vst [vmem:[%s53 + $0x2b4] sm:%s45] %v400
      %v402 = vld [vmem:[%s52 + $0x2ac] sm:%s45]
      %403 = vst [vmem:[%s53 + $0x2b8] sm:%s45] %v402
      %v404 = vld [vmem:[%s52 + $0x2bc] sm:%s45]
      %405 = vst [vmem:[%s53 + $0x2bc] sm:%s45] %v404
      %v406 = vld [vmem:[%s52 + $0x2c0] sm:%s45]
      %407 = vst [vmem:[%s53 + $0x2c0] sm:%s45] %v406
      %v408 = vld [vmem:[%s52 + $0x2d0] sm:%s45]
      %409 = vst [vmem:[%s53 + $0x2c4] sm:%s45] %v408
      %v410 = vld [vmem:[%s52 + $0x2c4] sm:%s45]
      %411 = vst [vmem:[%s53 + $0x2c8] sm:%s45] %v410
      %v412 = vld [vmem:[%s52 + $0x2d4] sm:%s45]
      %413 = vst [vmem:[%s53 + $0x2cc] sm:%s45] %v412
      %v414 = vld [vmem:[%s52 + $0x2c8] sm:%s45]
      %415 = vst [vmem:[%s53 + $0x2d0] sm:%s45] %v414
      %v416 = vld [vmem:[%s52 + $0x2d8] sm:%s45]
      %417 = vst [vmem:[%s53 + $0x2d4] sm:%s45] %v416
      %v418 = vld [vmem:[%s52 + $0x2cc] sm:%s45]
      %419 = vst [vmem:[%s53 + $0x2d8] sm:%s45] %v418
      %v420 = vld [vmem:[%s52 + $0x2dc] sm:%s45]
      %421 = vst [vmem:[%s53 + $0x2dc] sm:%s45] %v420
      %v422 = vld [vmem:[%s52 + $0x2e0] sm:%s45]
      %423 = vst [vmem:[%s53 + $0x2e0] sm:%s45] %v422
      %v424 = vld [vmem:[%s52 + $0x2f0] sm:%s45]
      %425 = vst [vmem:[%s53 + $0x2e4] sm:%s45] %v424
      %v426 = vld [vmem:[%s52 + $0x2e4] sm:%s45]
      %427 = vst [vmem:[%s53 + $0x2e8] sm:%s45] %v426
      %v428 = vld [vmem:[%s52 + $0x2f4] sm:%s45]
      %429 = vst [vmem:[%s53 + $0x2ec] sm:%s45] %v428
      %v430 = vld [vmem:[%s52 + $0x2e8] sm:%s45]
      %431 = vst [vmem:[%s53 + $0x2f0] sm:%s45] %v430
      %v432 = vld [vmem:[%s52 + $0x2f8] sm:%s45]
      %433 = vst [vmem:[%s53 + $0x2f4] sm:%s45] %v432
      %v434 = vld [vmem:[%s52 + $0x2ec] sm:%s45]
      %435 = vst [vmem:[%s53 + $0x2f8] sm:%s45] %v434
      %v436 = vld [vmem:[%s52 + $0x2fc] sm:%s45]
      %437 = vst [vmem:[%s53 + $0x2fc] sm:%s45] %v436
      %v438 = vld [vmem:[%s52 + $0x300] sm:%s45]
      %439 = vst [vmem:[%s53 + $0x300] sm:%s45] %v438
      %v440 = vld [vmem:[%s52 + $0x310] sm:%s45]
      %441 = vst [vmem:[%s53 + $0x304] sm:%s45] %v440
      %v442 = vld [vmem:[%s52 + $0x304] sm:%s45]
      %443 = vst [vmem:[%s53 + $0x308] sm:%s45] %v442
      %v444 = vld [vmem:[%s52 + $0x314] sm:%s45]
      %445 = vst [vmem:[%s53 + $0x30c] sm:%s45] %v444
      %v446 = vld [vmem:[%s52 + $0x308] sm:%s45]
      %447 = vst [vmem:[%s53 + $0x310] sm:%s45] %v446
      %v448 = vld [vmem:[%s52 + $0x318] sm:%s45]
      %449 = vst [vmem:[%s53 + $0x314] sm:%s45] %v448
      %v450 = vld [vmem:[%s52 + $0x30c] sm:%s45]
      %451 = vst [vmem:[%s53 + $0x318] sm:%s45] %v450
      %v452 = vld [vmem:[%s52 + $0x31c] sm:%s45]
      %453 = vst [vmem:[%s53 + $0x31c] sm:%s45] %v452
      %v454 = vld [vmem:[%s52 + $0x320] sm:%s45]
      %455 = vst [vmem:[%s53 + $0x320] sm:%s45] %v454
      %v456 = vld [vmem:[%s52 + $0x330] sm:%s45]
      %457 = vst [vmem:[%s53 + $0x324] sm:%s45] %v456
      %v458 = vld [vmem:[%s52 + $0x324] sm:%s45]
      %459 = vst [vmem:[%s53 + $0x328] sm:%s45] %v458
      %v460 = vld [vmem:[%s52 + $0x334] sm:%s45]
      %461 = vst [vmem:[%s53 + $0x32c] sm:%s45] %v460
      %v462 = vld [vmem:[%s52 + $0x328] sm:%s45]
      %463 = vst [vmem:[%s53 + $0x330] sm:%s45] %v462
      %v464 = vld [vmem:[%s52 + $0x338] sm:%s45]
      %465 = vst [vmem:[%s53 + $0x334] sm:%s45] %v464
      %v466 = vld [vmem:[%s52 + $0x32c] sm:%s45]
      %467 = vst [vmem:[%s53 + $0x338] sm:%s45] %v466
      %v468 = vld [vmem:[%s52 + $0x33c] sm:%s45]
      %469 = vst [vmem:[%s53 + $0x33c] sm:%s45] %v468
      %v470 = vld [vmem:[%s52 + $0x340] sm:%s45]
      %471 = vst [vmem:[%s53 + $0x340] sm:%s45] %v470
      %v472 = vld [vmem:[%s52 + $0x350] sm:%s45]
      %473 = vst [vmem:[%s53 + $0x344] sm:%s45] %v472
      %v474 = vld [vmem:[%s52 + $0x344] sm:%s45]
      %475 = vst [vmem:[%s53 + $0x348] sm:%s45] %v474
      %v476 = vld [vmem:[%s52 + $0x354] sm:%s45]
      %477 = vst [vmem:[%s53 + $0x34c] sm:%s45] %v476
      %v478 = vld [vmem:[%s52 + $0x348] sm:%s45]
      %479 = vst [vmem:[%s53 + $0x350] sm:%s45] %v478
      %v480 = vld [vmem:[%s52 + $0x358] sm:%s45]
      %481 = vst [vmem:[%s53 + $0x354] sm:%s45] %v480
      %v482 = vld [vmem:[%s52 + $0x34c] sm:%s45]
      %483 = vst [vmem:[%s53 + $0x358] sm:%s45] %v482
      %v484 = vld [vmem:[%s52 + $0x35c] sm:%s45]
      %485 = vst [vmem:[%s53 + $0x35c] sm:%s45] %v484
      %v486 = vld [vmem:[%s52 + $0x360] sm:%s45]
      %487 = vst [vmem:[%s53 + $0x360] sm:%s45] %v486
      %v488 = vld [vmem:[%s52 + $0x370] sm:%s45]
      %489 = vst [vmem:[%s53 + $0x364] sm:%s45] %v488
      %v490 = vld [vmem:[%s52 + $0x364] sm:%s45]
      %491 = vst [vmem:[%s53 + $0x368] sm:%s45] %v490
      %v492 = vld [vmem:[%s52 + $0x374] sm:%s45]
      %493 = vst [vmem:[%s53 + $0x36c] sm:%s45] %v492
      %v494 = vld [vmem:[%s52 + $0x368] sm:%s45]
      %495 = vst [vmem:[%s53 + $0x370] sm:%s45] %v494
      %v496 = vld [vmem:[%s52 + $0x378] sm:%s45]
      %497 = vst [vmem:[%s53 + $0x374] sm:%s45] %v496
      %v498 = vld [vmem:[%s52 + $0x36c] sm:%s45]
      %499 = vst [vmem:[%s53 + $0x378] sm:%s45] %v498
      %v500 = vld [vmem:[%s52 + $0x37c] sm:%s45]
      %501 = vst [vmem:[%s53 + $0x37c] sm:%s45] %v500
      %v502 = vld [vmem:[%s52 + $0x380] sm:%s45]
      %503 = vst [vmem:[%s53 + $0x380] sm:%s45] %v502
      %v504 = vld [vmem:[%s52 + $0x390] sm:%s45]
      %505 = vst [vmem:[%s53 + $0x384] sm:%s45] %v504
      %v506 = vld [vmem:[%s52 + $0x384] sm:%s45]
      %507 = vst [vmem:[%s53 + $0x388] sm:%s45] %v506
      %v508 = vld [vmem:[%s52 + $0x394] sm:%s45]
      %509 = vst [vmem:[%s53 + $0x38c] sm:%s45] %v508
      %v510 = vld [vmem:[%s52 + $0x388] sm:%s45]
      %511 = vst [vmem:[%s53 + $0x390] sm:%s45] %v510
      %v512 = vld [vmem:[%s52 + $0x398] sm:%s45]
      %513 = vst [vmem:[%s53 + $0x394] sm:%s45] %v512
      %v514 = vld [vmem:[%s52 + $0x38c] sm:%s45]
      %515 = vst [vmem:[%s53 + $0x398] sm:%s45] %v514
      %v516 = vld [vmem:[%s52 + $0x39c] sm:%s45]
      %517 = vst [vmem:[%s53 + $0x39c] sm:%s45] %v516
      %v518 = vld [vmem:[%s52 + $0x3a0] sm:%s45]
      %519 = vst [vmem:[%s53 + $0x3a0] sm:%s45] %v518
      %v520 = vld [vmem:[%s52 + $0x3b0] sm:%s45]
      %521 = vst [vmem:[%s53 + $0x3a4] sm:%s45] %v520
      %v522 = vld [vmem:[%s52 + $0x3a4] sm:%s45]
      %523 = vst [vmem:[%s53 + $0x3a8] sm:%s45] %v522
      %v524 = vld [vmem:[%s52 + $0x3b4] sm:%s45]
      %525 = vst [vmem:[%s53 + $0x3ac] sm:%s45] %v524
      %v526 = vld [vmem:[%s52 + $0x3a8] sm:%s45]
      %527 = vst [vmem:[%s53 + $0x3b0] sm:%s45] %v526
      %v528 = vld [vmem:[%s52 + $0x3b8] sm:%s45]
      %529 = vst [vmem:[%s53 + $0x3b4] sm:%s45] %v528
      %v530 = vld [vmem:[%s52 + $0x3ac] sm:%s45]
      %531 = vst [vmem:[%s53 + $0x3b8] sm:%s45] %v530
      %v532 = vld [vmem:[%s52 + $0x3bc] sm:%s45]
      %533 = vst [vmem:[%s53 + $0x3bc] sm:%s45] %v532
      %v534 = vld [vmem:[%s52 + $0x3c0] sm:%s45]
      %535 = vst [vmem:[%s53 + $0x3c0] sm:%s45] %v534
      %v536 = vld [vmem:[%s52 + $0x3d0] sm:%s45]
      %537 = vst [vmem:[%s53 + $0x3c4] sm:%s45] %v536
      %v538 = vld [vmem:[%s52 + $0x3c4] sm:%s45]
      %539 = vst [vmem:[%s53 + $0x3c8] sm:%s45] %v538
      %v540 = vld [vmem:[%s52 + $0x3d4] sm:%s45]
      %541 = vst [vmem:[%s53 + $0x3cc] sm:%s45] %v540
      %v542 = vld [vmem:[%s52 + $0x3c8] sm:%s45]
      %543 = vst [vmem:[%s53 + $0x3d0] sm:%s45] %v542
      %v544 = vld [vmem:[%s52 + $0x3d8] sm:%s45]
      %545 = vst [vmem:[%s53 + $0x3d4] sm:%s45] %v544
      %v546 = vld [vmem:[%s52 + $0x3cc] sm:%s45]
      %547 = vst [vmem:[%s53 + $0x3d8] sm:%s45] %v546
      %v548 = vld [vmem:[%s52 + $0x3dc] sm:%s45]
      %549 = vst [vmem:[%s53 + $0x3dc] sm:%s45] %v548
      %v550 = vld [vmem:[%s52 + $0x3e0] sm:%s45]
      %551 = vst [vmem:[%s53 + $0x3e0] sm:%s45] %v550
      %v552 = vld [vmem:[%s52 + $0x3f0] sm:%s45]
      %553 = vst [vmem:[%s53 + $0x3e4] sm:%s45] %v552
      %v554 = vld [vmem:[%s52 + $0x3e4] sm:%s45]
      %555 = vst [vmem:[%s53 + $0x3e8] sm:%s45] %v554
      %v556 = vld [vmem:[%s52 + $0x3f4] sm:%s45]
      %557 = vst [vmem:[%s53 + $0x3ec] sm:%s45] %v556
      %v558 = vld [vmem:[%s52 + $0x3e8] sm:%s45]
      %559 = vst [vmem:[%s53 + $0x3f0] sm:%s45] %v558
      %v560 = vld [vmem:[%s52 + $0x3f8] sm:%s45]
      %561 = vst [vmem:[%s53 + $0x3f4] sm:%s45] %v560
      %v562 = vld [vmem:[%s52 + $0x3ec] sm:%s45]
      %563 = vst [vmem:[%s53 + $0x3f8] sm:%s45] %v562
      %v564 = vld [vmem:[%s52 + $0x3fc] sm:%s45]
      %565 = vst [vmem:[%s53 + $0x3fc] sm:%s45] %v564
      %v566 = vld [vmem:[%s52 + $0x400] sm:%s45]
      %567 = vst [vmem:[%s53 + $0x400] sm:%s45] %v566
      %v568 = vld [vmem:[%s52 + $0x410] sm:%s45]
      %569 = vst [vmem:[%s53 + $0x404] sm:%s45] %v568
      %v570 = vld [vmem:[%s52 + $0x404] sm:%s45]
      %571 = vst [vmem:[%s53 + $0x408] sm:%s45] %v570
      %v572 = vld [vmem:[%s52 + $0x414] sm:%s45]
      %573 = vst [vmem:[%s53 + $0x40c] sm:%s45] %v572
      %v574 = vld [vmem:[%s52 + $0x408] sm:%s45]
      %575 = vst [vmem:[%s53 + $0x410] sm:%s45] %v574
      %v576 = vld [vmem:[%s52 + $0x418] sm:%s45]
      %577 = vst [vmem:[%s53 + $0x414] sm:%s45] %v576
      %v578 = vld [vmem:[%s52 + $0x40c] sm:%s45]
      %579 = vst [vmem:[%s53 + $0x418] sm:%s45] %v578
      %v580 = vld [vmem:[%s52 + $0x41c] sm:%s45]
      %581 = vst [vmem:[%s53 + $0x41c] sm:%s45] %v580
      %v582 = vld [vmem:[%s52 + $0x420] sm:%s45]
      %583 = vst [vmem:[%s53 + $0x420] sm:%s45] %v582
      %v584 = vld [vmem:[%s52 + $0x430] sm:%s45]
      %585 = vst [vmem:[%s53 + $0x424] sm:%s45] %v584
      %v586 = vld [vmem:[%s52 + $0x424] sm:%s45]
      %587 = vst [vmem:[%s53 + $0x428] sm:%s45] %v586
      %v588 = vld [vmem:[%s52 + $0x434] sm:%s45]
      %589 = vst [vmem:[%s53 + $0x42c] sm:%s45] %v588
      %v590 = vld [vmem:[%s52 + $0x428] sm:%s45]
      %591 = vst [vmem:[%s53 + $0x430] sm:%s45] %v590
      %v592 = vld [vmem:[%s52 + $0x438] sm:%s45]
      %593 = vst [vmem:[%s53 + $0x434] sm:%s45] %v592
      %v594 = vld [vmem:[%s52 + $0x42c] sm:%s45]
      %595 = vst [vmem:[%s53 + $0x438] sm:%s45] %v594
      %v596 = vld [vmem:[%s52 + $0x43c] sm:%s45]
      %597 = vst [vmem:[%s53 + $0x43c] sm:%s45] %v596
      %v598 = vld [vmem:[%s52 + $0x440] sm:%s45]
      %599 = vst [vmem:[%s53 + $0x440] sm:%s45] %v598
      %v600 = vld [vmem:[%s52 + $0x450] sm:%s45]
      %601 = vst [vmem:[%s53 + $0x444] sm:%s45] %v600
      %v602 = vld [vmem:[%s52 + $0x444] sm:%s45]
      %603 = vst [vmem:[%s53 + $0x448] sm:%s45] %v602
      %v604 = vld [vmem:[%s52 + $0x454] sm:%s45]
      %605 = vst [vmem:[%s53 + $0x44c] sm:%s45] %v604
      %v606 = vld [vmem:[%s52 + $0x448] sm:%s45]
      %607 = vst [vmem:[%s53 + $0x450] sm:%s45] %v606
      %v608 = vld [vmem:[%s52 + $0x458] sm:%s45]
      %609 = vst [vmem:[%s53 + $0x454] sm:%s45] %v608
      %v610 = vld [vmem:[%s52 + $0x44c] sm:%s45]
      %611 = vst [vmem:[%s53 + $0x458] sm:%s45] %v610
      %v612 = vld [vmem:[%s52 + $0x45c] sm:%s45]
      %613 = vst [vmem:[%s53 + $0x45c] sm:%s45] %v612
      %v614 = vld [vmem:[%s52 + $0x460] sm:%s45]
      %615 = vst [vmem:[%s53 + $0x460] sm:%s45] %v614
      %v616 = vld [vmem:[%s52 + $0x470] sm:%s45]
      %617 = vst [vmem:[%s53 + $0x464] sm:%s45] %v616
      %v618 = vld [vmem:[%s52 + $0x464] sm:%s45]
      %619 = vst [vmem:[%s53 + $0x468] sm:%s45] %v618
      %v620 = vld [vmem:[%s52 + $0x474] sm:%s45]
      %621 = vst [vmem:[%s53 + $0x46c] sm:%s45] %v620
      %v622 = vld [vmem:[%s52 + $0x468] sm:%s45]
      %623 = vst [vmem:[%s53 + $0x470] sm:%s45] %v622
      %v624 = vld [vmem:[%s52 + $0x478] sm:%s45]
      %625 = vst [vmem:[%s53 + $0x474] sm:%s45] %v624
      %v626 = vld [vmem:[%s52 + $0x46c] sm:%s45]
      %627 = vst [vmem:[%s53 + $0x478] sm:%s45] %v626
      %v628 = vld [vmem:[%s52 + $0x47c] sm:%s45]
      %629 = vst [vmem:[%s53 + $0x47c] sm:%s45] %v628
      %v630 = vld [vmem:[%s52 + $0x480] sm:%s45]
      %631 = vst [vmem:[%s53 + $0x480] sm:%s45] %v630
      %v632 = vld [vmem:[%s52 + $0x490] sm:%s45]
      %633 = vst [vmem:[%s53 + $0x484] sm:%s45] %v632
      %v634 = vld [vmem:[%s52 + $0x484] sm:%s45]
      %635 = vst [vmem:[%s53 + $0x488] sm:%s45] %v634
      %v636 = vld [vmem:[%s52 + $0x494] sm:%s45]
      %637 = vst [vmem:[%s53 + $0x48c] sm:%s45] %v636
      %v638 = vld [vmem:[%s52 + $0x488] sm:%s45]
      %639 = vst [vmem:[%s53 + $0x490] sm:%s45] %v638
      %v640 = vld [vmem:[%s52 + $0x498] sm:%s45]
      %641 = vst [vmem:[%s53 + $0x494] sm:%s45] %v640
      %v642 = vld [vmem:[%s52 + $0x48c] sm:%s45]
      %643 = vst [vmem:[%s53 + $0x498] sm:%s45] %v642
      %v644 = vld [vmem:[%s52 + $0x49c] sm:%s45]
      %645 = vst [vmem:[%s53 + $0x49c] sm:%s45] %v644
      %v646 = vld [vmem:[%s52 + $0x4a0] sm:%s45]
      %647 = vst [vmem:[%s53 + $0x4a0] sm:%s45] %v646
      %v648 = vld [vmem:[%s52 + $0x4b0] sm:%s45]
      %649 = vst [vmem:[%s53 + $0x4a4] sm:%s45] %v648
      %v650 = vld [vmem:[%s52 + $0x4a4] sm:%s45]
      %651 = vst [vmem:[%s53 + $0x4a8] sm:%s45] %v650
      %v652 = vld [vmem:[%s52 + $0x4b4] sm:%s45]
      %653 = vst [vmem:[%s53 + $0x4ac] sm:%s45] %v652
      %v654 = vld [vmem:[%s52 + $0x4a8] sm:%s45]
      %655 = vst [vmem:[%s53 + $0x4b0] sm:%s45] %v654
      %v656 = vld [vmem:[%s52 + $0x4b8] sm:%s45]
      %657 = vst [vmem:[%s53 + $0x4b4] sm:%s45] %v656
      %v658 = vld [vmem:[%s52 + $0x4ac] sm:%s45]
      %659 = vst [vmem:[%s53 + $0x4b8] sm:%s45] %v658
      %v660 = vld [vmem:[%s52 + $0x4bc] sm:%s45]
      %661 = vst [vmem:[%s53 + $0x4bc] sm:%s45] %v660
      %v662 = vld [vmem:[%s52 + $0x4c0] sm:%s45]
      %663 = vst [vmem:[%s53 + $0x4c0] sm:%s45] %v662
      %v664 = vld [vmem:[%s52 + $0x4d0] sm:%s45]
      %665 = vst [vmem:[%s53 + $0x4c4] sm:%s45] %v664
      %v666 = vld [vmem:[%s52 + $0x4c4] sm:%s45]
      %667 = vst [vmem:[%s53 + $0x4c8] sm:%s45] %v666
      %v668 = vld [vmem:[%s52 + $0x4d4] sm:%s45]
      %669 = vst [vmem:[%s53 + $0x4cc] sm:%s45] %v668
      %v670 = vld [vmem:[%s52 + $0x4c8] sm:%s45]
      %671 = vst [vmem:[%s53 + $0x4d0] sm:%s45] %v670
      %v672 = vld [vmem:[%s52 + $0x4d8] sm:%s45]
      %673 = vst [vmem:[%s53 + $0x4d4] sm:%s45] %v672
      %v674 = vld [vmem:[%s52 + $0x4cc] sm:%s45]
      %675 = vst [vmem:[%s53 + $0x4d8] sm:%s45] %v674
      %v676 = vld [vmem:[%s52 + $0x4dc] sm:%s45]
      %677 = vst [vmem:[%s53 + $0x4dc] sm:%s45] %v676
      %v678 = vld [vmem:[%s52 + $0x4e0] sm:%s45]
      %679 = vst [vmem:[%s53 + $0x4e0] sm:%s45] %v678
      %v680 = vld [vmem:[%s52 + $0x4f0] sm:%s45]
      %681 = vst [vmem:[%s53 + $0x4e4] sm:%s45] %v680
      %v682 = vld [vmem:[%s52 + $0x4e4] sm:%s45]
      %683 = vst [vmem:[%s53 + $0x4e8] sm:%s45] %v682
      %v684 = vld [vmem:[%s52 + $0x4f4] sm:%s45]
      %685 = vst [vmem:[%s53 + $0x4ec] sm:%s45] %v684
      %v686 = vld [vmem:[%s52 + $0x4e8] sm:%s45]
      %687 = vst [vmem:[%s53 + $0x4f0] sm:%s45] %v686
      %v688 = vld [vmem:[%s52 + $0x4f8] sm:%s45]
      %689 = vst [vmem:[%s53 + $0x4f4] sm:%s45] %v688
      %v690 = vld [vmem:[%s52 + $0x4ec] sm:%s45]
      %691 = vst [vmem:[%s53 + $0x4f8] sm:%s45] %v690
      %v692 = vld [vmem:[%s52 + $0x4fc] sm:%s45]
      %693 = vst [vmem:[%s53 + $0x4fc] sm:%s45] %v692
      %v694 = vld [vmem:[%s52 + $0x500] sm:%s45]
      %695 = vst [vmem:[%s53 + $0x500] sm:%s45] %v694
      %v696 = vld [vmem:[%s52 + $0x510] sm:%s45]
      %697 = vst [vmem:[%s53 + $0x504] sm:%s45] %v696
      %v698 = vld [vmem:[%s52 + $0x504] sm:%s45]
      %699 = vst [vmem:[%s53 + $0x508] sm:%s45] %v698
      %v700 = vld [vmem:[%s52 + $0x514] sm:%s45]
      %701 = vst [vmem:[%s53 + $0x50c] sm:%s45] %v700
      %v702 = vld [vmem:[%s52 + $0x508] sm:%s45]
      %703 = vst [vmem:[%s53 + $0x510] sm:%s45] %v702
      %v704 = vld [vmem:[%s52 + $0x518] sm:%s45]
      %705 = vst [vmem:[%s53 + $0x514] sm:%s45] %v704
      %v706 = vld [vmem:[%s52 + $0x50c] sm:%s45]
      %707 = vst [vmem:[%s53 + $0x518] sm:%s45] %v706
      %v708 = vld [vmem:[%s52 + $0x51c] sm:%s45]
      %709 = vst [vmem:[%s53 + $0x51c] sm:%s45] %v708
      %v710 = vld [vmem:[%s52 + $0x520] sm:%s45]
      %711 = vst [vmem:[%s53 + $0x520] sm:%s45] %v710
      %v712 = vld [vmem:[%s52 + $0x530] sm:%s45]
      %713 = vst [vmem:[%s53 + $0x524] sm:%s45] %v712
      %v714 = vld [vmem:[%s52 + $0x524] sm:%s45]
      %715 = vst [vmem:[%s53 + $0x528] sm:%s45] %v714
      %v716 = vld [vmem:[%s52 + $0x534] sm:%s45]
      %717 = vst [vmem:[%s53 + $0x52c] sm:%s45] %v716
      %v718 = vld [vmem:[%s52 + $0x528] sm:%s45]
      %719 = vst [vmem:[%s53 + $0x530] sm:%s45] %v718
      %v720 = vld [vmem:[%s52 + $0x538] sm:%s45]
      %721 = vst [vmem:[%s53 + $0x534] sm:%s45] %v720
      %v722 = vld [vmem:[%s52 + $0x52c] sm:%s45]
      %723 = vst [vmem:[%s53 + $0x538] sm:%s45] %v722
      %v724 = vld [vmem:[%s52 + $0x53c] sm:%s45]
      %725 = vst [vmem:[%s53 + $0x53c] sm:%s45] %v724
      %v726 = vld [vmem:[%s52 + $0x540] sm:%s45]
      %727 = vst [vmem:[%s53 + $0x540] sm:%s45] %v726
      %v728 = vld [vmem:[%s52 + $0x550] sm:%s45]
      %729 = vst [vmem:[%s53 + $0x544] sm:%s45] %v728
      %v730 = vld [vmem:[%s52 + $0x544] sm:%s45]
      %731 = vst [vmem:[%s53 + $0x548] sm:%s45] %v730
      %v732 = vld [vmem:[%s52 + $0x554] sm:%s45]
      %733 = vst [vmem:[%s53 + $0x54c] sm:%s45] %v732
      %v734 = vld [vmem:[%s52 + $0x548] sm:%s45]
      %735 = vst [vmem:[%s53 + $0x550] sm:%s45] %v734
      %v736 = vld [vmem:[%s52 + $0x558] sm:%s45]
      %737 = vst [vmem:[%s53 + $0x554] sm:%s45] %v736
      %v738 = vld [vmem:[%s52 + $0x54c] sm:%s45]
      %739 = vst [vmem:[%s53 + $0x558] sm:%s45] %v738
      %v740 = vld [vmem:[%s52 + $0x55c] sm:%s45]
      %741 = vst [vmem:[%s53 + $0x55c] sm:%s45] %v740
      %v742 = vld [vmem:[%s52 + $0x560] sm:%s45]
      %743 = vst [vmem:[%s53 + $0x560] sm:%s45] %v742
      %v744 = vld [vmem:[%s52 + $0x570] sm:%s45]
      %745 = vst [vmem:[%s53 + $0x564] sm:%s45] %v744
      %v746 = vld [vmem:[%s52 + $0x564] sm:%s45]
      %747 = vst [vmem:[%s53 + $0x568] sm:%s45] %v746
      %v748 = vld [vmem:[%s52 + $0x574] sm:%s45]
      %749 = vst [vmem:[%s53 + $0x56c] sm:%s45] %v748
      %v750 = vld [vmem:[%s52 + $0x568] sm:%s45]
      %751 = vst [vmem:[%s53 + $0x570] sm:%s45] %v750
      %v752 = vld [vmem:[%s52 + $0x578] sm:%s45]
      %753 = vst [vmem:[%s53 + $0x574] sm:%s45] %v752
      %v754 = vld [vmem:[%s52 + $0x56c] sm:%s45]
      %755 = vst [vmem:[%s53 + $0x578] sm:%s45] %v754
      %v756 = vld [vmem:[%s52 + $0x57c] sm:%s45]
      %757 = vst [vmem:[%s53 + $0x57c] sm:%s45] %v756
      %v758 = vld [vmem:[%s52 + $0x580] sm:%s45]
      %759 = vst [vmem:[%s53 + $0x580] sm:%s45] %v758
      %v760 = vld [vmem:[%s52 + $0x590] sm:%s45]
      %761 = vst [vmem:[%s53 + $0x584] sm:%s45] %v760
      %v762 = vld [vmem:[%s52 + $0x584] sm:%s45]
      %763 = vst [vmem:[%s53 + $0x588] sm:%s45] %v762
      %v764 = vld [vmem:[%s52 + $0x594] sm:%s45]
      %765 = vst [vmem:[%s53 + $0x58c] sm:%s45] %v764
      %v766 = vld [vmem:[%s52 + $0x588] sm:%s45]
      %767 = vst [vmem:[%s53 + $0x590] sm:%s45] %v766
      %v768 = vld [vmem:[%s52 + $0x598] sm:%s45]
      %769 = vst [vmem:[%s53 + $0x594] sm:%s45] %v768
      %v770 = vld [vmem:[%s52 + $0x58c] sm:%s45]
      %771 = vst [vmem:[%s53 + $0x598] sm:%s45] %v770
      %v772 = vld [vmem:[%s52 + $0x59c] sm:%s45]
      %773 = vst [vmem:[%s53 + $0x59c] sm:%s45] %v772
      %v774 = vld [vmem:[%s52 + $0x5a0] sm:%s45]
      %775 = vst [vmem:[%s53 + $0x5a0] sm:%s45] %v774
      %v776 = vld [vmem:[%s52 + $0x5b0] sm:%s45]
      %777 = vst [vmem:[%s53 + $0x5a4] sm:%s45] %v776
      %v778 = vld [vmem:[%s52 + $0x5a4] sm:%s45]
      %779 = vst [vmem:[%s53 + $0x5a8] sm:%s45] %v778
      %v780 = vld [vmem:[%s52 + $0x5b4] sm:%s45]
      %781 = vst [vmem:[%s53 + $0x5ac] sm:%s45] %v780
      %v782 = vld [vmem:[%s52 + $0x5a8] sm:%s45]
      %783 = vst [vmem:[%s53 + $0x5b0] sm:%s45] %v782
      %v784 = vld [vmem:[%s52 + $0x5b8] sm:%s45]
      %785 = vst [vmem:[%s53 + $0x5b4] sm:%s45] %v784
      %v786 = vld [vmem:[%s52 + $0x5ac] sm:%s45]
      %787 = vst [vmem:[%s53 + $0x5b8] sm:%s45] %v786
      %v788 = vld [vmem:[%s52 + $0x5bc] sm:%s45]
      %789 = vst [vmem:[%s53 + $0x5bc] sm:%s45] %v788
      %v790 = vld [vmem:[%s52 + $0x5c0] sm:%s45]
      %791 = vst [vmem:[%s53 + $0x5c0] sm:%s45] %v790
      %v792 = vld [vmem:[%s52 + $0x5d0] sm:%s45]
      %793 = vst [vmem:[%s53 + $0x5c4] sm:%s45] %v792
      %v794 = vld [vmem:[%s52 + $0x5c4] sm:%s45]
      %795 = vst [vmem:[%s53 + $0x5c8] sm:%s45] %v794
      %v796 = vld [vmem:[%s52 + $0x5d4] sm:%s45]
      %797 = vst [vmem:[%s53 + $0x5cc] sm:%s45] %v796
      %v798 = vld [vmem:[%s52 + $0x5c8] sm:%s45]
      %799 = vst [vmem:[%s53 + $0x5d0] sm:%s45] %v798
      %v800 = vld [vmem:[%s52 + $0x5d8] sm:%s45]
      %801 = vst [vmem:[%s53 + $0x5d4] sm:%s45] %v800
      %v802 = vld [vmem:[%s52 + $0x5cc] sm:%s45]
      %803 = vst [vmem:[%s53 + $0x5d8] sm:%s45] %v802
      %v804 = vld [vmem:[%s52 + $0x5dc] sm:%s45]
      %805 = vst [vmem:[%s53 + $0x5dc] sm:%s45] %v804
      %v806 = vld [vmem:[%s52 + $0x5e0] sm:%s45]
      %807 = vst [vmem:[%s53 + $0x5e0] sm:%s45] %v806
      %v808 = vld [vmem:[%s52 + $0x5f0] sm:%s45]
      %809 = vst [vmem:[%s53 + $0x5e4] sm:%s45] %v808
      %v810 = vld [vmem:[%s52 + $0x5e4] sm:%s45]
      %811 = vst [vmem:[%s53 + $0x5e8] sm:%s45] %v810
      %v812 = vld [vmem:[%s52 + $0x5f4] sm:%s45]
      %813 = vst [vmem:[%s53 + $0x5ec] sm:%s45] %v812
      %v814 = vld [vmem:[%s52 + $0x5e8] sm:%s45]
      %815 = vst [vmem:[%s53 + $0x5f0] sm:%s45] %v814
      %v816 = vld [vmem:[%s52 + $0x5f8] sm:%s45]
      %817 = vst [vmem:[%s53 + $0x5f4] sm:%s45] %v816
      %v818 = vld [vmem:[%s52 + $0x5ec] sm:%s45]
      %819 = vst [vmem:[%s53 + $0x5f8] sm:%s45] %v818
      %v820 = vld [vmem:[%s52 + $0x5fc] sm:%s45]
      %821 = vst [vmem:[%s53 + $0x5fc] sm:%s45] %v820
    $region54: #{lstm_model_forward.1} parent=48 // loop_footer
      %s51 = sadd.s32 1, %s47
    $region55: #{lstm_model_forward.1} parent=48 // loop_footer_branch
      %46 = sbr.rel target = $region51
    $region56: #{lstm_model_forward.1} parent=48 // loop_exit
      _
  $region49: #{lstm_model_forward.1} parent=0 // pred_fallthru
    _
  // Predicated region
  $region75: #{lstm_model_forward.1} parent=0 // pred_check
    _
  $region76: #{lstm_model_forward.1} parent=0 // pred_check_branch
    %1619 = sbr.rel (0) target = $region78
  $region77: #{lstm_model_forward.1} parent=0 // pred_region
    %1620 = vsyncadd [#allocation4], 24576
  $region78: #{lstm_model_forward.1} parent=0 // pred_fallthru
    _
  %v1621 = vld [vmem:[%s0] sm:$0xff]
  %v1622 = vld [vmem:[%s0 + $0x8] sm:$0xff]
  %v1623 = vld [vmem:[%s0 + $0x10] sm:$0xff]
  %v1624 = vld [vmem:[%s0 + $0x18] sm:$0xff]
  %v1625 = vld [vmem:[%s0 + $0x20] sm:$0xff]
  %v1626 = vld [vmem:[%s0 + $0x28] sm:$0xff]
  %v1627 = vld [vmem:[%s0 + $0x30] sm:$0xff]
  %v1628 = vld [vmem:[%s0 + $0x38] sm:$0xff]
  %v1629 = vld [vmem:[%s0 + $0x40] sm:$0xff]
  %v1630 = vld [vmem:[%s0 + $0x48] sm:$0xff]
  %v1631 = vld [vmem:[%s0 + $0x50] sm:$0xff]
  %v1632 = vld [vmem:[%s0 + $0x58] sm:$0xff]
  %v1633 = vld [vmem:[%s0 + $0x60] sm:$0xff]
  %v1634 = vld [vmem:[%s0 + $0x68] sm:$0xff]
  %v1635 = vld [vmem:[%s0 + $0x70] sm:$0xff]
  %v1636 = vld [vmem:[%s0 + $0x78] sm:$0xff]
  %v1637 = vld [vmem:[%s0 + $0x80] sm:$0xff]
  %v1638 = vld [vmem:[%s0 + $0x88] sm:$0xff]
  %v1639 = vld [vmem:[%s0 + $0x90] sm:$0xff]
  %v1640 = vld [vmem:[%s0 + $0x98] sm:$0xff]
  %v1641 = vld [vmem:[%s0 + $0xa0] sm:$0xff]
  %v1642 = vld [vmem:[%s0 + $0xa8] sm:$0xff]
  %v1643 = vld [vmem:[%s0 + $0xb0] sm:$0xff]
  %v1644 = vld [vmem:[%s0 + $0xb8] sm:$0xff]
  %v1645 = vld [vmem:[%s0 + $0xc0] sm:$0xff]
  %v1646 = vld [vmem:[%s0 + $0xc8] sm:$0xff]
  %v1647 = vld [vmem:[%s0 + $0xd0] sm:$0xff]
  %v1648 = vld [vmem:[%s0 + $0xd8] sm:$0xff]
  %v1649 = vld [vmem:[%s0 + $0xe0] sm:$0xff]
  %v1650 = vld [vmem:[%s0 + $0xe8] sm:$0xff]
  %v1651 = vld [vmem:[%s0 + $0xf0] sm:$0xff]
  %v1652 = vld [vmem:[%s0 + $0xf8] sm:$0xff]
  %v1653 = vld [vmem:[%s0 + $0x100] sm:$0xff]
  %v1654 = vld [vmem:[%s0 + $0x108] sm:$0xff]
  %v1655 = vld [vmem:[%s0 + $0x110] sm:$0xff]
  %v1656 = vld [vmem:[%s0 + $0x118] sm:$0xff]
  %v1657 = vld [vmem:[%s0 + $0x120] sm:$0xff]
  %v1658 = vld [vmem:[%s0 + $0x128] sm:$0xff]
  %v1659 = vld [vmem:[%s0 + $0x130] sm:$0xff]
  %v1660 = vld [vmem:[%s0 + $0x138] sm:$0xff]
  %v1661 = vld [vmem:[%s0 + $0x140] sm:$0xff]
  %v1662 = vld [vmem:[%s0 + $0x148] sm:$0xff]
  %v1663 = vld [vmem:[%s0 + $0x150] sm:$0xff]
  %v1664 = vld [vmem:[%s0 + $0x158] sm:$0xff]
  %v1665 = vld [vmem:[%s0 + $0x160] sm:$0xff]
  %v1666 = vld [vmem:[%s0 + $0x168] sm:$0xff]
  %v1667 = vld [vmem:[%s0 + $0x170] sm:$0xff]
  %v1668 = vld [vmem:[%s0 + $0x178] sm:$0xff]
  %v1669 = vld [vmem:[%s0 + $0x180] sm:$0xff]
  %v1670 = vld [vmem:[%s0 + $0x188] sm:$0xff]
  %v1671 = vld [vmem:[%s0 + $0x190] sm:$0xff]
  %v1672 = vld [vmem:[%s0 + $0x198] sm:$0xff]
  %v1673 = vld [vmem:[%s0 + $0x1a0] sm:$0xff]
  %v1674 = vld [vmem:[%s0 + $0x1a8] sm:$0xff]
  %v1675 = vld [vmem:[%s0 + $0x1b0] sm:$0xff]
  %v1676 = vld [vmem:[%s0 + $0x1b8] sm:$0xff]
  %v1677 = vld [vmem:[%s0 + $0x1c0] sm:$0xff]
  %v1678 = vld [vmem:[%s0 + $0x1c8] sm:$0xff]
  %v1679 = vld [vmem:[%s0 + $0x1d0] sm:$0xff]
  %v1680 = vld [vmem:[%s0 + $0x1d8] sm:$0xff]
  %v1681 = vld [vmem:[%s1] sm:$0xff]
  %v1682 = vld [vmem:[%s1 + $0x8] sm:$0xff]
  %v1683 = vld [vmem:[%s1 + $0x10] sm:$0xff]
  %v1684 = vld [vmem:[%s1 + $0x18] sm:$0xff]
  %v1685 = vld [vmem:[%s1 + $0x20] sm:$0xff]
  %v1686 = vld [vmem:[%s1 + $0x28] sm:$0xff]
  %v1687 = vld [vmem:[%s1 + $0x30] sm:$0xff]
  %v1688 = vld [vmem:[%s1 + $0x38] sm:$0xff]
  %v1689 = vld [vmem:[%s3] sm:$0xf]
  %v1691 = vlaneseq
  %v1692 = vshrl.u32 %v1691, 7
  %v1693 = vsub.s32 0, %v1692
  %v1694 = vrot.slane %v1689, %v1693
  %v1695 = vlaneseq
  %v1696 = vshrl.u32 %v1695, 7
  %v1697 = vsub.s32 1, %v1696
  %v1698 = vrot.slane %v1689, %v1697
  %v1699 = vlaneseq
  %v1700 = vshrl.u32 %v1699, 7
  %v1701 = vsub.s32 2, %v1700
  %v1702 = vrot.slane %v1689, %v1701
  %v1703 = vlaneseq
  %v1704 = vshrl.u32 %v1703, 7
  %v1705 = vsub.s32 3, %v1704
  %v1706 = vrot.slane %v1689, %v1705
  %vm1711 = vcmask 130048
  %v1713 = vsel %vm1711, %v1621, 0
  %v1716 = vsel %vm1711, %v1622, 0
  %v1719 = vsel %vm1711, %v1623, 0
  %v1722 = vsel %vm1711, %v1624, 0
  %v1725 = vsel %vm1711, %v1625, 0
  %v1728 = vsel %vm1711, %v1626, 0
  %v1731 = vsel %vm1711, %v1627, 0
  %v1734 = vsel %vm1711, %v1628, 0
  %v1737 = vsel %vm1711, %v1629, 0
  %v1740 = vsel %vm1711, %v1630, 0
  %v1743 = vsel %vm1711, %v1631, 0
  %v1746 = vsel %vm1711, %v1632, 0
  %v1749 = vsel %vm1711, %v1633, 0
  %v1752 = vsel %vm1711, %v1634, 0
  %v1755 = vsel %vm1711, %v1635, 0
  %v1758 = vsel %vm1711, %v1636, 0
  %v1761 = vsel %vm1711, %v1637, 0
  %v1764 = vsel %vm1711, %v1638, 0
  %v1767 = vsel %vm1711, %v1639, 0
  %v1770 = vsel %vm1711, %v1640, 0
  %v1773 = vsel %vm1711, %v1641, 0
  %v1776 = vsel %vm1711, %v1642, 0
  %v1779 = vsel %vm1711, %v1643, 0
  %v1782 = vsel %vm1711, %v1644, 0
  %v1785 = vsel %vm1711, %v1645, 0
  %v1788 = vsel %vm1711, %v1646, 0
  %v1791 = vsel %vm1711, %v1647, 0
  %v1794 = vsel %vm1711, %v1648, 0
  %v1797 = vsel %vm1711, %v1649, 0
  %v1800 = vsel %vm1711, %v1650, 0
  %v1803 = vsel %vm1711, %v1651, 0
  %v1806 = vsel %vm1711, %v1652, 0
  %v1809 = vsel %vm1711, %v1653, 0
  %v1812 = vsel %vm1711, %v1654, 0
  %v1815 = vsel %vm1711, %v1655, 0
  %v1818 = vsel %vm1711, %v1656, 0
  %v1821 = vsel %vm1711, %v1657, 0
  %v1824 = vsel %vm1711, %v1658, 0
  %v1827 = vsel %vm1711, %v1659, 0
  %v1830 = vsel %vm1711, %v1660, 0
  %v1833 = vsel %vm1711, %v1661, 0
  %v1836 = vsel %vm1711, %v1662, 0
  %v1839 = vsel %vm1711, %v1663, 0
  %v1842 = vsel %vm1711, %v1664, 0
  %v1845 = vsel %vm1711, %v1665, 0
  %v1848 = vsel %vm1711, %v1666, 0
  %v1851 = vsel %vm1711, %v1667, 0
  %v1854 = vsel %vm1711, %v1668, 0
  %v1857 = vsel %vm1711, %v1669, 0
  %v1860 = vsel %vm1711, %v1670, 0
  %v1863 = vsel %vm1711, %v1671, 0
  %v1866 = vsel %vm1711, %v1672, 0
  %v1869 = vsel %vm1711, %v1673, 0
  %v1872 = vsel %vm1711, %v1674, 0
  %v1875 = vsel %vm1711, %v1675, 0
  %v1878 = vsel %vm1711, %v1676, 0
  %v1881 = vsel %vm1711, %v1677, 0
  %v1884 = vsel %vm1711, %v1678, 0
  %v1887 = vsel %vm1711, %v1679, 0
  %v1890 = vsel %vm1711, %v1680, 0
  %1892 = vmatprep.subr.mxu0 %v1682
  %1893 = vmatpush1.msra.mxu0 %v1681
  %1894 = vmatprep.subr.mxu0 %v1686
  %1895 = vmatpush1.msra.mxu0 %v1685
  %1896 = vmatprep.subr.mxu0 0.0
  %1897 = vmatpush1.msra.mxu0 0.0
  %1898 = vmatprep.subr.mxu0 0.0
  %1899 = vmatpush1.msra.mxu0 0.0
  %1900 = vmatprep.subr.mxu0 0.0
  %1901 = vmatpush1.msra.mxu0 0.0
  %1902 = vmatprep.subr.mxu0 0.0
  %1903 = vmatpush1.msra.mxu0 0.0
  %1904 = vmatprep.subr.mxu0 0.0
  %1905 = vmatpush1.msra.mxu0 0.0
  %1906 = vmatprep.subr.mxu0 0.0
  %1907 = vmatpush1.msra.mxu0 0.0
  %1908 = vmatprep.subr.mxu0 0.0
  %1909 = vmatpush1.msra.mxu0 0.0
  %1910 = vmatprep.subr.mxu0 0.0
  %1911 = vmatpush1.msra.mxu0 0.0
  %1912 = vmatprep.subr.mxu0 0.0
  %1913 = vmatpush1.msra.mxu0 0.0
  %1914 = vmatprep.subr.mxu0 0.0
  %1915 = vmatpush1.msra.mxu0 0.0
  %1916 = vmatprep.subr.mxu0 0.0
  %1917 = vmatpush1.msra.mxu0 0.0
  %1918 = vmatprep.subr.mxu0 0.0
  %1919 = vmatpush1.msra.mxu0 0.0
  %1920 = vmatprep.subr.mxu0 0.0
  %1921 = vmatpush1.msra.mxu0 0.0
  %1922 = vmatprep.subr.mxu0 0.0
  %1923 = vmatpush1.msra.mxu0 0.0
  %1924 = vmatprep.subr.mxu0 0.0
  %1925 = vmatpush1.msra.mxu0 0.0
  %1926 = vmatprep.subr.mxu0 0.0
  %1927 = vmatpush1.msra.mxu0 0.0
  %1928 = vmatprep.subr.mxu0 0.0
  %1929 = vmatpush1.msra.mxu0 0.0
  %1930 = vmatprep.subr.mxu0 0.0
  %1931 = vmatpush1.msra.mxu0 0.0
  %1932 = vmatprep.subr.mxu0 0.0
  %1933 = vmatpush1.msra.mxu0 0.0
  %1934 = vmatprep.subr.mxu0 0.0
  %1935 = vmatpush1.msra.mxu0 0.0
  %1936 = vmatprep.subr.mxu0 0.0
  %1937 = vmatpush1.msra.mxu0 0.0
  %1938 = vmatprep.subr.mxu0 0.0
  %1939 = vmatpush1.msra.mxu0 0.0
  %1940 = vmatprep.subr.mxu0 0.0
  %1941 = vmatpush1.msra.mxu0 0.0
  %1942 = vmatprep.subr.mxu0 0.0
  %1943 = vmatpush1.msra.mxu0 0.0
  %1944 = vmatprep.subr.mxu0 0.0
  %1945 = vmatpush1.msra.mxu0 0.0
  %1946 = vmatprep.subr.mxu0 0.0
  %1947 = vmatpush1.msra.mxu0 0.0
  %1948 = vmatprep.subr.mxu0 0.0
  %1949 = vmatpush1.msra.mxu0 0.0
  %1950 = vmatprep.subr.mxu0 0.0
  %1951 = vmatpush1.msra.mxu0 0.0
  %1952 = vmatprep.subr.mxu0 0.0
  %1953 = vmatpush1.msra.mxu0 0.0
  %1954 = vmatprep.subr.mxu0 0.0
  %1955 = vmatpush1.msra.mxu0 0.0
  %1956 = vmatprep.mubr.f32.mxu0 0.0
  %1957 = vmatmul.mubr.f32.gmra.mrb[0].mxu0 %v1713
  %v1958 = vpop.f32.mrb[0].mxu0
  %v1959 = vadd.f32 %v1694, %v1958
  %v1960 = vpop.f32.mrb[0].mxu0
  %v1961 = vadd.f32 %v1698, %v1960
  %1962 = vmatprep.mubr.f32.mxu0 0.0
  %1963 = vmatmul.mubr.f32.gmra.mrb[0].mxu0 %v1716
  %v1964 = vpop.f32.mrb[0].mxu0
  %v1965 = vadd.f32 %v1694, %v1964
  %v1966 = vpop.f32.mrb[0].mxu0
  %v1967 = vadd.f32 %v1698, %v1966
  %1968 = vmatprep.mubr.f32.mxu0 0.0
  %1969 = vmatmul.mubr.f32.gmra.mrb[0].mxu0 %v1719
  %v1970 = vpop.f32.mrb[0].mxu0
  %v1971 = vadd.f32 %v1694, %v1970
  %v1972 = vpop.f32.mrb[0].mxu0
  %v1973 = vadd.f32 %v1698, %v1972
  %1974 = vmatprep.mubr.f32.mxu0 0.0
  %1975 = vmatmul.mubr.f32.gmra.mrb[0].mxu0 %v1722
  %v1976 = vpop.f32.mrb[0].mxu0
  %v1977 = vadd.f32 %v1694, %v1976
  %v1978 = vpop.f32.mrb[0].mxu0
  %v1979 = vadd.f32 %v1698, %v1978
  %1980 = vmatprep.mubr.f32.mxu0 0.0
  %1981 = vmatmul.mubr.f32.gmra.mrb[0].mxu0 %v1725
  %v1982 = vpop.f32.mrb[0].mxu0
  %v1983 = vadd.f32 %v1694, %v1982
  %v1984 = vpop.f32.mrb[0].mxu0
  %v1985 = vadd.f32 %v1698, %v1984
  %1986 = vmatprep.mubr.f32.mxu0 0.0
  %1987 = vmatmul.mubr.f32.gmra.mrb[0].mxu0 %v1728
  %v1988 = vpop.f32.mrb[0].mxu0
  %v1989 = vadd.f32 %v1694, %v1988
  %v1990 = vpop.f32.mrb[0].mxu0
  %v1991 = vadd.f32 %v1698, %v1990
  %1992 = vmatprep.mubr.f32.mxu0 0.0
  %1993 = vmatmul.mubr.f32.gmra.mrb[0].mxu0 %v1731
  %v1994 = vpop.f32.mrb[0].mxu0
  %v1995 = vadd.f32 %v1694, %v1994
  %v1996 = vpop.f32.mrb[0].mxu0
  %v1997 = vadd.f32 %v1698, %v1996
  %1998 = vmatprep.mubr.f32.mxu0 0.0
  %1999 = vmatmul.mubr.f32.gmra.mrb[0].mxu0 %v1734
  %v2000 = vpop.f32.mrb[0].mxu0
  %v2001 = vadd.f32 %v1694, %v2000
  %v2002 = vpop.f32.mrb[0].mxu0
  %v2003 = vadd.f32 %v1698, %v2002
  %2004 = vmatprep.mubr.f32.mxu0 0.0
  %2005 = vmatmul.mubr.f32.gmra.mrb[0].mxu0 %v1737
  %v2006 = vpop.f32.mrb[0].mxu0
  %v2007 = vadd.f32 %v1694, %v2006
  %v2008 = vpop.f32.mrb[0].mxu0
  %v2009 = vadd.f32 %v1698, %v2008
  %2010 = vmatprep.mubr.f32.mxu0 0.0
  %2011 = vmatmul.mubr.f32.gmra.mrb[0].mxu0 %v1740
  %v2012 = vpop.f32.mrb[0].mxu0
  %v2013 = vadd.f32 %v1694, %v2012
  %v2014 = vpop.f32.mrb[0].mxu0
  %v2015 = vadd.f32 %v1698, %v2014
  %2016 = vmatprep.mubr.f32.mxu0 0.0
  %2017 = vmatmul.mubr.f32.gmra.mrb[0].mxu0 %v1743
  %v2018 = vpop.f32.mrb[0].mxu0
  %v2019 = vadd.f32 %v1694, %v2018
  %v2020 = vpop.f32.mrb[0].mxu0
  %v2021 = vadd.f32 %v1698, %v2020
  %2022 = vmatprep.mubr.f32.mxu0 0.0
  %2023 = vmatmul.mubr.f32.gmra.mrb[0].mxu0 %v1746
  %v2024 = vpop.f32.mrb[0].mxu0
  %v2025 = vadd.f32 %v1694, %v2024
  %v2026 = vpop.f32.mrb[0].mxu0
  %v2027 = vadd.f32 %v1698, %v2026
  %2028 = vmatprep.mubr.f32.mxu0 0.0
  %2029 = vmatmul.mubr.f32.gmra.mrb[0].mxu0 %v1749
  %v2030 = vpop.f32.mrb[0].mxu0
  %v2031 = vadd.f32 %v1694, %v2030
  %v2032 = vpop.f32.mrb[0].mxu0
  %v2033 = vadd.f32 %v1698, %v2032
  %2034 = vmatprep.mubr.f32.mxu0 0.0
  %2035 = vmatmul.mubr.f32.gmra.mrb[0].mxu0 %v1752
  %v2036 = vpop.f32.mrb[0].mxu0
  %v2037 = vadd.f32 %v1694, %v2036
  %v2038 = vpop.f32.mrb[0].mxu0
  %v2039 = vadd.f32 %v1698, %v2038
  %2040 = vmatprep.mubr.f32.mxu0 0.0
  %2041 = vmatmul.mubr.f32.gmra.mrb[0].mxu0 %v1755
  %v2042 = vpop.f32.mrb[0].mxu0
  %v2043 = vadd.f32 %v1694, %v2042
  %v2044 = vpop.f32.mrb[0].mxu0
  %v2045 = vadd.f32 %v1698, %v2044
  %2046 = vmatprep.mubr.f32.mxu0 0.0
  %2047 = vmatmul.mubr.f32.gmra.mrb[0].mxu0 %v1758
  %v2048 = vpop.f32.mrb[0].mxu0
  %v2049 = vadd.f32 %v1694, %v2048
  %v2050 = vpop.f32.mrb[0].mxu0
  %v2051 = vadd.f32 %v1698, %v2050
  %2052 = vmatprep.mubr.f32.mxu0 0.0
  %2053 = vmatmul.mubr.f32.gmra.mrb[0].mxu0 %v1761
  %v2054 = vpop.f32.mrb[0].mxu0
  %v2055 = vadd.f32 %v1694, %v2054
  %v2056 = vpop.f32.mrb[0].mxu0
  %v2057 = vadd.f32 %v1698, %v2056
  %2058 = vmatprep.mubr.f32.mxu0 0.0
  %2059 = vmatmul.mubr.f32.gmra.mrb[0].mxu0 %v1764
  %v2060 = vpop.f32.mrb[0].mxu0
  %v2061 = vadd.f32 %v1694, %v2060
  %v2062 = vpop.f32.mrb[0].mxu0
  %v2063 = vadd.f32 %v1698, %v2062
  %2064 = vmatprep.mubr.f32.mxu0 0.0
  %2065 = vmatmul.mubr.f32.gmra.mrb[0].mxu0 %v1767
  %v2066 = vpop.f32.mrb[0].mxu0
  %v2067 = vadd.f32 %v1694, %v2066
  %v2068 = vpop.f32.mrb[0].mxu0
  %v2069 = vadd.f32 %v1698, %v2068
  %2070 = vmatprep.mubr.f32.mxu0 0.0
  %2071 = vmatmul.mubr.f32.gmra.mrb[0].mxu0 %v1770
  %v2072 = vpop.f32.mrb[0].mxu0
  %v2073 = vadd.f32 %v1694, %v2072
  %v2074 = vpop.f32.mrb[0].mxu0
  %v2075 = vadd.f32 %v1698, %v2074
  %2076 = vmatprep.mubr.f32.mxu0 0.0
  %2077 = vmatmul.mubr.f32.gmra.mrb[0].mxu0 %v1773
  %v2078 = vpop.f32.mrb[0].mxu0
  %v2079 = vadd.f32 %v1694, %v2078
  %v2080 = vpop.f32.mrb[0].mxu0
  %v2081 = vadd.f32 %v1698, %v2080
  %2082 = vmatprep.mubr.f32.mxu0 0.0
  %2083 = vmatmul.mubr.f32.gmra.mrb[0].mxu0 %v1776
  %v2084 = vpop.f32.mrb[0].mxu0
  %v2085 = vadd.f32 %v1694, %v2084
  %v2086 = vpop.f32.mrb[0].mxu0
  %v2087 = vadd.f32 %v1698, %v2086
  %2088 = vmatprep.mubr.f32.mxu0 0.0
  %2089 = vmatmul.mubr.f32.gmra.mrb[0].mxu0 %v1779
  %v2090 = vpop.f32.mrb[0].mxu0
  %v2091 = vadd.f32 %v1694, %v2090
  %v2092 = vpop.f32.mrb[0].mxu0
  %v2093 = vadd.f32 %v1698, %v2092
  %2094 = vmatprep.mubr.f32.mxu0 0.0
  %2095 = vmatmul.mubr.f32.gmra.mrb[0].mxu0 %v1782
  %v2096 = vpop.f32.mrb[0].mxu0
  %v2097 = vadd.f32 %v1694, %v2096
  %v2098 = vpop.f32.mrb[0].mxu0
  %v2099 = vadd.f32 %v1698, %v2098
  %2100 = vmatprep.mubr.f32.mxu0 0.0
  %2101 = vmatmul.mubr.f32.gmra.mrb[0].mxu0 %v1785
  %v2102 = vpop.f32.mrb[0].mxu0
  %v2103 = vadd.f32 %v1694, %v2102
  %v2104 = vpop.f32.mrb[0].mxu0
  %v2105 = vadd.f32 %v1698, %v2104
  %2106 = vmatprep.mubr.f32.mxu0 0.0
  %2107 = vmatmul.mubr.f32.gmra.mrb[0].mxu0 %v1788
  %v2108 = vpop.f32.mrb[0].mxu0
  %v2109 = vadd.f32 %v1694, %v2108
  %v2110 = vpop.f32.mrb[0].mxu0
  %v2111 = vadd.f32 %v1698, %v2110
  %2112 = vmatprep.mubr.f32.mxu0 0.0
  %2113 = vmatmul.mubr.f32.gmra.mrb[0].mxu0 %v1791
  %v2114 = vpop.f32.mrb[0].mxu0
  %v2115 = vadd.f32 %v1694, %v2114
  %v2116 = vpop.f32.mrb[0].mxu0
  %v2117 = vadd.f32 %v1698, %v2116
  %2118 = vmatprep.mubr.f32.mxu0 0.0
  %2119 = vmatmul.mubr.f32.gmra.mrb[0].mxu0 %v1794
  %v2120 = vpop.f32.mrb[0].mxu0
  %v2121 = vadd.f32 %v1694, %v2120
  %v2122 = vpop.f32.mrb[0].mxu0
  %v2123 = vadd.f32 %v1698, %v2122
  %2124 = vmatprep.mubr.f32.mxu0 0.0
  %2125 = vmatmul.mubr.f32.gmra.mrb[0].mxu0 %v1797
  %v2126 = vpop.f32.mrb[0].mxu0
  %v2127 = vadd.f32 %v1694, %v2126
  %v2128 = vpop.f32.mrb[0].mxu0
  %v2129 = vadd.f32 %v1698, %v2128
  %2130 = vmatprep.mubr.f32.mxu0 0.0
  %2131 = vmatmul.mubr.f32.gmra.mrb[0].mxu0 %v1800
  %v2132 = vpop.f32.mrb[0].mxu0
  %v2133 = vadd.f32 %v1694, %v2132
  %v2134 = vpop.f32.mrb[0].mxu0
  %v2135 = vadd.f32 %v1698, %v2134
  %2136 = vmatprep.mubr.f32.mxu0 0.0
  %2137 = vmatmul.mubr.f32.gmra.mrb[0].mxu0 %v1803
  %v2138 = vpop.f32.mrb[0].mxu0
  %v2139 = vadd.f32 %v1694, %v2138
  %v2140 = vpop.f32.mrb[0].mxu0
  %v2141 = vadd.f32 %v1698, %v2140
  %2142 = vmatprep.mubr.f32.mxu0 0.0
  %2143 = vmatmul.mubr.f32.gmra.mrb[0].mxu0 %v1806
  %v2144 = vpop.f32.mrb[0].mxu0
  %v2145 = vadd.f32 %v1694, %v2144
  %v2146 = vpop.f32.mrb[0].mxu0
  %v2147 = vadd.f32 %v1698, %v2146
  %2148 = vmatprep.mubr.f32.mxu0 0.0
  %2149 = vmatmul.mubr.f32.gmra.mrb[0].mxu0 %v1809
  %v2150 = vpop.f32.mrb[0].mxu0
  %v2151 = vadd.f32 %v1694, %v2150
  %v2152 = vpop.f32.mrb[0].mxu0
  %v2153 = vadd.f32 %v1698, %v2152
  %2154 = vmatprep.mubr.f32.mxu0 0.0
  %2155 = vmatmul.mubr.f32.gmra.mrb[0].mxu0 %v1812
  %v2156 = vpop.f32.mrb[0].mxu0
  %v2157 = vadd.f32 %v1694, %v2156
  %v2158 = vpop.f32.mrb[0].mxu0
  %v2159 = vadd.f32 %v1698, %v2158
  %2160 = vmatprep.mubr.f32.mxu0 0.0
  %2161 = vmatmul.mubr.f32.gmra.mrb[0].mxu0 %v1815
  %v2162 = vpop.f32.mrb[0].mxu0
  %v2163 = vadd.f32 %v1694, %v2162
  %v2164 = vpop.f32.mrb[0].mxu0
  %v2165 = vadd.f32 %v1698, %v2164
  %2166 = vmatprep.mubr.f32.mxu0 0.0
  %2167 = vmatmul.mubr.f32.gmra.mrb[0].mxu0 %v1818
  %v2168 = vpop.f32.mrb[0].mxu0
  %v2169 = vadd.f32 %v1694, %v2168
  %v2170 = vpop.f32.mrb[0].mxu0
  %v2171 = vadd.f32 %v1698, %v2170
  %2172 = vmatprep.mubr.f32.mxu0 0.0
  %2173 = vmatmul.mubr.f32.gmra.mrb[0].mxu0 %v1821
  %v2174 = vpop.f32.mrb[0].mxu0
  %v2175 = vadd.f32 %v1694, %v2174
  %v2176 = vpop.f32.mrb[0].mxu0
  %v2177 = vadd.f32 %v1698, %v2176
  %2178 = vmatprep.mubr.f32.mxu0 0.0
  %2179 = vmatmul.mubr.f32.gmra.mrb[0].mxu0 %v1824
  %v2180 = vpop.f32.mrb[0].mxu0
  %v2181 = vadd.f32 %v1694, %v2180
  %v2182 = vpop.f32.mrb[0].mxu0
  %v2183 = vadd.f32 %v1698, %v2182
  %2184 = vmatprep.mubr.f32.mxu0 0.0
  %2185 = vmatmul.mubr.f32.gmra.mrb[0].mxu0 %v1827
  %v2186 = vpop.f32.mrb[0].mxu0
  %v2187 = vadd.f32 %v1694, %v2186
  %v2188 = vpop.f32.mrb[0].mxu0
  %v2189 = vadd.f32 %v1698, %v2188
  %2190 = vmatprep.mubr.f32.mxu0 0.0
  %2191 = vmatmul.mubr.f32.gmra.mrb[0].mxu0 %v1830
  %v2192 = vpop.f32.mrb[0].mxu0
  %v2193 = vadd.f32 %v1694, %v2192
  %v2194 = vpop.f32.mrb[0].mxu0
  %v2195 = vadd.f32 %v1698, %v2194
  %2196 = vmatprep.mubr.f32.mxu0 0.0
  %2197 = vmatmul.mubr.f32.gmra.mrb[0].mxu0 %v1833
  %v2198 = vpop.f32.mrb[0].mxu0
  %v2199 = vadd.f32 %v1694, %v2198
  %v2200 = vpop.f32.mrb[0].mxu0
  %v2201 = vadd.f32 %v1698, %v2200
  %2202 = vmatprep.mubr.f32.mxu0 0.0
  %2203 = vmatmul.mubr.f32.gmra.mrb[0].mxu0 %v1836
  %v2204 = vpop.f32.mrb[0].mxu0
  %v2205 = vadd.f32 %v1694, %v2204
  %v2206 = vpop.f32.mrb[0].mxu0
  %v2207 = vadd.f32 %v1698, %v2206
  %2208 = vmatprep.mubr.f32.mxu0 0.0
  %2209 = vmatmul.mubr.f32.gmra.mrb[0].mxu0 %v1839
  %v2210 = vpop.f32.mrb[0].mxu0
  %v2211 = vadd.f32 %v1694, %v2210
  %v2212 = vpop.f32.mrb[0].mxu0
  %v2213 = vadd.f32 %v1698, %v2212
  %2214 = vmatprep.mubr.f32.mxu0 0.0
  %2215 = vmatmul.mubr.f32.gmra.mrb[0].mxu0 %v1842
  %v2216 = vpop.f32.mrb[0].mxu0
  %v2217 = vadd.f32 %v1694, %v2216
  %v2218 = vpop.f32.mrb[0].mxu0
  %v2219 = vadd.f32 %v1698, %v2218
  %2220 = vmatprep.mubr.f32.mxu0 0.0
  %2221 = vmatmul.mubr.f32.gmra.mrb[0].mxu0 %v1845
  %v2222 = vpop.f32.mrb[0].mxu0
  %v2223 = vadd.f32 %v1694, %v2222
  %v2224 = vpop.f32.mrb[0].mxu0
  %v2225 = vadd.f32 %v1698, %v2224
  %2226 = vmatprep.mubr.f32.mxu0 0.0
  %2227 = vmatmul.mubr.f32.gmra.mrb[0].mxu0 %v1848
  %v2228 = vpop.f32.mrb[0].mxu0
  %v2229 = vadd.f32 %v1694, %v2228
  %v2230 = vpop.f32.mrb[0].mxu0
  %v2231 = vadd.f32 %v1698, %v2230
  %2232 = vmatprep.mubr.f32.mxu0 0.0
  %2233 = vmatmul.mubr.f32.gmra.mrb[0].mxu0 %v1851
  %v2234 = vpop.f32.mrb[0].mxu0
  %v2235 = vadd.f32 %v1694, %v2234
  %v2236 = vpop.f32.mrb[0].mxu0
  %v2237 = vadd.f32 %v1698, %v2236
  %2238 = vmatprep.mubr.f32.mxu0 0.0
  %2239 = vmatmul.mubr.f32.gmra.mrb[0].mxu0 %v1854
  %v2240 = vpop.f32.mrb[0].mxu0
  %v2241 = vadd.f32 %v1694, %v2240
  %v2242 = vpop.f32.mrb[0].mxu0
  %v2243 = vadd.f32 %v1698, %v2242
  %2244 = vmatprep.mubr.f32.mxu0 0.0
  %2245 = vmatmul.mubr.f32.gmra.mrb[0].mxu0 %v1857
  %v2246 = vpop.f32.mrb[0].mxu0
  %v2247 = vadd.f32 %v1694, %v2246
  %v2248 = vpop.f32.mrb[0].mxu0
  %v2249 = vadd.f32 %v1698, %v2248
  %2250 = vmatprep.mubr.f32.mxu0 0.0
  %2251 = vmatmul.mubr.f32.gmra.mrb[0].mxu0 %v1860
  %v2252 = vpop.f32.mrb[0].mxu0
  %v2253 = vadd.f32 %v1694, %v2252
  %v2254 = vpop.f32.mrb[0].mxu0
  %v2255 = vadd.f32 %v1698, %v2254
  %2256 = vmatprep.mubr.f32.mxu0 0.0
  %2257 = vmatmul.mubr.f32.gmra.mrb[0].mxu0 %v1863
  %v2258 = vpop.f32.mrb[0].mxu0
  %v2259 = vadd.f32 %v1694, %v2258
  %v2260 = vpop.f32.mrb[0].mxu0
  %v2261 = vadd.f32 %v1698, %v2260
  %2262 = vmatprep.mubr.f32.mxu0 0.0
  %2263 = vmatmul.mubr.f32.gmra.mrb[0].mxu0 %v1866
  %v2264 = vpop.f32.mrb[0].mxu0
  %v2265 = vadd.f32 %v1694, %v2264
  %v2266 = vpop.f32.mrb[0].mxu0
  %v2267 = vadd.f32 %v1698, %v2266
  %2268 = vmatprep.mubr.f32.mxu0 0.0
  %2269 = vmatmul.mubr.f32.gmra.mrb[0].mxu0 %v1869
  %v2270 = vpop.f32.mrb[0].mxu0
  %v2271 = vadd.f32 %v1694, %v2270
  %v2272 = vpop.f32.mrb[0].mxu0
  %v2273 = vadd.f32 %v1698, %v2272
  %2274 = vmatprep.mubr.f32.mxu0 0.0
  %2275 = vmatmul.mubr.f32.gmra.mrb[0].mxu0 %v1872
  %v2276 = vpop.f32.mrb[0].mxu0
  %v2277 = vadd.f32 %v1694, %v2276
  %v2278 = vpop.f32.mrb[0].mxu0
  %v2279 = vadd.f32 %v1698, %v2278
  %2280 = vmatprep.mubr.f32.mxu0 0.0
  %2281 = vmatmul.mubr.f32.gmra.mrb[0].mxu0 %v1875
  %v2282 = vpop.f32.mrb[0].mxu0
  %v2283 = vadd.f32 %v1694, %v2282
  %v2284 = vpop.f32.mrb[0].mxu0
  %v2285 = vadd.f32 %v1698, %v2284
  %2286 = vmatprep.mubr.f32.mxu0 0.0
  %2287 = vmatmul.mubr.f32.gmra.mrb[0].mxu0 %v1878
  %v2288 = vpop.f32.mrb[0].mxu0
  %v2289 = vadd.f32 %v1694, %v2288
  %v2290 = vpop.f32.mrb[0].mxu0
  %v2291 = vadd.f32 %v1698, %v2290
  %2292 = vmatprep.mubr.f32.mxu0 0.0
  %2293 = vmatmul.mubr.f32.gmra.mrb[0].mxu0 %v1881
  %v2294 = vpop.f32.mrb[0].mxu0
  %v2295 = vadd.f32 %v1694, %v2294
  %v2296 = vpop.f32.mrb[0].mxu0
  %v2297 = vadd.f32 %v1698, %v2296
  %2298 = vmatprep.mubr.f32.mxu0 0.0
  %2299 = vmatmul.mubr.f32.gmra.mrb[0].mxu0 %v1884
  %v2300 = vpop.f32.mrb[0].mxu0
  %v2301 = vadd.f32 %v1694, %v2300
  %v2302 = vpop.f32.mrb[0].mxu0
  %v2303 = vadd.f32 %v1698, %v2302
  %2304 = vmatprep.mubr.f32.mxu0 0.0
  %2305 = vmatmul.mubr.f32.gmra.mrb[0].mxu0 %v1887
  %v2306 = vpop.f32.mrb[0].mxu0
  %v2307 = vadd.f32 %v1694, %v2306
  %v2308 = vpop.f32.mrb[0].mxu0
  %v2309 = vadd.f32 %v1698, %v2308
  %2310 = vmatprep.mubr.f32.mxu0 0.0
  %2311 = vmatmul.mubr.f32.gmra.mrb[0].mxu0 %v1890
  %v2312 = vpop.f32.mrb[0].mxu0
  %v2313 = vadd.f32 %v1694, %v2312
  %v2314 = vpop.f32.mrb[0].mxu0
  %v2315 = vadd.f32 %v1698, %v2314
  %2316 = vdwg.mxu0
  %2317 = vmatprep.subr.mxu0 %v1684
  %2318 = vmatpush1.msra.mxu0 %v1683
  %2319 = vmatprep.subr.mxu0 %v1688
  %2320 = vmatpush1.msra.mxu0 %v1687
  %2321 = vmatprep.subr.mxu0 0.0
  %2322 = vmatpush1.msra.mxu0 0.0
  %2323 = vmatprep.subr.mxu0 0.0
  %2324 = vmatpush1.msra.mxu0 0.0
  %2325 = vmatprep.subr.mxu0 0.0
  %2326 = vmatpush1.msra.mxu0 0.0
  %2327 = vmatprep.subr.mxu0 0.0
  %2328 = vmatpush1.msra.mxu0 0.0
  %2329 = vmatprep.subr.mxu0 0.0
  %2330 = vmatpush1.msra.mxu0 0.0
  %2331 = vmatprep.subr.mxu0 0.0
  %2332 = vmatpush1.msra.mxu0 0.0
  %2333 = vmatprep.subr.mxu0 0.0
  %2334 = vmatpush1.msra.mxu0 0.0
  %2335 = vmatprep.subr.mxu0 0.0
  %2336 = vmatpush1.msra.mxu0 0.0
  %2337 = vmatprep.subr.mxu0 0.0
  %2338 = vmatpush1.msra.mxu0 0.0
  %2339 = vmatprep.subr.mxu0 0.0
  %2340 = vmatpush1.msra.mxu0 0.0
  %2341 = vmatprep.subr.mxu0 0.0
  %2342 = vmatpush1.msra.mxu0 0.0
  %2343 = vmatprep.subr.mxu0 0.0
  %2344 = vmatpush1.msra.mxu0 0.0
  %2345 = vmatprep.subr.mxu0 0.0
  %2346 = vmatpush1.msra.mxu0 0.0
  %2347 = vmatprep.subr.mxu0 0.0
  %2348 = vmatpush1.msra.mxu0 0.0
  %2349 = vmatprep.subr.mxu0 0.0
  %2350 = vmatpush1.msra.mxu0 0.0
  %2351 = vmatprep.subr.mxu0 0.0
  %2352 = vmatpush1.msra.mxu0 0.0
  %2353 = vmatprep.subr.mxu0 0.0
  %2354 = vmatpush1.msra.mxu0 0.0
  %2355 = vmatprep.subr.mxu0 0.0
  %2356 = vmatpush1.msra.mxu0 0.0
  %2357 = vmatprep.subr.mxu0 0.0
  %2358 = vmatpush1.msra.mxu0 0.0
  %2359 = vmatprep.subr.mxu0 0.0
  %2360 = vmatpush1.msra.mxu0 0.0
  %2361 = vmatprep.subr.mxu0 0.0
  %2362 = vmatpush1.msra.mxu0 0.0
  %2363 = vmatprep.subr.mxu0 0.0
  %2364 = vmatpush1.msra.mxu0 0.0
  %2365 = vmatprep.subr.mxu0 0.0
  %2366 = vmatpush1.msra.mxu0 0.0
  %2367 = vmatprep.subr.mxu0 0.0
  %2368 = vmatpush1.msra.mxu0 0.0
  %2369 = vmatprep.subr.mxu0 0.0
  %2370 = vmatpush1.msra.mxu0 0.0
  %2371 = vmatprep.subr.mxu0 0.0
  %2372 = vmatpush1.msra.mxu0 0.0
  %2373 = vmatprep.subr.mxu0 0.0
  %2374 = vmatpush1.msra.mxu0 0.0
  %2375 = vmatprep.subr.mxu0 0.0
  %2376 = vmatpush1.msra.mxu0 0.0
  %2377 = vmatprep.subr.mxu0 0.0
  %2378 = vmatpush1.msra.mxu0 0.0
  %2379 = vmatprep.subr.mxu0 0.0
  %2380 = vmatpush1.msra.mxu0 0.0
  %2381 = vmatprep.mubr.f32.mxu0 0.0
  %2382 = vmatmul.mubr.f32.gmra.mrb[0].mxu0 %v1713
  %v2383 = vpop.f32.mrb[0].mxu0
  %v2384 = vadd.f32 %v1702, %v2383
  %v2385 = vpop.f32.mrb[0].mxu0
  %v2386 = vadd.f32 %v1706, %v2385
  %2387 = vmatprep.mubr.f32.mxu0 0.0
  %2388 = vmatmul.mubr.f32.gmra.mrb[0].mxu0 %v1716
  %v2389 = vpop.f32.mrb[0].mxu0
  %v2390 = vadd.f32 %v1702, %v2389
  %v2391 = vpop.f32.mrb[0].mxu0
  %v2392 = vadd.f32 %v1706, %v2391
  %2393 = vmatprep.mubr.f32.mxu0 0.0
  %2394 = vmatmul.mubr.f32.gmra.mrb[0].mxu0 %v1719
  %v2395 = vpop.f32.mrb[0].mxu0
  %v2396 = vadd.f32 %v1702, %v2395
  %v2397 = vpop.f32.mrb[0].mxu0
  %v2398 = vadd.f32 %v1706, %v2397
  %2399 = vmatprep.mubr.f32.mxu0 0.0
  %2400 = vmatmul.mubr.f32.gmra.mrb[0].mxu0 %v1722
  %v2401 = vpop.f32.mrb[0].mxu0
  %v2402 = vadd.f32 %v1702, %v2401
  %v2403 = vpop.f32.mrb[0].mxu0
  %v2404 = vadd.f32 %v1706, %v2403
  %2405 = vmatprep.mubr.f32.mxu0 0.0
  %2406 = vmatmul.mubr.f32.gmra.mrb[0].mxu0 %v1725
  %v2407 = vpop.f32.mrb[0].mxu0
  %v2408 = vadd.f32 %v1702, %v2407
  %v2409 = vpop.f32.mrb[0].mxu0
  %v2410 = vadd.f32 %v1706, %v2409
  %2411 = vmatprep.mubr.f32.mxu0 0.0
  %2412 = vmatmul.mubr.f32.gmra.mrb[0].mxu0 %v1728
  %v2413 = vpop.f32.mrb[0].mxu0
  %v2414 = vadd.f32 %v1702, %v2413
  %v2415 = vpop.f32.mrb[0].mxu0
  %v2416 = vadd.f32 %v1706, %v2415
  %2417 = vmatprep.mubr.f32.mxu0 0.0
  %2418 = vmatmul.mubr.f32.gmra.mrb[0].mxu0 %v1731
  %v2419 = vpop.f32.mrb[0].mxu0
  %v2420 = vadd.f32 %v1702, %v2419
  %v2421 = vpop.f32.mrb[0].mxu0
  %v2422 = vadd.f32 %v1706, %v2421
  %2423 = vmatprep.mubr.f32.mxu0 0.0
  %2424 = vmatmul.mubr.f32.gmra.mrb[0].mxu0 %v1734
  %v2425 = vpop.f32.mrb[0].mxu0
  %v2426 = vadd.f32 %v1702, %v2425
  %v2427 = vpop.f32.mrb[0].mxu0
  %v2428 = vadd.f32 %v1706, %v2427
  %2429 = vmatprep.mubr.f32.mxu0 0.0
  %2430 = vmatmul.mubr.f32.gmra.mrb[0].mxu0 %v1737
  %v2431 = vpop.f32.mrb[0].mxu0
  %v2432 = vadd.f32 %v1702, %v2431
  %v2433 = vpop.f32.mrb[0].mxu0
  %v2434 = vadd.f32 %v1706, %v2433
  %2435 = vmatprep.mubr.f32.mxu0 0.0
  %2436 = vmatmul.mubr.f32.gmra.mrb[0].mxu0 %v1740
  %v2437 = vpop.f32.mrb[0].mxu0
  %v2438 = vadd.f32 %v1702, %v2437
  %v2439 = vpop.f32.mrb[0].mxu0
  %v2440 = vadd.f32 %v1706, %v2439
  %2441 = vmatprep.mubr.f32.mxu0 0.0
  %2442 = vmatmul.mubr.f32.gmra.mrb[0].mxu0 %v1743
  %v2443 = vpop.f32.mrb[0].mxu0
  %v2444 = vadd.f32 %v1702, %v2443
  %v2445 = vpop.f32.mrb[0].mxu0
  %v2446 = vadd.f32 %v1706, %v2445
  %2447 = vmatprep.mubr.f32.mxu0 0.0
  %2448 = vmatmul.mubr.f32.gmra.mrb[0].mxu0 %v1746
  %v2449 = vpop.f32.mrb[0].mxu0
  %v2450 = vadd.f32 %v1702, %v2449
  %v2451 = vpop.f32.mrb[0].mxu0
  %v2452 = vadd.f32 %v1706, %v2451
  %2453 = vmatprep.mubr.f32.mxu0 0.0
  %2454 = vmatmul.mubr.f32.gmra.mrb[0].mxu0 %v1749
  %v2455 = vpop.f32.mrb[0].mxu0
  %v2456 = vadd.f32 %v1702, %v2455
  %v2457 = vpop.f32.mrb[0].mxu0
  %v2458 = vadd.f32 %v1706, %v2457
  %2459 = vmatprep.mubr.f32.mxu0 0.0
  %2460 = vmatmul.mubr.f32.gmra.mrb[0].mxu0 %v1752
  %v2461 = vpop.f32.mrb[0].mxu0
  %v2462 = vadd.f32 %v1702, %v2461
  %v2463 = vpop.f32.mrb[0].mxu0
  %v2464 = vadd.f32 %v1706, %v2463
  %2465 = vmatprep.mubr.f32.mxu0 0.0
  %2466 = vmatmul.mubr.f32.gmra.mrb[0].mxu0 %v1755
  %v2467 = vpop.f32.mrb[0].mxu0
  %v2468 = vadd.f32 %v1702, %v2467
  %v2469 = vpop.f32.mrb[0].mxu0
  %v2470 = vadd.f32 %v1706, %v2469
  %2471 = vmatprep.mubr.f32.mxu0 0.0
  %2472 = vmatmul.mubr.f32.gmra.mrb[0].mxu0 %v1758
  %v2473 = vpop.f32.mrb[0].mxu0
  %v2474 = vadd.f32 %v1702, %v2473
  %v2475 = vpop.f32.mrb[0].mxu0
  %v2476 = vadd.f32 %v1706, %v2475
  %2477 = vmatprep.mubr.f32.mxu0 0.0
  %2478 = vmatmul.mubr.f32.gmra.mrb[0].mxu0 %v1761
  %v2479 = vpop.f32.mrb[0].mxu0
  %v2480 = vadd.f32 %v1702, %v2479
  %v2481 = vpop.f32.mrb[0].mxu0
  %v2482 = vadd.f32 %v1706, %v2481
  %2483 = vmatprep.mubr.f32.mxu0 0.0
  %2484 = vmatmul.mubr.f32.gmra.mrb[0].mxu0 %v1764
  %v2485 = vpop.f32.mrb[0].mxu0
  %v2486 = vadd.f32 %v1702, %v2485
  %v2487 = vpop.f32.mrb[0].mxu0
  %v2488 = vadd.f32 %v1706, %v2487
  %2489 = vmatprep.mubr.f32.mxu0 0.0
  %2490 = vmatmul.mubr.f32.gmra.mrb[0].mxu0 %v1767
  %v2491 = vpop.f32.mrb[0].mxu0
  %v2492 = vadd.f32 %v1702, %v2491
  %v2493 = vpop.f32.mrb[0].mxu0
  %v2494 = vadd.f32 %v1706, %v2493
  %2495 = vmatprep.mubr.f32.mxu0 0.0
  %2496 = vmatmul.mubr.f32.gmra.mrb[0].mxu0 %v1770
  %v2497 = vpop.f32.mrb[0].mxu0
  %v2498 = vadd.f32 %v1702, %v2497
  %v2499 = vpop.f32.mrb[0].mxu0
  %v2500 = vadd.f32 %v1706, %v2499
  %2501 = vmatprep.mubr.f32.mxu0 0.0
  %2502 = vmatmul.mubr.f32.gmra.mrb[0].mxu0 %v1773
  %v2503 = vpop.f32.mrb[0].mxu0
  %v2504 = vadd.f32 %v1702, %v2503
  %v2505 = vpop.f32.mrb[0].mxu0
  %v2506 = vadd.f32 %v1706, %v2505
  %2507 = vmatprep.mubr.f32.mxu0 0.0
  %2508 = vmatmul.mubr.f32.gmra.mrb[0].mxu0 %v1776
  %v2509 = vpop.f32.mrb[0].mxu0
  %v2510 = vadd.f32 %v1702, %v2509
  %v2511 = vpop.f32.mrb[0].mxu0
  %v2512 = vadd.f32 %v1706, %v2511
  %2513 = vmatprep.mubr.f32.mxu0 0.0
  %2514 = vmatmul.mubr.f32.gmra.mrb[0].mxu0 %v1779
  %v2515 = vpop.f32.mrb[0].mxu0
  %v2516 = vadd.f32 %v1702, %v2515
  %v2517 = vpop.f32.mrb[0].mxu0
  %v2518 = vadd.f32 %v1706, %v2517
  %2519 = vmatprep.mubr.f32.mxu0 0.0
  %2520 = vmatmul.mubr.f32.gmra.mrb[0].mxu0 %v1782
  %v2521 = vpop.f32.mrb[0].mxu0
  %v2522 = vadd.f32 %v1702, %v2521
  %v2523 = vpop.f32.mrb[0].mxu0
  %v2524 = vadd.f32 %v1706, %v2523
  %2525 = vmatprep.mubr.f32.mxu0 0.0
  %2526 = vmatmul.mubr.f32.gmra.mrb[0].mxu0 %v1785
  %v2527 = vpop.f32.mrb[0].mxu0
  %v2528 = vadd.f32 %v1702, %v2527
  %v2529 = vpop.f32.mrb[0].mxu0
  %v2530 = vadd.f32 %v1706, %v2529
  %2531 = vmatprep.mubr.f32.mxu0 0.0
  %2532 = vmatmul.mubr.f32.gmra.mrb[0].mxu0 %v1788
  %v2533 = vpop.f32.mrb[0].mxu0
  %v2534 = vadd.f32 %v1702, %v2533
  %v2535 = vpop.f32.mrb[0].mxu0
  %v2536 = vadd.f32 %v1706, %v2535
  %2537 = vmatprep.mubr.f32.mxu0 0.0
  %2538 = vmatmul.mubr.f32.gmra.mrb[0].mxu0 %v1791
  %v2539 = vpop.f32.mrb[0].mxu0
  %v2540 = vadd.f32 %v1702, %v2539
  %v2541 = vpop.f32.mrb[0].mxu0
  %v2542 = vadd.f32 %v1706, %v2541
  %2543 = vmatprep.mubr.f32.mxu0 0.0
  %2544 = vmatmul.mubr.f32.gmra.mrb[0].mxu0 %v1794
  %v2545 = vpop.f32.mrb[0].mxu0
  %v2546 = vadd.f32 %v1702, %v2545
  %v2547 = vpop.f32.mrb[0].mxu0
  %v2548 = vadd.f32 %v1706, %v2547
  %2549 = vmatprep.mubr.f32.mxu0 0.0
  %2550 = vmatmul.mubr.f32.gmra.mrb[0].mxu0 %v1797
  %v2551 = vpop.f32.mrb[0].mxu0
  %v2552 = vadd.f32 %v1702, %v2551
  %v2553 = vpop.f32.mrb[0].mxu0
  %v2554 = vadd.f32 %v1706, %v2553
  %2555 = vmatprep.mubr.f32.mxu0 0.0
  %2556 = vmatmul.mubr.f32.gmra.mrb[0].mxu0 %v1800
  %v2557 = vpop.f32.mrb[0].mxu0
  %v2558 = vadd.f32 %v1702, %v2557
  %v2559 = vpop.f32.mrb[0].mxu0
  %v2560 = vadd.f32 %v1706, %v2559
  %2561 = vmatprep.mubr.f32.mxu0 0.0
  %2562 = vmatmul.mubr.f32.gmra.mrb[0].mxu0 %v1803
  %v2563 = vpop.f32.mrb[0].mxu0
  %v2564 = vadd.f32 %v1702, %v2563
  %v2565 = vpop.f32.mrb[0].mxu0
  %v2566 = vadd.f32 %v1706, %v2565
  %2567 = vmatprep.mubr.f32.mxu0 0.0
  %2568 = vmatmul.mubr.f32.gmra.mrb[0].mxu0 %v1806
  %v2569 = vpop.f32.mrb[0].mxu0
  %v2570 = vadd.f32 %v1702, %v2569
  %v2571 = vpop.f32.mrb[0].mxu0
  %v2572 = vadd.f32 %v1706, %v2571
  %2573 = vmatprep.mubr.f32.mxu0 0.0
  %2574 = vmatmul.mubr.f32.gmra.mrb[0].mxu0 %v1809
  %v2575 = vpop.f32.mrb[0].mxu0
  %v2576 = vadd.f32 %v1702, %v2575
  %v2577 = vpop.f32.mrb[0].mxu0
  %v2578 = vadd.f32 %v1706, %v2577
  %2579 = vmatprep.mubr.f32.mxu0 0.0
  %2580 = vmatmul.mubr.f32.gmra.mrb[0].mxu0 %v1812
  %v2581 = vpop.f32.mrb[0].mxu0
  %v2582 = vadd.f32 %v1702, %v2581
  %v2583 = vpop.f32.mrb[0].mxu0
  %v2584 = vadd.f32 %v1706, %v2583
  %2585 = vmatprep.mubr.f32.mxu0 0.0
  %2586 = vmatmul.mubr.f32.gmra.mrb[0].mxu0 %v1815
  %v2587 = vpop.f32.mrb[0].mxu0
  %v2588 = vadd.f32 %v1702, %v2587
  %v2589 = vpop.f32.mrb[0].mxu0
  %v2590 = vadd.f32 %v1706, %v2589
  %2591 = vmatprep.mubr.f32.mxu0 0.0
  %2592 = vmatmul.mubr.f32.gmra.mrb[0].mxu0 %v1818
  %v2593 = vpop.f32.mrb[0].mxu0
  %v2594 = vadd.f32 %v1702, %v2593
  %v2595 = vpop.f32.mrb[0].mxu0
  %v2596 = vadd.f32 %v1706, %v2595
  %2597 = vmatprep.mubr.f32.mxu0 0.0
  %2598 = vmatmul.mubr.f32.gmra.mrb[0].mxu0 %v1821
  %v2599 = vpop.f32.mrb[0].mxu0
  %v2600 = vadd.f32 %v1702, %v2599
  %v2601 = vpop.f32.mrb[0].mxu0
  %v2602 = vadd.f32 %v1706, %v2601
  %2603 = vmatprep.mubr.f32.mxu0 0.0
  %2604 = vmatmul.mubr.f32.gmra.mrb[0].mxu0 %v1824
  %v2605 = vpop.f32.mrb[0].mxu0
  %v2606 = vadd.f32 %v1702, %v2605
  %v2607 = vpop.f32.mrb[0].mxu0
  %v2608 = vadd.f32 %v1706, %v2607
  %2609 = vmatprep.mubr.f32.mxu0 0.0
  %2610 = vmatmul.mubr.f32.gmra.mrb[0].mxu0 %v1827
  %v2611 = vpop.f32.mrb[0].mxu0
  %v2612 = vadd.f32 %v1702, %v2611
  %v2613 = vpop.f32.mrb[0].mxu0
  %v2614 = vadd.f32 %v1706, %v2613
  %2615 = vmatprep.mubr.f32.mxu0 0.0
  %2616 = vmatmul.mubr.f32.gmra.mrb[0].mxu0 %v1830
  %v2617 = vpop.f32.mrb[0].mxu0
  %v2618 = vadd.f32 %v1702, %v2617
  %v2619 = vpop.f32.mrb[0].mxu0
  %v2620 = vadd.f32 %v1706, %v2619
  %2621 = vmatprep.mubr.f32.mxu0 0.0
  %2622 = vmatmul.mubr.f32.gmra.mrb[0].mxu0 %v1833
  %v2623 = vpop.f32.mrb[0].mxu0
  %v2624 = vadd.f32 %v1702, %v2623
  %v2625 = vpop.f32.mrb[0].mxu0
  %v2626 = vadd.f32 %v1706, %v2625
  %2627 = vmatprep.mubr.f32.mxu0 0.0
  %2628 = vmatmul.mubr.f32.gmra.mrb[0].mxu0 %v1836
  %v2629 = vpop.f32.mrb[0].mxu0
  %v2630 = vadd.f32 %v1702, %v2629
  %v2631 = vpop.f32.mrb[0].mxu0
  %v2632 = vadd.f32 %v1706, %v2631
  %2633 = vmatprep.mubr.f32.mxu0 0.0
  %2634 = vmatmul.mubr.f32.gmra.mrb[0].mxu0 %v1839
  %v2635 = vpop.f32.mrb[0].mxu0
  %v2636 = vadd.f32 %v1702, %v2635
  %v2637 = vpop.f32.mrb[0].mxu0
  %v2638 = vadd.f32 %v1706, %v2637
  %2639 = vmatprep.mubr.f32.mxu0 0.0
  %2640 = vmatmul.mubr.f32.gmra.mrb[0].mxu0 %v1842
  %v2641 = vpop.f32.mrb[0].mxu0
  %v2642 = vadd.f32 %v1702, %v2641
  %v2643 = vpop.f32.mrb[0].mxu0
  %v2644 = vadd.f32 %v1706, %v2643
  %2645 = vmatprep.mubr.f32.mxu0 0.0
  %2646 = vmatmul.mubr.f32.gmra.mrb[0].mxu0 %v1845
  %v2647 = vpop.f32.mrb[0].mxu0
  %v2648 = vadd.f32 %v1702, %v2647
  %v2649 = vpop.f32.mrb[0].mxu0
  %v2650 = vadd.f32 %v1706, %v2649
  %2651 = vmatprep.mubr.f32.mxu0 0.0
  %2652 = vmatmul.mubr.f32.gmra.mrb[0].mxu0 %v1848
  %v2653 = vpop.f32.mrb[0].mxu0
  %v2654 = vadd.f32 %v1702, %v2653
  %v2655 = vpop.f32.mrb[0].mxu0
  %v2656 = vadd.f32 %v1706, %v2655
  %2657 = vmatprep.mubr.f32.mxu0 0.0
  %2658 = vmatmul.mubr.f32.gmra.mrb[0].mxu0 %v1851
  %v2659 = vpop.f32.mrb[0].mxu0
  %v2660 = vadd.f32 %v1702, %v2659
  %v2661 = vpop.f32.mrb[0].mxu0
  %v2662 = vadd.f32 %v1706, %v2661
  %2663 = vmatprep.mubr.f32.mxu0 0.0
  %2664 = vmatmul.mubr.f32.gmra.mrb[0].mxu0 %v1854
  %v2665 = vpop.f32.mrb[0].mxu0
  %v2666 = vadd.f32 %v1702, %v2665
  %v2667 = vpop.f32.mrb[0].mxu0
  %v2668 = vadd.f32 %v1706, %v2667
  %2669 = vmatprep.mubr.f32.mxu0 0.0
  %2670 = vmatmul.mubr.f32.gmra.mrb[0].mxu0 %v1857
  %v2671 = vpop.f32.mrb[0].mxu0
  %v2672 = vadd.f32 %v1702, %v2671
  %v2673 = vpop.f32.mrb[0].mxu0
  %v2674 = vadd.f32 %v1706, %v2673
  %2675 = vmatprep.mubr.f32.mxu0 0.0
  %2676 = vmatmul.mubr.f32.gmra.mrb[0].mxu0 %v1860
  %v2677 = vpop.f32.mrb[0].mxu0
  %v2678 = vadd.f32 %v1702, %v2677
  %v2679 = vpop.f32.mrb[0].mxu0
  %v2680 = vadd.f32 %v1706, %v2679
  %2681 = vmatprep.mubr.f32.mxu0 0.0
  %2682 = vmatmul.mubr.f32.gmra.mrb[0].mxu0 %v1863
  %v2683 = vpop.f32.mrb[0].mxu0
  %v2684 = vadd.f32 %v1702, %v2683
  %v2685 = vpop.f32.mrb[0].mxu0
  %v2686 = vadd.f32 %v1706, %v2685
  %2687 = vmatprep.mubr.f32.mxu0 0.0
  %2688 = vmatmul.mubr.f32.gmra.mrb[0].mxu0 %v1866
  %v2689 = vpop.f32.mrb[0].mxu0
  %v2690 = vadd.f32 %v1702, %v2689
  %v2691 = vpop.f32.mrb[0].mxu0
  %v2692 = vadd.f32 %v1706, %v2691
  %2693 = vmatprep.mubr.f32.mxu0 0.0
  %2694 = vmatmul.mubr.f32.gmra.mrb[0].mxu0 %v1869
  %v2695 = vpop.f32.mrb[0].mxu0
  %v2696 = vadd.f32 %v1702, %v2695
  %v2697 = vpop.f32.mrb[0].mxu0
  %v2698 = vadd.f32 %v1706, %v2697
  %2699 = vmatprep.mubr.f32.mxu0 0.0
  %2700 = vmatmul.mubr.f32.gmra.mrb[0].mxu0 %v1872
  %v2701 = vpop.f32.mrb[0].mxu0
  %v2702 = vadd.f32 %v1702, %v2701
  %v2703 = vpop.f32.mrb[0].mxu0
  %v2704 = vadd.f32 %v1706, %v2703
  %2705 = vmatprep.mubr.f32.mxu0 0.0
  %2706 = vmatmul.mubr.f32.gmra.mrb[0].mxu0 %v1875
  %v2707 = vpop.f32.mrb[0].mxu0
  %v2708 = vadd.f32 %v1702, %v2707
  %v2709 = vpop.f32.mrb[0].mxu0
  %v2710 = vadd.f32 %v1706, %v2709
  %2711 = vmatprep.mubr.f32.mxu0 0.0
  %2712 = vmatmul.mubr.f32.gmra.mrb[0].mxu0 %v1878
  %v2713 = vpop.f32.mrb[0].mxu0
  %v2714 = vadd.f32 %v1702, %v2713
  %v2715 = vpop.f32.mrb[0].mxu0
  %v2716 = vadd.f32 %v1706, %v2715
  %2717 = vmatprep.mubr.f32.mxu0 0.0
  %2718 = vmatmul.mubr.f32.gmra.mrb[0].mxu0 %v1881
  %v2719 = vpop.f32.mrb[0].mxu0
  %v2720 = vadd.f32 %v1702, %v2719
  %v2721 = vpop.f32.mrb[0].mxu0
  %v2722 = vadd.f32 %v1706, %v2721
  %2723 = vmatprep.mubr.f32.mxu0 0.0
  %2724 = vmatmul.mubr.f32.gmra.mrb[0].mxu0 %v1884
  %v2725 = vpop.f32.mrb[0].mxu0
  %v2726 = vadd.f32 %v1702, %v2725
  %v2727 = vpop.f32.mrb[0].mxu0
  %v2728 = vadd.f32 %v1706, %v2727
  %2729 = vmatprep.mubr.f32.mxu0 0.0
  %2730 = vmatmul.mubr.f32.gmra.mrb[0].mxu0 %v1887
  %v2731 = vpop.f32.mrb[0].mxu0
  %v2732 = vadd.f32 %v1702, %v2731
  %v2733 = vpop.f32.mrb[0].mxu0
  %v2734 = vadd.f32 %v1706, %v2733
  %2735 = vmatprep.mubr.f32.mxu0 0.0
  %2736 = vmatmul.mubr.f32.gmra.mrb[0].mxu0 %v1890
  %v2737 = vpop.f32.mrb[0].mxu0
  %v2738 = vadd.f32 %v1702, %v2737
  %v2739 = vpop.f32.mrb[0].mxu0
  %v2740 = vadd.f32 %v1706, %v2739
  %2741 = vdwg.mxu0
  %2742 = vst [vmem:[#allocation2] sm:$0xff] %v1959
  %2743 = vst [vmem:[#allocation2 + $0x8] sm:$0xff] %v1961
  %2744 = vst [vmem:[#allocation2 + $0x10] sm:$0xff] %v2384
  %2745 = vst [vmem:[#allocation2 + $0x18] sm:$0xff] %v2386
  %2746 = vst [vmem:[#allocation2 + $0x20] sm:$0xff] %v1965
  %2747 = vst [vmem:[#allocation2 + $0x28] sm:$0xff] %v1967
  %2748 = vst [vmem:[#allocation2 + $0x30] sm:$0xff] %v2390
  %2749 = vst [vmem:[#allocation2 + $0x38] sm:$0xff] %v2392
  %2750 = vst [vmem:[#allocation2 + $0x40] sm:$0xff] %v1971
  %2751 = vst [vmem:[#allocation2 + $0x48] sm:$0xff] %v1973
  %2752 = vst [vmem:[#allocation2 + $0x50] sm:$0xff] %v2396
  %2753 = vst [vmem:[#allocation2 + $0x58] sm:$0xff] %v2398
  %2754 = vst [vmem:[#allocation2 + $0x60] sm:$0xff] %v1977
  %2755 = vst [vmem:[#allocation2 + $0x68] sm:$0xff] %v1979
  %2756 = vst [vmem:[#allocation2 + $0x70] sm:$0xff] %v2402
  %2757 = vst [vmem:[#allocation2 + $0x78] sm:$0xff] %v2404
  %2758 = vst [vmem:[#allocation2 + $0x80] sm:$0xff] %v1983
  %2759 = vst [vmem:[#allocation2 + $0x88] sm:$0xff] %v1985
  %2760 = vst [vmem:[#allocation2 + $0x90] sm:$0xff] %v2408
  %2761 = vst [vmem:[#allocation2 + $0x98] sm:$0xff] %v2410
  %2762 = vst [vmem:[#allocation2 + $0xa0] sm:$0xff] %v1989
  %2763 = vst [vmem:[#allocation2 + $0xa8] sm:$0xff] %v1991
  %2764 = vst [vmem:[#allocation2 + $0xb0] sm:$0xff] %v2414
  %2765 = vst [vmem:[#allocation2 + $0xb8] sm:$0xff] %v2416
  %2766 = vst [vmem:[#allocation2 + $0xc0] sm:$0xff] %v1995
  %2767 = vst [vmem:[#allocation2 + $0xc8] sm:$0xff] %v1997
  %2768 = vst [vmem:[#allocation2 + $0xd0] sm:$0xff] %v2420
  %2769 = vst [vmem:[#allocation2 + $0xd8] sm:$0xff] %v2422
  %2770 = vst [vmem:[#allocation2 + $0xe0] sm:$0xff] %v2001
  %2771 = vst [vmem:[#allocation2 + $0xe8] sm:$0xff] %v2003
  %2772 = vst [vmem:[#allocation2 + $0xf0] sm:$0xff] %v2426
  %2773 = vst [vmem:[#allocation2 + $0xf8] sm:$0xff] %v2428
  %2774 = vst [vmem:[#allocation2 + $0x100] sm:$0xff] %v2007
  %2775 = vst [vmem:[#allocation2 + $0x108] sm:$0xff] %v2009
  %2776 = vst [vmem:[#allocation2 + $0x110] sm:$0xff] %v2432
  %2777 = vst [vmem:[#allocation2 + $0x118] sm:$0xff] %v2434
  %2778 = vst [vmem:[#allocation2 + $0x120] sm:$0xff] %v2013
  %2779 = vst [vmem:[#allocation2 + $0x128] sm:$0xff] %v2015
  %2780 = vst [vmem:[#allocation2 + $0x130] sm:$0xff] %v2438
  %2781 = vst [vmem:[#allocation2 + $0x138] sm:$0xff] %v2440
  %2782 = vst [vmem:[#allocation2 + $0x140] sm:$0xff] %v2019
  %2783 = vst [vmem:[#allocation2 + $0x148] sm:$0xff] %v2021
  %2784 = vst [vmem:[#allocation2 + $0x150] sm:$0xff] %v2444
  %2785 = vst [vmem:[#allocation2 + $0x158] sm:$0xff] %v2446
  %2786 = vst [vmem:[#allocation2 + $0x160] sm:$0xff] %v2025
  %2787 = vst [vmem:[#allocation2 + $0x168] sm:$0xff] %v2027
  %2788 = vst [vmem:[#allocation2 + $0x170] sm:$0xff] %v2450
  %2789 = vst [vmem:[#allocation2 + $0x178] sm:$0xff] %v2452
  %2790 = vst [vmem:[#allocation2 + $0x180] sm:$0xff] %v2031
  %2791 = vst [vmem:[#allocation2 + $0x188] sm:$0xff] %v2033
  %2792 = vst [vmem:[#allocation2 + $0x190] sm:$0xff] %v2456
  %2793 = vst [vmem:[#allocation2 + $0x198] sm:$0xff] %v2458
  %2794 = vst [vmem:[#allocation2 + $0x1a0] sm:$0xff] %v2037
  %2795 = vst [vmem:[#allocation2 + $0x1a8] sm:$0xff] %v2039
  %2796 = vst [vmem:[#allocation2 + $0x1b0] sm:$0xff] %v2462
  %2797 = vst [vmem:[#allocation2 + $0x1b8] sm:$0xff] %v2464
  %2798 = vst [vmem:[#allocation2 + $0x1c0] sm:$0xff] %v2043
  %2799 = vst [vmem:[#allocation2 + $0x1c8] sm:$0xff] %v2045
  %2800 = vst [vmem:[#allocation2 + $0x1d0] sm:$0xff] %v2468
  %2801 = vst [vmem:[#allocation2 + $0x1d8] sm:$0xff] %v2470
  %2802 = vst [vmem:[#allocation2 + $0x1e0] sm:$0xff] %v2049
  %2803 = vst [vmem:[#allocation2 + $0x1e8] sm:$0xff] %v2051
  %2804 = vst [vmem:[#allocation2 + $0x1f0] sm:$0xff] %v2474
  %2805 = vst [vmem:[#allocation2 + $0x1f8] sm:$0xff] %v2476
  %2806 = vst [vmem:[#allocation2 + $0x200] sm:$0xff] %v2055
  %2807 = vst [vmem:[#allocation2 + $0x208] sm:$0xff] %v2057
  %2808 = vst [vmem:[#allocation2 + $0x210] sm:$0xff] %v2480
  %2809 = vst [vmem:[#allocation2 + $0x218] sm:$0xff] %v2482
  %2810 = vst [vmem:[#allocation2 + $0x220] sm:$0xff] %v2061
  %2811 = vst [vmem:[#allocation2 + $0x228] sm:$0xff] %v2063
  %2812 = vst [vmem:[#allocation2 + $0x230] sm:$0xff] %v2486
  %2813 = vst [vmem:[#allocation2 + $0x238] sm:$0xff] %v2488
  %2814 = vst [vmem:[#allocation2 + $0x240] sm:$0xff] %v2067
  %2815 = vst [vmem:[#allocation2 + $0x248] sm:$0xff] %v2069
  %2816 = vst [vmem:[#allocation2 + $0x250] sm:$0xff] %v2492
  %2817 = vst [vmem:[#allocation2 + $0x258] sm:$0xff] %v2494
  %2818 = vst [vmem:[#allocation2 + $0x260] sm:$0xff] %v2073
  %2819 = vst [vmem:[#allocation2 + $0x268] sm:$0xff] %v2075
  %2820 = vst [vmem:[#allocation2 + $0x270] sm:$0xff] %v2498
  %2821 = vst [vmem:[#allocation2 + $0x278] sm:$0xff] %v2500
  %2822 = vst [vmem:[#allocation2 + $0x280] sm:$0xff] %v2079
  %2823 = vst [vmem:[#allocation2 + $0x288] sm:$0xff] %v2081
  %2824 = vst [vmem:[#allocation2 + $0x290] sm:$0xff] %v2504
  %2825 = vst [vmem:[#allocation2 + $0x298] sm:$0xff] %v2506
  %2826 = vst [vmem:[#allocation2 + $0x2a0] sm:$0xff] %v2085
  %2827 = vst [vmem:[#allocation2 + $0x2a8] sm:$0xff] %v2087
  %2828 = vst [vmem:[#allocation2 + $0x2b0] sm:$0xff] %v2510
  %2829 = vst [vmem:[#allocation2 + $0x2b8] sm:$0xff] %v2512
  %2830 = vst [vmem:[#allocation2 + $0x2c0] sm:$0xff] %v2091
  %2831 = vst [vmem:[#allocation2 + $0x2c8] sm:$0xff] %v2093
  %2832 = vst [vmem:[#allocation2 + $0x2d0] sm:$0xff] %v2516
  %2833 = vst [vmem:[#allocation2 + $0x2d8] sm:$0xff] %v2518
  %2834 = vst [vmem:[#allocation2 + $0x2e0] sm:$0xff] %v2097
  %2835 = vst [vmem:[#allocation2 + $0x2e8] sm:$0xff] %v2099
  %2836 = vst [vmem:[#allocation2 + $0x2f0] sm:$0xff] %v2522
  %2837 = vst [vmem:[#allocation2 + $0x2f8] sm:$0xff] %v2524
  %2838 = vst [vmem:[#allocation2 + $0x300] sm:$0xff] %v2103
  %2839 = vst [vmem:[#allocation2 + $0x308] sm:$0xff] %v2105
  %2840 = vst [vmem:[#allocation2 + $0x310] sm:$0xff] %v2528
  %2841 = vst [vmem:[#allocation2 + $0x318] sm:$0xff] %v2530
  %2842 = vst [vmem:[#allocation2 + $0x320] sm:$0xff] %v2109
  %2843 = vst [vmem:[#allocation2 + $0x328] sm:$0xff] %v2111
  %2844 = vst [vmem:[#allocation2 + $0x330] sm:$0xff] %v2534
  %2845 = vst [vmem:[#allocation2 + $0x338] sm:$0xff] %v2536
  %2846 = vst [vmem:[#allocation2 + $0x340] sm:$0xff] %v2115
  %2847 = vst [vmem:[#allocation2 + $0x348] sm:$0xff] %v2117
  %2848 = vst [vmem:[#allocation2 + $0x350] sm:$0xff] %v2540
  %2849 = vst [vmem:[#allocation2 + $0x358] sm:$0xff] %v2542
  %2850 = vst [vmem:[#allocation2 + $0x360] sm:$0xff] %v2121
  %2851 = vst [vmem:[#allocation2 + $0x368] sm:$0xff] %v2123
  %2852 = vst [vmem:[#allocation2 + $0x370] sm:$0xff] %v2546
  %2853 = vst [vmem:[#allocation2 + $0x378] sm:$0xff] %v2548
  %2854 = vst [vmem:[#allocation2 + $0x380] sm:$0xff] %v2127
  %2855 = vst [vmem:[#allocation2 + $0x388] sm:$0xff] %v2129
  %2856 = vst [vmem:[#allocation2 + $0x390] sm:$0xff] %v2552
  %2857 = vst [vmem:[#allocation2 + $0x398] sm:$0xff] %v2554
  %2858 = vst [vmem:[#allocation2 + $0x3a0] sm:$0xff] %v2133
  %2859 = vst [vmem:[#allocation2 + $0x3a8] sm:$0xff] %v2135
  %2860 = vst [vmem:[#allocation2 + $0x3b0] sm:$0xff] %v2558
  %2861 = vst [vmem:[#allocation2 + $0x3b8] sm:$0xff] %v2560
  %2862 = vst [vmem:[#allocation2 + $0x3c0] sm:$0xff] %v2139
  %2863 = vst [vmem:[#allocation2 + $0x3c8] sm:$0xff] %v2141
  %2864 = vst [vmem:[#allocation2 + $0x3d0] sm:$0xff] %v2564
  %2865 = vst [vmem:[#allocation2 + $0x3d8] sm:$0xff] %v2566
  %2866 = vst [vmem:[#allocation2 + $0x3e0] sm:$0xff] %v2145
  %2867 = vst [vmem:[#allocation2 + $0x3e8] sm:$0xff] %v2147
  %2868 = vst [vmem:[#allocation2 + $0x3f0] sm:$0xff] %v2570
  %2869 = vst [vmem:[#allocation2 + $0x3f8] sm:$0xff] %v2572
  %2870 = vst [vmem:[#allocation2 + $0x400] sm:$0xff] %v2151
  %2871 = vst [vmem:[#allocation2 + $0x408] sm:$0xff] %v2153
  %2872 = vst [vmem:[#allocation2 + $0x410] sm:$0xff] %v2576
  %2873 = vst [vmem:[#allocation2 + $0x418] sm:$0xff] %v2578
  %2874 = vst [vmem:[#allocation2 + $0x420] sm:$0xff] %v2157
  %2875 = vst [vmem:[#allocation2 + $0x428] sm:$0xff] %v2159
  %2876 = vst [vmem:[#allocation2 + $0x430] sm:$0xff] %v2582
  %2877 = vst [vmem:[#allocation2 + $0x438] sm:$0xff] %v2584
  %2878 = vst [vmem:[#allocation2 + $0x440] sm:$0xff] %v2163
  %2879 = vst [vmem:[#allocation2 + $0x448] sm:$0xff] %v2165
  %2880 = vst [vmem:[#allocation2 + $0x450] sm:$0xff] %v2588
  %2881 = vst [vmem:[#allocation2 + $0x458] sm:$0xff] %v2590
  %2882 = vst [vmem:[#allocation2 + $0x460] sm:$0xff] %v2169
  %2883 = vst [vmem:[#allocation2 + $0x468] sm:$0xff] %v2171
  %2884 = vst [vmem:[#allocation2 + $0x470] sm:$0xff] %v2594
  %2885 = vst [vmem:[#allocation2 + $0x478] sm:$0xff] %v2596
  %2886 = vst [vmem:[#allocation2 + $0x480] sm:$0xff] %v2175
  %2887 = vst [vmem:[#allocation2 + $0x488] sm:$0xff] %v2177
  %2888 = vst [vmem:[#allocation2 + $0x490] sm:$0xff] %v2600
  %2889 = vst [vmem:[#allocation2 + $0x498] sm:$0xff] %v2602
  %2890 = vst [vmem:[#allocation2 + $0x4a0] sm:$0xff] %v2181
  %2891 = vst [vmem:[#allocation2 + $0x4a8] sm:$0xff] %v2183
  %2892 = vst [vmem:[#allocation2 + $0x4b0] sm:$0xff] %v2606
  %2893 = vst [vmem:[#allocation2 + $0x4b8] sm:$0xff] %v2608
  %2894 = vst [vmem:[#allocation2 + $0x4c0] sm:$0xff] %v2187
  %2895 = vst [vmem:[#allocation2 + $0x4c8] sm:$0xff] %v2189
  %2896 = vst [vmem:[#allocation2 + $0x4d0] sm:$0xff] %v2612
  %2897 = vst [vmem:[#allocation2 + $0x4d8] sm:$0xff] %v2614
  %2898 = vst [vmem:[#allocation2 + $0x4e0] sm:$0xff] %v2193
  %2899 = vst [vmem:[#allocation2 + $0x4e8] sm:$0xff] %v2195
  %2900 = vst [vmem:[#allocation2 + $0x4f0] sm:$0xff] %v2618
  %2901 = vst [vmem:[#allocation2 + $0x4f8] sm:$0xff] %v2620
  %2902 = vst [vmem:[#allocation2 + $0x500] sm:$0xff] %v2199
  %2903 = vst [vmem:[#allocation2 + $0x508] sm:$0xff] %v2201
  %2904 = vst [vmem:[#allocation2 + $0x510] sm:$0xff] %v2624
  %2905 = vst [vmem:[#allocation2 + $0x518] sm:$0xff] %v2626
  %2906 = vst [vmem:[#allocation2 + $0x520] sm:$0xff] %v2205
  %2907 = vst [vmem:[#allocation2 + $0x528] sm:$0xff] %v2207
  %2908 = vst [vmem:[#allocation2 + $0x530] sm:$0xff] %v2630
  %2909 = vst [vmem:[#allocation2 + $0x538] sm:$0xff] %v2632
  %2910 = vst [vmem:[#allocation2 + $0x540] sm:$0xff] %v2211
  %2911 = vst [vmem:[#allocation2 + $0x548] sm:$0xff] %v2213
  %2912 = vst [vmem:[#allocation2 + $0x550] sm:$0xff] %v2636
  %2913 = vst [vmem:[#allocation2 + $0x558] sm:$0xff] %v2638
  %2914 = vst [vmem:[#allocation2 + $0x560] sm:$0xff] %v2217
  %2915 = vst [vmem:[#allocation2 + $0x568] sm:$0xff] %v2219
  %2916 = vst [vmem:[#allocation2 + $0x570] sm:$0xff] %v2642
  %2917 = vst [vmem:[#allocation2 + $0x578] sm:$0xff] %v2644
  %2918 = vst [vmem:[#allocation2 + $0x580] sm:$0xff] %v2223
  %2919 = vst [vmem:[#allocation2 + $0x588] sm:$0xff] %v2225
  %2920 = vst [vmem:[#allocation2 + $0x590] sm:$0xff] %v2648
  %2921 = vst [vmem:[#allocation2 + $0x598] sm:$0xff] %v2650
  %2922 = vst [vmem:[#allocation2 + $0x5a0] sm:$0xff] %v2229
  %2923 = vst [vmem:[#allocation2 + $0x5a8] sm:$0xff] %v2231
  %2924 = vst [vmem:[#allocation2 + $0x5b0] sm:$0xff] %v2654
  %2925 = vst [vmem:[#allocation2 + $0x5b8] sm:$0xff] %v2656
  %2926 = vst [vmem:[#allocation2 + $0x5c0] sm:$0xff] %v2235
  %2927 = vst [vmem:[#allocation2 + $0x5c8] sm:$0xff] %v2237
  %2928 = vst [vmem:[#allocation2 + $0x5d0] sm:$0xff] %v2660
  %2929 = vst [vmem:[#allocation2 + $0x5d8] sm:$0xff] %v2662
  %2930 = vst [vmem:[#allocation2 + $0x5e0] sm:$0xff] %v2241
  %2931 = vst [vmem:[#allocation2 + $0x5e8] sm:$0xff] %v2243
  %2932 = vst [vmem:[#allocation2 + $0x5f0] sm:$0xff] %v2666
  %2933 = vst [vmem:[#allocation2 + $0x5f8] sm:$0xff] %v2668
  %2934 = vst [vmem:[#allocation2 + $0x600] sm:$0xff] %v2247
  %2935 = vst [vmem:[#allocation2 + $0x608] sm:$0xff] %v2249
  %2936 = vst [vmem:[#allocation2 + $0x610] sm:$0xff] %v2672
  %2937 = vst [vmem:[#allocation2 + $0x618] sm:$0xff] %v2674
  %2938 = vst [vmem:[#allocation2 + $0x620] sm:$0xff] %v2253
  %2939 = vst [vmem:[#allocation2 + $0x628] sm:$0xff] %v2255
  %2940 = vst [vmem:[#allocation2 + $0x630] sm:$0xff] %v2678
  %2941 = vst [vmem:[#allocation2 + $0x638] sm:$0xff] %v2680
  %2942 = vst [vmem:[#allocation2 + $0x640] sm:$0xff] %v2259
  %2943 = vst [vmem:[#allocation2 + $0x648] sm:$0xff] %v2261
  %2944 = vst [vmem:[#allocation2 + $0x650] sm:$0xff] %v2684
  %2945 = vst [vmem:[#allocation2 + $0x658] sm:$0xff] %v2686
  %2946 = vst [vmem:[#allocation2 + $0x660] sm:$0xff] %v2265
  %2947 = vst [vmem:[#allocation2 + $0x668] sm:$0xff] %v2267
  %2948 = vst [vmem:[#allocation2 + $0x670] sm:$0xff] %v2690
  %2949 = vst [vmem:[#allocation2 + $0x678] sm:$0xff] %v2692
  %2950 = vst [vmem:[#allocation2 + $0x680] sm:$0xff] %v2271
  %2951 = vst [vmem:[#allocation2 + $0x688] sm:$0xff] %v2273
  %2952 = vst [vmem:[#allocation2 + $0x690] sm:$0xff] %v2696
  %2953 = vst [vmem:[#allocation2 + $0x698] sm:$0xff] %v2698
  %2954 = vst [vmem:[#allocation2 + $0x6a0] sm:$0xff] %v2277
  %2955 = vst [vmem:[#allocation2 + $0x6a8] sm:$0xff] %v2279
  %2956 = vst [vmem:[#allocation2 + $0x6b0] sm:$0xff] %v2702
  %2957 = vst [vmem:[#allocation2 + $0x6b8] sm:$0xff] %v2704
  %2958 = vst [vmem:[#allocation2 + $0x6c0] sm:$0xff] %v2283
  %2959 = vst [vmem:[#allocation2 + $0x6c8] sm:$0xff] %v2285
  %2960 = vst [vmem:[#allocation2 + $0x6d0] sm:$0xff] %v2708
  %2961 = vst [vmem:[#allocation2 + $0x6d8] sm:$0xff] %v2710
  %2962 = vst [vmem:[#allocation2 + $0x6e0] sm:$0xff] %v2289
  %2963 = vst [vmem:[#allocation2 + $0x6e8] sm:$0xff] %v2291
  %2964 = vst [vmem:[#allocation2 + $0x6f0] sm:$0xff] %v2714
  %2965 = vst [vmem:[#allocation2 + $0x6f8] sm:$0xff] %v2716
  %2966 = vst [vmem:[#allocation2 + $0x700] sm:$0xff] %v2295
  %2967 = vst [vmem:[#allocation2 + $0x708] sm:$0xff] %v2297
  %2968 = vst [vmem:[#allocation2 + $0x710] sm:$0xff] %v2720
  %2969 = vst [vmem:[#allocation2 + $0x718] sm:$0xff] %v2722
  %2970 = vst [vmem:[#allocation2 + $0x720] sm:$0xff] %v2301
  %2971 = vst [vmem:[#allocation2 + $0x728] sm:$0xff] %v2303
  %2972 = vst [vmem:[#allocation2 + $0x730] sm:$0xff] %v2726
  %2973 = vst [vmem:[#allocation2 + $0x738] sm:$0xff] %v2728
  %2974 = vst [vmem:[#allocation2 + $0x740] sm:$0xff] %v2307
  %2975 = vst [vmem:[#allocation2 + $0x748] sm:$0xff] %v2309
  %2976 = vst [vmem:[#allocation2 + $0x750] sm:$0xff] %v2732
  %2977 = vst [vmem:[#allocation2 + $0x758] sm:$0xff] %v2734
  %2978 = vst [vmem:[#allocation2 + $0x760] sm:$0xff] %v2313
  %2979 = vst [vmem:[#allocation2 + $0x768] sm:$0xff] %v2315
  %2980 = vst [vmem:[#allocation2 + $0x770] sm:$0xff] %v2738
  %2981 = vst [vmem:[#allocation2 + $0x778] sm:$0xff] %v2740
  %v2982 = vld [vmem:[%s6] sm:$0xf]
  %v2984 = vlaneseq
  %v2985 = vshrl.u32 %v2984, 7
  %v2986 = vsub.s32 0, %v2985
  %v2987 = vrot.slane %v2982, %v2986
  %v2988 = vlaneseq
  %v2989 = vshrl.u32 %v2988, 7
  %v2990 = vsub.s32 1, %v2989
  %v2991 = vrot.slane %v2982, %v2990
  %v2992 = vlaneseq
  %v2993 = vshrl.u32 %v2992, 7
  %v2994 = vsub.s32 2, %v2993
  %v2995 = vrot.slane %v2982, %v2994
  %v2996 = vlaneseq
  %v2997 = vshrl.u32 %v2996, 7
  %v2998 = vsub.s32 3, %v2997
  %v2999 = vrot.slane %v2982, %v2998
  %v3004 = vld [vmem:[%s8] sm:$0xf]
  %v3006 = vlaneseq
  %v3007 = vshrl.u32 %v3006, 7
  %v3008 = vsub.s32 0, %v3007
  %v3009 = vrot.slane %v3004, %v3008
  %v3010 = vlaneseq
  %v3011 = vshrl.u32 %v3010, 7
  %v3012 = vsub.s32 1, %v3011
  %v3013 = vrot.slane %v3004, %v3012
  %v3014 = vlaneseq
  %v3015 = vshrl.u32 %v3014, 7
  %v3016 = vsub.s32 2, %v3015
  %v3017 = vrot.slane %v3004, %v3016
  %v3018 = vlaneseq
  %v3019 = vshrl.u32 %v3018, 7
  %v3020 = vsub.s32 3, %v3019
  %v3021 = vrot.slane %v3004, %v3020
  loop: start=0, step=1, limit=10
  $region79: #{lstm_model_forward.1} parent=0 // loop_pre_header
    _
  $region80: #{lstm_model_forward.1} parent=0 // loop_header
    %s3027 = sphi 0, %s3031
    %p3028 = scmp.ge.s32.totalorder %s3027, 10
    %v3032 = vphi 0.0, %v8126
    %v3033 = vphi 0.0, %v8124
    %v3034 = vphi 0.0, %v8438
    %v3035 = vphi 0.0, %v8436
    %v3036 = vphi %v3009, %v8522
    %v3037 = vphi %v3013, %v8523
    %v3038 = vphi %v3017, %v8524
    %v3039 = vphi %v3021, %v8525
  $region81: #{lstm_model_forward.1} parent=0 // loop_header_branch
    %3030 = sbr.rel (%p3028) target = $region85
  $region82: #{lstm_model_forward.1} parent=0 // loop_body
    %s3040 = sand.u32 %s3027, 1
    %s3041 = scalar_lea.sflag [#allocation4], %s3040
    %s3042 = smul.u32 4, 6
    %s3043 = smul.u32 %s3042, 16
    %s3044 = smul.u32 %s3043, 4
    %s3045 = sshll.u32 %s3044, 4
    %3046 = dma.done %s3041, %s3045
    %s3047 = sadd.s32 %s3027, 1
    %p3048 = scmp.lt.s32.totalorder %s3047, 10
    // Predicated region
    $region86: #{lstm_model_forward.1} parent=82 // pred_check
      %p3049 = pneg %p3048
    $region87: #{lstm_model_forward.1} parent=82 // pred_check_branch
      %3051 = sbr.rel (%p3049) target = $region89
    $region88: #{lstm_model_forward.1} parent=82 // pred_region
      %s3052 = ssub.s32 1, %s3040
      %s3053 = smul.u32 %s3047, 384
      %s3054 = smul.addr %s3053, 4
      %s3055 = scalar_lea.vmem %s7, %s3054
      %s3056 = smul.u32 %s3052, 192
      %s3057 = smul.addr %s3056, 8
      %s3058 = scalar_lea.vmem [#allocation3], %s3057
      %s3059 = scalar_lea.sflag [#allocation4], %s3052
      %p3061 = scmp.lt.u32.totalorder 4, 8
      %p3062 = pneg %p3061
      // Predicated region
      $region90: #{lstm_model_forward.1} parent=88 // pred_check
        _
      $region91: #{lstm_model_forward.1} parent=88 // pred_check_branch
        %3064 = sbr.rel (%p3061) target = $region93
      $region92: #{lstm_model_forward.1} parent=88 // pred_region
        %s3845 = sand.u32 4, 7
        %p3846 = scmp.eq.s32.totalorder %s3845, 0
        %p3847 = pneg %p3846
        // Predicated region
        $region105: #{lstm_model_forward.1} parent=92 // pred_check
          _
        $region106: #{lstm_model_forward.1} parent=92 // pred_check_branch
          %3849 = sbr.rel (%p3846) target = $region108
        $region107: #{lstm_model_forward.1} parent=92 // pred_region
          %s3850 = sand.u32 4, 7
          %s3851 = ssub.s32 4, %s3850
          %s3852 = scalar_lea.vmem %s3055, %s3851
          %s3853 = ssub.s32 4, %s3850
          %s3854 = scalar_lea.vmem %s3058, %s3853 [#allocation3]
          loop: start=0, step=1, limit=1
          $region109: #{lstm_model_forward.1} parent=107 // loop_pre_header
            _
          $region110: #{lstm_model_forward.1} parent=107 // loop_header
            %s3856 = sphi 0, %s3860
            %p3857 = scmp.ge.s32.totalorder %s3856, 1
            %s3861 = sphi %s3055, %s3055
            %s3862 = sphi %s3058, %s3058
          $region111: #{lstm_model_forward.1} parent=107 // loop_header_branch
            %3859 = sbr.rel (%p3857) target = $region115
          $region112: #{lstm_model_forward.1} parent=107 // loop_body
            _
          $region113: #{lstm_model_forward.1} parent=107 // loop_footer
            %s3860 = sadd.s32 1, %s3856
          $region114: #{lstm_model_forward.1} parent=107 // loop_footer_branch
            %3855 = sbr.rel target = $region110
          $region115: #{lstm_model_forward.1} parent=107 // loop_exit
            _
          %s3863 = sshllo.u32 0, %s3850
          loop: start=0, step=1, limit=1
          $region116: #{lstm_model_forward.1} parent=107 // loop_pre_header
            _
          $region117: #{lstm_model_forward.1} parent=107 // loop_header
            %s3865 = sphi 0, %s3869
            %p3866 = scmp.ge.s32.totalorder %s3865, 1
            %s3870 = sphi %s3852, %s3852
            %s3871 = sphi %s3854, %s3854
          $region118: #{lstm_model_forward.1} parent=107 // loop_header_branch
            %3868 = sbr.rel (%p3866) target = $region122
          $region119: #{lstm_model_forward.1} parent=107 // loop_body
            %v3872 = vld [vmem:[%s3870] sm:%s3863]
            %3873 = vst [vmem:[%s3871] sm:%s3863] %v3872
            %v3874 = vld [vmem:[%s3870 + $0x10] sm:%s3863]
            %3875 = vst [vmem:[%s3871 + $0x4] sm:%s3863] %v3874
            %v3876 = vld [vmem:[%s3870 + $0x4] sm:%s3863]
            %3877 = vst [vmem:[%s3871 + $0x8] sm:%s3863] %v3876
            %v3878 = vld [vmem:[%s3870 + $0x14] sm:%s3863]
            %3879 = vst [vmem:[%s3871 + $0xc] sm:%s3863] %v3878
            %v3880 = vld [vmem:[%s3870 + $0x8] sm:%s3863]
            %3881 = vst [vmem:[%s3871 + $0x10] sm:%s3863] %v3880
            %v3882 = vld [vmem:[%s3870 + $0x18] sm:%s3863]
            %3883 = vst [vmem:[%s3871 + $0x14] sm:%s3863] %v3882
            %v3884 = vld [vmem:[%s3870 + $0xc] sm:%s3863]
            %3885 = vst [vmem:[%s3871 + $0x18] sm:%s3863] %v3884
            %v3886 = vld [vmem:[%s3870 + $0x1c] sm:%s3863]
            %3887 = vst [vmem:[%s3871 + $0x1c] sm:%s3863] %v3886
            %v3888 = vld [vmem:[%s3870 + $0x20] sm:%s3863]
            %3889 = vst [vmem:[%s3871 + $0x20] sm:%s3863] %v3888
            %v3890 = vld [vmem:[%s3870 + $0x30] sm:%s3863]
            %3891 = vst [vmem:[%s3871 + $0x24] sm:%s3863] %v3890
            %v3892 = vld [vmem:[%s3870 + $0x24] sm:%s3863]
            %3893 = vst [vmem:[%s3871 + $0x28] sm:%s3863] %v3892
            %v3894 = vld [vmem:[%s3870 + $0x34] sm:%s3863]
            %3895 = vst [vmem:[%s3871 + $0x2c] sm:%s3863] %v3894
            %v3896 = vld [vmem:[%s3870 + $0x28] sm:%s3863]
            %3897 = vst [vmem:[%s3871 + $0x30] sm:%s3863] %v3896
            %v3898 = vld [vmem:[%s3870 + $0x38] sm:%s3863]
            %3899 = vst [vmem:[%s3871 + $0x34] sm:%s3863] %v3898
            %v3900 = vld [vmem:[%s3870 + $0x2c] sm:%s3863]
            %3901 = vst [vmem:[%s3871 + $0x38] sm:%s3863] %v3900
            %v3902 = vld [vmem:[%s3870 + $0x3c] sm:%s3863]
            %3903 = vst [vmem:[%s3871 + $0x3c] sm:%s3863] %v3902
            %v3904 = vld [vmem:[%s3870 + $0x40] sm:%s3863]
            %3905 = vst [vmem:[%s3871 + $0x40] sm:%s3863] %v3904
            %v3906 = vld [vmem:[%s3870 + $0x50] sm:%s3863]
            %3907 = vst [vmem:[%s3871 + $0x44] sm:%s3863] %v3906
            %v3908 = vld [vmem:[%s3870 + $0x44] sm:%s3863]
            %3909 = vst [vmem:[%s3871 + $0x48] sm:%s3863] %v3908
            %v3910 = vld [vmem:[%s3870 + $0x54] sm:%s3863]
            %3911 = vst [vmem:[%s3871 + $0x4c] sm:%s3863] %v3910
            %v3912 = vld [vmem:[%s3870 + $0x48] sm:%s3863]
            %3913 = vst [vmem:[%s3871 + $0x50] sm:%s3863] %v3912
            %v3914 = vld [vmem:[%s3870 + $0x58] sm:%s3863]
            %3915 = vst [vmem:[%s3871 + $0x54] sm:%s3863] %v3914
            %v3916 = vld [vmem:[%s3870 + $0x4c] sm:%s3863]
            %3917 = vst [vmem:[%s3871 + $0x58] sm:%s3863] %v3916
            %v3918 = vld [vmem:[%s3870 + $0x5c] sm:%s3863]
            %3919 = vst [vmem:[%s3871 + $0x5c] sm:%s3863] %v3918
            %v3920 = vld [vmem:[%s3870 + $0x60] sm:%s3863]
            %3921 = vst [vmem:[%s3871 + $0x60] sm:%s3863] %v3920
            %v3922 = vld [vmem:[%s3870 + $0x70] sm:%s3863]
            %3923 = vst [vmem:[%s3871 + $0x64] sm:%s3863] %v3922
            %v3924 = vld [vmem:[%s3870 + $0x64] sm:%s3863]
            %3925 = vst [vmem:[%s3871 + $0x68] sm:%s3863] %v3924
            %v3926 = vld [vmem:[%s3870 + $0x74] sm:%s3863]
            %3927 = vst [vmem:[%s3871 + $0x6c] sm:%s3863] %v3926
            %v3928 = vld [vmem:[%s3870 + $0x68] sm:%s3863]
            %3929 = vst [vmem:[%s3871 + $0x70] sm:%s3863] %v3928
            %v3930 = vld [vmem:[%s3870 + $0x78] sm:%s3863]
            %3931 = vst [vmem:[%s3871 + $0x74] sm:%s3863] %v3930
            %v3932 = vld [vmem:[%s3870 + $0x6c] sm:%s3863]
            %3933 = vst [vmem:[%s3871 + $0x78] sm:%s3863] %v3932
            %v3934 = vld [vmem:[%s3870 + $0x7c] sm:%s3863]
            %3935 = vst [vmem:[%s3871 + $0x7c] sm:%s3863] %v3934
            %v3936 = vld [vmem:[%s3870 + $0x80] sm:%s3863]
            %3937 = vst [vmem:[%s3871 + $0x80] sm:%s3863] %v3936
            %v3938 = vld [vmem:[%s3870 + $0x90] sm:%s3863]
            %3939 = vst [vmem:[%s3871 + $0x84] sm:%s3863] %v3938
            %v3940 = vld [vmem:[%s3870 + $0x84] sm:%s3863]
            %3941 = vst [vmem:[%s3871 + $0x88] sm:%s3863] %v3940
            %v3942 = vld [vmem:[%s3870 + $0x94] sm:%s3863]
            %3943 = vst [vmem:[%s3871 + $0x8c] sm:%s3863] %v3942
            %v3944 = vld [vmem:[%s3870 + $0x88] sm:%s3863]
            %3945 = vst [vmem:[%s3871 + $0x90] sm:%s3863] %v3944
            %v3946 = vld [vmem:[%s3870 + $0x98] sm:%s3863]
            %3947 = vst [vmem:[%s3871 + $0x94] sm:%s3863] %v3946
            %v3948 = vld [vmem:[%s3870 + $0x8c] sm:%s3863]
            %3949 = vst [vmem:[%s3871 + $0x98] sm:%s3863] %v3948
            %v3950 = vld [vmem:[%s3870 + $0x9c] sm:%s3863]
            %3951 = vst [vmem:[%s3871 + $0x9c] sm:%s3863] %v3950
            %v3952 = vld [vmem:[%s3870 + $0xa0] sm:%s3863]
            %3953 = vst [vmem:[%s3871 + $0xa0] sm:%s3863] %v3952
            %v3954 = vld [vmem:[%s3870 + $0xb0] sm:%s3863]
            %3955 = vst [vmem:[%s3871 + $0xa4] sm:%s3863] %v3954
            %v3956 = vld [vmem:[%s3870 + $0xa4] sm:%s3863]
            %3957 = vst [vmem:[%s3871 + $0xa8] sm:%s3863] %v3956
            %v3958 = vld [vmem:[%s3870 + $0xb4] sm:%s3863]
            %3959 = vst [vmem:[%s3871 + $0xac] sm:%s3863] %v3958
            %v3960 = vld [vmem:[%s3870 + $0xa8] sm:%s3863]
            %3961 = vst [vmem:[%s3871 + $0xb0] sm:%s3863] %v3960
            %v3962 = vld [vmem:[%s3870 + $0xb8] sm:%s3863]
            %3963 = vst [vmem:[%s3871 + $0xb4] sm:%s3863] %v3962
            %v3964 = vld [vmem:[%s3870 + $0xac] sm:%s3863]
            %3965 = vst [vmem:[%s3871 + $0xb8] sm:%s3863] %v3964
            %v3966 = vld [vmem:[%s3870 + $0xbc] sm:%s3863]
            %3967 = vst [vmem:[%s3871 + $0xbc] sm:%s3863] %v3966
            %v3968 = vld [vmem:[%s3870 + $0xc0] sm:%s3863]
            %3969 = vst [vmem:[%s3871 + $0xc0] sm:%s3863] %v3968
            %v3970 = vld [vmem:[%s3870 + $0xd0] sm:%s3863]
            %3971 = vst [vmem:[%s3871 + $0xc4] sm:%s3863] %v3970
            %v3972 = vld [vmem:[%s3870 + $0xc4] sm:%s3863]
            %3973 = vst [vmem:[%s3871 + $0xc8] sm:%s3863] %v3972
            %v3974 = vld [vmem:[%s3870 + $0xd4] sm:%s3863]
            %3975 = vst [vmem:[%s3871 + $0xcc] sm:%s3863] %v3974
            %v3976 = vld [vmem:[%s3870 + $0xc8] sm:%s3863]
            %3977 = vst [vmem:[%s3871 + $0xd0] sm:%s3863] %v3976
            %v3978 = vld [vmem:[%s3870 + $0xd8] sm:%s3863]
            %3979 = vst [vmem:[%s3871 + $0xd4] sm:%s3863] %v3978
            %v3980 = vld [vmem:[%s3870 + $0xcc] sm:%s3863]
            %3981 = vst [vmem:[%s3871 + $0xd8] sm:%s3863] %v3980
            %v3982 = vld [vmem:[%s3870 + $0xdc] sm:%s3863]
            %3983 = vst [vmem:[%s3871 + $0xdc] sm:%s3863] %v3982
            %v3984 = vld [vmem:[%s3870 + $0xe0] sm:%s3863]
            %3985 = vst [vmem:[%s3871 + $0xe0] sm:%s3863] %v3984
            %v3986 = vld [vmem:[%s3870 + $0xf0] sm:%s3863]
            %3987 = vst [vmem:[%s3871 + $0xe4] sm:%s3863] %v3986
            %v3988 = vld [vmem:[%s3870 + $0xe4] sm:%s3863]
            %3989 = vst [vmem:[%s3871 + $0xe8] sm:%s3863] %v3988
            %v3990 = vld [vmem:[%s3870 + $0xf4] sm:%s3863]
            %3991 = vst [vmem:[%s3871 + $0xec] sm:%s3863] %v3990
            %v3992 = vld [vmem:[%s3870 + $0xe8] sm:%s3863]
            %3993 = vst [vmem:[%s3871 + $0xf0] sm:%s3863] %v3992
            %v3994 = vld [vmem:[%s3870 + $0xf8] sm:%s3863]
            %3995 = vst [vmem:[%s3871 + $0xf4] sm:%s3863] %v3994
            %v3996 = vld [vmem:[%s3870 + $0xec] sm:%s3863]
            %3997 = vst [vmem:[%s3871 + $0xf8] sm:%s3863] %v3996
            %v3998 = vld [vmem:[%s3870 + $0xfc] sm:%s3863]
            %3999 = vst [vmem:[%s3871 + $0xfc] sm:%s3863] %v3998
            %v4000 = vld [vmem:[%s3870 + $0x100] sm:%s3863]
            %4001 = vst [vmem:[%s3871 + $0x100] sm:%s3863] %v4000
            %v4002 = vld [vmem:[%s3870 + $0x110] sm:%s3863]
            %4003 = vst [vmem:[%s3871 + $0x104] sm:%s3863] %v4002
            %v4004 = vld [vmem:[%s3870 + $0x104] sm:%s3863]
            %4005 = vst [vmem:[%s3871 + $0x108] sm:%s3863] %v4004
            %v4006 = vld [vmem:[%s3870 + $0x114] sm:%s3863]
            %4007 = vst [vmem:[%s3871 + $0x10c] sm:%s3863] %v4006
            %v4008 = vld [vmem:[%s3870 + $0x108] sm:%s3863]
            %4009 = vst [vmem:[%s3871 + $0x110] sm:%s3863] %v4008
            %v4010 = vld [vmem:[%s3870 + $0x118] sm:%s3863]
            %4011 = vst [vmem:[%s3871 + $0x114] sm:%s3863] %v4010
            %v4012 = vld [vmem:[%s3870 + $0x10c] sm:%s3863]
            %4013 = vst [vmem:[%s3871 + $0x118] sm:%s3863] %v4012
            %v4014 = vld [vmem:[%s3870 + $0x11c] sm:%s3863]
            %4015 = vst [vmem:[%s3871 + $0x11c] sm:%s3863] %v4014
            %v4016 = vld [vmem:[%s3870 + $0x120] sm:%s3863]
            %4017 = vst [vmem:[%s3871 + $0x120] sm:%s3863] %v4016
            %v4018 = vld [vmem:[%s3870 + $0x130] sm:%s3863]
            %4019 = vst [vmem:[%s3871 + $0x124] sm:%s3863] %v4018
            %v4020 = vld [vmem:[%s3870 + $0x124] sm:%s3863]
            %4021 = vst [vmem:[%s3871 + $0x128] sm:%s3863] %v4020
            %v4022 = vld [vmem:[%s3870 + $0x134] sm:%s3863]
            %4023 = vst [vmem:[%s3871 + $0x12c] sm:%s3863] %v4022
            %v4024 = vld [vmem:[%s3870 + $0x128] sm:%s3863]
            %4025 = vst [vmem:[%s3871 + $0x130] sm:%s3863] %v4024
            %v4026 = vld [vmem:[%s3870 + $0x138] sm:%s3863]
            %4027 = vst [vmem:[%s3871 + $0x134] sm:%s3863] %v4026
            %v4028 = vld [vmem:[%s3870 + $0x12c] sm:%s3863]
            %4029 = vst [vmem:[%s3871 + $0x138] sm:%s3863] %v4028
            %v4030 = vld [vmem:[%s3870 + $0x13c] sm:%s3863]
            %4031 = vst [vmem:[%s3871 + $0x13c] sm:%s3863] %v4030
            %v4032 = vld [vmem:[%s3870 + $0x140] sm:%s3863]
            %4033 = vst [vmem:[%s3871 + $0x140] sm:%s3863] %v4032
            %v4034 = vld [vmem:[%s3870 + $0x150] sm:%s3863]
            %4035 = vst [vmem:[%s3871 + $0x144] sm:%s3863] %v4034
            %v4036 = vld [vmem:[%s3870 + $0x144] sm:%s3863]
            %4037 = vst [vmem:[%s3871 + $0x148] sm:%s3863] %v4036
            %v4038 = vld [vmem:[%s3870 + $0x154] sm:%s3863]
            %4039 = vst [vmem:[%s3871 + $0x14c] sm:%s3863] %v4038
            %v4040 = vld [vmem:[%s3870 + $0x148] sm:%s3863]
            %4041 = vst [vmem:[%s3871 + $0x150] sm:%s3863] %v4040
            %v4042 = vld [vmem:[%s3870 + $0x158] sm:%s3863]
            %4043 = vst [vmem:[%s3871 + $0x154] sm:%s3863] %v4042
            %v4044 = vld [vmem:[%s3870 + $0x14c] sm:%s3863]
            %4045 = vst [vmem:[%s3871 + $0x158] sm:%s3863] %v4044
            %v4046 = vld [vmem:[%s3870 + $0x15c] sm:%s3863]
            %4047 = vst [vmem:[%s3871 + $0x15c] sm:%s3863] %v4046
            %v4048 = vld [vmem:[%s3870 + $0x160] sm:%s3863]
            %4049 = vst [vmem:[%s3871 + $0x160] sm:%s3863] %v4048
            %v4050 = vld [vmem:[%s3870 + $0x170] sm:%s3863]
            %4051 = vst [vmem:[%s3871 + $0x164] sm:%s3863] %v4050
            %v4052 = vld [vmem:[%s3870 + $0x164] sm:%s3863]
            %4053 = vst [vmem:[%s3871 + $0x168] sm:%s3863] %v4052
            %v4054 = vld [vmem:[%s3870 + $0x174] sm:%s3863]
            %4055 = vst [vmem:[%s3871 + $0x16c] sm:%s3863] %v4054
            %v4056 = vld [vmem:[%s3870 + $0x168] sm:%s3863]
            %4057 = vst [vmem:[%s3871 + $0x170] sm:%s3863] %v4056
            %v4058 = vld [vmem:[%s3870 + $0x178] sm:%s3863]
            %4059 = vst [vmem:[%s3871 + $0x174] sm:%s3863] %v4058
            %v4060 = vld [vmem:[%s3870 + $0x16c] sm:%s3863]
            %4061 = vst [vmem:[%s3871 + $0x178] sm:%s3863] %v4060
            %v4062 = vld [vmem:[%s3870 + $0x17c] sm:%s3863]
            %4063 = vst [vmem:[%s3871 + $0x17c] sm:%s3863] %v4062
            %v4064 = vld [vmem:[%s3870 + $0x180] sm:%s3863]
            %4065 = vst [vmem:[%s3871 + $0x180] sm:%s3863] %v4064
            %v4066 = vld [vmem:[%s3870 + $0x190] sm:%s3863]
            %4067 = vst [vmem:[%s3871 + $0x184] sm:%s3863] %v4066
            %v4068 = vld [vmem:[%s3870 + $0x184] sm:%s3863]
            %4069 = vst [vmem:[%s3871 + $0x188] sm:%s3863] %v4068
            %v4070 = vld [vmem:[%s3870 + $0x194] sm:%s3863]
            %4071 = vst [vmem:[%s3871 + $0x18c] sm:%s3863] %v4070
            %v4072 = vld [vmem:[%s3870 + $0x188] sm:%s3863]
            %4073 = vst [vmem:[%s3871 + $0x190] sm:%s3863] %v4072
            %v4074 = vld [vmem:[%s3870 + $0x198] sm:%s3863]
            %4075 = vst [vmem:[%s3871 + $0x194] sm:%s3863] %v4074
            %v4076 = vld [vmem:[%s3870 + $0x18c] sm:%s3863]
            %4077 = vst [vmem:[%s3871 + $0x198] sm:%s3863] %v4076
            %v4078 = vld [vmem:[%s3870 + $0x19c] sm:%s3863]
            %4079 = vst [vmem:[%s3871 + $0x19c] sm:%s3863] %v4078
            %v4080 = vld [vmem:[%s3870 + $0x1a0] sm:%s3863]
            %4081 = vst [vmem:[%s3871 + $0x1a0] sm:%s3863] %v4080
            %v4082 = vld [vmem:[%s3870 + $0x1b0] sm:%s3863]
            %4083 = vst [vmem:[%s3871 + $0x1a4] sm:%s3863] %v4082
            %v4084 = vld [vmem:[%s3870 + $0x1a4] sm:%s3863]
            %4085 = vst [vmem:[%s3871 + $0x1a8] sm:%s3863] %v4084
            %v4086 = vld [vmem:[%s3870 + $0x1b4] sm:%s3863]
            %4087 = vst [vmem:[%s3871 + $0x1ac] sm:%s3863] %v4086
            %v4088 = vld [vmem:[%s3870 + $0x1a8] sm:%s3863]
            %4089 = vst [vmem:[%s3871 + $0x1b0] sm:%s3863] %v4088
            %v4090 = vld [vmem:[%s3870 + $0x1b8] sm:%s3863]
            %4091 = vst [vmem:[%s3871 + $0x1b4] sm:%s3863] %v4090
            %v4092 = vld [vmem:[%s3870 + $0x1ac] sm:%s3863]
            %4093 = vst [vmem:[%s3871 + $0x1b8] sm:%s3863] %v4092
            %v4094 = vld [vmem:[%s3870 + $0x1bc] sm:%s3863]
            %4095 = vst [vmem:[%s3871 + $0x1bc] sm:%s3863] %v4094
            %v4096 = vld [vmem:[%s3870 + $0x1c0] sm:%s3863]
            %4097 = vst [vmem:[%s3871 + $0x1c0] sm:%s3863] %v4096
            %v4098 = vld [vmem:[%s3870 + $0x1d0] sm:%s3863]
            %4099 = vst [vmem:[%s3871 + $0x1c4] sm:%s3863] %v4098
            %v4100 = vld [vmem:[%s3870 + $0x1c4] sm:%s3863]
            %4101 = vst [vmem:[%s3871 + $0x1c8] sm:%s3863] %v4100
            %v4102 = vld [vmem:[%s3870 + $0x1d4] sm:%s3863]
            %4103 = vst [vmem:[%s3871 + $0x1cc] sm:%s3863] %v4102
            %v4104 = vld [vmem:[%s3870 + $0x1c8] sm:%s3863]
            %4105 = vst [vmem:[%s3871 + $0x1d0] sm:%s3863] %v4104
            %v4106 = vld [vmem:[%s3870 + $0x1d8] sm:%s3863]
            %4107 = vst [vmem:[%s3871 + $0x1d4] sm:%s3863] %v4106
            %v4108 = vld [vmem:[%s3870 + $0x1cc] sm:%s3863]
            %4109 = vst [vmem:[%s3871 + $0x1d8] sm:%s3863] %v4108
            %v4110 = vld [vmem:[%s3870 + $0x1dc] sm:%s3863]
            %4111 = vst [vmem:[%s3871 + $0x1dc] sm:%s3863] %v4110
            %v4112 = vld [vmem:[%s3870 + $0x1e0] sm:%s3863]
            %4113 = vst [vmem:[%s3871 + $0x1e0] sm:%s3863] %v4112
            %v4114 = vld [vmem:[%s3870 + $0x1f0] sm:%s3863]
            %4115 = vst [vmem:[%s3871 + $0x1e4] sm:%s3863] %v4114
            %v4116 = vld [vmem:[%s3870 + $0x1e4] sm:%s3863]
            %4117 = vst [vmem:[%s3871 + $0x1e8] sm:%s3863] %v4116
            %v4118 = vld [vmem:[%s3870 + $0x1f4] sm:%s3863]
            %4119 = vst [vmem:[%s3871 + $0x1ec] sm:%s3863] %v4118
            %v4120 = vld [vmem:[%s3870 + $0x1e8] sm:%s3863]
            %4121 = vst [vmem:[%s3871 + $0x1f0] sm:%s3863] %v4120
            %v4122 = vld [vmem:[%s3870 + $0x1f8] sm:%s3863]
            %4123 = vst [vmem:[%s3871 + $0x1f4] sm:%s3863] %v4122
            %v4124 = vld [vmem:[%s3870 + $0x1ec] sm:%s3863]
            %4125 = vst [vmem:[%s3871 + $0x1f8] sm:%s3863] %v4124
            %v4126 = vld [vmem:[%s3870 + $0x1fc] sm:%s3863]
            %4127 = vst [vmem:[%s3871 + $0x1fc] sm:%s3863] %v4126
            %v4128 = vld [vmem:[%s3870 + $0x200] sm:%s3863]
            %4129 = vst [vmem:[%s3871 + $0x200] sm:%s3863] %v4128
            %v4130 = vld [vmem:[%s3870 + $0x210] sm:%s3863]
            %4131 = vst [vmem:[%s3871 + $0x204] sm:%s3863] %v4130
            %v4132 = vld [vmem:[%s3870 + $0x204] sm:%s3863]
            %4133 = vst [vmem:[%s3871 + $0x208] sm:%s3863] %v4132
            %v4134 = vld [vmem:[%s3870 + $0x214] sm:%s3863]
            %4135 = vst [vmem:[%s3871 + $0x20c] sm:%s3863] %v4134
            %v4136 = vld [vmem:[%s3870 + $0x208] sm:%s3863]
            %4137 = vst [vmem:[%s3871 + $0x210] sm:%s3863] %v4136
            %v4138 = vld [vmem:[%s3870 + $0x218] sm:%s3863]
            %4139 = vst [vmem:[%s3871 + $0x214] sm:%s3863] %v4138
            %v4140 = vld [vmem:[%s3870 + $0x20c] sm:%s3863]
            %4141 = vst [vmem:[%s3871 + $0x218] sm:%s3863] %v4140
            %v4142 = vld [vmem:[%s3870 + $0x21c] sm:%s3863]
            %4143 = vst [vmem:[%s3871 + $0x21c] sm:%s3863] %v4142
            %v4144 = vld [vmem:[%s3870 + $0x220] sm:%s3863]
            %4145 = vst [vmem:[%s3871 + $0x220] sm:%s3863] %v4144
            %v4146 = vld [vmem:[%s3870 + $0x230] sm:%s3863]
            %4147 = vst [vmem:[%s3871 + $0x224] sm:%s3863] %v4146
            %v4148 = vld [vmem:[%s3870 + $0x224] sm:%s3863]
            %4149 = vst [vmem:[%s3871 + $0x228] sm:%s3863] %v4148
            %v4150 = vld [vmem:[%s3870 + $0x234] sm:%s3863]
            %4151 = vst [vmem:[%s3871 + $0x22c] sm:%s3863] %v4150
            %v4152 = vld [vmem:[%s3870 + $0x228] sm:%s3863]
            %4153 = vst [vmem:[%s3871 + $0x230] sm:%s3863] %v4152
            %v4154 = vld [vmem:[%s3870 + $0x238] sm:%s3863]
            %4155 = vst [vmem:[%s3871 + $0x234] sm:%s3863] %v4154
            %v4156 = vld [vmem:[%s3870 + $0x22c] sm:%s3863]
            %4157 = vst [vmem:[%s3871 + $0x238] sm:%s3863] %v4156
            %v4158 = vld [vmem:[%s3870 + $0x23c] sm:%s3863]
            %4159 = vst [vmem:[%s3871 + $0x23c] sm:%s3863] %v4158
            %v4160 = vld [vmem:[%s3870 + $0x240] sm:%s3863]
            %4161 = vst [vmem:[%s3871 + $0x240] sm:%s3863] %v4160
            %v4162 = vld [vmem:[%s3870 + $0x250] sm:%s3863]
            %4163 = vst [vmem:[%s3871 + $0x244] sm:%s3863] %v4162
            %v4164 = vld [vmem:[%s3870 + $0x244] sm:%s3863]
            %4165 = vst [vmem:[%s3871 + $0x248] sm:%s3863] %v4164
            %v4166 = vld [vmem:[%s3870 + $0x254] sm:%s3863]
            %4167 = vst [vmem:[%s3871 + $0x24c] sm:%s3863] %v4166
            %v4168 = vld [vmem:[%s3870 + $0x248] sm:%s3863]
            %4169 = vst [vmem:[%s3871 + $0x250] sm:%s3863] %v4168
            %v4170 = vld [vmem:[%s3870 + $0x258] sm:%s3863]
            %4171 = vst [vmem:[%s3871 + $0x254] sm:%s3863] %v4170
            %v4172 = vld [vmem:[%s3870 + $0x24c] sm:%s3863]
            %4173 = vst [vmem:[%s3871 + $0x258] sm:%s3863] %v4172
            %v4174 = vld [vmem:[%s3870 + $0x25c] sm:%s3863]
            %4175 = vst [vmem:[%s3871 + $0x25c] sm:%s3863] %v4174
            %v4176 = vld [vmem:[%s3870 + $0x260] sm:%s3863]
            %4177 = vst [vmem:[%s3871 + $0x260] sm:%s3863] %v4176
            %v4178 = vld [vmem:[%s3870 + $0x270] sm:%s3863]
            %4179 = vst [vmem:[%s3871 + $0x264] sm:%s3863] %v4178
            %v4180 = vld [vmem:[%s3870 + $0x264] sm:%s3863]
            %4181 = vst [vmem:[%s3871 + $0x268] sm:%s3863] %v4180
            %v4182 = vld [vmem:[%s3870 + $0x274] sm:%s3863]
            %4183 = vst [vmem:[%s3871 + $0x26c] sm:%s3863] %v4182
            %v4184 = vld [vmem:[%s3870 + $0x268] sm:%s3863]
            %4185 = vst [vmem:[%s3871 + $0x270] sm:%s3863] %v4184
            %v4186 = vld [vmem:[%s3870 + $0x278] sm:%s3863]
            %4187 = vst [vmem:[%s3871 + $0x274] sm:%s3863] %v4186
            %v4188 = vld [vmem:[%s3870 + $0x26c] sm:%s3863]
            %4189 = vst [vmem:[%s3871 + $0x278] sm:%s3863] %v4188
            %v4190 = vld [vmem:[%s3870 + $0x27c] sm:%s3863]
            %4191 = vst [vmem:[%s3871 + $0x27c] sm:%s3863] %v4190
            %v4192 = vld [vmem:[%s3870 + $0x280] sm:%s3863]
            %4193 = vst [vmem:[%s3871 + $0x280] sm:%s3863] %v4192
            %v4194 = vld [vmem:[%s3870 + $0x290] sm:%s3863]
            %4195 = vst [vmem:[%s3871 + $0x284] sm:%s3863] %v4194
            %v4196 = vld [vmem:[%s3870 + $0x284] sm:%s3863]
            %4197 = vst [vmem:[%s3871 + $0x288] sm:%s3863] %v4196
            %v4198 = vld [vmem:[%s3870 + $0x294] sm:%s3863]
            %4199 = vst [vmem:[%s3871 + $0x28c] sm:%s3863] %v4198
            %v4200 = vld [vmem:[%s3870 + $0x288] sm:%s3863]
            %4201 = vst [vmem:[%s3871 + $0x290] sm:%s3863] %v4200
            %v4202 = vld [vmem:[%s3870 + $0x298] sm:%s3863]
            %4203 = vst [vmem:[%s3871 + $0x294] sm:%s3863] %v4202
            %v4204 = vld [vmem:[%s3870 + $0x28c] sm:%s3863]
            %4205 = vst [vmem:[%s3871 + $0x298] sm:%s3863] %v4204
            %v4206 = vld [vmem:[%s3870 + $0x29c] sm:%s3863]
            %4207 = vst [vmem:[%s3871 + $0x29c] sm:%s3863] %v4206
            %v4208 = vld [vmem:[%s3870 + $0x2a0] sm:%s3863]
            %4209 = vst [vmem:[%s3871 + $0x2a0] sm:%s3863] %v4208
            %v4210 = vld [vmem:[%s3870 + $0x2b0] sm:%s3863]
            %4211 = vst [vmem:[%s3871 + $0x2a4] sm:%s3863] %v4210
            %v4212 = vld [vmem:[%s3870 + $0x2a4] sm:%s3863]
            %4213 = vst [vmem:[%s3871 + $0x2a8] sm:%s3863] %v4212
            %v4214 = vld [vmem:[%s3870 + $0x2b4] sm:%s3863]
            %4215 = vst [vmem:[%s3871 + $0x2ac] sm:%s3863] %v4214
            %v4216 = vld [vmem:[%s3870 + $0x2a8] sm:%s3863]
            %4217 = vst [vmem:[%s3871 + $0x2b0] sm:%s3863] %v4216
            %v4218 = vld [vmem:[%s3870 + $0x2b8] sm:%s3863]
            %4219 = vst [vmem:[%s3871 + $0x2b4] sm:%s3863] %v4218
            %v4220 = vld [vmem:[%s3870 + $0x2ac] sm:%s3863]
            %4221 = vst [vmem:[%s3871 + $0x2b8] sm:%s3863] %v4220
            %v4222 = vld [vmem:[%s3870 + $0x2bc] sm:%s3863]
            %4223 = vst [vmem:[%s3871 + $0x2bc] sm:%s3863] %v4222
            %v4224 = vld [vmem:[%s3870 + $0x2c0] sm:%s3863]
            %4225 = vst [vmem:[%s3871 + $0x2c0] sm:%s3863] %v4224
            %v4226 = vld [vmem:[%s3870 + $0x2d0] sm:%s3863]
            %4227 = vst [vmem:[%s3871 + $0x2c4] sm:%s3863] %v4226
            %v4228 = vld [vmem:[%s3870 + $0x2c4] sm:%s3863]
            %4229 = vst [vmem:[%s3871 + $0x2c8] sm:%s3863] %v4228
            %v4230 = vld [vmem:[%s3870 + $0x2d4] sm:%s3863]
            %4231 = vst [vmem:[%s3871 + $0x2cc] sm:%s3863] %v4230
            %v4232 = vld [vmem:[%s3870 + $0x2c8] sm:%s3863]
            %4233 = vst [vmem:[%s3871 + $0x2d0] sm:%s3863] %v4232
            %v4234 = vld [vmem:[%s3870 + $0x2d8] sm:%s3863]
            %4235 = vst [vmem:[%s3871 + $0x2d4] sm:%s3863] %v4234
            %v4236 = vld [vmem:[%s3870 + $0x2cc] sm:%s3863]
            %4237 = vst [vmem:[%s3871 + $0x2d8] sm:%s3863] %v4236
            %v4238 = vld [vmem:[%s3870 + $0x2dc] sm:%s3863]
            %4239 = vst [vmem:[%s3871 + $0x2dc] sm:%s3863] %v4238
            %v4240 = vld [vmem:[%s3870 + $0x2e0] sm:%s3863]
            %4241 = vst [vmem:[%s3871 + $0x2e0] sm:%s3863] %v4240
            %v4242 = vld [vmem:[%s3870 + $0x2f0] sm:%s3863]
            %4243 = vst [vmem:[%s3871 + $0x2e4] sm:%s3863] %v4242
            %v4244 = vld [vmem:[%s3870 + $0x2e4] sm:%s3863]
            %4245 = vst [vmem:[%s3871 + $0x2e8] sm:%s3863] %v4244
            %v4246 = vld [vmem:[%s3870 + $0x2f4] sm:%s3863]
            %4247 = vst [vmem:[%s3871 + $0x2ec] sm:%s3863] %v4246
            %v4248 = vld [vmem:[%s3870 + $0x2e8] sm:%s3863]
            %4249 = vst [vmem:[%s3871 + $0x2f0] sm:%s3863] %v4248
            %v4250 = vld [vmem:[%s3870 + $0x2f8] sm:%s3863]
            %4251 = vst [vmem:[%s3871 + $0x2f4] sm:%s3863] %v4250
            %v4252 = vld [vmem:[%s3870 + $0x2ec] sm:%s3863]
            %4253 = vst [vmem:[%s3871 + $0x2f8] sm:%s3863] %v4252
            %v4254 = vld [vmem:[%s3870 + $0x2fc] sm:%s3863]
            %4255 = vst [vmem:[%s3871 + $0x2fc] sm:%s3863] %v4254
            %v4256 = vld [vmem:[%s3870 + $0x300] sm:%s3863]
            %4257 = vst [vmem:[%s3871 + $0x300] sm:%s3863] %v4256
            %v4258 = vld [vmem:[%s3870 + $0x310] sm:%s3863]
            %4259 = vst [vmem:[%s3871 + $0x304] sm:%s3863] %v4258
            %v4260 = vld [vmem:[%s3870 + $0x304] sm:%s3863]
            %4261 = vst [vmem:[%s3871 + $0x308] sm:%s3863] %v4260
            %v4262 = vld [vmem:[%s3870 + $0x314] sm:%s3863]
            %4263 = vst [vmem:[%s3871 + $0x30c] sm:%s3863] %v4262
            %v4264 = vld [vmem:[%s3870 + $0x308] sm:%s3863]
            %4265 = vst [vmem:[%s3871 + $0x310] sm:%s3863] %v4264
            %v4266 = vld [vmem:[%s3870 + $0x318] sm:%s3863]
            %4267 = vst [vmem:[%s3871 + $0x314] sm:%s3863] %v4266
            %v4268 = vld [vmem:[%s3870 + $0x30c] sm:%s3863]
            %4269 = vst [vmem:[%s3871 + $0x318] sm:%s3863] %v4268
            %v4270 = vld [vmem:[%s3870 + $0x31c] sm:%s3863]
            %4271 = vst [vmem:[%s3871 + $0x31c] sm:%s3863] %v4270
            %v4272 = vld [vmem:[%s3870 + $0x320] sm:%s3863]
            %4273 = vst [vmem:[%s3871 + $0x320] sm:%s3863] %v4272
            %v4274 = vld [vmem:[%s3870 + $0x330] sm:%s3863]
            %4275 = vst [vmem:[%s3871 + $0x324] sm:%s3863] %v4274
            %v4276 = vld [vmem:[%s3870 + $0x324] sm:%s3863]
            %4277 = vst [vmem:[%s3871 + $0x328] sm:%s3863] %v4276
            %v4278 = vld [vmem:[%s3870 + $0x334] sm:%s3863]
            %4279 = vst [vmem:[%s3871 + $0x32c] sm:%s3863] %v4278
            %v4280 = vld [vmem:[%s3870 + $0x328] sm:%s3863]
            %4281 = vst [vmem:[%s3871 + $0x330] sm:%s3863] %v4280
            %v4282 = vld [vmem:[%s3870 + $0x338] sm:%s3863]
            %4283 = vst [vmem:[%s3871 + $0x334] sm:%s3863] %v4282
            %v4284 = vld [vmem:[%s3870 + $0x32c] sm:%s3863]
            %4285 = vst [vmem:[%s3871 + $0x338] sm:%s3863] %v4284
            %v4286 = vld [vmem:[%s3870 + $0x33c] sm:%s3863]
            %4287 = vst [vmem:[%s3871 + $0x33c] sm:%s3863] %v4286
            %v4288 = vld [vmem:[%s3870 + $0x340] sm:%s3863]
            %4289 = vst [vmem:[%s3871 + $0x340] sm:%s3863] %v4288
            %v4290 = vld [vmem:[%s3870 + $0x350] sm:%s3863]
            %4291 = vst [vmem:[%s3871 + $0x344] sm:%s3863] %v4290
            %v4292 = vld [vmem:[%s3870 + $0x344] sm:%s3863]
            %4293 = vst [vmem:[%s3871 + $0x348] sm:%s3863] %v4292
            %v4294 = vld [vmem:[%s3870 + $0x354] sm:%s3863]
            %4295 = vst [vmem:[%s3871 + $0x34c] sm:%s3863] %v4294
            %v4296 = vld [vmem:[%s3870 + $0x348] sm:%s3863]
            %4297 = vst [vmem:[%s3871 + $0x350] sm:%s3863] %v4296
            %v4298 = vld [vmem:[%s3870 + $0x358] sm:%s3863]
            %4299 = vst [vmem:[%s3871 + $0x354] sm:%s3863] %v4298
            %v4300 = vld [vmem:[%s3870 + $0x34c] sm:%s3863]
            %4301 = vst [vmem:[%s3871 + $0x358] sm:%s3863] %v4300
            %v4302 = vld [vmem:[%s3870 + $0x35c] sm:%s3863]
            %4303 = vst [vmem:[%s3871 + $0x35c] sm:%s3863] %v4302
            %v4304 = vld [vmem:[%s3870 + $0x360] sm:%s3863]
            %4305 = vst [vmem:[%s3871 + $0x360] sm:%s3863] %v4304
            %v4306 = vld [vmem:[%s3870 + $0x370] sm:%s3863]
            %4307 = vst [vmem:[%s3871 + $0x364] sm:%s3863] %v4306
            %v4308 = vld [vmem:[%s3870 + $0x364] sm:%s3863]
            %4309 = vst [vmem:[%s3871 + $0x368] sm:%s3863] %v4308
            %v4310 = vld [vmem:[%s3870 + $0x374] sm:%s3863]
            %4311 = vst [vmem:[%s3871 + $0x36c] sm:%s3863] %v4310
            %v4312 = vld [vmem:[%s3870 + $0x368] sm:%s3863]
            %4313 = vst [vmem:[%s3871 + $0x370] sm:%s3863] %v4312
            %v4314 = vld [vmem:[%s3870 + $0x378] sm:%s3863]
            %4315 = vst [vmem:[%s3871 + $0x374] sm:%s3863] %v4314
            %v4316 = vld [vmem:[%s3870 + $0x36c] sm:%s3863]
            %4317 = vst [vmem:[%s3871 + $0x378] sm:%s3863] %v4316
            %v4318 = vld [vmem:[%s3870 + $0x37c] sm:%s3863]
            %4319 = vst [vmem:[%s3871 + $0x37c] sm:%s3863] %v4318
            %v4320 = vld [vmem:[%s3870 + $0x380] sm:%s3863]
            %4321 = vst [vmem:[%s3871 + $0x380] sm:%s3863] %v4320
            %v4322 = vld [vmem:[%s3870 + $0x390] sm:%s3863]
            %4323 = vst [vmem:[%s3871 + $0x384] sm:%s3863] %v4322
            %v4324 = vld [vmem:[%s3870 + $0x384] sm:%s3863]
            %4325 = vst [vmem:[%s3871 + $0x388] sm:%s3863] %v4324
            %v4326 = vld [vmem:[%s3870 + $0x394] sm:%s3863]
            %4327 = vst [vmem:[%s3871 + $0x38c] sm:%s3863] %v4326
            %v4328 = vld [vmem:[%s3870 + $0x388] sm:%s3863]
            %4329 = vst [vmem:[%s3871 + $0x390] sm:%s3863] %v4328
            %v4330 = vld [vmem:[%s3870 + $0x398] sm:%s3863]
            %4331 = vst [vmem:[%s3871 + $0x394] sm:%s3863] %v4330
            %v4332 = vld [vmem:[%s3870 + $0x38c] sm:%s3863]
            %4333 = vst [vmem:[%s3871 + $0x398] sm:%s3863] %v4332
            %v4334 = vld [vmem:[%s3870 + $0x39c] sm:%s3863]
            %4335 = vst [vmem:[%s3871 + $0x39c] sm:%s3863] %v4334
            %v4336 = vld [vmem:[%s3870 + $0x3a0] sm:%s3863]
            %4337 = vst [vmem:[%s3871 + $0x3a0] sm:%s3863] %v4336
            %v4338 = vld [vmem:[%s3870 + $0x3b0] sm:%s3863]
            %4339 = vst [vmem:[%s3871 + $0x3a4] sm:%s3863] %v4338
            %v4340 = vld [vmem:[%s3870 + $0x3a4] sm:%s3863]
            %4341 = vst [vmem:[%s3871 + $0x3a8] sm:%s3863] %v4340
            %v4342 = vld [vmem:[%s3870 + $0x3b4] sm:%s3863]
            %4343 = vst [vmem:[%s3871 + $0x3ac] sm:%s3863] %v4342
            %v4344 = vld [vmem:[%s3870 + $0x3a8] sm:%s3863]
            %4345 = vst [vmem:[%s3871 + $0x3b0] sm:%s3863] %v4344
            %v4346 = vld [vmem:[%s3870 + $0x3b8] sm:%s3863]
            %4347 = vst [vmem:[%s3871 + $0x3b4] sm:%s3863] %v4346
            %v4348 = vld [vmem:[%s3870 + $0x3ac] sm:%s3863]
            %4349 = vst [vmem:[%s3871 + $0x3b8] sm:%s3863] %v4348
            %v4350 = vld [vmem:[%s3870 + $0x3bc] sm:%s3863]
            %4351 = vst [vmem:[%s3871 + $0x3bc] sm:%s3863] %v4350
            %v4352 = vld [vmem:[%s3870 + $0x3c0] sm:%s3863]
            %4353 = vst [vmem:[%s3871 + $0x3c0] sm:%s3863] %v4352
            %v4354 = vld [vmem:[%s3870 + $0x3d0] sm:%s3863]
            %4355 = vst [vmem:[%s3871 + $0x3c4] sm:%s3863] %v4354
            %v4356 = vld [vmem:[%s3870 + $0x3c4] sm:%s3863]
            %4357 = vst [vmem:[%s3871 + $0x3c8] sm:%s3863] %v4356
            %v4358 = vld [vmem:[%s3870 + $0x3d4] sm:%s3863]
            %4359 = vst [vmem:[%s3871 + $0x3cc] sm:%s3863] %v4358
            %v4360 = vld [vmem:[%s3870 + $0x3c8] sm:%s3863]
            %4361 = vst [vmem:[%s3871 + $0x3d0] sm:%s3863] %v4360
            %v4362 = vld [vmem:[%s3870 + $0x3d8] sm:%s3863]
            %4363 = vst [vmem:[%s3871 + $0x3d4] sm:%s3863] %v4362
            %v4364 = vld [vmem:[%s3870 + $0x3cc] sm:%s3863]
            %4365 = vst [vmem:[%s3871 + $0x3d8] sm:%s3863] %v4364
            %v4366 = vld [vmem:[%s3870 + $0x3dc] sm:%s3863]
            %4367 = vst [vmem:[%s3871 + $0x3dc] sm:%s3863] %v4366
            %v4368 = vld [vmem:[%s3870 + $0x3e0] sm:%s3863]
            %4369 = vst [vmem:[%s3871 + $0x3e0] sm:%s3863] %v4368
            %v4370 = vld [vmem:[%s3870 + $0x3f0] sm:%s3863]
            %4371 = vst [vmem:[%s3871 + $0x3e4] sm:%s3863] %v4370
            %v4372 = vld [vmem:[%s3870 + $0x3e4] sm:%s3863]
            %4373 = vst [vmem:[%s3871 + $0x3e8] sm:%s3863] %v4372
            %v4374 = vld [vmem:[%s3870 + $0x3f4] sm:%s3863]
            %4375 = vst [vmem:[%s3871 + $0x3ec] sm:%s3863] %v4374
            %v4376 = vld [vmem:[%s3870 + $0x3e8] sm:%s3863]
            %4377 = vst [vmem:[%s3871 + $0x3f0] sm:%s3863] %v4376
            %v4378 = vld [vmem:[%s3870 + $0x3f8] sm:%s3863]
            %4379 = vst [vmem:[%s3871 + $0x3f4] sm:%s3863] %v4378
            %v4380 = vld [vmem:[%s3870 + $0x3ec] sm:%s3863]
            %4381 = vst [vmem:[%s3871 + $0x3f8] sm:%s3863] %v4380
            %v4382 = vld [vmem:[%s3870 + $0x3fc] sm:%s3863]
            %4383 = vst [vmem:[%s3871 + $0x3fc] sm:%s3863] %v4382
            %v4384 = vld [vmem:[%s3870 + $0x400] sm:%s3863]
            %4385 = vst [vmem:[%s3871 + $0x400] sm:%s3863] %v4384
            %v4386 = vld [vmem:[%s3870 + $0x410] sm:%s3863]
            %4387 = vst [vmem:[%s3871 + $0x404] sm:%s3863] %v4386
            %v4388 = vld [vmem:[%s3870 + $0x404] sm:%s3863]
            %4389 = vst [vmem:[%s3871 + $0x408] sm:%s3863] %v4388
            %v4390 = vld [vmem:[%s3870 + $0x414] sm:%s3863]
            %4391 = vst [vmem:[%s3871 + $0x40c] sm:%s3863] %v4390
            %v4392 = vld [vmem:[%s3870 + $0x408] sm:%s3863]
            %4393 = vst [vmem:[%s3871 + $0x410] sm:%s3863] %v4392
            %v4394 = vld [vmem:[%s3870 + $0x418] sm:%s3863]
            %4395 = vst [vmem:[%s3871 + $0x414] sm:%s3863] %v4394
            %v4396 = vld [vmem:[%s3870 + $0x40c] sm:%s3863]
            %4397 = vst [vmem:[%s3871 + $0x418] sm:%s3863] %v4396
            %v4398 = vld [vmem:[%s3870 + $0x41c] sm:%s3863]
            %4399 = vst [vmem:[%s3871 + $0x41c] sm:%s3863] %v4398
            %v4400 = vld [vmem:[%s3870 + $0x420] sm:%s3863]
            %4401 = vst [vmem:[%s3871 + $0x420] sm:%s3863] %v4400
            %v4402 = vld [vmem:[%s3870 + $0x430] sm:%s3863]
            %4403 = vst [vmem:[%s3871 + $0x424] sm:%s3863] %v4402
            %v4404 = vld [vmem:[%s3870 + $0x424] sm:%s3863]
            %4405 = vst [vmem:[%s3871 + $0x428] sm:%s3863] %v4404
            %v4406 = vld [vmem:[%s3870 + $0x434] sm:%s3863]
            %4407 = vst [vmem:[%s3871 + $0x42c] sm:%s3863] %v4406
            %v4408 = vld [vmem:[%s3870 + $0x428] sm:%s3863]
            %4409 = vst [vmem:[%s3871 + $0x430] sm:%s3863] %v4408
            %v4410 = vld [vmem:[%s3870 + $0x438] sm:%s3863]
            %4411 = vst [vmem:[%s3871 + $0x434] sm:%s3863] %v4410
            %v4412 = vld [vmem:[%s3870 + $0x42c] sm:%s3863]
            %4413 = vst [vmem:[%s3871 + $0x438] sm:%s3863] %v4412
            %v4414 = vld [vmem:[%s3870 + $0x43c] sm:%s3863]
            %4415 = vst [vmem:[%s3871 + $0x43c] sm:%s3863] %v4414
            %v4416 = vld [vmem:[%s3870 + $0x440] sm:%s3863]
            %4417 = vst [vmem:[%s3871 + $0x440] sm:%s3863] %v4416
            %v4418 = vld [vmem:[%s3870 + $0x450] sm:%s3863]
            %4419 = vst [vmem:[%s3871 + $0x444] sm:%s3863] %v4418
            %v4420 = vld [vmem:[%s3870 + $0x444] sm:%s3863]
            %4421 = vst [vmem:[%s3871 + $0x448] sm:%s3863] %v4420
            %v4422 = vld [vmem:[%s3870 + $0x454] sm:%s3863]
            %4423 = vst [vmem:[%s3871 + $0x44c] sm:%s3863] %v4422
            %v4424 = vld [vmem:[%s3870 + $0x448] sm:%s3863]
            %4425 = vst [vmem:[%s3871 + $0x450] sm:%s3863] %v4424
            %v4426 = vld [vmem:[%s3870 + $0x458] sm:%s3863]
            %4427 = vst [vmem:[%s3871 + $0x454] sm:%s3863] %v4426
            %v4428 = vld [vmem:[%s3870 + $0x44c] sm:%s3863]
            %4429 = vst [vmem:[%s3871 + $0x458] sm:%s3863] %v4428
            %v4430 = vld [vmem:[%s3870 + $0x45c] sm:%s3863]
            %4431 = vst [vmem:[%s3871 + $0x45c] sm:%s3863] %v4430
            %v4432 = vld [vmem:[%s3870 + $0x460] sm:%s3863]
            %4433 = vst [vmem:[%s3871 + $0x460] sm:%s3863] %v4432
            %v4434 = vld [vmem:[%s3870 + $0x470] sm:%s3863]
            %4435 = vst [vmem:[%s3871 + $0x464] sm:%s3863] %v4434
            %v4436 = vld [vmem:[%s3870 + $0x464] sm:%s3863]
            %4437 = vst [vmem:[%s3871 + $0x468] sm:%s3863] %v4436
            %v4438 = vld [vmem:[%s3870 + $0x474] sm:%s3863]
            %4439 = vst [vmem:[%s3871 + $0x46c] sm:%s3863] %v4438
            %v4440 = vld [vmem:[%s3870 + $0x468] sm:%s3863]
            %4441 = vst [vmem:[%s3871 + $0x470] sm:%s3863] %v4440
            %v4442 = vld [vmem:[%s3870 + $0x478] sm:%s3863]
            %4443 = vst [vmem:[%s3871 + $0x474] sm:%s3863] %v4442
            %v4444 = vld [vmem:[%s3870 + $0x46c] sm:%s3863]
            %4445 = vst [vmem:[%s3871 + $0x478] sm:%s3863] %v4444
            %v4446 = vld [vmem:[%s3870 + $0x47c] sm:%s3863]
            %4447 = vst [vmem:[%s3871 + $0x47c] sm:%s3863] %v4446
            %v4448 = vld [vmem:[%s3870 + $0x480] sm:%s3863]
            %4449 = vst [vmem:[%s3871 + $0x480] sm:%s3863] %v4448
            %v4450 = vld [vmem:[%s3870 + $0x490] sm:%s3863]
            %4451 = vst [vmem:[%s3871 + $0x484] sm:%s3863] %v4450
            %v4452 = vld [vmem:[%s3870 + $0x484] sm:%s3863]
            %4453 = vst [vmem:[%s3871 + $0x488] sm:%s3863] %v4452
            %v4454 = vld [vmem:[%s3870 + $0x494] sm:%s3863]
            %4455 = vst [vmem:[%s3871 + $0x48c] sm:%s3863] %v4454
            %v4456 = vld [vmem:[%s3870 + $0x488] sm:%s3863]
            %4457 = vst [vmem:[%s3871 + $0x490] sm:%s3863] %v4456
            %v4458 = vld [vmem:[%s3870 + $0x498] sm:%s3863]
            %4459 = vst [vmem:[%s3871 + $0x494] sm:%s3863] %v4458
            %v4460 = vld [vmem:[%s3870 + $0x48c] sm:%s3863]
            %4461 = vst [vmem:[%s3871 + $0x498] sm:%s3863] %v4460
            %v4462 = vld [vmem:[%s3870 + $0x49c] sm:%s3863]
            %4463 = vst [vmem:[%s3871 + $0x49c] sm:%s3863] %v4462
            %v4464 = vld [vmem:[%s3870 + $0x4a0] sm:%s3863]
            %4465 = vst [vmem:[%s3871 + $0x4a0] sm:%s3863] %v4464
            %v4466 = vld [vmem:[%s3870 + $0x4b0] sm:%s3863]
            %4467 = vst [vmem:[%s3871 + $0x4a4] sm:%s3863] %v4466
            %v4468 = vld [vmem:[%s3870 + $0x4a4] sm:%s3863]
            %4469 = vst [vmem:[%s3871 + $0x4a8] sm:%s3863] %v4468
            %v4470 = vld [vmem:[%s3870 + $0x4b4] sm:%s3863]
            %4471 = vst [vmem:[%s3871 + $0x4ac] sm:%s3863] %v4470
            %v4472 = vld [vmem:[%s3870 + $0x4a8] sm:%s3863]
            %4473 = vst [vmem:[%s3871 + $0x4b0] sm:%s3863] %v4472
            %v4474 = vld [vmem:[%s3870 + $0x4b8] sm:%s3863]
            %4475 = vst [vmem:[%s3871 + $0x4b4] sm:%s3863] %v4474
            %v4476 = vld [vmem:[%s3870 + $0x4ac] sm:%s3863]
            %4477 = vst [vmem:[%s3871 + $0x4b8] sm:%s3863] %v4476
            %v4478 = vld [vmem:[%s3870 + $0x4bc] sm:%s3863]
            %4479 = vst [vmem:[%s3871 + $0x4bc] sm:%s3863] %v4478
            %v4480 = vld [vmem:[%s3870 + $0x4c0] sm:%s3863]
            %4481 = vst [vmem:[%s3871 + $0x4c0] sm:%s3863] %v4480
            %v4482 = vld [vmem:[%s3870 + $0x4d0] sm:%s3863]
            %4483 = vst [vmem:[%s3871 + $0x4c4] sm:%s3863] %v4482
            %v4484 = vld [vmem:[%s3870 + $0x4c4] sm:%s3863]
            %4485 = vst [vmem:[%s3871 + $0x4c8] sm:%s3863] %v4484
            %v4486 = vld [vmem:[%s3870 + $0x4d4] sm:%s3863]
            %4487 = vst [vmem:[%s3871 + $0x4cc] sm:%s3863] %v4486
            %v4488 = vld [vmem:[%s3870 + $0x4c8] sm:%s3863]
            %4489 = vst [vmem:[%s3871 + $0x4d0] sm:%s3863] %v4488
            %v4490 = vld [vmem:[%s3870 + $0x4d8] sm:%s3863]
            %4491 = vst [vmem:[%s3871 + $0x4d4] sm:%s3863] %v4490
            %v4492 = vld [vmem:[%s3870 + $0x4cc] sm:%s3863]
            %4493 = vst [vmem:[%s3871 + $0x4d8] sm:%s3863] %v4492
            %v4494 = vld [vmem:[%s3870 + $0x4dc] sm:%s3863]
            %4495 = vst [vmem:[%s3871 + $0x4dc] sm:%s3863] %v4494
            %v4496 = vld [vmem:[%s3870 + $0x4e0] sm:%s3863]
            %4497 = vst [vmem:[%s3871 + $0x4e0] sm:%s3863] %v4496
            %v4498 = vld [vmem:[%s3870 + $0x4f0] sm:%s3863]
            %4499 = vst [vmem:[%s3871 + $0x4e4] sm:%s3863] %v4498
            %v4500 = vld [vmem:[%s3870 + $0x4e4] sm:%s3863]
            %4501 = vst [vmem:[%s3871 + $0x4e8] sm:%s3863] %v4500
            %v4502 = vld [vmem:[%s3870 + $0x4f4] sm:%s3863]
            %4503 = vst [vmem:[%s3871 + $0x4ec] sm:%s3863] %v4502
            %v4504 = vld [vmem:[%s3870 + $0x4e8] sm:%s3863]
            %4505 = vst [vmem:[%s3871 + $0x4f0] sm:%s3863] %v4504
            %v4506 = vld [vmem:[%s3870 + $0x4f8] sm:%s3863]
            %4507 = vst [vmem:[%s3871 + $0x4f4] sm:%s3863] %v4506
            %v4508 = vld [vmem:[%s3870 + $0x4ec] sm:%s3863]
            %4509 = vst [vmem:[%s3871 + $0x4f8] sm:%s3863] %v4508
            %v4510 = vld [vmem:[%s3870 + $0x4fc] sm:%s3863]
            %4511 = vst [vmem:[%s3871 + $0x4fc] sm:%s3863] %v4510
            %v4512 = vld [vmem:[%s3870 + $0x500] sm:%s3863]
            %4513 = vst [vmem:[%s3871 + $0x500] sm:%s3863] %v4512
            %v4514 = vld [vmem:[%s3870 + $0x510] sm:%s3863]
            %4515 = vst [vmem:[%s3871 + $0x504] sm:%s3863] %v4514
            %v4516 = vld [vmem:[%s3870 + $0x504] sm:%s3863]
            %4517 = vst [vmem:[%s3871 + $0x508] sm:%s3863] %v4516
            %v4518 = vld [vmem:[%s3870 + $0x514] sm:%s3863]
            %4519 = vst [vmem:[%s3871 + $0x50c] sm:%s3863] %v4518
            %v4520 = vld [vmem:[%s3870 + $0x508] sm:%s3863]
            %4521 = vst [vmem:[%s3871 + $0x510] sm:%s3863] %v4520
            %v4522 = vld [vmem:[%s3870 + $0x518] sm:%s3863]
            %4523 = vst [vmem:[%s3871 + $0x514] sm:%s3863] %v4522
            %v4524 = vld [vmem:[%s3870 + $0x50c] sm:%s3863]
            %4525 = vst [vmem:[%s3871 + $0x518] sm:%s3863] %v4524
            %v4526 = vld [vmem:[%s3870 + $0x51c] sm:%s3863]
            %4527 = vst [vmem:[%s3871 + $0x51c] sm:%s3863] %v4526
            %v4528 = vld [vmem:[%s3870 + $0x520] sm:%s3863]
            %4529 = vst [vmem:[%s3871 + $0x520] sm:%s3863] %v4528
            %v4530 = vld [vmem:[%s3870 + $0x530] sm:%s3863]
            %4531 = vst [vmem:[%s3871 + $0x524] sm:%s3863] %v4530
            %v4532 = vld [vmem:[%s3870 + $0x524] sm:%s3863]
            %4533 = vst [vmem:[%s3871 + $0x528] sm:%s3863] %v4532
            %v4534 = vld [vmem:[%s3870 + $0x534] sm:%s3863]
            %4535 = vst [vmem:[%s3871 + $0x52c] sm:%s3863] %v4534
            %v4536 = vld [vmem:[%s3870 + $0x528] sm:%s3863]
            %4537 = vst [vmem:[%s3871 + $0x530] sm:%s3863] %v4536
            %v4538 = vld [vmem:[%s3870 + $0x538] sm:%s3863]
            %4539 = vst [vmem:[%s3871 + $0x534] sm:%s3863] %v4538
            %v4540 = vld [vmem:[%s3870 + $0x52c] sm:%s3863]
            %4541 = vst [vmem:[%s3871 + $0x538] sm:%s3863] %v4540
            %v4542 = vld [vmem:[%s3870 + $0x53c] sm:%s3863]
            %4543 = vst [vmem:[%s3871 + $0x53c] sm:%s3863] %v4542
            %v4544 = vld [vmem:[%s3870 + $0x540] sm:%s3863]
            %4545 = vst [vmem:[%s3871 + $0x540] sm:%s3863] %v4544
            %v4546 = vld [vmem:[%s3870 + $0x550] sm:%s3863]
            %4547 = vst [vmem:[%s3871 + $0x544] sm:%s3863] %v4546
            %v4548 = vld [vmem:[%s3870 + $0x544] sm:%s3863]
            %4549 = vst [vmem:[%s3871 + $0x548] sm:%s3863] %v4548
            %v4550 = vld [vmem:[%s3870 + $0x554] sm:%s3863]
            %4551 = vst [vmem:[%s3871 + $0x54c] sm:%s3863] %v4550
            %v4552 = vld [vmem:[%s3870 + $0x548] sm:%s3863]
            %4553 = vst [vmem:[%s3871 + $0x550] sm:%s3863] %v4552
            %v4554 = vld [vmem:[%s3870 + $0x558] sm:%s3863]
            %4555 = vst [vmem:[%s3871 + $0x554] sm:%s3863] %v4554
            %v4556 = vld [vmem:[%s3870 + $0x54c] sm:%s3863]
            %4557 = vst [vmem:[%s3871 + $0x558] sm:%s3863] %v4556
            %v4558 = vld [vmem:[%s3870 + $0x55c] sm:%s3863]
            %4559 = vst [vmem:[%s3871 + $0x55c] sm:%s3863] %v4558
            %v4560 = vld [vmem:[%s3870 + $0x560] sm:%s3863]
            %4561 = vst [vmem:[%s3871 + $0x560] sm:%s3863] %v4560
            %v4562 = vld [vmem:[%s3870 + $0x570] sm:%s3863]
            %4563 = vst [vmem:[%s3871 + $0x564] sm:%s3863] %v4562
            %v4564 = vld [vmem:[%s3870 + $0x564] sm:%s3863]
            %4565 = vst [vmem:[%s3871 + $0x568] sm:%s3863] %v4564
            %v4566 = vld [vmem:[%s3870 + $0x574] sm:%s3863]
            %4567 = vst [vmem:[%s3871 + $0x56c] sm:%s3863] %v4566
            %v4568 = vld [vmem:[%s3870 + $0x568] sm:%s3863]
            %4569 = vst [vmem:[%s3871 + $0x570] sm:%s3863] %v4568
            %v4570 = vld [vmem:[%s3870 + $0x578] sm:%s3863]
            %4571 = vst [vmem:[%s3871 + $0x574] sm:%s3863] %v4570
            %v4572 = vld [vmem:[%s3870 + $0x56c] sm:%s3863]
            %4573 = vst [vmem:[%s3871 + $0x578] sm:%s3863] %v4572
            %v4574 = vld [vmem:[%s3870 + $0x57c] sm:%s3863]
            %4575 = vst [vmem:[%s3871 + $0x57c] sm:%s3863] %v4574
            %v4576 = vld [vmem:[%s3870 + $0x580] sm:%s3863]
            %4577 = vst [vmem:[%s3871 + $0x580] sm:%s3863] %v4576
            %v4578 = vld [vmem:[%s3870 + $0x590] sm:%s3863]
            %4579 = vst [vmem:[%s3871 + $0x584] sm:%s3863] %v4578
            %v4580 = vld [vmem:[%s3870 + $0x584] sm:%s3863]
            %4581 = vst [vmem:[%s3871 + $0x588] sm:%s3863] %v4580
            %v4582 = vld [vmem:[%s3870 + $0x594] sm:%s3863]
            %4583 = vst [vmem:[%s3871 + $0x58c] sm:%s3863] %v4582
            %v4584 = vld [vmem:[%s3870 + $0x588] sm:%s3863]
            %4585 = vst [vmem:[%s3871 + $0x590] sm:%s3863] %v4584
            %v4586 = vld [vmem:[%s3870 + $0x598] sm:%s3863]
            %4587 = vst [vmem:[%s3871 + $0x594] sm:%s3863] %v4586
            %v4588 = vld [vmem:[%s3870 + $0x58c] sm:%s3863]
            %4589 = vst [vmem:[%s3871 + $0x598] sm:%s3863] %v4588
            %v4590 = vld [vmem:[%s3870 + $0x59c] sm:%s3863]
            %4591 = vst [vmem:[%s3871 + $0x59c] sm:%s3863] %v4590
            %v4592 = vld [vmem:[%s3870 + $0x5a0] sm:%s3863]
            %4593 = vst [vmem:[%s3871 + $0x5a0] sm:%s3863] %v4592
            %v4594 = vld [vmem:[%s3870 + $0x5b0] sm:%s3863]
            %4595 = vst [vmem:[%s3871 + $0x5a4] sm:%s3863] %v4594
            %v4596 = vld [vmem:[%s3870 + $0x5a4] sm:%s3863]
            %4597 = vst [vmem:[%s3871 + $0x5a8] sm:%s3863] %v4596
            %v4598 = vld [vmem:[%s3870 + $0x5b4] sm:%s3863]
            %4599 = vst [vmem:[%s3871 + $0x5ac] sm:%s3863] %v4598
            %v4600 = vld [vmem:[%s3870 + $0x5a8] sm:%s3863]
            %4601 = vst [vmem:[%s3871 + $0x5b0] sm:%s3863] %v4600
            %v4602 = vld [vmem:[%s3870 + $0x5b8] sm:%s3863]
            %4603 = vst [vmem:[%s3871 + $0x5b4] sm:%s3863] %v4602
            %v4604 = vld [vmem:[%s3870 + $0x5ac] sm:%s3863]
            %4605 = vst [vmem:[%s3871 + $0x5b8] sm:%s3863] %v4604
            %v4606 = vld [vmem:[%s3870 + $0x5bc] sm:%s3863]
            %4607 = vst [vmem:[%s3871 + $0x5bc] sm:%s3863] %v4606
            %v4608 = vld [vmem:[%s3870 + $0x5c0] sm:%s3863]
            %4609 = vst [vmem:[%s3871 + $0x5c0] sm:%s3863] %v4608
            %v4610 = vld [vmem:[%s3870 + $0x5d0] sm:%s3863]
            %4611 = vst [vmem:[%s3871 + $0x5c4] sm:%s3863] %v4610
            %v4612 = vld [vmem:[%s3870 + $0x5c4] sm:%s3863]
            %4613 = vst [vmem:[%s3871 + $0x5c8] sm:%s3863] %v4612
            %v4614 = vld [vmem:[%s3870 + $0x5d4] sm:%s3863]
            %4615 = vst [vmem:[%s3871 + $0x5cc] sm:%s3863] %v4614
            %v4616 = vld [vmem:[%s3870 + $0x5c8] sm:%s3863]
            %4617 = vst [vmem:[%s3871 + $0x5d0] sm:%s3863] %v4616
            %v4618 = vld [vmem:[%s3870 + $0x5d8] sm:%s3863]
            %4619 = vst [vmem:[%s3871 + $0x5d4] sm:%s3863] %v4618
            %v4620 = vld [vmem:[%s3870 + $0x5cc] sm:%s3863]
            %4621 = vst [vmem:[%s3871 + $0x5d8] sm:%s3863] %v4620
            %v4622 = vld [vmem:[%s3870 + $0x5dc] sm:%s3863]
            %4623 = vst [vmem:[%s3871 + $0x5dc] sm:%s3863] %v4622
            %v4624 = vld [vmem:[%s3870 + $0x5e0] sm:%s3863]
            %4625 = vst [vmem:[%s3871 + $0x5e0] sm:%s3863] %v4624
            %v4626 = vld [vmem:[%s3870 + $0x5f0] sm:%s3863]
            %4627 = vst [vmem:[%s3871 + $0x5e4] sm:%s3863] %v4626
            %v4628 = vld [vmem:[%s3870 + $0x5e4] sm:%s3863]
            %4629 = vst [vmem:[%s3871 + $0x5e8] sm:%s3863] %v4628
            %v4630 = vld [vmem:[%s3870 + $0x5f4] sm:%s3863]
            %4631 = vst [vmem:[%s3871 + $0x5ec] sm:%s3863] %v4630
            %v4632 = vld [vmem:[%s3870 + $0x5e8] sm:%s3863]
            %4633 = vst [vmem:[%s3871 + $0x5f0] sm:%s3863] %v4632
            %v4634 = vld [vmem:[%s3870 + $0x5f8] sm:%s3863]
            %4635 = vst [vmem:[%s3871 + $0x5f4] sm:%s3863] %v4634
            %v4636 = vld [vmem:[%s3870 + $0x5ec] sm:%s3863]
            %4637 = vst [vmem:[%s3871 + $0x5f8] sm:%s3863] %v4636
            %v4638 = vld [vmem:[%s3870 + $0x5fc] sm:%s3863]
            %4639 = vst [vmem:[%s3871 + $0x5fc] sm:%s3863] %v4638
          $region120: #{lstm_model_forward.1} parent=107 // loop_footer
            %s3869 = sadd.s32 1, %s3865
          $region121: #{lstm_model_forward.1} parent=107 // loop_footer_branch
            %3864 = sbr.rel target = $region117
          $region122: #{lstm_model_forward.1} parent=107 // loop_exit
            _
        $region108: #{lstm_model_forward.1} parent=92 // pred_fallthru
          _
      $region93: #{lstm_model_forward.1} parent=88 // pred_fallthru
        _
      // Predicated region
      $region94: #{lstm_model_forward.1} parent=88 // pred_check
        %p3065 = pneg %p3061
      $region95: #{lstm_model_forward.1} parent=88 // pred_check_branch
        %3067 = sbr.rel (%p3065) target = $region97
      $region96: #{lstm_model_forward.1} parent=88 // pred_region
        %s3068 = sshllo.u32 0, 4
        loop: start=0, step=1, limit=1
        $region98: #{lstm_model_forward.1} parent=96 // loop_pre_header
          _
        $region99: #{lstm_model_forward.1} parent=96 // loop_header
          %s3070 = sphi 0, %s3074
          %p3071 = scmp.ge.s32.totalorder %s3070, 1
          %s3075 = sphi %s3055, %s3055
          %s3076 = sphi %s3058, %s3058
        $region100: #{lstm_model_forward.1} parent=96 // loop_header_branch
          %3073 = sbr.rel (%p3071) target = $region104
        $region101: #{lstm_model_forward.1} parent=96 // loop_body
          %v3077 = vld [vmem:[%s3075] sm:%s3068]
          %3078 = vst [vmem:[%s3076] sm:%s3068] %v3077
          %v3079 = vld [vmem:[%s3075 + $0x10] sm:%s3068]
          %3080 = vst [vmem:[%s3076 + $0x4] sm:%s3068] %v3079
          %v3081 = vld [vmem:[%s3075 + $0x4] sm:%s3068]
          %3082 = vst [vmem:[%s3076 + $0x8] sm:%s3068] %v3081
          %v3083 = vld [vmem:[%s3075 + $0x14] sm:%s3068]
          %3084 = vst [vmem:[%s3076 + $0xc] sm:%s3068] %v3083
          %v3085 = vld [vmem:[%s3075 + $0x8] sm:%s3068]
          %3086 = vst [vmem:[%s3076 + $0x10] sm:%s3068] %v3085
          %v3087 = vld [vmem:[%s3075 + $0x18] sm:%s3068]
          %3088 = vst [vmem:[%s3076 + $0x14] sm:%s3068] %v3087
          %v3089 = vld [vmem:[%s3075 + $0xc] sm:%s3068]
          %3090 = vst [vmem:[%s3076 + $0x18] sm:%s3068] %v3089
          %v3091 = vld [vmem:[%s3075 + $0x1c] sm:%s3068]
          %3092 = vst [vmem:[%s3076 + $0x1c] sm:%s3068] %v3091
          %v3093 = vld [vmem:[%s3075 + $0x20] sm:%s3068]
          %3094 = vst [vmem:[%s3076 + $0x20] sm:%s3068] %v3093
          %v3095 = vld [vmem:[%s3075 + $0x30] sm:%s3068]
          %3096 = vst [vmem:[%s3076 + $0x24] sm:%s3068] %v3095
          %v3097 = vld [vmem:[%s3075 + $0x24] sm:%s3068]
          %3098 = vst [vmem:[%s3076 + $0x28] sm:%s3068] %v3097
          %v3099 = vld [vmem:[%s3075 + $0x34] sm:%s3068]
          %3100 = vst [vmem:[%s3076 + $0x2c] sm:%s3068] %v3099
          %v3101 = vld [vmem:[%s3075 + $0x28] sm:%s3068]
          %3102 = vst [vmem:[%s3076 + $0x30] sm:%s3068] %v3101
          %v3103 = vld [vmem:[%s3075 + $0x38] sm:%s3068]
          %3104 = vst [vmem:[%s3076 + $0x34] sm:%s3068] %v3103
          %v3105 = vld [vmem:[%s3075 + $0x2c] sm:%s3068]
          %3106 = vst [vmem:[%s3076 + $0x38] sm:%s3068] %v3105
          %v3107 = vld [vmem:[%s3075 + $0x3c] sm:%s3068]
          %3108 = vst [vmem:[%s3076 + $0x3c] sm:%s3068] %v3107
          %v3109 = vld [vmem:[%s3075 + $0x40] sm:%s3068]
          %3110 = vst [vmem:[%s3076 + $0x40] sm:%s3068] %v3109
          %v3111 = vld [vmem:[%s3075 + $0x50] sm:%s3068]
          %3112 = vst [vmem:[%s3076 + $0x44] sm:%s3068] %v3111
          %v3113 = vld [vmem:[%s3075 + $0x44] sm:%s3068]
          %3114 = vst [vmem:[%s3076 + $0x48] sm:%s3068] %v3113
          %v3115 = vld [vmem:[%s3075 + $0x54] sm:%s3068]
          %3116 = vst [vmem:[%s3076 + $0x4c] sm:%s3068] %v3115
          %v3117 = vld [vmem:[%s3075 + $0x48] sm:%s3068]
          %3118 = vst [vmem:[%s3076 + $0x50] sm:%s3068] %v3117
          %v3119 = vld [vmem:[%s3075 + $0x58] sm:%s3068]
          %3120 = vst [vmem:[%s3076 + $0x54] sm:%s3068] %v3119
          %v3121 = vld [vmem:[%s3075 + $0x4c] sm:%s3068]
          %3122 = vst [vmem:[%s3076 + $0x58] sm:%s3068] %v3121
          %v3123 = vld [vmem:[%s3075 + $0x5c] sm:%s3068]
          %3124 = vst [vmem:[%s3076 + $0x5c] sm:%s3068] %v3123
          %v3125 = vld [vmem:[%s3075 + $0x60] sm:%s3068]
          %3126 = vst [vmem:[%s3076 + $0x60] sm:%s3068] %v3125
          %v3127 = vld [vmem:[%s3075 + $0x70] sm:%s3068]
          %3128 = vst [vmem:[%s3076 + $0x64] sm:%s3068] %v3127
          %v3129 = vld [vmem:[%s3075 + $0x64] sm:%s3068]
          %3130 = vst [vmem:[%s3076 + $0x68] sm:%s3068] %v3129
          %v3131 = vld [vmem:[%s3075 + $0x74] sm:%s3068]
          %3132 = vst [vmem:[%s3076 + $0x6c] sm:%s3068] %v3131
          %v3133 = vld [vmem:[%s3075 + $0x68] sm:%s3068]
          %3134 = vst [vmem:[%s3076 + $0x70] sm:%s3068] %v3133
          %v3135 = vld [vmem:[%s3075 + $0x78] sm:%s3068]
          %3136 = vst [vmem:[%s3076 + $0x74] sm:%s3068] %v3135
          %v3137 = vld [vmem:[%s3075 + $0x6c] sm:%s3068]
          %3138 = vst [vmem:[%s3076 + $0x78] sm:%s3068] %v3137
          %v3139 = vld [vmem:[%s3075 + $0x7c] sm:%s3068]
          %3140 = vst [vmem:[%s3076 + $0x7c] sm:%s3068] %v3139
          %v3141 = vld [vmem:[%s3075 + $0x80] sm:%s3068]
          %3142 = vst [vmem:[%s3076 + $0x80] sm:%s3068] %v3141
          %v3143 = vld [vmem:[%s3075 + $0x90] sm:%s3068]
          %3144 = vst [vmem:[%s3076 + $0x84] sm:%s3068] %v3143
          %v3145 = vld [vmem:[%s3075 + $0x84] sm:%s3068]
          %3146 = vst [vmem:[%s3076 + $0x88] sm:%s3068] %v3145
          %v3147 = vld [vmem:[%s3075 + $0x94] sm:%s3068]
          %3148 = vst [vmem:[%s3076 + $0x8c] sm:%s3068] %v3147
          %v3149 = vld [vmem:[%s3075 + $0x88] sm:%s3068]
          %3150 = vst [vmem:[%s3076 + $0x90] sm:%s3068] %v3149
          %v3151 = vld [vmem:[%s3075 + $0x98] sm:%s3068]
          %3152 = vst [vmem:[%s3076 + $0x94] sm:%s3068] %v3151
          %v3153 = vld [vmem:[%s3075 + $0x8c] sm:%s3068]
          %3154 = vst [vmem:[%s3076 + $0x98] sm:%s3068] %v3153
          %v3155 = vld [vmem:[%s3075 + $0x9c] sm:%s3068]
          %3156 = vst [vmem:[%s3076 + $0x9c] sm:%s3068] %v3155
          %v3157 = vld [vmem:[%s3075 + $0xa0] sm:%s3068]
          %3158 = vst [vmem:[%s3076 + $0xa0] sm:%s3068] %v3157
          %v3159 = vld [vmem:[%s3075 + $0xb0] sm:%s3068]
          %3160 = vst [vmem:[%s3076 + $0xa4] sm:%s3068] %v3159
          %v3161 = vld [vmem:[%s3075 + $0xa4] sm:%s3068]
          %3162 = vst [vmem:[%s3076 + $0xa8] sm:%s3068] %v3161
          %v3163 = vld [vmem:[%s3075 + $0xb4] sm:%s3068]
          %3164 = vst [vmem:[%s3076 + $0xac] sm:%s3068] %v3163
          %v3165 = vld [vmem:[%s3075 + $0xa8] sm:%s3068]
          %3166 = vst [vmem:[%s3076 + $0xb0] sm:%s3068] %v3165
          %v3167 = vld [vmem:[%s3075 + $0xb8] sm:%s3068]
          %3168 = vst [vmem:[%s3076 + $0xb4] sm:%s3068] %v3167
          %v3169 = vld [vmem:[%s3075 + $0xac] sm:%s3068]
          %3170 = vst [vmem:[%s3076 + $0xb8] sm:%s3068] %v3169
          %v3171 = vld [vmem:[%s3075 + $0xbc] sm:%s3068]
          %3172 = vst [vmem:[%s3076 + $0xbc] sm:%s3068] %v3171
          %v3173 = vld [vmem:[%s3075 + $0xc0] sm:%s3068]
          %3174 = vst [vmem:[%s3076 + $0xc0] sm:%s3068] %v3173
          %v3175 = vld [vmem:[%s3075 + $0xd0] sm:%s3068]
          %3176 = vst [vmem:[%s3076 + $0xc4] sm:%s3068] %v3175
          %v3177 = vld [vmem:[%s3075 + $0xc4] sm:%s3068]
          %3178 = vst [vmem:[%s3076 + $0xc8] sm:%s3068] %v3177
          %v3179 = vld [vmem:[%s3075 + $0xd4] sm:%s3068]
          %3180 = vst [vmem:[%s3076 + $0xcc] sm:%s3068] %v3179
          %v3181 = vld [vmem:[%s3075 + $0xc8] sm:%s3068]
          %3182 = vst [vmem:[%s3076 + $0xd0] sm:%s3068] %v3181
          %v3183 = vld [vmem:[%s3075 + $0xd8] sm:%s3068]
          %3184 = vst [vmem:[%s3076 + $0xd4] sm:%s3068] %v3183
          %v3185 = vld [vmem:[%s3075 + $0xcc] sm:%s3068]
          %3186 = vst [vmem:[%s3076 + $0xd8] sm:%s3068] %v3185
          %v3187 = vld [vmem:[%s3075 + $0xdc] sm:%s3068]
          %3188 = vst [vmem:[%s3076 + $0xdc] sm:%s3068] %v3187
          %v3189 = vld [vmem:[%s3075 + $0xe0] sm:%s3068]
          %3190 = vst [vmem:[%s3076 + $0xe0] sm:%s3068] %v3189
          %v3191 = vld [vmem:[%s3075 + $0xf0] sm:%s3068]
          %3192 = vst [vmem:[%s3076 + $0xe4] sm:%s3068] %v3191
          %v3193 = vld [vmem:[%s3075 + $0xe4] sm:%s3068]
          %3194 = vst [vmem:[%s3076 + $0xe8] sm:%s3068] %v3193
          %v3195 = vld [vmem:[%s3075 + $0xf4] sm:%s3068]
          %3196 = vst [vmem:[%s3076 + $0xec] sm:%s3068] %v3195
          %v3197 = vld [vmem:[%s3075 + $0xe8] sm:%s3068]
          %3198 = vst [vmem:[%s3076 + $0xf0] sm:%s3068] %v3197
          %v3199 = vld [vmem:[%s3075 + $0xf8] sm:%s3068]
          %3200 = vst [vmem:[%s3076 + $0xf4] sm:%s3068] %v3199
          %v3201 = vld [vmem:[%s3075 + $0xec] sm:%s3068]
          %3202 = vst [vmem:[%s3076 + $0xf8] sm:%s3068] %v3201
          %v3203 = vld [vmem:[%s3075 + $0xfc] sm:%s3068]
          %3204 = vst [vmem:[%s3076 + $0xfc] sm:%s3068] %v3203
          %v3205 = vld [vmem:[%s3075 + $0x100] sm:%s3068]
          %3206 = vst [vmem:[%s3076 + $0x100] sm:%s3068] %v3205
          %v3207 = vld [vmem:[%s3075 + $0x110] sm:%s3068]
          %3208 = vst [vmem:[%s3076 + $0x104] sm:%s3068] %v3207
          %v3209 = vld [vmem:[%s3075 + $0x104] sm:%s3068]
          %3210 = vst [vmem:[%s3076 + $0x108] sm:%s3068] %v3209
          %v3211 = vld [vmem:[%s3075 + $0x114] sm:%s3068]
          %3212 = vst [vmem:[%s3076 + $0x10c] sm:%s3068] %v3211
          %v3213 = vld [vmem:[%s3075 + $0x108] sm:%s3068]
          %3214 = vst [vmem:[%s3076 + $0x110] sm:%s3068] %v3213
          %v3215 = vld [vmem:[%s3075 + $0x118] sm:%s3068]
          %3216 = vst [vmem:[%s3076 + $0x114] sm:%s3068] %v3215
          %v3217 = vld [vmem:[%s3075 + $0x10c] sm:%s3068]
          %3218 = vst [vmem:[%s3076 + $0x118] sm:%s3068] %v3217
          %v3219 = vld [vmem:[%s3075 + $0x11c] sm:%s3068]
          %3220 = vst [vmem:[%s3076 + $0x11c] sm:%s3068] %v3219
          %v3221 = vld [vmem:[%s3075 + $0x120] sm:%s3068]
          %3222 = vst [vmem:[%s3076 + $0x120] sm:%s3068] %v3221
          %v3223 = vld [vmem:[%s3075 + $0x130] sm:%s3068]
          %3224 = vst [vmem:[%s3076 + $0x124] sm:%s3068] %v3223
          %v3225 = vld [vmem:[%s3075 + $0x124] sm:%s3068]
          %3226 = vst [vmem:[%s3076 + $0x128] sm:%s3068] %v3225
          %v3227 = vld [vmem:[%s3075 + $0x134] sm:%s3068]
          %3228 = vst [vmem:[%s3076 + $0x12c] sm:%s3068] %v3227
          %v3229 = vld [vmem:[%s3075 + $0x128] sm:%s3068]
          %3230 = vst [vmem:[%s3076 + $0x130] sm:%s3068] %v3229
          %v3231 = vld [vmem:[%s3075 + $0x138] sm:%s3068]
          %3232 = vst [vmem:[%s3076 + $0x134] sm:%s3068] %v3231
          %v3233 = vld [vmem:[%s3075 + $0x12c] sm:%s3068]
          %3234 = vst [vmem:[%s3076 + $0x138] sm:%s3068] %v3233
          %v3235 = vld [vmem:[%s3075 + $0x13c] sm:%s3068]
          %3236 = vst [vmem:[%s3076 + $0x13c] sm:%s3068] %v3235
          %v3237 = vld [vmem:[%s3075 + $0x140] sm:%s3068]
          %3238 = vst [vmem:[%s3076 + $0x140] sm:%s3068] %v3237
          %v3239 = vld [vmem:[%s3075 + $0x150] sm:%s3068]
          %3240 = vst [vmem:[%s3076 + $0x144] sm:%s3068] %v3239
          %v3241 = vld [vmem:[%s3075 + $0x144] sm:%s3068]
          %3242 = vst [vmem:[%s3076 + $0x148] sm:%s3068] %v3241
          %v3243 = vld [vmem:[%s3075 + $0x154] sm:%s3068]
          %3244 = vst [vmem:[%s3076 + $0x14c] sm:%s3068] %v3243
          %v3245 = vld [vmem:[%s3075 + $0x148] sm:%s3068]
          %3246 = vst [vmem:[%s3076 + $0x150] sm:%s3068] %v3245
          %v3247 = vld [vmem:[%s3075 + $0x158] sm:%s3068]
          %3248 = vst [vmem:[%s3076 + $0x154] sm:%s3068] %v3247
          %v3249 = vld [vmem:[%s3075 + $0x14c] sm:%s3068]
          %3250 = vst [vmem:[%s3076 + $0x158] sm:%s3068] %v3249
          %v3251 = vld [vmem:[%s3075 + $0x15c] sm:%s3068]
          %3252 = vst [vmem:[%s3076 + $0x15c] sm:%s3068] %v3251
          %v3253 = vld [vmem:[%s3075 + $0x160] sm:%s3068]
          %3254 = vst [vmem:[%s3076 + $0x160] sm:%s3068] %v3253
          %v3255 = vld [vmem:[%s3075 + $0x170] sm:%s3068]
          %3256 = vst [vmem:[%s3076 + $0x164] sm:%s3068] %v3255
          %v3257 = vld [vmem:[%s3075 + $0x164] sm:%s3068]
          %3258 = vst [vmem:[%s3076 + $0x168] sm:%s3068] %v3257
          %v3259 = vld [vmem:[%s3075 + $0x174] sm:%s3068]
          %3260 = vst [vmem:[%s3076 + $0x16c] sm:%s3068] %v3259
          %v3261 = vld [vmem:[%s3075 + $0x168] sm:%s3068]
          %3262 = vst [vmem:[%s3076 + $0x170] sm:%s3068] %v3261
          %v3263 = vld [vmem:[%s3075 + $0x178] sm:%s3068]
          %3264 = vst [vmem:[%s3076 + $0x174] sm:%s3068] %v3263
          %v3265 = vld [vmem:[%s3075 + $0x16c] sm:%s3068]
          %3266 = vst [vmem:[%s3076 + $0x178] sm:%s3068] %v3265
          %v3267 = vld [vmem:[%s3075 + $0x17c] sm:%s3068]
          %3268 = vst [vmem:[%s3076 + $0x17c] sm:%s3068] %v3267
          %v3269 = vld [vmem:[%s3075 + $0x180] sm:%s3068]
          %3270 = vst [vmem:[%s3076 + $0x180] sm:%s3068] %v3269
          %v3271 = vld [vmem:[%s3075 + $0x190] sm:%s3068]
          %3272 = vst [vmem:[%s3076 + $0x184] sm:%s3068] %v3271
          %v3273 = vld [vmem:[%s3075 + $0x184] sm:%s3068]
          %3274 = vst [vmem:[%s3076 + $0x188] sm:%s3068] %v3273
          %v3275 = vld [vmem:[%s3075 + $0x194] sm:%s3068]
          %3276 = vst [vmem:[%s3076 + $0x18c] sm:%s3068] %v3275
          %v3277 = vld [vmem:[%s3075 + $0x188] sm:%s3068]
          %3278 = vst [vmem:[%s3076 + $0x190] sm:%s3068] %v3277
          %v3279 = vld [vmem:[%s3075 + $0x198] sm:%s3068]
          %3280 = vst [vmem:[%s3076 + $0x194] sm:%s3068] %v3279
          %v3281 = vld [vmem:[%s3075 + $0x18c] sm:%s3068]
          %3282 = vst [vmem:[%s3076 + $0x198] sm:%s3068] %v3281
          %v3283 = vld [vmem:[%s3075 + $0x19c] sm:%s3068]
          %3284 = vst [vmem:[%s3076 + $0x19c] sm:%s3068] %v3283
          %v3285 = vld [vmem:[%s3075 + $0x1a0] sm:%s3068]
          %3286 = vst [vmem:[%s3076 + $0x1a0] sm:%s3068] %v3285
          %v3287 = vld [vmem:[%s3075 + $0x1b0] sm:%s3068]
          %3288 = vst [vmem:[%s3076 + $0x1a4] sm:%s3068] %v3287
          %v3289 = vld [vmem:[%s3075 + $0x1a4] sm:%s3068]
          %3290 = vst [vmem:[%s3076 + $0x1a8] sm:%s3068] %v3289
          %v3291 = vld [vmem:[%s3075 + $0x1b4] sm:%s3068]
          %3292 = vst [vmem:[%s3076 + $0x1ac] sm:%s3068] %v3291
          %v3293 = vld [vmem:[%s3075 + $0x1a8] sm:%s3068]
          %3294 = vst [vmem:[%s3076 + $0x1b0] sm:%s3068] %v3293
          %v3295 = vld [vmem:[%s3075 + $0x1b8] sm:%s3068]
          %3296 = vst [vmem:[%s3076 + $0x1b4] sm:%s3068] %v3295
          %v3297 = vld [vmem:[%s3075 + $0x1ac] sm:%s3068]
          %3298 = vst [vmem:[%s3076 + $0x1b8] sm:%s3068] %v3297
          %v3299 = vld [vmem:[%s3075 + $0x1bc] sm:%s3068]
          %3300 = vst [vmem:[%s3076 + $0x1bc] sm:%s3068] %v3299
          %v3301 = vld [vmem:[%s3075 + $0x1c0] sm:%s3068]
          %3302 = vst [vmem:[%s3076 + $0x1c0] sm:%s3068] %v3301
          %v3303 = vld [vmem:[%s3075 + $0x1d0] sm:%s3068]
          %3304 = vst [vmem:[%s3076 + $0x1c4] sm:%s3068] %v3303
          %v3305 = vld [vmem:[%s3075 + $0x1c4] sm:%s3068]
          %3306 = vst [vmem:[%s3076 + $0x1c8] sm:%s3068] %v3305
          %v3307 = vld [vmem:[%s3075 + $0x1d4] sm:%s3068]
          %3308 = vst [vmem:[%s3076 + $0x1cc] sm:%s3068] %v3307
          %v3309 = vld [vmem:[%s3075 + $0x1c8] sm:%s3068]
          %3310 = vst [vmem:[%s3076 + $0x1d0] sm:%s3068] %v3309
          %v3311 = vld [vmem:[%s3075 + $0x1d8] sm:%s3068]
          %3312 = vst [vmem:[%s3076 + $0x1d4] sm:%s3068] %v3311
          %v3313 = vld [vmem:[%s3075 + $0x1cc] sm:%s3068]
          %3314 = vst [vmem:[%s3076 + $0x1d8] sm:%s3068] %v3313
          %v3315 = vld [vmem:[%s3075 + $0x1dc] sm:%s3068]
          %3316 = vst [vmem:[%s3076 + $0x1dc] sm:%s3068] %v3315
          %v3317 = vld [vmem:[%s3075 + $0x1e0] sm:%s3068]
          %3318 = vst [vmem:[%s3076 + $0x1e0] sm:%s3068] %v3317
          %v3319 = vld [vmem:[%s3075 + $0x1f0] sm:%s3068]
          %3320 = vst [vmem:[%s3076 + $0x1e4] sm:%s3068] %v3319
          %v3321 = vld [vmem:[%s3075 + $0x1e4] sm:%s3068]
          %3322 = vst [vmem:[%s3076 + $0x1e8] sm:%s3068] %v3321
          %v3323 = vld [vmem:[%s3075 + $0x1f4] sm:%s3068]
          %3324 = vst [vmem:[%s3076 + $0x1ec] sm:%s3068] %v3323
          %v3325 = vld [vmem:[%s3075 + $0x1e8] sm:%s3068]
          %3326 = vst [vmem:[%s3076 + $0x1f0] sm:%s3068] %v3325
          %v3327 = vld [vmem:[%s3075 + $0x1f8] sm:%s3068]
          %3328 = vst [vmem:[%s3076 + $0x1f4] sm:%s3068] %v3327
          %v3329 = vld [vmem:[%s3075 + $0x1ec] sm:%s3068]
          %3330 = vst [vmem:[%s3076 + $0x1f8] sm:%s3068] %v3329
          %v3331 = vld [vmem:[%s3075 + $0x1fc] sm:%s3068]
          %3332 = vst [vmem:[%s3076 + $0x1fc] sm:%s3068] %v3331
          %v3333 = vld [vmem:[%s3075 + $0x200] sm:%s3068]
          %3334 = vst [vmem:[%s3076 + $0x200] sm:%s3068] %v3333
          %v3335 = vld [vmem:[%s3075 + $0x210] sm:%s3068]
          %3336 = vst [vmem:[%s3076 + $0x204] sm:%s3068] %v3335
          %v3337 = vld [vmem:[%s3075 + $0x204] sm:%s3068]
          %3338 = vst [vmem:[%s3076 + $0x208] sm:%s3068] %v3337
          %v3339 = vld [vmem:[%s3075 + $0x214] sm:%s3068]
          %3340 = vst [vmem:[%s3076 + $0x20c] sm:%s3068] %v3339
          %v3341 = vld [vmem:[%s3075 + $0x208] sm:%s3068]
          %3342 = vst [vmem:[%s3076 + $0x210] sm:%s3068] %v3341
          %v3343 = vld [vmem:[%s3075 + $0x218] sm:%s3068]
          %3344 = vst [vmem:[%s3076 + $0x214] sm:%s3068] %v3343
          %v3345 = vld [vmem:[%s3075 + $0x20c] sm:%s3068]
          %3346 = vst [vmem:[%s3076 + $0x218] sm:%s3068] %v3345
          %v3347 = vld [vmem:[%s3075 + $0x21c] sm:%s3068]
          %3348 = vst [vmem:[%s3076 + $0x21c] sm:%s3068] %v3347
          %v3349 = vld [vmem:[%s3075 + $0x220] sm:%s3068]
          %3350 = vst [vmem:[%s3076 + $0x220] sm:%s3068] %v3349
          %v3351 = vld [vmem:[%s3075 + $0x230] sm:%s3068]
          %3352 = vst [vmem:[%s3076 + $0x224] sm:%s3068] %v3351
          %v3353 = vld [vmem:[%s3075 + $0x224] sm:%s3068]
          %3354 = vst [vmem:[%s3076 + $0x228] sm:%s3068] %v3353
          %v3355 = vld [vmem:[%s3075 + $0x234] sm:%s3068]
          %3356 = vst [vmem:[%s3076 + $0x22c] sm:%s3068] %v3355
          %v3357 = vld [vmem:[%s3075 + $0x228] sm:%s3068]
          %3358 = vst [vmem:[%s3076 + $0x230] sm:%s3068] %v3357
          %v3359 = vld [vmem:[%s3075 + $0x238] sm:%s3068]
          %3360 = vst [vmem:[%s3076 + $0x234] sm:%s3068] %v3359
          %v3361 = vld [vmem:[%s3075 + $0x22c] sm:%s3068]
          %3362 = vst [vmem:[%s3076 + $0x238] sm:%s3068] %v3361
          %v3363 = vld [vmem:[%s3075 + $0x23c] sm:%s3068]
          %3364 = vst [vmem:[%s3076 + $0x23c] sm:%s3068] %v3363
          %v3365 = vld [vmem:[%s3075 + $0x240] sm:%s3068]
          %3366 = vst [vmem:[%s3076 + $0x240] sm:%s3068] %v3365
          %v3367 = vld [vmem:[%s3075 + $0x250] sm:%s3068]
          %3368 = vst [vmem:[%s3076 + $0x244] sm:%s3068] %v3367
          %v3369 = vld [vmem:[%s3075 + $0x244] sm:%s3068]
          %3370 = vst [vmem:[%s3076 + $0x248] sm:%s3068] %v3369
          %v3371 = vld [vmem:[%s3075 + $0x254] sm:%s3068]
          %3372 = vst [vmem:[%s3076 + $0x24c] sm:%s3068] %v3371
          %v3373 = vld [vmem:[%s3075 + $0x248] sm:%s3068]
          %3374 = vst [vmem:[%s3076 + $0x250] sm:%s3068] %v3373
          %v3375 = vld [vmem:[%s3075 + $0x258] sm:%s3068]
          %3376 = vst [vmem:[%s3076 + $0x254] sm:%s3068] %v3375
          %v3377 = vld [vmem:[%s3075 + $0x24c] sm:%s3068]
          %3378 = vst [vmem:[%s3076 + $0x258] sm:%s3068] %v3377
          %v3379 = vld [vmem:[%s3075 + $0x25c] sm:%s3068]
          %3380 = vst [vmem:[%s3076 + $0x25c] sm:%s3068] %v3379
          %v3381 = vld [vmem:[%s3075 + $0x260] sm:%s3068]
          %3382 = vst [vmem:[%s3076 + $0x260] sm:%s3068] %v3381
          %v3383 = vld [vmem:[%s3075 + $0x270] sm:%s3068]
          %3384 = vst [vmem:[%s3076 + $0x264] sm:%s3068] %v3383
          %v3385 = vld [vmem:[%s3075 + $0x264] sm:%s3068]
          %3386 = vst [vmem:[%s3076 + $0x268] sm:%s3068] %v3385
          %v3387 = vld [vmem:[%s3075 + $0x274] sm:%s3068]
          %3388 = vst [vmem:[%s3076 + $0x26c] sm:%s3068] %v3387
          %v3389 = vld [vmem:[%s3075 + $0x268] sm:%s3068]
          %3390 = vst [vmem:[%s3076 + $0x270] sm:%s3068] %v3389
          %v3391 = vld [vmem:[%s3075 + $0x278] sm:%s3068]
          %3392 = vst [vmem:[%s3076 + $0x274] sm:%s3068] %v3391
          %v3393 = vld [vmem:[%s3075 + $0x26c] sm:%s3068]
          %3394 = vst [vmem:[%s3076 + $0x278] sm:%s3068] %v3393
          %v3395 = vld [vmem:[%s3075 + $0x27c] sm:%s3068]
          %3396 = vst [vmem:[%s3076 + $0x27c] sm:%s3068] %v3395
          %v3397 = vld [vmem:[%s3075 + $0x280] sm:%s3068]
          %3398 = vst [vmem:[%s3076 + $0x280] sm:%s3068] %v3397
          %v3399 = vld [vmem:[%s3075 + $0x290] sm:%s3068]
          %3400 = vst [vmem:[%s3076 + $0x284] sm:%s3068] %v3399
          %v3401 = vld [vmem:[%s3075 + $0x284] sm:%s3068]
          %3402 = vst [vmem:[%s3076 + $0x288] sm:%s3068] %v3401
          %v3403 = vld [vmem:[%s3075 + $0x294] sm:%s3068]
          %3404 = vst [vmem:[%s3076 + $0x28c] sm:%s3068] %v3403
          %v3405 = vld [vmem:[%s3075 + $0x288] sm:%s3068]
          %3406 = vst [vmem:[%s3076 + $0x290] sm:%s3068] %v3405
          %v3407 = vld [vmem:[%s3075 + $0x298] sm:%s3068]
          %3408 = vst [vmem:[%s3076 + $0x294] sm:%s3068] %v3407
          %v3409 = vld [vmem:[%s3075 + $0x28c] sm:%s3068]
          %3410 = vst [vmem:[%s3076 + $0x298] sm:%s3068] %v3409
          %v3411 = vld [vmem:[%s3075 + $0x29c] sm:%s3068]
          %3412 = vst [vmem:[%s3076 + $0x29c] sm:%s3068] %v3411
          %v3413 = vld [vmem:[%s3075 + $0x2a0] sm:%s3068]
          %3414 = vst [vmem:[%s3076 + $0x2a0] sm:%s3068] %v3413
          %v3415 = vld [vmem:[%s3075 + $0x2b0] sm:%s3068]
          %3416 = vst [vmem:[%s3076 + $0x2a4] sm:%s3068] %v3415
          %v3417 = vld [vmem:[%s3075 + $0x2a4] sm:%s3068]
          %3418 = vst [vmem:[%s3076 + $0x2a8] sm:%s3068] %v3417
          %v3419 = vld [vmem:[%s3075 + $0x2b4] sm:%s3068]
          %3420 = vst [vmem:[%s3076 + $0x2ac] sm:%s3068] %v3419
          %v3421 = vld [vmem:[%s3075 + $0x2a8] sm:%s3068]
          %3422 = vst [vmem:[%s3076 + $0x2b0] sm:%s3068] %v3421
          %v3423 = vld [vmem:[%s3075 + $0x2b8] sm:%s3068]
          %3424 = vst [vmem:[%s3076 + $0x2b4] sm:%s3068] %v3423
          %v3425 = vld [vmem:[%s3075 + $0x2ac] sm:%s3068]
          %3426 = vst [vmem:[%s3076 + $0x2b8] sm:%s3068] %v3425
          %v3427 = vld [vmem:[%s3075 + $0x2bc] sm:%s3068]
          %3428 = vst [vmem:[%s3076 + $0x2bc] sm:%s3068] %v3427
          %v3429 = vld [vmem:[%s3075 + $0x2c0] sm:%s3068]
          %3430 = vst [vmem:[%s3076 + $0x2c0] sm:%s3068] %v3429
          %v3431 = vld [vmem:[%s3075 + $0x2d0] sm:%s3068]
          %3432 = vst [vmem:[%s3076 + $0x2c4] sm:%s3068] %v3431
          %v3433 = vld [vmem:[%s3075 + $0x2c4] sm:%s3068]
          %3434 = vst [vmem:[%s3076 + $0x2c8] sm:%s3068] %v3433
          %v3435 = vld [vmem:[%s3075 + $0x2d4] sm:%s3068]
          %3436 = vst [vmem:[%s3076 + $0x2cc] sm:%s3068] %v3435
          %v3437 = vld [vmem:[%s3075 + $0x2c8] sm:%s3068]
          %3438 = vst [vmem:[%s3076 + $0x2d0] sm:%s3068] %v3437
          %v3439 = vld [vmem:[%s3075 + $0x2d8] sm:%s3068]
          %3440 = vst [vmem:[%s3076 + $0x2d4] sm:%s3068] %v3439
          %v3441 = vld [vmem:[%s3075 + $0x2cc] sm:%s3068]
          %3442 = vst [vmem:[%s3076 + $0x2d8] sm:%s3068] %v3441
          %v3443 = vld [vmem:[%s3075 + $0x2dc] sm:%s3068]
          %3444 = vst [vmem:[%s3076 + $0x2dc] sm:%s3068] %v3443
          %v3445 = vld [vmem:[%s3075 + $0x2e0] sm:%s3068]
          %3446 = vst [vmem:[%s3076 + $0x2e0] sm:%s3068] %v3445
          %v3447 = vld [vmem:[%s3075 + $0x2f0] sm:%s3068]
          %3448 = vst [vmem:[%s3076 + $0x2e4] sm:%s3068] %v3447
          %v3449 = vld [vmem:[%s3075 + $0x2e4] sm:%s3068]
          %3450 = vst [vmem:[%s3076 + $0x2e8] sm:%s3068] %v3449
          %v3451 = vld [vmem:[%s3075 + $0x2f4] sm:%s3068]
          %3452 = vst [vmem:[%s3076 + $0x2ec] sm:%s3068] %v3451
          %v3453 = vld [vmem:[%s3075 + $0x2e8] sm:%s3068]
          %3454 = vst [vmem:[%s3076 + $0x2f0] sm:%s3068] %v3453
          %v3455 = vld [vmem:[%s3075 + $0x2f8] sm:%s3068]
          %3456 = vst [vmem:[%s3076 + $0x2f4] sm:%s3068] %v3455
          %v3457 = vld [vmem:[%s3075 + $0x2ec] sm:%s3068]
          %3458 = vst [vmem:[%s3076 + $0x2f8] sm:%s3068] %v3457
          %v3459 = vld [vmem:[%s3075 + $0x2fc] sm:%s3068]
          %3460 = vst [vmem:[%s3076 + $0x2fc] sm:%s3068] %v3459
          %v3461 = vld [vmem:[%s3075 + $0x300] sm:%s3068]
          %3462 = vst [vmem:[%s3076 + $0x300] sm:%s3068] %v3461
          %v3463 = vld [vmem:[%s3075 + $0x310] sm:%s3068]
          %3464 = vst [vmem:[%s3076 + $0x304] sm:%s3068] %v3463
          %v3465 = vld [vmem:[%s3075 + $0x304] sm:%s3068]
          %3466 = vst [vmem:[%s3076 + $0x308] sm:%s3068] %v3465
          %v3467 = vld [vmem:[%s3075 + $0x314] sm:%s3068]
          %3468 = vst [vmem:[%s3076 + $0x30c] sm:%s3068] %v3467
          %v3469 = vld [vmem:[%s3075 + $0x308] sm:%s3068]
          %3470 = vst [vmem:[%s3076 + $0x310] sm:%s3068] %v3469
          %v3471 = vld [vmem:[%s3075 + $0x318] sm:%s3068]
          %3472 = vst [vmem:[%s3076 + $0x314] sm:%s3068] %v3471
          %v3473 = vld [vmem:[%s3075 + $0x30c] sm:%s3068]
          %3474 = vst [vmem:[%s3076 + $0x318] sm:%s3068] %v3473
          %v3475 = vld [vmem:[%s3075 + $0x31c] sm:%s3068]
          %3476 = vst [vmem:[%s3076 + $0x31c] sm:%s3068] %v3475
          %v3477 = vld [vmem:[%s3075 + $0x320] sm:%s3068]
          %3478 = vst [vmem:[%s3076 + $0x320] sm:%s3068] %v3477
          %v3479 = vld [vmem:[%s3075 + $0x330] sm:%s3068]
          %3480 = vst [vmem:[%s3076 + $0x324] sm:%s3068] %v3479
          %v3481 = vld [vmem:[%s3075 + $0x324] sm:%s3068]
          %3482 = vst [vmem:[%s3076 + $0x328] sm:%s3068] %v3481
          %v3483 = vld [vmem:[%s3075 + $0x334] sm:%s3068]
          %3484 = vst [vmem:[%s3076 + $0x32c] sm:%s3068] %v3483
          %v3485 = vld [vmem:[%s3075 + $0x328] sm:%s3068]
          %3486 = vst [vmem:[%s3076 + $0x330] sm:%s3068] %v3485
          %v3487 = vld [vmem:[%s3075 + $0x338] sm:%s3068]
          %3488 = vst [vmem:[%s3076 + $0x334] sm:%s3068] %v3487
          %v3489 = vld [vmem:[%s3075 + $0x32c] sm:%s3068]
          %3490 = vst [vmem:[%s3076 + $0x338] sm:%s3068] %v3489
          %v3491 = vld [vmem:[%s3075 + $0x33c] sm:%s3068]
          %3492 = vst [vmem:[%s3076 + $0x33c] sm:%s3068] %v3491
          %v3493 = vld [vmem:[%s3075 + $0x340] sm:%s3068]
          %3494 = vst [vmem:[%s3076 + $0x340] sm:%s3068] %v3493
          %v3495 = vld [vmem:[%s3075 + $0x350] sm:%s3068]
          %3496 = vst [vmem:[%s3076 + $0x344] sm:%s3068] %v3495
          %v3497 = vld [vmem:[%s3075 + $0x344] sm:%s3068]
          %3498 = vst [vmem:[%s3076 + $0x348] sm:%s3068] %v3497
          %v3499 = vld [vmem:[%s3075 + $0x354] sm:%s3068]
          %3500 = vst [vmem:[%s3076 + $0x34c] sm:%s3068] %v3499
          %v3501 = vld [vmem:[%s3075 + $0x348] sm:%s3068]
          %3502 = vst [vmem:[%s3076 + $0x350] sm:%s3068] %v3501
          %v3503 = vld [vmem:[%s3075 + $0x358] sm:%s3068]
          %3504 = vst [vmem:[%s3076 + $0x354] sm:%s3068] %v3503
          %v3505 = vld [vmem:[%s3075 + $0x34c] sm:%s3068]
          %3506 = vst [vmem:[%s3076 + $0x358] sm:%s3068] %v3505
          %v3507 = vld [vmem:[%s3075 + $0x35c] sm:%s3068]
          %3508 = vst [vmem:[%s3076 + $0x35c] sm:%s3068] %v3507
          %v3509 = vld [vmem:[%s3075 + $0x360] sm:%s3068]
          %3510 = vst [vmem:[%s3076 + $0x360] sm:%s3068] %v3509
          %v3511 = vld [vmem:[%s3075 + $0x370] sm:%s3068]
          %3512 = vst [vmem:[%s3076 + $0x364] sm:%s3068] %v3511
          %v3513 = vld [vmem:[%s3075 + $0x364] sm:%s3068]
          %3514 = vst [vmem:[%s3076 + $0x368] sm:%s3068] %v3513
          %v3515 = vld [vmem:[%s3075 + $0x374] sm:%s3068]
          %3516 = vst [vmem:[%s3076 + $0x36c] sm:%s3068] %v3515
          %v3517 = vld [vmem:[%s3075 + $0x368] sm:%s3068]
          %3518 = vst [vmem:[%s3076 + $0x370] sm:%s3068] %v3517
          %v3519 = vld [vmem:[%s3075 + $0x378] sm:%s3068]
          %3520 = vst [vmem:[%s3076 + $0x374] sm:%s3068] %v3519
          %v3521 = vld [vmem:[%s3075 + $0x36c] sm:%s3068]
          %3522 = vst [vmem:[%s3076 + $0x378] sm:%s3068] %v3521
          %v3523 = vld [vmem:[%s3075 + $0x37c] sm:%s3068]
          %3524 = vst [vmem:[%s3076 + $0x37c] sm:%s3068] %v3523
          %v3525 = vld [vmem:[%s3075 + $0x380] sm:%s3068]
          %3526 = vst [vmem:[%s3076 + $0x380] sm:%s3068] %v3525
          %v3527 = vld [vmem:[%s3075 + $0x390] sm:%s3068]
          %3528 = vst [vmem:[%s3076 + $0x384] sm:%s3068] %v3527
          %v3529 = vld [vmem:[%s3075 + $0x384] sm:%s3068]
          %3530 = vst [vmem:[%s3076 + $0x388] sm:%s3068] %v3529
          %v3531 = vld [vmem:[%s3075 + $0x394] sm:%s3068]
          %3532 = vst [vmem:[%s3076 + $0x38c] sm:%s3068] %v3531
          %v3533 = vld [vmem:[%s3075 + $0x388] sm:%s3068]
          %3534 = vst [vmem:[%s3076 + $0x390] sm:%s3068] %v3533
          %v3535 = vld [vmem:[%s3075 + $0x398] sm:%s3068]
          %3536 = vst [vmem:[%s3076 + $0x394] sm:%s3068] %v3535
          %v3537 = vld [vmem:[%s3075 + $0x38c] sm:%s3068]
          %3538 = vst [vmem:[%s3076 + $0x398] sm:%s3068] %v3537
          %v3539 = vld [vmem:[%s3075 + $0x39c] sm:%s3068]
          %3540 = vst [vmem:[%s3076 + $0x39c] sm:%s3068] %v3539
          %v3541 = vld [vmem:[%s3075 + $0x3a0] sm:%s3068]
          %3542 = vst [vmem:[%s3076 + $0x3a0] sm:%s3068] %v3541
          %v3543 = vld [vmem:[%s3075 + $0x3b0] sm:%s3068]
          %3544 = vst [vmem:[%s3076 + $0x3a4] sm:%s3068] %v3543
          %v3545 = vld [vmem:[%s3075 + $0x3a4] sm:%s3068]
          %3546 = vst [vmem:[%s3076 + $0x3a8] sm:%s3068] %v3545
          %v3547 = vld [vmem:[%s3075 + $0x3b4] sm:%s3068]
          %3548 = vst [vmem:[%s3076 + $0x3ac] sm:%s3068] %v3547
          %v3549 = vld [vmem:[%s3075 + $0x3a8] sm:%s3068]
          %3550 = vst [vmem:[%s3076 + $0x3b0] sm:%s3068] %v3549
          %v3551 = vld [vmem:[%s3075 + $0x3b8] sm:%s3068]
          %3552 = vst [vmem:[%s3076 + $0x3b4] sm:%s3068] %v3551
          %v3553 = vld [vmem:[%s3075 + $0x3ac] sm:%s3068]
          %3554 = vst [vmem:[%s3076 + $0x3b8] sm:%s3068] %v3553
          %v3555 = vld [vmem:[%s3075 + $0x3bc] sm:%s3068]
          %3556 = vst [vmem:[%s3076 + $0x3bc] sm:%s3068] %v3555
          %v3557 = vld [vmem:[%s3075 + $0x3c0] sm:%s3068]
          %3558 = vst [vmem:[%s3076 + $0x3c0] sm:%s3068] %v3557
          %v3559 = vld [vmem:[%s3075 + $0x3d0] sm:%s3068]
          %3560 = vst [vmem:[%s3076 + $0x3c4] sm:%s3068] %v3559
          %v3561 = vld [vmem:[%s3075 + $0x3c4] sm:%s3068]
          %3562 = vst [vmem:[%s3076 + $0x3c8] sm:%s3068] %v3561
          %v3563 = vld [vmem:[%s3075 + $0x3d4] sm:%s3068]
          %3564 = vst [vmem:[%s3076 + $0x3cc] sm:%s3068] %v3563
          %v3565 = vld [vmem:[%s3075 + $0x3c8] sm:%s3068]
          %3566 = vst [vmem:[%s3076 + $0x3d0] sm:%s3068] %v3565
          %v3567 = vld [vmem:[%s3075 + $0x3d8] sm:%s3068]
          %3568 = vst [vmem:[%s3076 + $0x3d4] sm:%s3068] %v3567
          %v3569 = vld [vmem:[%s3075 + $0x3cc] sm:%s3068]
          %3570 = vst [vmem:[%s3076 + $0x3d8] sm:%s3068] %v3569
          %v3571 = vld [vmem:[%s3075 + $0x3dc] sm:%s3068]
          %3572 = vst [vmem:[%s3076 + $0x3dc] sm:%s3068] %v3571
          %v3573 = vld [vmem:[%s3075 + $0x3e0] sm:%s3068]
          %3574 = vst [vmem:[%s3076 + $0x3e0] sm:%s3068] %v3573
          %v3575 = vld [vmem:[%s3075 + $0x3f0] sm:%s3068]
          %3576 = vst [vmem:[%s3076 + $0x3e4] sm:%s3068] %v3575
          %v3577 = vld [vmem:[%s3075 + $0x3e4] sm:%s3068]
          %3578 = vst [vmem:[%s3076 + $0x3e8] sm:%s3068] %v3577
          %v3579 = vld [vmem:[%s3075 + $0x3f4] sm:%s3068]
          %3580 = vst [vmem:[%s3076 + $0x3ec] sm:%s3068] %v3579
          %v3581 = vld [vmem:[%s3075 + $0x3e8] sm:%s3068]
          %3582 = vst [vmem:[%s3076 + $0x3f0] sm:%s3068] %v3581
          %v3583 = vld [vmem:[%s3075 + $0x3f8] sm:%s3068]
          %3584 = vst [vmem:[%s3076 + $0x3f4] sm:%s3068] %v3583
          %v3585 = vld [vmem:[%s3075 + $0x3ec] sm:%s3068]
          %3586 = vst [vmem:[%s3076 + $0x3f8] sm:%s3068] %v3585
          %v3587 = vld [vmem:[%s3075 + $0x3fc] sm:%s3068]
          %3588 = vst [vmem:[%s3076 + $0x3fc] sm:%s3068] %v3587
          %v3589 = vld [vmem:[%s3075 + $0x400] sm:%s3068]
          %3590 = vst [vmem:[%s3076 + $0x400] sm:%s3068] %v3589
          %v3591 = vld [vmem:[%s3075 + $0x410] sm:%s3068]
          %3592 = vst [vmem:[%s3076 + $0x404] sm:%s3068] %v3591
          %v3593 = vld [vmem:[%s3075 + $0x404] sm:%s3068]
          %3594 = vst [vmem:[%s3076 + $0x408] sm:%s3068] %v3593
          %v3595 = vld [vmem:[%s3075 + $0x414] sm:%s3068]
          %3596 = vst [vmem:[%s3076 + $0x40c] sm:%s3068] %v3595
          %v3597 = vld [vmem:[%s3075 + $0x408] sm:%s3068]
          %3598 = vst [vmem:[%s3076 + $0x410] sm:%s3068] %v3597
          %v3599 = vld [vmem:[%s3075 + $0x418] sm:%s3068]
          %3600 = vst [vmem:[%s3076 + $0x414] sm:%s3068] %v3599
          %v3601 = vld [vmem:[%s3075 + $0x40c] sm:%s3068]
          %3602 = vst [vmem:[%s3076 + $0x418] sm:%s3068] %v3601
          %v3603 = vld [vmem:[%s3075 + $0x41c] sm:%s3068]
          %3604 = vst [vmem:[%s3076 + $0x41c] sm:%s3068] %v3603
          %v3605 = vld [vmem:[%s3075 + $0x420] sm:%s3068]
          %3606 = vst [vmem:[%s3076 + $0x420] sm:%s3068] %v3605
          %v3607 = vld [vmem:[%s3075 + $0x430] sm:%s3068]
          %3608 = vst [vmem:[%s3076 + $0x424] sm:%s3068] %v3607
          %v3609 = vld [vmem:[%s3075 + $0x424] sm:%s3068]
          %3610 = vst [vmem:[%s3076 + $0x428] sm:%s3068] %v3609
          %v3611 = vld [vmem:[%s3075 + $0x434] sm:%s3068]
          %3612 = vst [vmem:[%s3076 + $0x42c] sm:%s3068] %v3611
          %v3613 = vld [vmem:[%s3075 + $0x428] sm:%s3068]
          %3614 = vst [vmem:[%s3076 + $0x430] sm:%s3068] %v3613
          %v3615 = vld [vmem:[%s3075 + $0x438] sm:%s3068]
          %3616 = vst [vmem:[%s3076 + $0x434] sm:%s3068] %v3615
          %v3617 = vld [vmem:[%s3075 + $0x42c] sm:%s3068]
          %3618 = vst [vmem:[%s3076 + $0x438] sm:%s3068] %v3617
          %v3619 = vld [vmem:[%s3075 + $0x43c] sm:%s3068]
          %3620 = vst [vmem:[%s3076 + $0x43c] sm:%s3068] %v3619
          %v3621 = vld [vmem:[%s3075 + $0x440] sm:%s3068]
          %3622 = vst [vmem:[%s3076 + $0x440] sm:%s3068] %v3621
          %v3623 = vld [vmem:[%s3075 + $0x450] sm:%s3068]
          %3624 = vst [vmem:[%s3076 + $0x444] sm:%s3068] %v3623
          %v3625 = vld [vmem:[%s3075 + $0x444] sm:%s3068]
          %3626 = vst [vmem:[%s3076 + $0x448] sm:%s3068] %v3625
          %v3627 = vld [vmem:[%s3075 + $0x454] sm:%s3068]
          %3628 = vst [vmem:[%s3076 + $0x44c] sm:%s3068] %v3627
          %v3629 = vld [vmem:[%s3075 + $0x448] sm:%s3068]
          %3630 = vst [vmem:[%s3076 + $0x450] sm:%s3068] %v3629
          %v3631 = vld [vmem:[%s3075 + $0x458] sm:%s3068]
          %3632 = vst [vmem:[%s3076 + $0x454] sm:%s3068] %v3631
          %v3633 = vld [vmem:[%s3075 + $0x44c] sm:%s3068]
          %3634 = vst [vmem:[%s3076 + $0x458] sm:%s3068] %v3633
          %v3635 = vld [vmem:[%s3075 + $0x45c] sm:%s3068]
          %3636 = vst [vmem:[%s3076 + $0x45c] sm:%s3068] %v3635
          %v3637 = vld [vmem:[%s3075 + $0x460] sm:%s3068]
          %3638 = vst [vmem:[%s3076 + $0x460] sm:%s3068] %v3637
          %v3639 = vld [vmem:[%s3075 + $0x470] sm:%s3068]
          %3640 = vst [vmem:[%s3076 + $0x464] sm:%s3068] %v3639
          %v3641 = vld [vmem:[%s3075 + $0x464] sm:%s3068]
          %3642 = vst [vmem:[%s3076 + $0x468] sm:%s3068] %v3641
          %v3643 = vld [vmem:[%s3075 + $0x474] sm:%s3068]
          %3644 = vst [vmem:[%s3076 + $0x46c] sm:%s3068] %v3643
          %v3645 = vld [vmem:[%s3075 + $0x468] sm:%s3068]
          %3646 = vst [vmem:[%s3076 + $0x470] sm:%s3068] %v3645
          %v3647 = vld [vmem:[%s3075 + $0x478] sm:%s3068]
          %3648 = vst [vmem:[%s3076 + $0x474] sm:%s3068] %v3647
          %v3649 = vld [vmem:[%s3075 + $0x46c] sm:%s3068]
          %3650 = vst [vmem:[%s3076 + $0x478] sm:%s3068] %v3649
          %v3651 = vld [vmem:[%s3075 + $0x47c] sm:%s3068]
          %3652 = vst [vmem:[%s3076 + $0x47c] sm:%s3068] %v3651
          %v3653 = vld [vmem:[%s3075 + $0x480] sm:%s3068]
          %3654 = vst [vmem:[%s3076 + $0x480] sm:%s3068] %v3653
          %v3655 = vld [vmem:[%s3075 + $0x490] sm:%s3068]
          %3656 = vst [vmem:[%s3076 + $0x484] sm:%s3068] %v3655
          %v3657 = vld [vmem:[%s3075 + $0x484] sm:%s3068]
          %3658 = vst [vmem:[%s3076 + $0x488] sm:%s3068] %v3657
          %v3659 = vld [vmem:[%s3075 + $0x494] sm:%s3068]
          %3660 = vst [vmem:[%s3076 + $0x48c] sm:%s3068] %v3659
          %v3661 = vld [vmem:[%s3075 + $0x488] sm:%s3068]
          %3662 = vst [vmem:[%s3076 + $0x490] sm:%s3068] %v3661
          %v3663 = vld [vmem:[%s3075 + $0x498] sm:%s3068]
          %3664 = vst [vmem:[%s3076 + $0x494] sm:%s3068] %v3663
          %v3665 = vld [vmem:[%s3075 + $0x48c] sm:%s3068]
          %3666 = vst [vmem:[%s3076 + $0x498] sm:%s3068] %v3665
          %v3667 = vld [vmem:[%s3075 + $0x49c] sm:%s3068]
          %3668 = vst [vmem:[%s3076 + $0x49c] sm:%s3068] %v3667
          %v3669 = vld [vmem:[%s3075 + $0x4a0] sm:%s3068]
          %3670 = vst [vmem:[%s3076 + $0x4a0] sm:%s3068] %v3669
          %v3671 = vld [vmem:[%s3075 + $0x4b0] sm:%s3068]
          %3672 = vst [vmem:[%s3076 + $0x4a4] sm:%s3068] %v3671
          %v3673 = vld [vmem:[%s3075 + $0x4a4] sm:%s3068]
          %3674 = vst [vmem:[%s3076 + $0x4a8] sm:%s3068] %v3673
          %v3675 = vld [vmem:[%s3075 + $0x4b4] sm:%s3068]
          %3676 = vst [vmem:[%s3076 + $0x4ac] sm:%s3068] %v3675
          %v3677 = vld [vmem:[%s3075 + $0x4a8] sm:%s3068]
          %3678 = vst [vmem:[%s3076 + $0x4b0] sm:%s3068] %v3677
          %v3679 = vld [vmem:[%s3075 + $0x4b8] sm:%s3068]
          %3680 = vst [vmem:[%s3076 + $0x4b4] sm:%s3068] %v3679
          %v3681 = vld [vmem:[%s3075 + $0x4ac] sm:%s3068]
          %3682 = vst [vmem:[%s3076 + $0x4b8] sm:%s3068] %v3681
          %v3683 = vld [vmem:[%s3075 + $0x4bc] sm:%s3068]
          %3684 = vst [vmem:[%s3076 + $0x4bc] sm:%s3068] %v3683
          %v3685 = vld [vmem:[%s3075 + $0x4c0] sm:%s3068]
          %3686 = vst [vmem:[%s3076 + $0x4c0] sm:%s3068] %v3685
          %v3687 = vld [vmem:[%s3075 + $0x4d0] sm:%s3068]
          %3688 = vst [vmem:[%s3076 + $0x4c4] sm:%s3068] %v3687
          %v3689 = vld [vmem:[%s3075 + $0x4c4] sm:%s3068]
          %3690 = vst [vmem:[%s3076 + $0x4c8] sm:%s3068] %v3689
          %v3691 = vld [vmem:[%s3075 + $0x4d4] sm:%s3068]
          %3692 = vst [vmem:[%s3076 + $0x4cc] sm:%s3068] %v3691
          %v3693 = vld [vmem:[%s3075 + $0x4c8] sm:%s3068]
          %3694 = vst [vmem:[%s3076 + $0x4d0] sm:%s3068] %v3693
          %v3695 = vld [vmem:[%s3075 + $0x4d8] sm:%s3068]
          %3696 = vst [vmem:[%s3076 + $0x4d4] sm:%s3068] %v3695
          %v3697 = vld [vmem:[%s3075 + $0x4cc] sm:%s3068]
          %3698 = vst [vmem:[%s3076 + $0x4d8] sm:%s3068] %v3697
          %v3699 = vld [vmem:[%s3075 + $0x4dc] sm:%s3068]
          %3700 = vst [vmem:[%s3076 + $0x4dc] sm:%s3068] %v3699
          %v3701 = vld [vmem:[%s3075 + $0x4e0] sm:%s3068]
          %3702 = vst [vmem:[%s3076 + $0x4e0] sm:%s3068] %v3701
          %v3703 = vld [vmem:[%s3075 + $0x4f0] sm:%s3068]
          %3704 = vst [vmem:[%s3076 + $0x4e4] sm:%s3068] %v3703
          %v3705 = vld [vmem:[%s3075 + $0x4e4] sm:%s3068]
          %3706 = vst [vmem:[%s3076 + $0x4e8] sm:%s3068] %v3705
          %v3707 = vld [vmem:[%s3075 + $0x4f4] sm:%s3068]
          %3708 = vst [vmem:[%s3076 + $0x4ec] sm:%s3068] %v3707
          %v3709 = vld [vmem:[%s3075 + $0x4e8] sm:%s3068]
          %3710 = vst [vmem:[%s3076 + $0x4f0] sm:%s3068] %v3709
          %v3711 = vld [vmem:[%s3075 + $0x4f8] sm:%s3068]
          %3712 = vst [vmem:[%s3076 + $0x4f4] sm:%s3068] %v3711
          %v3713 = vld [vmem:[%s3075 + $0x4ec] sm:%s3068]
          %3714 = vst [vmem:[%s3076 + $0x4f8] sm:%s3068] %v3713
          %v3715 = vld [vmem:[%s3075 + $0x4fc] sm:%s3068]
          %3716 = vst [vmem:[%s3076 + $0x4fc] sm:%s3068] %v3715
          %v3717 = vld [vmem:[%s3075 + $0x500] sm:%s3068]
          %3718 = vst [vmem:[%s3076 + $0x500] sm:%s3068] %v3717
          %v3719 = vld [vmem:[%s3075 + $0x510] sm:%s3068]
          %3720 = vst [vmem:[%s3076 + $0x504] sm:%s3068] %v3719
          %v3721 = vld [vmem:[%s3075 + $0x504] sm:%s3068]
          %3722 = vst [vmem:[%s3076 + $0x508] sm:%s3068] %v3721
          %v3723 = vld [vmem:[%s3075 + $0x514] sm:%s3068]
          %3724 = vst [vmem:[%s3076 + $0x50c] sm:%s3068] %v3723
          %v3725 = vld [vmem:[%s3075 + $0x508] sm:%s3068]
          %3726 = vst [vmem:[%s3076 + $0x510] sm:%s3068] %v3725
          %v3727 = vld [vmem:[%s3075 + $0x518] sm:%s3068]
          %3728 = vst [vmem:[%s3076 + $0x514] sm:%s3068] %v3727
          %v3729 = vld [vmem:[%s3075 + $0x50c] sm:%s3068]
          %3730 = vst [vmem:[%s3076 + $0x518] sm:%s3068] %v3729
          %v3731 = vld [vmem:[%s3075 + $0x51c] sm:%s3068]
          %3732 = vst [vmem:[%s3076 + $0x51c] sm:%s3068] %v3731
          %v3733 = vld [vmem:[%s3075 + $0x520] sm:%s3068]
          %3734 = vst [vmem:[%s3076 + $0x520] sm:%s3068] %v3733
          %v3735 = vld [vmem:[%s3075 + $0x530] sm:%s3068]
          %3736 = vst [vmem:[%s3076 + $0x524] sm:%s3068] %v3735
          %v3737 = vld [vmem:[%s3075 + $0x524] sm:%s3068]
          %3738 = vst [vmem:[%s3076 + $0x528] sm:%s3068] %v3737
          %v3739 = vld [vmem:[%s3075 + $0x534] sm:%s3068]
          %3740 = vst [vmem:[%s3076 + $0x52c] sm:%s3068] %v3739
          %v3741 = vld [vmem:[%s3075 + $0x528] sm:%s3068]
          %3742 = vst [vmem:[%s3076 + $0x530] sm:%s3068] %v3741
          %v3743 = vld [vmem:[%s3075 + $0x538] sm:%s3068]
          %3744 = vst [vmem:[%s3076 + $0x534] sm:%s3068] %v3743
          %v3745 = vld [vmem:[%s3075 + $0x52c] sm:%s3068]
          %3746 = vst [vmem:[%s3076 + $0x538] sm:%s3068] %v3745
          %v3747 = vld [vmem:[%s3075 + $0x53c] sm:%s3068]
          %3748 = vst [vmem:[%s3076 + $0x53c] sm:%s3068] %v3747
          %v3749 = vld [vmem:[%s3075 + $0x540] sm:%s3068]
          %3750 = vst [vmem:[%s3076 + $0x540] sm:%s3068] %v3749
          %v3751 = vld [vmem:[%s3075 + $0x550] sm:%s3068]
          %3752 = vst [vmem:[%s3076 + $0x544] sm:%s3068] %v3751
          %v3753 = vld [vmem:[%s3075 + $0x544] sm:%s3068]
          %3754 = vst [vmem:[%s3076 + $0x548] sm:%s3068] %v3753
          %v3755 = vld [vmem:[%s3075 + $0x554] sm:%s3068]
          %3756 = vst [vmem:[%s3076 + $0x54c] sm:%s3068] %v3755
          %v3757 = vld [vmem:[%s3075 + $0x548] sm:%s3068]
          %3758 = vst [vmem:[%s3076 + $0x550] sm:%s3068] %v3757
          %v3759 = vld [vmem:[%s3075 + $0x558] sm:%s3068]
          %3760 = vst [vmem:[%s3076 + $0x554] sm:%s3068] %v3759
          %v3761 = vld [vmem:[%s3075 + $0x54c] sm:%s3068]
          %3762 = vst [vmem:[%s3076 + $0x558] sm:%s3068] %v3761
          %v3763 = vld [vmem:[%s3075 + $0x55c] sm:%s3068]
          %3764 = vst [vmem:[%s3076 + $0x55c] sm:%s3068] %v3763
          %v3765 = vld [vmem:[%s3075 + $0x560] sm:%s3068]
          %3766 = vst [vmem:[%s3076 + $0x560] sm:%s3068] %v3765
          %v3767 = vld [vmem:[%s3075 + $0x570] sm:%s3068]
          %3768 = vst [vmem:[%s3076 + $0x564] sm:%s3068] %v3767
          %v3769 = vld [vmem:[%s3075 + $0x564] sm:%s3068]
          %3770 = vst [vmem:[%s3076 + $0x568] sm:%s3068] %v3769
          %v3771 = vld [vmem:[%s3075 + $0x574] sm:%s3068]
          %3772 = vst [vmem:[%s3076 + $0x56c] sm:%s3068] %v3771
          %v3773 = vld [vmem:[%s3075 + $0x568] sm:%s3068]
          %3774 = vst [vmem:[%s3076 + $0x570] sm:%s3068] %v3773
          %v3775 = vld [vmem:[%s3075 + $0x578] sm:%s3068]
          %3776 = vst [vmem:[%s3076 + $0x574] sm:%s3068] %v3775
          %v3777 = vld [vmem:[%s3075 + $0x56c] sm:%s3068]
          %3778 = vst [vmem:[%s3076 + $0x578] sm:%s3068] %v3777
          %v3779 = vld [vmem:[%s3075 + $0x57c] sm:%s3068]
          %3780 = vst [vmem:[%s3076 + $0x57c] sm:%s3068] %v3779
          %v3781 = vld [vmem:[%s3075 + $0x580] sm:%s3068]
          %3782 = vst [vmem:[%s3076 + $0x580] sm:%s3068] %v3781
          %v3783 = vld [vmem:[%s3075 + $0x590] sm:%s3068]
          %3784 = vst [vmem:[%s3076 + $0x584] sm:%s3068] %v3783
          %v3785 = vld [vmem:[%s3075 + $0x584] sm:%s3068]
          %3786 = vst [vmem:[%s3076 + $0x588] sm:%s3068] %v3785
          %v3787 = vld [vmem:[%s3075 + $0x594] sm:%s3068]
          %3788 = vst [vmem:[%s3076 + $0x58c] sm:%s3068] %v3787
          %v3789 = vld [vmem:[%s3075 + $0x588] sm:%s3068]
          %3790 = vst [vmem:[%s3076 + $0x590] sm:%s3068] %v3789
          %v3791 = vld [vmem:[%s3075 + $0x598] sm:%s3068]
          %3792 = vst [vmem:[%s3076 + $0x594] sm:%s3068] %v3791
          %v3793 = vld [vmem:[%s3075 + $0x58c] sm:%s3068]
          %3794 = vst [vmem:[%s3076 + $0x598] sm:%s3068] %v3793
          %v3795 = vld [vmem:[%s3075 + $0x59c] sm:%s3068]
          %3796 = vst [vmem:[%s3076 + $0x59c] sm:%s3068] %v3795
          %v3797 = vld [vmem:[%s3075 + $0x5a0] sm:%s3068]
          %3798 = vst [vmem:[%s3076 + $0x5a0] sm:%s3068] %v3797
          %v3799 = vld [vmem:[%s3075 + $0x5b0] sm:%s3068]
          %3800 = vst [vmem:[%s3076 + $0x5a4] sm:%s3068] %v3799
          %v3801 = vld [vmem:[%s3075 + $0x5a4] sm:%s3068]
          %3802 = vst [vmem:[%s3076 + $0x5a8] sm:%s3068] %v3801
          %v3803 = vld [vmem:[%s3075 + $0x5b4] sm:%s3068]
          %3804 = vst [vmem:[%s3076 + $0x5ac] sm:%s3068] %v3803
          %v3805 = vld [vmem:[%s3075 + $0x5a8] sm:%s3068]
          %3806 = vst [vmem:[%s3076 + $0x5b0] sm:%s3068] %v3805
          %v3807 = vld [vmem:[%s3075 + $0x5b8] sm:%s3068]
          %3808 = vst [vmem:[%s3076 + $0x5b4] sm:%s3068] %v3807
          %v3809 = vld [vmem:[%s3075 + $0x5ac] sm:%s3068]
          %3810 = vst [vmem:[%s3076 + $0x5b8] sm:%s3068] %v3809
          %v3811 = vld [vmem:[%s3075 + $0x5bc] sm:%s3068]
          %3812 = vst [vmem:[%s3076 + $0x5bc] sm:%s3068] %v3811
          %v3813 = vld [vmem:[%s3075 + $0x5c0] sm:%s3068]
          %3814 = vst [vmem:[%s3076 + $0x5c0] sm:%s3068] %v3813
          %v3815 = vld [vmem:[%s3075 + $0x5d0] sm:%s3068]
          %3816 = vst [vmem:[%s3076 + $0x5c4] sm:%s3068] %v3815
          %v3817 = vld [vmem:[%s3075 + $0x5c4] sm:%s3068]
          %3818 = vst [vmem:[%s3076 + $0x5c8] sm:%s3068] %v3817
          %v3819 = vld [vmem:[%s3075 + $0x5d4] sm:%s3068]
          %3820 = vst [vmem:[%s3076 + $0x5cc] sm:%s3068] %v3819
          %v3821 = vld [vmem:[%s3075 + $0x5c8] sm:%s3068]
          %3822 = vst [vmem:[%s3076 + $0x5d0] sm:%s3068] %v3821
          %v3823 = vld [vmem:[%s3075 + $0x5d8] sm:%s3068]
          %3824 = vst [vmem:[%s3076 + $0x5d4] sm:%s3068] %v3823
          %v3825 = vld [vmem:[%s3075 + $0x5cc] sm:%s3068]
          %3826 = vst [vmem:[%s3076 + $0x5d8] sm:%s3068] %v3825
          %v3827 = vld [vmem:[%s3075 + $0x5dc] sm:%s3068]
          %3828 = vst [vmem:[%s3076 + $0x5dc] sm:%s3068] %v3827
          %v3829 = vld [vmem:[%s3075 + $0x5e0] sm:%s3068]
          %3830 = vst [vmem:[%s3076 + $0x5e0] sm:%s3068] %v3829
          %v3831 = vld [vmem:[%s3075 + $0x5f0] sm:%s3068]
          %3832 = vst [vmem:[%s3076 + $0x5e4] sm:%s3068] %v3831
          %v3833 = vld [vmem:[%s3075 + $0x5e4] sm:%s3068]
          %3834 = vst [vmem:[%s3076 + $0x5e8] sm:%s3068] %v3833
          %v3835 = vld [vmem:[%s3075 + $0x5f4] sm:%s3068]
          %3836 = vst [vmem:[%s3076 + $0x5ec] sm:%s3068] %v3835
          %v3837 = vld [vmem:[%s3075 + $0x5e8] sm:%s3068]
          %3838 = vst [vmem:[%s3076 + $0x5f0] sm:%s3068] %v3837
          %v3839 = vld [vmem:[%s3075 + $0x5f8] sm:%s3068]
          %3840 = vst [vmem:[%s3076 + $0x5f4] sm:%s3068] %v3839
          %v3841 = vld [vmem:[%s3075 + $0x5ec] sm:%s3068]
          %3842 = vst [vmem:[%s3076 + $0x5f8] sm:%s3068] %v3841
          %v3843 = vld [vmem:[%s3075 + $0x5fc] sm:%s3068]
          %3844 = vst [vmem:[%s3076 + $0x5fc] sm:%s3068] %v3843
        $region102: #{lstm_model_forward.1} parent=96 // loop_footer
          %s3074 = sadd.s32 1, %s3070
        $region103: #{lstm_model_forward.1} parent=96 // loop_footer_branch
          %3069 = sbr.rel target = $region99
        $region104: #{lstm_model_forward.1} parent=96 // loop_exit
          _
      $region97: #{lstm_model_forward.1} parent=88 // pred_fallthru
        _
      // Predicated region
      $region123: #{lstm_model_forward.1} parent=88 // pred_check
        _
      $region124: #{lstm_model_forward.1} parent=88 // pred_check_branch
        %4642 = sbr.rel (0) target = $region126
      $region125: #{lstm_model_forward.1} parent=88 // pred_region
        %4643 = vsyncadd %s3059, 24576
      $region126: #{lstm_model_forward.1} parent=88 // pred_fallthru
        _
    $region89: #{lstm_model_forward.1} parent=82 // pred_fallthru
      _
    %s4644 = smul.u32 %s3040, 192
    %s4645 = smul.addr %s4644, 8
    %s4646 = scalar_lea.vmem [#allocation3], %s4645
    %v4647 = vld [vmem:[%s4646] sm:$0xff]
    %v4648 = vld [vmem:[%s4646 + $0x8] sm:$0xff]
    %v4649 = vld [vmem:[%s4646 + $0x10] sm:$0xff]
    %v4650 = vld [vmem:[%s4646 + $0x18] sm:$0xff]
    %v4651 = vld [vmem:[%s4646 + $0x20] sm:$0xff]
    %v4652 = vld [vmem:[%s4646 + $0x28] sm:$0xff]
    %v4653 = vld [vmem:[%s4646 + $0x30] sm:$0xff]
    %v4654 = vld [vmem:[%s4646 + $0x38] sm:$0xff]
    %v4655 = vld [vmem:[%s4646 + $0x40] sm:$0xff]
    %v4656 = vld [vmem:[%s4646 + $0x48] sm:$0xff]
    %v4657 = vld [vmem:[%s4646 + $0x50] sm:$0xff]
    %v4658 = vld [vmem:[%s4646 + $0x58] sm:$0xff]
    %v4659 = vld [vmem:[%s4646 + $0x60] sm:$0xff]
    %v4660 = vld [vmem:[%s4646 + $0x68] sm:$0xff]
    %v4661 = vld [vmem:[%s4646 + $0x70] sm:$0xff]
    %v4662 = vld [vmem:[%s4646 + $0x78] sm:$0xff]
    %v4663 = vld [vmem:[%s4646 + $0x80] sm:$0xff]
    %v4664 = vld [vmem:[%s4646 + $0x88] sm:$0xff]
    %v4665 = vld [vmem:[%s4646 + $0x90] sm:$0xff]
    %v4666 = vld [vmem:[%s4646 + $0x98] sm:$0xff]
    %v4667 = vld [vmem:[%s4646 + $0xa0] sm:$0xff]
    %v4668 = vld [vmem:[%s4646 + $0xa8] sm:$0xff]
    %v4669 = vld [vmem:[%s4646 + $0xb0] sm:$0xff]
    %v4670 = vld [vmem:[%s4646 + $0xb8] sm:$0xff]
    %v4671 = vld [vmem:[%s4646 + $0xc0] sm:$0xff]
    %v4672 = vld [vmem:[%s4646 + $0xc8] sm:$0xff]
    %v4673 = vld [vmem:[%s4646 + $0xd0] sm:$0xff]
    %v4674 = vld [vmem:[%s4646 + $0xd8] sm:$0xff]
    %v4675 = vld [vmem:[%s4646 + $0xe0] sm:$0xff]
    %v4676 = vld [vmem:[%s4646 + $0xe8] sm:$0xff]
    %v4677 = vld [vmem:[%s4646 + $0xf0] sm:$0xff]
    %v4678 = vld [vmem:[%s4646 + $0xf8] sm:$0xff]
    %v4679 = vld [vmem:[%s5] sm:$0xff]
    %v4680 = vld [vmem:[%s5 + $0x8] sm:$0xff]
    %v4681 = vld [vmem:[%s5 + $0x10] sm:$0xff]
    %v4682 = vld [vmem:[%s5 + $0x18] sm:$0xff]
    %v4683 = vld [vmem:[%s5 + $0x20] sm:$0xff]
    %v4684 = vld [vmem:[%s5 + $0x28] sm:$0xff]
    %v4685 = vld [vmem:[%s5 + $0x30] sm:$0xff]
    %v4686 = vld [vmem:[%s5 + $0x38] sm:$0xff]
    %v4687 = vld [vmem:[%s5 + $0x40] sm:$0xff]
    %v4688 = vld [vmem:[%s5 + $0x48] sm:$0xff]
    %v4689 = vld [vmem:[%s5 + $0x50] sm:$0xff]
    %v4690 = vld [vmem:[%s5 + $0x58] sm:$0xff]
    %v4691 = vld [vmem:[%s5 + $0x60] sm:$0xff]
    %v4692 = vld [vmem:[%s5 + $0x68] sm:$0xff]
    %v4693 = vld [vmem:[%s5 + $0x70] sm:$0xff]
    %v4694 = vld [vmem:[%s5 + $0x78] sm:$0xff]
    %v4695 = vld [vmem:[%s5 + $0x80] sm:$0xff]
    %v4696 = vld [vmem:[%s5 + $0x88] sm:$0xff]
    %v4697 = vld [vmem:[%s5 + $0x90] sm:$0xff]
    %v4698 = vld [vmem:[%s5 + $0x98] sm:$0xff]
    %v4699 = vld [vmem:[%s5 + $0xa0] sm:$0xff]
    %v4700 = vld [vmem:[%s5 + $0xa8] sm:$0xff]
    %v4701 = vld [vmem:[%s5 + $0xb0] sm:$0xff]
    %v4702 = vld [vmem:[%s5 + $0xb8] sm:$0xff]
    %v4703 = vld [vmem:[%s5 + $0xc0] sm:$0xff]
    %v4704 = vld [vmem:[%s5 + $0xc8] sm:$0xff]
    %v4705 = vld [vmem:[%s5 + $0xd0] sm:$0xff]
    %v4706 = vld [vmem:[%s5 + $0xd8] sm:$0xff]
    %v4707 = vld [vmem:[%s5 + $0xe0] sm:$0xff]
    %v4708 = vld [vmem:[%s5 + $0xe8] sm:$0xff]
    %v4709 = vld [vmem:[%s5 + $0xf0] sm:$0xff]
    %v4710 = vld [vmem:[%s5 + $0xf8] sm:$0xff]
    %v4711 = vld [vmem:[%s5 + $0x100] sm:$0xff]
    %v4712 = vld [vmem:[%s5 + $0x108] sm:$0xff]
    %v4713 = vld [vmem:[%s5 + $0x110] sm:$0xff]
    %v4714 = vld [vmem:[%s5 + $0x118] sm:$0xff]
    %v4715 = vld [vmem:[%s5 + $0x120] sm:$0xff]
    %v4716 = vld [vmem:[%s5 + $0x128] sm:$0xff]
    %v4717 = vld [vmem:[%s5 + $0x130] sm:$0xff]
    %v4718 = vld [vmem:[%s5 + $0x138] sm:$0xff]
    %v4719 = vld [vmem:[%s5 + $0x140] sm:$0xff]
    %v4720 = vld [vmem:[%s5 + $0x148] sm:$0xff]
    %v4721 = vld [vmem:[%s5 + $0x150] sm:$0xff]
    %v4722 = vld [vmem:[%s5 + $0x158] sm:$0xff]
    %v4723 = vld [vmem:[%s5 + $0x160] sm:$0xff]
    %v4724 = vld [vmem:[%s5 + $0x168] sm:$0xff]
    %v4725 = vld [vmem:[%s5 + $0x170] sm:$0xff]
    %v4726 = vld [vmem:[%s5 + $0x178] sm:$0xff]
    %v4727 = vld [vmem:[%s5 + $0x180] sm:$0xff]
    %v4728 = vld [vmem:[%s5 + $0x188] sm:$0xff]
    %v4729 = vld [vmem:[%s5 + $0x190] sm:$0xff]
    %v4730 = vld [vmem:[%s5 + $0x198] sm:$0xff]
    %v4731 = vld [vmem:[%s5 + $0x1a0] sm:$0xff]
    %v4732 = vld [vmem:[%s5 + $0x1a8] sm:$0xff]
    %v4733 = vld [vmem:[%s5 + $0x1b0] sm:$0xff]
    %v4734 = vld [vmem:[%s5 + $0x1b8] sm:$0xff]
    %v4735 = vld [vmem:[%s5 + $0x1c0] sm:$0xff]
    %v4736 = vld [vmem:[%s5 + $0x1c8] sm:$0xff]
    %v4737 = vld [vmem:[%s5 + $0x1d0] sm:$0xff]
    %v4738 = vld [vmem:[%s5 + $0x1d8] sm:$0xff]
    %v4739 = vld [vmem:[%s5 + $0x1e0] sm:$0xff]
    %v4740 = vld [vmem:[%s5 + $0x1e8] sm:$0xff]
    %v4741 = vld [vmem:[%s5 + $0x1f0] sm:$0xff]
    %v4742 = vld [vmem:[%s5 + $0x1f8] sm:$0xff]
    %s4743 = smul.u32 %s3027, 48
    %s4744 = sshra.s32 %s4743, 3
    %s4745 = sand.u32 %s4743, 7
    %s4746 = smul.u32 %s4744, 4
    %s4747 = smul.addr %s4746, 8
    %s4748 = scalar_lea.vmem [#allocation2], %s4747
    %v4749 = vld [vmem:[%s4748] sm:$0xff]
    %v4750 = vld [vmem:[%s4748 + $0x8] sm:$0xff]
    %v4751 = vld [vmem:[%s4748 + $0x10] sm:$0xff]
    %v4752 = vld [vmem:[%s4748 + $0x18] sm:$0xff]
    %v4753 = vld [vmem:[%s2] sm:$0xff]
    %v4754 = vld [vmem:[%s2 + $0x8] sm:$0xff]
    %v4755 = vld [vmem:[%s2 + $0x10] sm:$0xff]
    %v4756 = vld [vmem:[%s2 + $0x18] sm:$0xff]
    %v4757 = vld [vmem:[%s2 + $0x20] sm:$0xff]
    %v4758 = vld [vmem:[%s2 + $0x28] sm:$0xff]
    %v4759 = vld [vmem:[%s2 + $0x30] sm:$0xff]
    %v4760 = vld [vmem:[%s2 + $0x38] sm:$0xff]
    %v4761 = vld [vmem:[%s2 + $0x40] sm:$0xff]
    %v4762 = vld [vmem:[%s2 + $0x48] sm:$0xff]
    %v4763 = vld [vmem:[%s2 + $0x50] sm:$0xff]
    %v4764 = vld [vmem:[%s2 + $0x58] sm:$0xff]
    %v4765 = vld [vmem:[%s2 + $0x60] sm:$0xff]
    %v4766 = vld [vmem:[%s2 + $0x68] sm:$0xff]
    %v4767 = vld [vmem:[%s2 + $0x70] sm:$0xff]
    %v4768 = vld [vmem:[%s2 + $0x78] sm:$0xff]
    %v4769 = vld [vmem:[%s2 + $0x80] sm:$0xff]
    %v4770 = vld [vmem:[%s2 + $0x88] sm:$0xff]
    %v4771 = vld [vmem:[%s2 + $0x90] sm:$0xff]
    %v4772 = vld [vmem:[%s2 + $0x98] sm:$0xff]
    %v4773 = vld [vmem:[%s2 + $0xa0] sm:$0xff]
    %v4774 = vld [vmem:[%s2 + $0xa8] sm:$0xff]
    %v4775 = vld [vmem:[%s2 + $0xb0] sm:$0xff]
    %v4776 = vld [vmem:[%s2 + $0xb8] sm:$0xff]
    %v4777 = vld [vmem:[%s2 + $0xc0] sm:$0xff]
    %v4778 = vld [vmem:[%s2 + $0xc8] sm:$0xff]
    %v4779 = vld [vmem:[%s2 + $0xd0] sm:$0xff]
    %v4780 = vld [vmem:[%s2 + $0xd8] sm:$0xff]
    %v4781 = vld [vmem:[%s2 + $0xe0] sm:$0xff]
    %v4782 = vld [vmem:[%s2 + $0xe8] sm:$0xff]
    %v4783 = vld [vmem:[%s2 + $0xf0] sm:$0xff]
    %v4784 = vld [vmem:[%s2 + $0xf8] sm:$0xff]
    %v4785 = vld [vmem:[%s2 + $0x100] sm:$0xff]
    %v4786 = vld [vmem:[%s2 + $0x108] sm:$0xff]
    %v4787 = vld [vmem:[%s2 + $0x110] sm:$0xff]
    %v4788 = vld [vmem:[%s2 + $0x118] sm:$0xff]
    %v4789 = vld [vmem:[%s2 + $0x120] sm:$0xff]
    %v4790 = vld [vmem:[%s2 + $0x128] sm:$0xff]
    %v4791 = vld [vmem:[%s2 + $0x130] sm:$0xff]
    %v4792 = vld [vmem:[%s2 + $0x138] sm:$0xff]
    %v4793 = vld [vmem:[%s2 + $0x140] sm:$0xff]
    %v4794 = vld [vmem:[%s2 + $0x148] sm:$0xff]
    %v4795 = vld [vmem:[%s2 + $0x150] sm:$0xff]
    %v4796 = vld [vmem:[%s2 + $0x158] sm:$0xff]
    %v4797 = vld [vmem:[%s2 + $0x160] sm:$0xff]
    %v4798 = vld [vmem:[%s2 + $0x168] sm:$0xff]
    %v4799 = vld [vmem:[%s2 + $0x170] sm:$0xff]
    %v4800 = vld [vmem:[%s2 + $0x178] sm:$0xff]
    %v4801 = vld [vmem:[%s2 + $0x180] sm:$0xff]
    %v4802 = vld [vmem:[%s2 + $0x188] sm:$0xff]
    %v4803 = vld [vmem:[%s2 + $0x190] sm:$0xff]
    %v4804 = vld [vmem:[%s2 + $0x198] sm:$0xff]
    %v4805 = vld [vmem:[%s2 + $0x1a0] sm:$0xff]
    %v4806 = vld [vmem:[%s2 + $0x1a8] sm:$0xff]
    %v4807 = vld [vmem:[%s2 + $0x1b0] sm:$0xff]
    %v4808 = vld [vmem:[%s2 + $0x1b8] sm:$0xff]
    %v4809 = vld [vmem:[%s2 + $0x1c0] sm:$0xff]
    %v4810 = vld [vmem:[%s2 + $0x1c8] sm:$0xff]
    %v4811 = vld [vmem:[%s2 + $0x1d0] sm:$0xff]
    %v4812 = vld [vmem:[%s2 + $0x1d8] sm:$0xff]
    %v4813 = vld [vmem:[%s2 + $0x1e0] sm:$0xff]
    %v4814 = vld [vmem:[%s2 + $0x1e8] sm:$0xff]
    %v4815 = vld [vmem:[%s2 + $0x1f0] sm:$0xff]
    %v4816 = vld [vmem:[%s2 + $0x1f8] sm:$0xff]
    %4817 = vmatprep.subr.mxu0 %v4754
    %4818 = vmatpush1.msra.mxu0 %v4753
    %4819 = vmatprep.subr.mxu0 %v4758
    %4820 = vmatpush1.msra.mxu0 %v4757
    %4821 = vmatprep.subr.mxu0 %v4762
    %4822 = vmatpush1.msra.mxu0 %v4761
    %4823 = vmatprep.subr.mxu0 %v4766
    %4824 = vmatpush1.msra.mxu0 %v4765
    %4825 = vmatprep.subr.mxu0 %v4770
    %4826 = vmatpush1.msra.mxu0 %v4769
    %4827 = vmatprep.subr.mxu0 %v4774
    %4828 = vmatpush1.msra.mxu0 %v4773
    %4829 = vmatprep.subr.mxu0 %v4778
    %4830 = vmatpush1.msra.mxu0 %v4777
    %4831 = vmatprep.subr.mxu0 %v4782
    %4832 = vmatpush1.msra.mxu0 %v4781
    %4833 = vmatprep.subr.mxu0 %v4786
    %4834 = vmatpush1.msra.mxu0 %v4785
    %4835 = vmatprep.subr.mxu0 %v4790
    %4836 = vmatpush1.msra.mxu0 %v4789
    %4837 = vmatprep.subr.mxu0 %v4794
    %4838 = vmatpush1.msra.mxu0 %v4793
    %4839 = vmatprep.subr.mxu0 %v4798
    %4840 = vmatpush1.msra.mxu0 %v4797
    %4841 = vmatprep.subr.mxu0 %v4802
    %4842 = vmatpush1.msra.mxu0 %v4801
    %4843 = vmatprep.subr.mxu0 %v4806
    %4844 = vmatpush1.msra.mxu0 %v4805
    %4845 = vmatprep.subr.mxu0 %v4810
    %4846 = vmatpush1.msra.mxu0 %v4809
    %4847 = vmatprep.subr.mxu0 %v4814
    %4848 = vmatpush1.msra.mxu0 %v4813
    %4849 = vmatprep.subr.mxu0 0.0
    %4850 = vmatpush1.msra.mxu0 0.0
    %4851 = vmatprep.subr.mxu0 0.0
    %4852 = vmatpush1.msra.mxu0 0.0
    %4853 = vmatprep.subr.mxu0 0.0
    %4854 = vmatpush1.msra.mxu0 0.0
    %4855 = vmatprep.subr.mxu0 0.0
    %4856 = vmatpush1.msra.mxu0 0.0
    %4857 = vmatprep.subr.mxu0 0.0
    %4858 = vmatpush1.msra.mxu0 0.0
    %4859 = vmatprep.subr.mxu0 0.0
    %4860 = vmatpush1.msra.mxu0 0.0
    %4861 = vmatprep.subr.mxu0 0.0
    %4862 = vmatpush1.msra.mxu0 0.0
    %4863 = vmatprep.subr.mxu0 0.0
    %4864 = vmatpush1.msra.mxu0 0.0
    %4865 = vmatprep.subr.mxu0 0.0
    %4866 = vmatpush1.msra.mxu0 0.0
    %4867 = vmatprep.subr.mxu0 0.0
    %4868 = vmatpush1.msra.mxu0 0.0
    %4869 = vmatprep.subr.mxu0 0.0
    %4870 = vmatpush1.msra.mxu0 0.0
    %4871 = vmatprep.subr.mxu0 0.0
    %4872 = vmatpush1.msra.mxu0 0.0
    %4873 = vmatprep.subr.mxu0 0.0
    %4874 = vmatpush1.msra.mxu0 0.0
    %4875 = vmatprep.subr.mxu0 0.0
    %4876 = vmatpush1.msra.mxu0 0.0
    %4877 = vmatprep.subr.mxu0 0.0
    %4878 = vmatpush1.msra.mxu0 0.0
    %4879 = vmatprep.subr.mxu0 0.0
    %4880 = vmatpush1.msra.mxu0 0.0
    %4881 = vmatprep.mubr.f32.mxu0 0.0
    %4882 = vmatmul.mubr.f32.gmra.mrb[0].mxu0 %v3032
    %v4883 = vpop.f32.mrb[0].mxu0
    %v4884 = vadd.f32 0.0, %v4883
    %v4885 = vpop.f32.mrb[0].mxu0
    %v4886 = vadd.f32 0.0, %v4885
    %4887 = vdwg.mxu0
    %4888 = vmatprep.subr.mxu0 %v4756
    %4889 = vmatpush1.msra.mxu0 %v4755
    %4890 = vmatprep.subr.mxu0 %v4760
    %4891 = vmatpush1.msra.mxu0 %v4759
    %4892 = vmatprep.subr.mxu0 %v4764
    %4893 = vmatpush1.msra.mxu0 %v4763
    %4894 = vmatprep.subr.mxu0 %v4768
    %4895 = vmatpush1.msra.mxu0 %v4767
    %4896 = vmatprep.subr.mxu0 %v4772
    %4897 = vmatpush1.msra.mxu0 %v4771
    %4898 = vmatprep.subr.mxu0 %v4776
    %4899 = vmatpush1.msra.mxu0 %v4775
    %4900 = vmatprep.subr.mxu0 %v4780
    %4901 = vmatpush1.msra.mxu0 %v4779
    %4902 = vmatprep.subr.mxu0 %v4784
    %4903 = vmatpush1.msra.mxu0 %v4783
    %4904 = vmatprep.subr.mxu0 %v4788
    %4905 = vmatpush1.msra.mxu0 %v4787
    %4906 = vmatprep.subr.mxu0 %v4792
    %4907 = vmatpush1.msra.mxu0 %v4791
    %4908 = vmatprep.subr.mxu0 %v4796
    %4909 = vmatpush1.msra.mxu0 %v4795
    %4910 = vmatprep.subr.mxu0 %v4800
    %4911 = vmatpush1.msra.mxu0 %v4799
    %4912 = vmatprep.subr.mxu0 %v4804
    %4913 = vmatpush1.msra.mxu0 %v4803
    %4914 = vmatprep.subr.mxu0 %v4808
    %4915 = vmatpush1.msra.mxu0 %v4807
    %4916 = vmatprep.subr.mxu0 %v4812
    %4917 = vmatpush1.msra.mxu0 %v4811
    %4918 = vmatprep.subr.mxu0 %v4816
    %4919 = vmatpush1.msra.mxu0 %v4815
    %4920 = vmatprep.subr.mxu0 0.0
    %4921 = vmatpush1.msra.mxu0 0.0
    %4922 = vmatprep.subr.mxu0 0.0
    %4923 = vmatpush1.msra.mxu0 0.0
    %4924 = vmatprep.subr.mxu0 0.0
    %4925 = vmatpush1.msra.mxu0 0.0
    %4926 = vmatprep.subr.mxu0 0.0
    %4927 = vmatpush1.msra.mxu0 0.0
    %4928 = vmatprep.subr.mxu0 0.0
    %4929 = vmatpush1.msra.mxu0 0.0
    %4930 = vmatprep.subr.mxu0 0.0
    %4931 = vmatpush1.msra.mxu0 0.0
    %4932 = vmatprep.subr.mxu0 0.0
    %4933 = vmatpush1.msra.mxu0 0.0
    %4934 = vmatprep.subr.mxu0 0.0
    %4935 = vmatpush1.msra.mxu0 0.0
    %4936 = vmatprep.subr.mxu0 0.0
    %4937 = vmatpush1.msra.mxu0 0.0
    %4938 = vmatprep.subr.mxu0 0.0
    %4939 = vmatpush1.msra.mxu0 0.0
    %4940 = vmatprep.subr.mxu0 0.0
    %4941 = vmatpush1.msra.mxu0 0.0
    %4942 = vmatprep.subr.mxu0 0.0
    %4943 = vmatpush1.msra.mxu0 0.0
    %4944 = vmatprep.subr.mxu0 0.0
    %4945 = vmatpush1.msra.mxu0 0.0
    %4946 = vmatprep.subr.mxu0 0.0
    %4947 = vmatpush1.msra.mxu0 0.0
    %4948 = vmatprep.subr.mxu0 0.0
    %4949 = vmatpush1.msra.mxu0 0.0
    %4950 = vmatprep.subr.mxu0 0.0
    %4951 = vmatpush1.msra.mxu0 0.0
    %4952 = vmatprep.mubr.f32.mxu0 0.0
    %4953 = vmatmul.mubr.f32.gmra.mrb[0].mxu0 %v3032
    %v4954 = vpop.f32.mrb[0].mxu0
    %v4955 = vadd.f32 0.0, %v4954
    %v4956 = vpop.f32.mrb[0].mxu0
    %v4957 = vadd.f32 0.0, %v4956
    %4958 = vdwg.mxu0
    %v4959 = vadd.f32 %v4749, %v4884
    %v4960 = vadd.f32 %v4750, %v4886
    %v4961 = vadd.f32 %v4751, %v4955
    %v4962 = vadd.f32 %v4752, %v4957
    %v4963 = vxor.u32 %v4959, 2147483648
    %v4964 = vmul.f32 %v4963, 1.442695
    %v4965 = vpow.pop %v4964
    %v4966 = vadd.f32 %v4965, 1.0
    %v4967 = vrcp.pop %v4966
    %v4968 = vmul.f32 1.0, %v4967
    %v4969 = vxor.u32 %v4960, 2147483648
    %v4970 = vmul.f32 %v4969, 1.442695
    %v4971 = vpow.pop %v4970
    %v4972 = vadd.f32 %v4971, 1.0
    %v4973 = vrcp.pop %v4972
    %v4974 = vmul.f32 1.0, %v4973
    %v4975 = vtanh.pop %v4961
    %v4976 = vxor.u32 %v4962, 2147483648
    %v4977 = vmul.f32 %v4976, 1.442695
    %v4978 = vpow.pop %v4977
    %v4979 = vadd.f32 %v4978, 1.0
    %v4980 = vrcp.pop %v4979
    %v4981 = vmul.f32 1.0, %v4980
    %v4982 = vmul.f32 %v4974, %v3033
    %v4983 = vmul.f32 %v4968, %v4975
    %v4984 = vadd.f32 %v4982, %v4983
    %v4985 = vtanh.pop %v4984
    %v4986 = vmul.f32 %v4981, %v4985
    %v4987 = vld [vmem:[%s4] sm:$0xff]
    %v4988 = vld [vmem:[%s4 + $0x8] sm:$0xff]
    %v4989 = vld [vmem:[%s4 + $0x10] sm:$0xff]
    %v4990 = vld [vmem:[%s4 + $0x18] sm:$0xff]
    %v4991 = vld [vmem:[%s4 + $0x20] sm:$0xff]
    %v4992 = vld [vmem:[%s4 + $0x28] sm:$0xff]
    %v4993 = vld [vmem:[%s4 + $0x30] sm:$0xff]
    %v4994 = vld [vmem:[%s4 + $0x38] sm:$0xff]
    %v4995 = vld [vmem:[%s4 + $0x40] sm:$0xff]
    %v4996 = vld [vmem:[%s4 + $0x48] sm:$0xff]
    %v4997 = vld [vmem:[%s4 + $0x50] sm:$0xff]
    %v4998 = vld [vmem:[%s4 + $0x58] sm:$0xff]
    %v4999 = vld [vmem:[%s4 + $0x60] sm:$0xff]
    %v5000 = vld [vmem:[%s4 + $0x68] sm:$0xff]
    %v5001 = vld [vmem:[%s4 + $0x70] sm:$0xff]
    %v5002 = vld [vmem:[%s4 + $0x78] sm:$0xff]
    %v5003 = vld [vmem:[%s4 + $0x80] sm:$0xff]
    %v5004 = vld [vmem:[%s4 + $0x88] sm:$0xff]
    %v5005 = vld [vmem:[%s4 + $0x90] sm:$0xff]
    %v5006 = vld [vmem:[%s4 + $0x98] sm:$0xff]
    %v5007 = vld [vmem:[%s4 + $0xa0] sm:$0xff]
    %v5008 = vld [vmem:[%s4 + $0xa8] sm:$0xff]
    %v5009 = vld [vmem:[%s4 + $0xb0] sm:$0xff]
    %v5010 = vld [vmem:[%s4 + $0xb8] sm:$0xff]
    %v5011 = vld [vmem:[%s4 + $0xc0] sm:$0xff]
    %v5012 = vld [vmem:[%s4 + $0xc8] sm:$0xff]
    %v5013 = vld [vmem:[%s4 + $0xd0] sm:$0xff]
    %v5014 = vld [vmem:[%s4 + $0xd8] sm:$0xff]
    %v5015 = vld [vmem:[%s4 + $0xe0] sm:$0xff]
    %v5016 = vld [vmem:[%s4 + $0xe8] sm:$0xff]
    %v5017 = vld [vmem:[%s4 + $0xf0] sm:$0xff]
    %v5018 = vld [vmem:[%s4 + $0xf8] sm:$0xff]
    %v5019 = vld [vmem:[%s4 + $0x100] sm:$0xff]
    %v5020 = vld [vmem:[%s4 + $0x108] sm:$0xff]
    %v5021 = vld [vmem:[%s4 + $0x110] sm:$0xff]
    %v5022 = vld [vmem:[%s4 + $0x118] sm:$0xff]
    %v5023 = vld [vmem:[%s4 + $0x120] sm:$0xff]
    %v5024 = vld [vmem:[%s4 + $0x128] sm:$0xff]
    %v5025 = vld [vmem:[%s4 + $0x130] sm:$0xff]
    %v5026 = vld [vmem:[%s4 + $0x138] sm:$0xff]
    %v5027 = vld [vmem:[%s4 + $0x140] sm:$0xff]
    %v5028 = vld [vmem:[%s4 + $0x148] sm:$0xff]
    %v5029 = vld [vmem:[%s4 + $0x150] sm:$0xff]
    %v5030 = vld [vmem:[%s4 + $0x158] sm:$0xff]
    %v5031 = vld [vmem:[%s4 + $0x160] sm:$0xff]
    %v5032 = vld [vmem:[%s4 + $0x168] sm:$0xff]
    %v5033 = vld [vmem:[%s4 + $0x170] sm:$0xff]
    %v5034 = vld [vmem:[%s4 + $0x178] sm:$0xff]
    %v5035 = vld [vmem:[%s4 + $0x180] sm:$0xff]
    %v5036 = vld [vmem:[%s4 + $0x188] sm:$0xff]
    %v5037 = vld [vmem:[%s4 + $0x190] sm:$0xff]
    %v5038 = vld [vmem:[%s4 + $0x198] sm:$0xff]
    %v5039 = vld [vmem:[%s4 + $0x1a0] sm:$0xff]
    %v5040 = vld [vmem:[%s4 + $0x1a8] sm:$0xff]
    %v5041 = vld [vmem:[%s4 + $0x1b0] sm:$0xff]
    %v5042 = vld [vmem:[%s4 + $0x1b8] sm:$0xff]
    %v5043 = vld [vmem:[%s4 + $0x1c0] sm:$0xff]
    %v5044 = vld [vmem:[%s4 + $0x1c8] sm:$0xff]
    %v5045 = vld [vmem:[%s4 + $0x1d0] sm:$0xff]
    %v5046 = vld [vmem:[%s4 + $0x1d8] sm:$0xff]
    %v5047 = vld [vmem:[%s4 + $0x1e0] sm:$0xff]
    %v5048 = vld [vmem:[%s4 + $0x1e8] sm:$0xff]
    %v5049 = vld [vmem:[%s4 + $0x1f0] sm:$0xff]
    %v5050 = vld [vmem:[%s4 + $0x1f8] sm:$0xff]
    %5051 = vmatprep.subr.mxu0 %v4988
    %5052 = vmatpush1.msra.mxu0 %v4987
    %5053 = vmatprep.subr.mxu0 %v4992
    %5054 = vmatpush1.msra.mxu0 %v4991
    %5055 = vmatprep.subr.mxu0 %v4996
    %5056 = vmatpush1.msra.mxu0 %v4995
    %5057 = vmatprep.subr.mxu0 %v5000
    %5058 = vmatpush1.msra.mxu0 %v4999
    %5059 = vmatprep.subr.mxu0 %v5004
    %5060 = vmatpush1.msra.mxu0 %v5003
    %5061 = vmatprep.subr.mxu0 %v5008
    %5062 = vmatpush1.msra.mxu0 %v5007
    %5063 = vmatprep.subr.mxu0 %v5012
    %5064 = vmatpush1.msra.mxu0 %v5011
    %5065 = vmatprep.subr.mxu0 %v5016
    %5066 = vmatpush1.msra.mxu0 %v5015
    %5067 = vmatprep.subr.mxu0 %v5020
    %5068 = vmatpush1.msra.mxu0 %v5019
    %5069 = vmatprep.subr.mxu0 %v5024
    %5070 = vmatpush1.msra.mxu0 %v5023
    %5071 = vmatprep.subr.mxu0 %v5028
    %5072 = vmatpush1.msra.mxu0 %v5027
    %5073 = vmatprep.subr.mxu0 %v5032
    %5074 = vmatpush1.msra.mxu0 %v5031
    %5075 = vmatprep.subr.mxu0 %v5036
    %5076 = vmatpush1.msra.mxu0 %v5035
    %5077 = vmatprep.subr.mxu0 %v5040
    %5078 = vmatpush1.msra.mxu0 %v5039
    %5079 = vmatprep.subr.mxu0 %v5044
    %5080 = vmatpush1.msra.mxu0 %v5043
    %5081 = vmatprep.subr.mxu0 %v5048
    %5082 = vmatpush1.msra.mxu0 %v5047
    %5083 = vmatprep.subr.mxu0 0.0
    %5084 = vmatpush1.msra.mxu0 0.0
    %5085 = vmatprep.subr.mxu0 0.0
    %5086 = vmatpush1.msra.mxu0 0.0
    %5087 = vmatprep.subr.mxu0 0.0
    %5088 = vmatpush1.msra.mxu0 0.0
    %5089 = vmatprep.subr.mxu0 0.0
    %5090 = vmatpush1.msra.mxu0 0.0
    %5091 = vmatprep.subr.mxu0 0.0
    %5092 = vmatpush1.msra.mxu0 0.0
    %5093 = vmatprep.subr.mxu0 0.0
    %5094 = vmatpush1.msra.mxu0 0.0
    %5095 = vmatprep.subr.mxu0 0.0
    %5096 = vmatpush1.msra.mxu0 0.0
    %5097 = vmatprep.subr.mxu0 0.0
    %5098 = vmatpush1.msra.mxu0 0.0
    %5099 = vmatprep.subr.mxu0 0.0
    %5100 = vmatpush1.msra.mxu0 0.0
    %5101 = vmatprep.subr.mxu0 0.0
    %5102 = vmatpush1.msra.mxu0 0.0
    %5103 = vmatprep.subr.mxu0 0.0
    %5104 = vmatpush1.msra.mxu0 0.0
    %5105 = vmatprep.subr.mxu0 0.0
    %5106 = vmatpush1.msra.mxu0 0.0
    %5107 = vmatprep.subr.mxu0 0.0
    %5108 = vmatpush1.msra.mxu0 0.0
    %5109 = vmatprep.subr.mxu0 0.0
    %5110 = vmatpush1.msra.mxu0 0.0
    %5111 = vmatprep.subr.mxu0 0.0
    %5112 = vmatpush1.msra.mxu0 0.0
    %5113 = vmatprep.subr.mxu0 0.0
    %5114 = vmatpush1.msra.mxu0 0.0
    %5115 = vmatprep.mubr.f32.mxu0 0.0
    %5116 = vmatmul.mubr.f32.gmra.mrb[0].mxu0 %v4986
    %v5117 = vpop.f32.mrb[0].mxu0
    %v5118 = vadd.f32 0.0, %v5117
    %v5119 = vpop.f32.mrb[0].mxu0
    %v5120 = vadd.f32 0.0, %v5119
    %5121 = vdwg.mxu0
    %5122 = vmatprep.subr.mxu0 %v4990
    %5123 = vmatpush1.msra.mxu0 %v4989
    %5124 = vmatprep.subr.mxu0 %v4994
    %5125 = vmatpush1.msra.mxu0 %v4993
    %5126 = vmatprep.subr.mxu0 %v4998
    %5127 = vmatpush1.msra.mxu0 %v4997
    %5128 = vmatprep.subr.mxu0 %v5002
    %5129 = vmatpush1.msra.mxu0 %v5001
    %5130 = vmatprep.subr.mxu0 %v5006
    %5131 = vmatpush1.msra.mxu0 %v5005
    %5132 = vmatprep.subr.mxu0 %v5010
    %5133 = vmatpush1.msra.mxu0 %v5009
    %5134 = vmatprep.subr.mxu0 %v5014
    %5135 = vmatpush1.msra.mxu0 %v5013
    %5136 = vmatprep.subr.mxu0 %v5018
    %5137 = vmatpush1.msra.mxu0 %v5017
    %5138 = vmatprep.subr.mxu0 %v5022
    %5139 = vmatpush1.msra.mxu0 %v5021
    %5140 = vmatprep.subr.mxu0 %v5026
    %5141 = vmatpush1.msra.mxu0 %v5025
    %5142 = vmatprep.subr.mxu0 %v5030
    %5143 = vmatpush1.msra.mxu0 %v5029
    %5144 = vmatprep.subr.mxu0 %v5034
    %5145 = vmatpush1.msra.mxu0 %v5033
    %5146 = vmatprep.subr.mxu0 %v5038
    %5147 = vmatpush1.msra.mxu0 %v5037
    %5148 = vmatprep.subr.mxu0 %v5042
    %5149 = vmatpush1.msra.mxu0 %v5041
    %5150 = vmatprep.subr.mxu0 %v5046
    %5151 = vmatpush1.msra.mxu0 %v5045
    %5152 = vmatprep.subr.mxu0 %v5050
    %5153 = vmatpush1.msra.mxu0 %v5049
    %5154 = vmatprep.subr.mxu0 0.0
    %5155 = vmatpush1.msra.mxu0 0.0
    %5156 = vmatprep.subr.mxu0 0.0
    %5157 = vmatpush1.msra.mxu0 0.0
    %5158 = vmatprep.subr.mxu0 0.0
    %5159 = vmatpush1.msra.mxu0 0.0
    %5160 = vmatprep.subr.mxu0 0.0
    %5161 = vmatpush1.msra.mxu0 0.0
    %5162 = vmatprep.subr.mxu0 0.0
    %5163 = vmatpush1.msra.mxu0 0.0
    %5164 = vmatprep.subr.mxu0 0.0
    %5165 = vmatpush1.msra.mxu0 0.0
    %5166 = vmatprep.subr.mxu0 0.0
    %5167 = vmatpush1.msra.mxu0 0.0
    %5168 = vmatprep.subr.mxu0 0.0
    %5169 = vmatpush1.msra.mxu0 0.0
    %5170 = vmatprep.subr.mxu0 0.0
    %5171 = vmatpush1.msra.mxu0 0.0
    %5172 = vmatprep.subr.mxu0 0.0
    %5173 = vmatpush1.msra.mxu0 0.0
    %5174 = vmatprep.subr.mxu0 0.0
    %5175 = vmatpush1.msra.mxu0 0.0
    %5176 = vmatprep.subr.mxu0 0.0
    %5177 = vmatpush1.msra.mxu0 0.0
    %5178 = vmatprep.subr.mxu0 0.0
    %5179 = vmatpush1.msra.mxu0 0.0
    %5180 = vmatprep.subr.mxu0 0.0
    %5181 = vmatpush1.msra.mxu0 0.0
    %5182 = vmatprep.subr.mxu0 0.0
    %5183 = vmatpush1.msra.mxu0 0.0
    %5184 = vmatprep.subr.mxu0 0.0
    %5185 = vmatpush1.msra.mxu0 0.0
    %5186 = vmatprep.mubr.f32.mxu0 0.0
    %5187 = vmatmul.mubr.f32.gmra.mrb[0].mxu0 %v4986
    %v5188 = vpop.f32.mrb[0].mxu0
    %v5189 = vadd.f32 0.0, %v5188
    %v5190 = vpop.f32.mrb[0].mxu0
    %v5191 = vadd.f32 0.0, %v5190
    %5192 = vdwg.mxu0
    %5193 = vmatprep.subr.mxu0 %v4680
    %5194 = vmatpush1.msra.mxu0 %v4679
    %5195 = vmatprep.subr.mxu0 %v4684
    %5196 = vmatpush1.msra.mxu0 %v4683
    %5197 = vmatprep.subr.mxu0 %v4688
    %5198 = vmatpush1.msra.mxu0 %v4687
    %5199 = vmatprep.subr.mxu0 %v4692
    %5200 = vmatpush1.msra.mxu0 %v4691
    %5201 = vmatprep.subr.mxu0 %v4696
    %5202 = vmatpush1.msra.mxu0 %v4695
    %5203 = vmatprep.subr.mxu0 %v4700
    %5204 = vmatpush1.msra.mxu0 %v4699
    %5205 = vmatprep.subr.mxu0 %v4704
    %5206 = vmatpush1.msra.mxu0 %v4703
    %5207 = vmatprep.subr.mxu0 %v4708
    %5208 = vmatpush1.msra.mxu0 %v4707
    %5209 = vmatprep.subr.mxu0 %v4712
    %5210 = vmatpush1.msra.mxu0 %v4711
    %5211 = vmatprep.subr.mxu0 %v4716
    %5212 = vmatpush1.msra.mxu0 %v4715
    %5213 = vmatprep.subr.mxu0 %v4720
    %5214 = vmatpush1.msra.mxu0 %v4719
    %5215 = vmatprep.subr.mxu0 %v4724
    %5216 = vmatpush1.msra.mxu0 %v4723
    %5217 = vmatprep.subr.mxu0 %v4728
    %5218 = vmatpush1.msra.mxu0 %v4727
    %5219 = vmatprep.subr.mxu0 %v4732
    %5220 = vmatpush1.msra.mxu0 %v4731
    %5221 = vmatprep.subr.mxu0 %v4736
    %5222 = vmatpush1.msra.mxu0 %v4735
    %5223 = vmatprep.subr.mxu0 %v4740
    %5224 = vmatpush1.msra.mxu0 %v4739
    %5225 = vmatprep.subr.mxu0 0.0
    %5226 = vmatpush1.msra.mxu0 0.0
    %5227 = vmatprep.subr.mxu0 0.0
    %5228 = vmatpush1.msra.mxu0 0.0
    %5229 = vmatprep.subr.mxu0 0.0
    %5230 = vmatpush1.msra.mxu0 0.0
    %5231 = vmatprep.subr.mxu0 0.0
    %5232 = vmatpush1.msra.mxu0 0.0
    %5233 = vmatprep.subr.mxu0 0.0
    %5234 = vmatpush1.msra.mxu0 0.0
    %5235 = vmatprep.subr.mxu0 0.0
    %5236 = vmatpush1.msra.mxu0 0.0
    %5237 = vmatprep.subr.mxu0 0.0
    %5238 = vmatpush1.msra.mxu0 0.0
    %5239 = vmatprep.subr.mxu0 0.0
    %5240 = vmatpush1.msra.mxu0 0.0
    %5241 = vmatprep.subr.mxu0 0.0
    %5242 = vmatpush1.msra.mxu0 0.0
    %5243 = vmatprep.subr.mxu0 0.0
    %5244 = vmatpush1.msra.mxu0 0.0
    %5245 = vmatprep.subr.mxu0 0.0
    %5246 = vmatpush1.msra.mxu0 0.0
    %5247 = vmatprep.subr.mxu0 0.0
    %5248 = vmatpush1.msra.mxu0 0.0
    %5249 = vmatprep.subr.mxu0 0.0
    %5250 = vmatpush1.msra.mxu0 0.0
    %5251 = vmatprep.subr.mxu0 0.0
    %5252 = vmatpush1.msra.mxu0 0.0
    %5253 = vmatprep.subr.mxu0 0.0
    %5254 = vmatpush1.msra.mxu0 0.0
    %5255 = vmatprep.subr.mxu0 0.0
    %5256 = vmatpush1.msra.mxu0 0.0
    %5257 = vmatprep.mubr.f32.mxu0 0.0
    %5258 = vmatmul.mubr.f32.gmra.mrb[0].mxu0 %v3034
    %v5259 = vpop.f32.mrb[0].mxu0
    %v5260 = vadd.f32 %v5118, %v5259
    %v5261 = vpop.f32.mrb[0].mxu0
    %v5262 = vadd.f32 %v5120, %v5261
    %5263 = vdwg.mxu0
    %5264 = vmatprep.subr.mxu0 %v4682
    %5265 = vmatpush1.msra.mxu0 %v4681
    %5266 = vmatprep.subr.mxu0 %v4686
    %5267 = vmatpush1.msra.mxu0 %v4685
    %5268 = vmatprep.subr.mxu0 %v4690
    %5269 = vmatpush1.msra.mxu0 %v4689
    %5270 = vmatprep.subr.mxu0 %v4694
    %5271 = vmatpush1.msra.mxu0 %v4693
    %5272 = vmatprep.subr.mxu0 %v4698
    %5273 = vmatpush1.msra.mxu0 %v4697
    %5274 = vmatprep.subr.mxu0 %v4702
    %5275 = vmatpush1.msra.mxu0 %v4701
    %5276 = vmatprep.subr.mxu0 %v4706
    %5277 = vmatpush1.msra.mxu0 %v4705
    %5278 = vmatprep.subr.mxu0 %v4710
    %5279 = vmatpush1.msra.mxu0 %v4709
    %5280 = vmatprep.subr.mxu0 %v4714
    %5281 = vmatpush1.msra.mxu0 %v4713
    %5282 = vmatprep.subr.mxu0 %v4718
    %5283 = vmatpush1.msra.mxu0 %v4717
    %5284 = vmatprep.subr.mxu0 %v4722
    %5285 = vmatpush1.msra.mxu0 %v4721
    %5286 = vmatprep.subr.mxu0 %v4726
    %5287 = vmatpush1.msra.mxu0 %v4725
    %5288 = vmatprep.subr.mxu0 %v4730
    %5289 = vmatpush1.msra.mxu0 %v4729
    %5290 = vmatprep.subr.mxu0 %v4734
    %5291 = vmatpush1.msra.mxu0 %v4733
    %5292 = vmatprep.subr.mxu0 %v4738
    %5293 = vmatpush1.msra.mxu0 %v4737
    %5294 = vmatprep.subr.mxu0 %v4742
    %5295 = vmatpush1.msra.mxu0 %v4741
    %5296 = vmatprep.subr.mxu0 0.0
    %5297 = vmatpush1.msra.mxu0 0.0
    %5298 = vmatprep.subr.mxu0 0.0
    %5299 = vmatpush1.msra.mxu0 0.0
    %5300 = vmatprep.subr.mxu0 0.0
    %5301 = vmatpush1.msra.mxu0 0.0
    %5302 = vmatprep.subr.mxu0 0.0
    %5303 = vmatpush1.msra.mxu0 0.0
    %5304 = vmatprep.subr.mxu0 0.0
    %5305 = vmatpush1.msra.mxu0 0.0
    %5306 = vmatprep.subr.mxu0 0.0
    %5307 = vmatpush1.msra.mxu0 0.0
    %5308 = vmatprep.subr.mxu0 0.0
    %5309 = vmatpush1.msra.mxu0 0.0
    %5310 = vmatprep.subr.mxu0 0.0
    %5311 = vmatpush1.msra.mxu0 0.0
    %5312 = vmatprep.subr.mxu0 0.0
    %5313 = vmatpush1.msra.mxu0 0.0
    %5314 = vmatprep.subr.mxu0 0.0
    %5315 = vmatpush1.msra.mxu0 0.0
    %5316 = vmatprep.subr.mxu0 0.0
    %5317 = vmatpush1.msra.mxu0 0.0
    %5318 = vmatprep.subr.mxu0 0.0
    %5319 = vmatpush1.msra.mxu0 0.0
    %5320 = vmatprep.subr.mxu0 0.0
    %5321 = vmatpush1.msra.mxu0 0.0
    %5322 = vmatprep.subr.mxu0 0.0
    %5323 = vmatpush1.msra.mxu0 0.0
    %5324 = vmatprep.subr.mxu0 0.0
    %5325 = vmatpush1.msra.mxu0 0.0
    %5326 = vmatprep.subr.mxu0 0.0
    %5327 = vmatpush1.msra.mxu0 0.0
    %5328 = vmatprep.mubr.f32.mxu0 0.0
    %5329 = vmatmul.mubr.f32.gmra.mrb[0].mxu0 %v3034
    %v5330 = vpop.f32.mrb[0].mxu0
    %v5331 = vadd.f32 %v5189, %v5330
    %v5332 = vpop.f32.mrb[0].mxu0
    %v5333 = vadd.f32 %v5191, %v5332
    %5334 = vdwg.mxu0
    %v5335 = vadd.f32 %v5260, %v2987
    %v5336 = vadd.f32 %v5262, %v2991
    %v5337 = vadd.f32 %v5331, %v2995
    %v5338 = vadd.f32 %v5333, %v2999
    %v5339 = vxor.u32 %v5335, 2147483648
    %v5340 = vmul.f32 %v5339, 1.442695
    %v5341 = vpow.pop %v5340
    %v5342 = vadd.f32 %v5341, 1.0
    %v5343 = vrcp.pop %v5342
    %v5344 = vmul.f32 1.0, %v5343
    %v5345 = vxor.u32 %v5336, 2147483648
    %v5346 = vmul.f32 %v5345, 1.442695
    %v5347 = vpow.pop %v5346
    %v5348 = vadd.f32 %v5347, 1.0
    %v5349 = vrcp.pop %v5348
    %v5350 = vmul.f32 1.0, %v5349
    %v5351 = vtanh.pop %v5337
    %v5352 = vxor.u32 %v5338, 2147483648
    %v5353 = vmul.f32 %v5352, 1.442695
    %v5354 = vpow.pop %v5353
    %v5355 = vadd.f32 %v5354, 1.0
    %v5356 = vrcp.pop %v5355
    %v5357 = vmul.f32 1.0, %v5356
    %v5358 = vmul.f32 %v5350, %v3035
    %v5359 = vmul.f32 %v5344, %v5351
    %v5360 = vadd.f32 %v5358, %v5359
    %v5361 = vtanh.pop %v5360
    %v5362 = vmul.f32 %v5357, %v5361
    %v5363 = vpack.c.bf16 %v5362, %v5362
    %5364 = vmatprep.subr.bf16.mxu0 %v4648
    %5365 = vmatpush1.bf16.msra.mxu0 %v4647
    %5366 = vmatprep.subr.bf16.mxu0 %v4652
    %5367 = vmatpush1.bf16.msra.mxu0 %v4651
    %5368 = vmatprep.subr.bf16.mxu0 %v4656
    %5369 = vmatpush1.bf16.msra.mxu0 %v4655
    %5370 = vmatprep.subr.bf16.mxu0 %v4660
    %5371 = vmatpush1.bf16.msra.mxu0 %v4659
    %5372 = vmatprep.subr.bf16.mxu0 %v4664
    %5373 = vmatpush1.bf16.msra.mxu0 %v4663
    %5374 = vmatprep.subr.bf16.mxu0 %v4668
    %5375 = vmatpush1.bf16.msra.mxu0 %v4667
    %5376 = vmatprep.subr.bf16.mxu0 %v4672
    %5377 = vmatpush1.bf16.msra.mxu0 %v4671
    %5378 = vmatprep.subr.bf16.mxu0 %v4676
    %5379 = vmatpush1.bf16.msra.mxu0 %v4675
    %5380 = vmatprep.subr.bf16.mxu0 0
    %5381 = vmatpush1.bf16.msra.mxu0 0
    %5382 = vmatprep.subr.bf16.mxu0 0
    %5383 = vmatpush1.bf16.msra.mxu0 0
    %5384 = vmatprep.subr.bf16.mxu0 0
    %5385 = vmatpush1.bf16.msra.mxu0 0
    %5386 = vmatprep.subr.bf16.mxu0 0
    %5387 = vmatpush1.bf16.msra.mxu0 0
    %5388 = vmatprep.subr.bf16.mxu0 0
    %5389 = vmatpush1.bf16.msra.mxu0 0
    %5390 = vmatprep.subr.bf16.mxu0 0
    %5391 = vmatpush1.bf16.msra.mxu0 0
    %5392 = vmatprep.subr.bf16.mxu0 0
    %5393 = vmatpush1.bf16.msra.mxu0 0
    %5394 = vmatprep.subr.bf16.mxu0 0
    %5395 = vmatpush1.bf16.msra.mxu0 0
    %5396 = vmatprep.mubr.bf16.mxu0 0
    %5397 = vmatmul.mubr.bf16.gmra.mrb[0].mxu0 %v5363
    %v5398 = vpop.f32.mrb[0].mxu0
    %v5399 = vadd.f32 0.0, %v5398
    %v5400 = vpop.f32.mrb[0].mxu0
    %v5401 = vadd.f32 0.0, %v5400
    %v5402 = vpop.f32.mrb[0].mxu0
    %v5403 = vpop.f32.mrb[0].mxu0
    %5404 = vdwg.mxu0
    %5405 = vmatprep.subr.bf16.mxu0 %v4650
    %5406 = vmatpush1.bf16.msra.mxu0 %v4649
    %5407 = vmatprep.subr.bf16.mxu0 %v4654
    %5408 = vmatpush1.bf16.msra.mxu0 %v4653
    %5409 = vmatprep.subr.bf16.mxu0 %v4658
    %5410 = vmatpush1.bf16.msra.mxu0 %v4657
    %5411 = vmatprep.subr.bf16.mxu0 %v4662
    %5412 = vmatpush1.bf16.msra.mxu0 %v4661
    %5413 = vmatprep.subr.bf16.mxu0 %v4666
    %5414 = vmatpush1.bf16.msra.mxu0 %v4665
    %5415 = vmatprep.subr.bf16.mxu0 %v4670
    %5416 = vmatpush1.bf16.msra.mxu0 %v4669
    %5417 = vmatprep.subr.bf16.mxu0 %v4674
    %5418 = vmatpush1.bf16.msra.mxu0 %v4673
    %5419 = vmatprep.subr.bf16.mxu0 %v4678
    %5420 = vmatpush1.bf16.msra.mxu0 %v4677
    %5421 = vmatprep.subr.bf16.mxu0 0
    %5422 = vmatpush1.bf16.msra.mxu0 0
    %5423 = vmatprep.subr.bf16.mxu0 0
    %5424 = vmatpush1.bf16.msra.mxu0 0
    %5425 = vmatprep.subr.bf16.mxu0 0
    %5426 = vmatpush1.bf16.msra.mxu0 0
    %5427 = vmatprep.subr.bf16.mxu0 0
    %5428 = vmatpush1.bf16.msra.mxu0 0
    %5429 = vmatprep.subr.bf16.mxu0 0
    %5430 = vmatpush1.bf16.msra.mxu0 0
    %5431 = vmatprep.subr.bf16.mxu0 0
    %5432 = vmatpush1.bf16.msra.mxu0 0
    %5433 = vmatprep.subr.bf16.mxu0 0
    %5434 = vmatpush1.bf16.msra.mxu0 0
    %5435 = vmatprep.subr.bf16.mxu0 0
    %5436 = vmatpush1.bf16.msra.mxu0 0
    %5437 = vmatprep.mubr.bf16.mxu0 0
    %5438 = vmatmul.mubr.bf16.gmra.mrb[0].mxu0 %v5363
    %v5439 = vpop.f32.mrb[0].mxu0
    %v5440 = vadd.f32 0.0, %v5439
    %v5441 = vpop.f32.mrb[0].mxu0
    %v5442 = vadd.f32 0.0, %v5441
    %v5443 = vpop.f32.mrb[0].mxu0
    %v5444 = vpop.f32.mrb[0].mxu0
    %5445 = vdwg.mxu0
    %v5446 = vadd.f32 %v3036, %v5399
    %v5447 = vadd.f32 %v3037, %v5401
    %v5448 = vadd.f32 %v3038, %v5440
    %v5449 = vadd.f32 %v3039, %v5442
    %s5450 = smul.u32 %s3027, 6
    %s5451 = sadd.s32 %s5450, 1
    %s5452 = sadd.s32 32, %s4644
    %s5453 = smul.addr %s5452, 8
    %s5454 = scalar_lea.vmem [#allocation3], %s5453
    %v5455 = vld [vmem:[%s5454] sm:$0xff]
    %v5456 = vld [vmem:[%s5454 + $0x8] sm:$0xff]
    %v5457 = vld [vmem:[%s5454 + $0x10] sm:$0xff]
    %v5458 = vld [vmem:[%s5454 + $0x18] sm:$0xff]
    %v5459 = vld [vmem:[%s5454 + $0x20] sm:$0xff]
    %v5460 = vld [vmem:[%s5454 + $0x28] sm:$0xff]
    %v5461 = vld [vmem:[%s5454 + $0x30] sm:$0xff]
    %v5462 = vld [vmem:[%s5454 + $0x38] sm:$0xff]
    %v5463 = vld [vmem:[%s5454 + $0x40] sm:$0xff]
    %v5464 = vld [vmem:[%s5454 + $0x48] sm:$0xff]
    %v5465 = vld [vmem:[%s5454 + $0x50] sm:$0xff]
    %v5466 = vld [vmem:[%s5454 + $0x58] sm:$0xff]
    %v5467 = vld [vmem:[%s5454 + $0x60] sm:$0xff]
    %v5468 = vld [vmem:[%s5454 + $0x68] sm:$0xff]
    %v5469 = vld [vmem:[%s5454 + $0x70] sm:$0xff]
    %v5470 = vld [vmem:[%s5454 + $0x78] sm:$0xff]
    %v5471 = vld [vmem:[%s5454 + $0x80] sm:$0xff]
    %v5472 = vld [vmem:[%s5454 + $0x88] sm:$0xff]
    %v5473 = vld [vmem:[%s5454 + $0x90] sm:$0xff]
    %v5474 = vld [vmem:[%s5454 + $0x98] sm:$0xff]
    %v5475 = vld [vmem:[%s5454 + $0xa0] sm:$0xff]
    %v5476 = vld [vmem:[%s5454 + $0xa8] sm:$0xff]
    %v5477 = vld [vmem:[%s5454 + $0xb0] sm:$0xff]
    %v5478 = vld [vmem:[%s5454 + $0xb8] sm:$0xff]
    %v5479 = vld [vmem:[%s5454 + $0xc0] sm:$0xff]
    %v5480 = vld [vmem:[%s5454 + $0xc8] sm:$0xff]
    %v5481 = vld [vmem:[%s5454 + $0xd0] sm:$0xff]
    %v5482 = vld [vmem:[%s5454 + $0xd8] sm:$0xff]
    %v5483 = vld [vmem:[%s5454 + $0xe0] sm:$0xff]
    %v5484 = vld [vmem:[%s5454 + $0xe8] sm:$0xff]
    %v5485 = vld [vmem:[%s5454 + $0xf0] sm:$0xff]
    %v5486 = vld [vmem:[%s5454 + $0xf8] sm:$0xff]
    %s5487 = smul.u32 %s5451, 8
    %s5488 = sshra.s32 %s5487, 3
    %s5489 = sand.u32 %s5487, 7
    %s5490 = smul.u32 %s5488, 4
    %s5491 = smul.addr %s5490, 8
    %s5492 = scalar_lea.vmem [#allocation2], %s5491
    %v5493 = vld [vmem:[%s5492] sm:$0xff]
    %v5494 = vld [vmem:[%s5492 + $0x8] sm:$0xff]
    %v5495 = vld [vmem:[%s5492 + $0x10] sm:$0xff]
    %v5496 = vld [vmem:[%s5492 + $0x18] sm:$0xff]
    %5497 = vmatprep.subr.mxu0 %v4754
    %5498 = vmatpush1.msra.mxu0 %v4753
    %5499 = vmatprep.subr.mxu0 %v4758
    %5500 = vmatpush1.msra.mxu0 %v4757
    %5501 = vmatprep.subr.mxu0 %v4762
    %5502 = vmatpush1.msra.mxu0 %v4761
    %5503 = vmatprep.subr.mxu0 %v4766
    %5504 = vmatpush1.msra.mxu0 %v4765
    %5505 = vmatprep.subr.mxu0 %v4770
    %5506 = vmatpush1.msra.mxu0 %v4769
    %5507 = vmatprep.subr.mxu0 %v4774
    %5508 = vmatpush1.msra.mxu0 %v4773
    %5509 = vmatprep.subr.mxu0 %v4778
    %5510 = vmatpush1.msra.mxu0 %v4777
    %5511 = vmatprep.subr.mxu0 %v4782
    %5512 = vmatpush1.msra.mxu0 %v4781
    %5513 = vmatprep.subr.mxu0 %v4786
    %5514 = vmatpush1.msra.mxu0 %v4785
    %5515 = vmatprep.subr.mxu0 %v4790
    %5516 = vmatpush1.msra.mxu0 %v4789
    %5517 = vmatprep.subr.mxu0 %v4794
    %5518 = vmatpush1.msra.mxu0 %v4793
    %5519 = vmatprep.subr.mxu0 %v4798
    %5520 = vmatpush1.msra.mxu0 %v4797
    %5521 = vmatprep.subr.mxu0 %v4802
    %5522 = vmatpush1.msra.mxu0 %v4801
    %5523 = vmatprep.subr.mxu0 %v4806
    %5524 = vmatpush1.msra.mxu0 %v4805
    %5525 = vmatprep.subr.mxu0 %v4810
    %5526 = vmatpush1.msra.mxu0 %v4809
    %5527 = vmatprep.subr.mxu0 %v4814
    %5528 = vmatpush1.msra.mxu0 %v4813
    %5529 = vmatprep.subr.mxu0 0.0
    %5530 = vmatpush1.msra.mxu0 0.0
    %5531 = vmatprep.subr.mxu0 0.0
    %5532 = vmatpush1.msra.mxu0 0.0
    %5533 = vmatprep.subr.mxu0 0.0
    %5534 = vmatpush1.msra.mxu0 0.0
    %5535 = vmatprep.subr.mxu0 0.0
    %5536 = vmatpush1.msra.mxu0 0.0
    %5537 = vmatprep.subr.mxu0 0.0
    %5538 = vmatpush1.msra.mxu0 0.0
    %5539 = vmatprep.subr.mxu0 0.0
    %5540 = vmatpush1.msra.mxu0 0.0
    %5541 = vmatprep.subr.mxu0 0.0
    %5542 = vmatpush1.msra.mxu0 0.0
    %5543 = vmatprep.subr.mxu0 0.0
    %5544 = vmatpush1.msra.mxu0 0.0
    %5545 = vmatprep.subr.mxu0 0.0
    %5546 = vmatpush1.msra.mxu0 0.0
    %5547 = vmatprep.subr.mxu0 0.0
    %5548 = vmatpush1.msra.mxu0 0.0
    %5549 = vmatprep.subr.mxu0 0.0
    %5550 = vmatpush1.msra.mxu0 0.0
    %5551 = vmatprep.subr.mxu0 0.0
    %5552 = vmatpush1.msra.mxu0 0.0
    %5553 = vmatprep.subr.mxu0 0.0
    %5554 = vmatpush1.msra.mxu0 0.0
    %5555 = vmatprep.subr.mxu0 0.0
    %5556 = vmatpush1.msra.mxu0 0.0
    %5557 = vmatprep.subr.mxu0 0.0
    %5558 = vmatpush1.msra.mxu0 0.0
    %5559 = vmatprep.subr.mxu0 0.0
    %5560 = vmatpush1.msra.mxu0 0.0
    %5561 = vmatprep.mubr.f32.mxu0 0.0
    %5562 = vmatmul.mubr.f32.gmra.mrb[0].mxu0 %v4986
    %v5563 = vpop.f32.mrb[0].mxu0
    %v5564 = vadd.f32 0.0, %v5563
    %v5565 = vpop.f32.mrb[0].mxu0
    %v5566 = vadd.f32 0.0, %v5565
    %5567 = vdwg.mxu0
    %5568 = vmatprep.subr.mxu0 %v4756
    %5569 = vmatpush1.msra.mxu0 %v4755
    %5570 = vmatprep.subr.mxu0 %v4760
    %5571 = vmatpush1.msra.mxu0 %v4759
    %5572 = vmatprep.subr.mxu0 %v4764
    %5573 = vmatpush1.msra.mxu0 %v4763
    %5574 = vmatprep.subr.mxu0 %v4768
    %5575 = vmatpush1.msra.mxu0 %v4767
    %5576 = vmatprep.subr.mxu0 %v4772
    %5577 = vmatpush1.msra.mxu0 %v4771
    %5578 = vmatprep.subr.mxu0 %v4776
    %5579 = vmatpush1.msra.mxu0 %v4775
    %5580 = vmatprep.subr.mxu0 %v4780
    %5581 = vmatpush1.msra.mxu0 %v4779
    %5582 = vmatprep.subr.mxu0 %v4784
    %5583 = vmatpush1.msra.mxu0 %v4783
    %5584 = vmatprep.subr.mxu0 %v4788
    %5585 = vmatpush1.msra.mxu0 %v4787
    %5586 = vmatprep.subr.mxu0 %v4792
    %5587 = vmatpush1.msra.mxu0 %v4791
    %5588 = vmatprep.subr.mxu0 %v4796
    %5589 = vmatpush1.msra.mxu0 %v4795
    %5590 = vmatprep.subr.mxu0 %v4800
    %5591 = vmatpush1.msra.mxu0 %v4799
    %5592 = vmatprep.subr.mxu0 %v4804
    %5593 = vmatpush1.msra.mxu0 %v4803
    %5594 = vmatprep.subr.mxu0 %v4808
    %5595 = vmatpush1.msra.mxu0 %v4807
    %5596 = vmatprep.subr.mxu0 %v4812
    %5597 = vmatpush1.msra.mxu0 %v4811
    %5598 = vmatprep.subr.mxu0 %v4816
    %5599 = vmatpush1.msra.mxu0 %v4815
    %5600 = vmatprep.subr.mxu0 0.0
    %5601 = vmatpush1.msra.mxu0 0.0
    %5602 = vmatprep.subr.mxu0 0.0
    %5603 = vmatpush1.msra.mxu0 0.0
    %5604 = vmatprep.subr.mxu0 0.0
    %5605 = vmatpush1.msra.mxu0 0.0
    %5606 = vmatprep.subr.mxu0 0.0
    %5607 = vmatpush1.msra.mxu0 0.0
    %5608 = vmatprep.subr.mxu0 0.0
    %5609 = vmatpush1.msra.mxu0 0.0
    %5610 = vmatprep.subr.mxu0 0.0
    %5611 = vmatpush1.msra.mxu0 0.0
    %5612 = vmatprep.subr.mxu0 0.0
    %5613 = vmatpush1.msra.mxu0 0.0
    %5614 = vmatprep.subr.mxu0 0.0
    %5615 = vmatpush1.msra.mxu0 0.0
    %5616 = vmatprep.subr.mxu0 0.0
    %5617 = vmatpush1.msra.mxu0 0.0
    %5618 = vmatprep.subr.mxu0 0.0
    %5619 = vmatpush1.msra.mxu0 0.0
    %5620 = vmatprep.subr.mxu0 0.0
    %5621 = vmatpush1.msra.mxu0 0.0
    %5622 = vmatprep.subr.mxu0 0.0
    %5623 = vmatpush1.msra.mxu0 0.0
    %5624 = vmatprep.subr.mxu0 0.0
    %5625 = vmatpush1.msra.mxu0 0.0
    %5626 = vmatprep.subr.mxu0 0.0
    %5627 = vmatpush1.msra.mxu0 0.0
    %5628 = vmatprep.subr.mxu0 0.0
    %5629 = vmatpush1.msra.mxu0 0.0
    %5630 = vmatprep.subr.mxu0 0.0
    %5631 = vmatpush1.msra.mxu0 0.0
    %5632 = vmatprep.mubr.f32.mxu0 0.0
    %5633 = vmatmul.mubr.f32.gmra.mrb[0].mxu0 %v4986
    %v5634 = vpop.f32.mrb[0].mxu0
    %v5635 = vadd.f32 0.0, %v5634
    %v5636 = vpop.f32.mrb[0].mxu0
    %v5637 = vadd.f32 0.0, %v5636
    %5638 = vdwg.mxu0
    %v5639 = vadd.f32 %v5493, %v5564
    %v5640 = vadd.f32 %v5494, %v5566
    %v5641 = vadd.f32 %v5495, %v5635
    %v5642 = vadd.f32 %v5496, %v5637
    %v5643 = vxor.u32 %v5639, 2147483648
    %v5644 = vmul.f32 %v5643, 1.442695
    %v5645 = vpow.pop %v5644
    %v5646 = vadd.f32 %v5645, 1.0
    %v5647 = vrcp.pop %v5646
    %v5648 = vmul.f32 1.0, %v5647
    %v5649 = vxor.u32 %v5640, 2147483648
    %v5650 = vmul.f32 %v5649, 1.442695
    %v5651 = vpow.pop %v5650
    %v5652 = vadd.f32 %v5651, 1.0
    %v5653 = vrcp.pop %v5652
    %v5654 = vmul.f32 1.0, %v5653
    %v5655 = vtanh.pop %v5641
    %v5656 = vxor.u32 %v5642, 2147483648
    %v5657 = vmul.f32 %v5656, 1.442695
    %v5658 = vpow.pop %v5657
    %v5659 = vadd.f32 %v5658, 1.0
    %v5660 = vrcp.pop %v5659
    %v5661 = vmul.f32 1.0, %v5660
    %v5662 = vmul.f32 %v5654, %v4984
    %v5663 = vmul.f32 %v5648, %v5655
    %v5664 = vadd.f32 %v5662, %v5663
    %v5665 = vtanh.pop %v5664
    %v5666 = vmul.f32 %v5661, %v5665
    %5667 = vmatprep.subr.mxu0 %v4988
    %5668 = vmatpush1.msra.mxu0 %v4987
    %5669 = vmatprep.subr.mxu0 %v4992
    %5670 = vmatpush1.msra.mxu0 %v4991
    %5671 = vmatprep.subr.mxu0 %v4996
    %5672 = vmatpush1.msra.mxu0 %v4995
    %5673 = vmatprep.subr.mxu0 %v5000
    %5674 = vmatpush1.msra.mxu0 %v4999
    %5675 = vmatprep.subr.mxu0 %v5004
    %5676 = vmatpush1.msra.mxu0 %v5003
    %5677 = vmatprep.subr.mxu0 %v5008
    %5678 = vmatpush1.msra.mxu0 %v5007
    %5679 = vmatprep.subr.mxu0 %v5012
    %5680 = vmatpush1.msra.mxu0 %v5011
    %5681 = vmatprep.subr.mxu0 %v5016
    %5682 = vmatpush1.msra.mxu0 %v5015
    %5683 = vmatprep.subr.mxu0 %v5020
    %5684 = vmatpush1.msra.mxu0 %v5019
    %5685 = vmatprep.subr.mxu0 %v5024
    %5686 = vmatpush1.msra.mxu0 %v5023
    %5687 = vmatprep.subr.mxu0 %v5028
    %5688 = vmatpush1.msra.mxu0 %v5027
    %5689 = vmatprep.subr.mxu0 %v5032
    %5690 = vmatpush1.msra.mxu0 %v5031
    %5691 = vmatprep.subr.mxu0 %v5036
    %5692 = vmatpush1.msra.mxu0 %v5035
    %5693 = vmatprep.subr.mxu0 %v5040
    %5694 = vmatpush1.msra.mxu0 %v5039
    %5695 = vmatprep.subr.mxu0 %v5044
    %5696 = vmatpush1.msra.mxu0 %v5043
    %5697 = vmatprep.subr.mxu0 %v5048
    %5698 = vmatpush1.msra.mxu0 %v5047
    %5699 = vmatprep.subr.mxu0 0.0
    %5700 = vmatpush1.msra.mxu0 0.0
    %5701 = vmatprep.subr.mxu0 0.0
    %5702 = vmatpush1.msra.mxu0 0.0
    %5703 = vmatprep.subr.mxu0 0.0
    %5704 = vmatpush1.msra.mxu0 0.0
    %5705 = vmatprep.subr.mxu0 0.0
    %5706 = vmatpush1.msra.mxu0 0.0
    %5707 = vmatprep.subr.mxu0 0.0
    %5708 = vmatpush1.msra.mxu0 0.0
    %5709 = vmatprep.subr.mxu0 0.0
    %5710 = vmatpush1.msra.mxu0 0.0
    %5711 = vmatprep.subr.mxu0 0.0
    %5712 = vmatpush1.msra.mxu0 0.0
    %5713 = vmatprep.subr.mxu0 0.0
    %5714 = vmatpush1.msra.mxu0 0.0
    %5715 = vmatprep.subr.mxu0 0.0
    %5716 = vmatpush1.msra.mxu0 0.0
    %5717 = vmatprep.subr.mxu0 0.0
    %5718 = vmatpush1.msra.mxu0 0.0
    %5719 = vmatprep.subr.mxu0 0.0
    %5720 = vmatpush1.msra.mxu0 0.0
    %5721 = vmatprep.subr.mxu0 0.0
    %5722 = vmatpush1.msra.mxu0 0.0
    %5723 = vmatprep.subr.mxu0 0.0
    %5724 = vmatpush1.msra.mxu0 0.0
    %5725 = vmatprep.subr.mxu0 0.0
    %5726 = vmatpush1.msra.mxu0 0.0
    %5727 = vmatprep.subr.mxu0 0.0
    %5728 = vmatpush1.msra.mxu0 0.0
    %5729 = vmatprep.subr.mxu0 0.0
    %5730 = vmatpush1.msra.mxu0 0.0
    %5731 = vmatprep.mubr.f32.mxu0 0.0
    %5732 = vmatmul.mubr.f32.gmra.mrb[0].mxu0 %v5666
    %v5733 = vpop.f32.mrb[0].mxu0
    %v5734 = vadd.f32 0.0, %v5733
    %v5735 = vpop.f32.mrb[0].mxu0
    %v5736 = vadd.f32 0.0, %v5735
    %5737 = vdwg.mxu0
    %5738 = vmatprep.subr.mxu0 %v4990
    %5739 = vmatpush1.msra.mxu0 %v4989
    %5740 = vmatprep.subr.mxu0 %v4994
    %5741 = vmatpush1.msra.mxu0 %v4993
    %5742 = vmatprep.subr.mxu0 %v4998
    %5743 = vmatpush1.msra.mxu0 %v4997
    %5744 = vmatprep.subr.mxu0 %v5002
    %5745 = vmatpush1.msra.mxu0 %v5001
    %5746 = vmatprep.subr.mxu0 %v5006
    %5747 = vmatpush1.msra.mxu0 %v5005
    %5748 = vmatprep.subr.mxu0 %v5010
    %5749 = vmatpush1.msra.mxu0 %v5009
    %5750 = vmatprep.subr.mxu0 %v5014
    %5751 = vmatpush1.msra.mxu0 %v5013
    %5752 = vmatprep.subr.mxu0 %v5018
    %5753 = vmatpush1.msra.mxu0 %v5017
    %5754 = vmatprep.subr.mxu0 %v5022
    %5755 = vmatpush1.msra.mxu0 %v5021
    %5756 = vmatprep.subr.mxu0 %v5026
    %5757 = vmatpush1.msra.mxu0 %v5025
    %5758 = vmatprep.subr.mxu0 %v5030
    %5759 = vmatpush1.msra.mxu0 %v5029
    %5760 = vmatprep.subr.mxu0 %v5034
    %5761 = vmatpush1.msra.mxu0 %v5033
    %5762 = vmatprep.subr.mxu0 %v5038
    %5763 = vmatpush1.msra.mxu0 %v5037
    %5764 = vmatprep.subr.mxu0 %v5042
    %5765 = vmatpush1.msra.mxu0 %v5041
    %5766 = vmatprep.subr.mxu0 %v5046
    %5767 = vmatpush1.msra.mxu0 %v5045
    %5768 = vmatprep.subr.mxu0 %v5050
    %5769 = vmatpush1.msra.mxu0 %v5049
    %5770 = vmatprep.subr.mxu0 0.0
    %5771 = vmatpush1.msra.mxu0 0.0
    %5772 = vmatprep.subr.mxu0 0.0
    %5773 = vmatpush1.msra.mxu0 0.0
    %5774 = vmatprep.subr.mxu0 0.0
    %5775 = vmatpush1.msra.mxu0 0.0
    %5776 = vmatprep.subr.mxu0 0.0
    %5777 = vmatpush1.msra.mxu0 0.0
    %5778 = vmatprep.subr.mxu0 0.0
    %5779 = vmatpush1.msra.mxu0 0.0
    %5780 = vmatprep.subr.mxu0 0.0
    %5781 = vmatpush1.msra.mxu0 0.0
    %5782 = vmatprep.subr.mxu0 0.0
    %5783 = vmatpush1.msra.mxu0 0.0
    %5784 = vmatprep.subr.mxu0 0.0
    %5785 = vmatpush1.msra.mxu0 0.0
    %5786 = vmatprep.subr.mxu0 0.0
    %5787 = vmatpush1.msra.mxu0 0.0
    %5788 = vmatprep.subr.mxu0 0.0
    %5789 = vmatpush1.msra.mxu0 0.0
    %5790 = vmatprep.subr.mxu0 0.0
    %5791 = vmatpush1.msra.mxu0 0.0
    %5792 = vmatprep.subr.mxu0 0.0
    %5793 = vmatpush1.msra.mxu0 0.0
    %5794 = vmatprep.subr.mxu0 0.0
    %5795 = vmatpush1.msra.mxu0 0.0
    %5796 = vmatprep.subr.mxu0 0.0
    %5797 = vmatpush1.msra.mxu0 0.0
    %5798 = vmatprep.subr.mxu0 0.0
    %5799 = vmatpush1.msra.mxu0 0.0
    %5800 = vmatprep.subr.mxu0 0.0
    %5801 = vmatpush1.msra.mxu0 0.0
    %5802 = vmatprep.mubr.f32.mxu0 0.0
    %5803 = vmatmul.mubr.f32.gmra.mrb[0].mxu0 %v5666
    %v5804 = vpop.f32.mrb[0].mxu0
    %v5805 = vadd.f32 0.0, %v5804
    %v5806 = vpop.f32.mrb[0].mxu0
    %v5807 = vadd.f32 0.0, %v5806
    %5808 = vdwg.mxu0
    %5809 = vmatprep.subr.mxu0 %v4680
    %5810 = vmatpush1.msra.mxu0 %v4679
    %5811 = vmatprep.subr.mxu0 %v4684
    %5812 = vmatpush1.msra.mxu0 %v4683
    %5813 = vmatprep.subr.mxu0 %v4688
    %5814 = vmatpush1.msra.mxu0 %v4687
    %5815 = vmatprep.subr.mxu0 %v4692
    %5816 = vmatpush1.msra.mxu0 %v4691
    %5817 = vmatprep.subr.mxu0 %v4696
    %5818 = vmatpush1.msra.mxu0 %v4695
    %5819 = vmatprep.subr.mxu0 %v4700
    %5820 = vmatpush1.msra.mxu0 %v4699
    %5821 = vmatprep.subr.mxu0 %v4704
    %5822 = vmatpush1.msra.mxu0 %v4703
    %5823 = vmatprep.subr.mxu0 %v4708
    %5824 = vmatpush1.msra.mxu0 %v4707
    %5825 = vmatprep.subr.mxu0 %v4712
    %5826 = vmatpush1.msra.mxu0 %v4711
    %5827 = vmatprep.subr.mxu0 %v4716
    %5828 = vmatpush1.msra.mxu0 %v4715
    %5829 = vmatprep.subr.mxu0 %v4720
    %5830 = vmatpush1.msra.mxu0 %v4719
    %5831 = vmatprep.subr.mxu0 %v4724
    %5832 = vmatpush1.msra.mxu0 %v4723
    %5833 = vmatprep.subr.mxu0 %v4728
    %5834 = vmatpush1.msra.mxu0 %v4727
    %5835 = vmatprep.subr.mxu0 %v4732
    %5836 = vmatpush1.msra.mxu0 %v4731
    %5837 = vmatprep.subr.mxu0 %v4736
    %5838 = vmatpush1.msra.mxu0 %v4735
    %5839 = vmatprep.subr.mxu0 %v4740
    %5840 = vmatpush1.msra.mxu0 %v4739
    %5841 = vmatprep.subr.mxu0 0.0
    %5842 = vmatpush1.msra.mxu0 0.0
    %5843 = vmatprep.subr.mxu0 0.0
    %5844 = vmatpush1.msra.mxu0 0.0
    %5845 = vmatprep.subr.mxu0 0.0
    %5846 = vmatpush1.msra.mxu0 0.0
    %5847 = vmatprep.subr.mxu0 0.0
    %5848 = vmatpush1.msra.mxu0 0.0
    %5849 = vmatprep.subr.mxu0 0.0
    %5850 = vmatpush1.msra.mxu0 0.0
    %5851 = vmatprep.subr.mxu0 0.0
    %5852 = vmatpush1.msra.mxu0 0.0
    %5853 = vmatprep.subr.mxu0 0.0
    %5854 = vmatpush1.msra.mxu0 0.0
    %5855 = vmatprep.subr.mxu0 0.0
    %5856 = vmatpush1.msra.mxu0 0.0
    %5857 = vmatprep.subr.mxu0 0.0
    %5858 = vmatpush1.msra.mxu0 0.0
    %5859 = vmatprep.subr.mxu0 0.0
    %5860 = vmatpush1.msra.mxu0 0.0
    %5861 = vmatprep.subr.mxu0 0.0
    %5862 = vmatpush1.msra.mxu0 0.0
    %5863 = vmatprep.subr.mxu0 0.0
    %5864 = vmatpush1.msra.mxu0 0.0
    %5865 = vmatprep.subr.mxu0 0.0
    %5866 = vmatpush1.msra.mxu0 0.0
    %5867 = vmatprep.subr.mxu0 0.0
    %5868 = vmatpush1.msra.mxu0 0.0
    %5869 = vmatprep.subr.mxu0 0.0
    %5870 = vmatpush1.msra.mxu0 0.0
    %5871 = vmatprep.subr.mxu0 0.0
    %5872 = vmatpush1.msra.mxu0 0.0
    %5873 = vmatprep.mubr.f32.mxu0 0.0
    %5874 = vmatmul.mubr.f32.gmra.mrb[0].mxu0 %v5362
    %v5875 = vpop.f32.mrb[0].mxu0
    %v5876 = vadd.f32 %v5734, %v5875
    %v5877 = vpop.f32.mrb[0].mxu0
    %v5878 = vadd.f32 %v5736, %v5877
    %5879 = vdwg.mxu0
    %5880 = vmatprep.subr.mxu0 %v4682
    %5881 = vmatpush1.msra.mxu0 %v4681
    %5882 = vmatprep.subr.mxu0 %v4686
    %5883 = vmatpush1.msra.mxu0 %v4685
    %5884 = vmatprep.subr.mxu0 %v4690
    %5885 = vmatpush1.msra.mxu0 %v4689
    %5886 = vmatprep.subr.mxu0 %v4694
    %5887 = vmatpush1.msra.mxu0 %v4693
    %5888 = vmatprep.subr.mxu0 %v4698
    %5889 = vmatpush1.msra.mxu0 %v4697
    %5890 = vmatprep.subr.mxu0 %v4702
    %5891 = vmatpush1.msra.mxu0 %v4701
    %5892 = vmatprep.subr.mxu0 %v4706
    %5893 = vmatpush1.msra.mxu0 %v4705
    %5894 = vmatprep.subr.mxu0 %v4710
    %5895 = vmatpush1.msra.mxu0 %v4709
    %5896 = vmatprep.subr.mxu0 %v4714
    %5897 = vmatpush1.msra.mxu0 %v4713
    %5898 = vmatprep.subr.mxu0 %v4718
    %5899 = vmatpush1.msra.mxu0 %v4717
    %5900 = vmatprep.subr.mxu0 %v4722
    %5901 = vmatpush1.msra.mxu0 %v4721
    %5902 = vmatprep.subr.mxu0 %v4726
    %5903 = vmatpush1.msra.mxu0 %v4725
    %5904 = vmatprep.subr.mxu0 %v4730
    %5905 = vmatpush1.msra.mxu0 %v4729
    %5906 = vmatprep.subr.mxu0 %v4734
    %5907 = vmatpush1.msra.mxu0 %v4733
    %5908 = vmatprep.subr.mxu0 %v4738
    %5909 = vmatpush1.msra.mxu0 %v4737
    %5910 = vmatprep.subr.mxu0 %v4742
    %5911 = vmatpush1.msra.mxu0 %v4741
    %5912 = vmatprep.subr.mxu0 0.0
    %5913 = vmatpush1.msra.mxu0 0.0
    %5914 = vmatprep.subr.mxu0 0.0
    %5915 = vmatpush1.msra.mxu0 0.0
    %5916 = vmatprep.subr.mxu0 0.0
    %5917 = vmatpush1.msra.mxu0 0.0
    %5918 = vmatprep.subr.mxu0 0.0
    %5919 = vmatpush1.msra.mxu0 0.0
    %5920 = vmatprep.subr.mxu0 0.0
    %5921 = vmatpush1.msra.mxu0 0.0
    %5922 = vmatprep.subr.mxu0 0.0
    %5923 = vmatpush1.msra.mxu0 0.0
    %5924 = vmatprep.subr.mxu0 0.0
    %5925 = vmatpush1.msra.mxu0 0.0
    %5926 = vmatprep.subr.mxu0 0.0
    %5927 = vmatpush1.msra.mxu0 0.0
    %5928 = vmatprep.subr.mxu0 0.0
    %5929 = vmatpush1.msra.mxu0 0.0
    %5930 = vmatprep.subr.mxu0 0.0
    %5931 = vmatpush1.msra.mxu0 0.0
    %5932 = vmatprep.subr.mxu0 0.0
    %5933 = vmatpush1.msra.mxu0 0.0
    %5934 = vmatprep.subr.mxu0 0.0
    %5935 = vmatpush1.msra.mxu0 0.0
    %5936 = vmatprep.subr.mxu0 0.0
    %5937 = vmatpush1.msra.mxu0 0.0
    %5938 = vmatprep.subr.mxu0 0.0
    %5939 = vmatpush1.msra.mxu0 0.0
    %5940 = vmatprep.subr.mxu0 0.0
    %5941 = vmatpush1.msra.mxu0 0.0
    %5942 = vmatprep.subr.mxu0 0.0
    %5943 = vmatpush1.msra.mxu0 0.0
    %5944 = vmatprep.mubr.f32.mxu0 0.0
    %5945 = vmatmul.mubr.f32.gmra.mrb[0].mxu0 %v5362
    %v5946 = vpop.f32.mrb[0].mxu0
    %v5947 = vadd.f32 %v5805, %v5946
    %v5948 = vpop.f32.mrb[0].mxu0
    %v5949 = vadd.f32 %v5807, %v5948
    %5950 = vdwg.mxu0
    %v5951 = vadd.f32 %v5876, %v2987
    %v5952 = vadd.f32 %v5878, %v2991
    %v5953 = vadd.f32 %v5947, %v2995
    %v5954 = vadd.f32 %v5949, %v2999
    %v5955 = vxor.u32 %v5951, 2147483648
    %v5956 = vmul.f32 %v5955, 1.442695
    %v5957 = vpow.pop %v5956
    %v5958 = vadd.f32 %v5957, 1.0
    %v5959 = vrcp.pop %v5958
    %v5960 = vmul.f32 1.0, %v5959
    %v5961 = vxor.u32 %v5952, 2147483648
    %v5962 = vmul.f32 %v5961, 1.442695
    %v5963 = vpow.pop %v5962
    %v5964 = vadd.f32 %v5963, 1.0
    %v5965 = vrcp.pop %v5964
    %v5966 = vmul.f32 1.0, %v5965
    %v5967 = vtanh.pop %v5953
    %v5968 = vxor.u32 %v5954, 2147483648
    %v5969 = vmul.f32 %v5968, 1.442695
    %v5970 = vpow.pop %v5969
    %v5971 = vadd.f32 %v5970, 1.0
    %v5972 = vrcp.pop %v5971
    %v5973 = vmul.f32 1.0, %v5972
    %v5974 = vmul.f32 %v5966, %v5360
    %v5975 = vmul.f32 %v5960, %v5967
    %v5976 = vadd.f32 %v5974, %v5975
    %v5977 = vtanh.pop %v5976
    %v5978 = vmul.f32 %v5973, %v5977
    %v5979 = vpack.c.bf16 %v5978, %v5978
    %5980 = vmatprep.subr.bf16.mxu0 %v5456
    %5981 = vmatpush1.bf16.msra.mxu0 %v5455
    %5982 = vmatprep.subr.bf16.mxu0 %v5460
    %5983 = vmatpush1.bf16.msra.mxu0 %v5459
    %5984 = vmatprep.subr.bf16.mxu0 %v5464
    %5985 = vmatpush1.bf16.msra.mxu0 %v5463
    %5986 = vmatprep.subr.bf16.mxu0 %v5468
    %5987 = vmatpush1.bf16.msra.mxu0 %v5467
    %5988 = vmatprep.subr.bf16.mxu0 %v5472
    %5989 = vmatpush1.bf16.msra.mxu0 %v5471
    %5990 = vmatprep.subr.bf16.mxu0 %v5476
    %5991 = vmatpush1.bf16.msra.mxu0 %v5475
    %5992 = vmatprep.subr.bf16.mxu0 %v5480
    %5993 = vmatpush1.bf16.msra.mxu0 %v5479
    %5994 = vmatprep.subr.bf16.mxu0 %v5484
    %5995 = vmatpush1.bf16.msra.mxu0 %v5483
    %5996 = vmatprep.subr.bf16.mxu0 0
    %5997 = vmatpush1.bf16.msra.mxu0 0
    %5998 = vmatprep.subr.bf16.mxu0 0
    %5999 = vmatpush1.bf16.msra.mxu0 0
    %6000 = vmatprep.subr.bf16.mxu0 0
    %6001 = vmatpush1.bf16.msra.mxu0 0
    %6002 = vmatprep.subr.bf16.mxu0 0
    %6003 = vmatpush1.bf16.msra.mxu0 0
    %6004 = vmatprep.subr.bf16.mxu0 0
    %6005 = vmatpush1.bf16.msra.mxu0 0
    %6006 = vmatprep.subr.bf16.mxu0 0
    %6007 = vmatpush1.bf16.msra.mxu0 0
    %6008 = vmatprep.subr.bf16.mxu0 0
    %6009 = vmatpush1.bf16.msra.mxu0 0
    %6010 = vmatprep.subr.bf16.mxu0 0
    %6011 = vmatpush1.bf16.msra.mxu0 0
    %6012 = vmatprep.mubr.bf16.mxu0 0
    %6013 = vmatmul.mubr.bf16.gmra.mrb[0].mxu0 %v5979
    %v6014 = vpop.f32.mrb[0].mxu0
    %v6015 = vadd.f32 0.0, %v6014
    %v6016 = vpop.f32.mrb[0].mxu0
    %v6017 = vadd.f32 0.0, %v6016
    %v6018 = vpop.f32.mrb[0].mxu0
    %v6019 = vpop.f32.mrb[0].mxu0
    %6020 = vdwg.mxu0
    %6021 = vmatprep.subr.bf16.mxu0 %v5458
    %6022 = vmatpush1.bf16.msra.mxu0 %v5457
    %6023 = vmatprep.subr.bf16.mxu0 %v5462
    %6024 = vmatpush1.bf16.msra.mxu0 %v5461
    %6025 = vmatprep.subr.bf16.mxu0 %v5466
    %6026 = vmatpush1.bf16.msra.mxu0 %v5465
    %6027 = vmatprep.subr.bf16.mxu0 %v5470
    %6028 = vmatpush1.bf16.msra.mxu0 %v5469
    %6029 = vmatprep.subr.bf16.mxu0 %v5474
    %6030 = vmatpush1.bf16.msra.mxu0 %v5473
    %6031 = vmatprep.subr.bf16.mxu0 %v5478
    %6032 = vmatpush1.bf16.msra.mxu0 %v5477
    %6033 = vmatprep.subr.bf16.mxu0 %v5482
    %6034 = vmatpush1.bf16.msra.mxu0 %v5481
    %6035 = vmatprep.subr.bf16.mxu0 %v5486
    %6036 = vmatpush1.bf16.msra.mxu0 %v5485
    %6037 = vmatprep.subr.bf16.mxu0 0
    %6038 = vmatpush1.bf16.msra.mxu0 0
    %6039 = vmatprep.subr.bf16.mxu0 0
    %6040 = vmatpush1.bf16.msra.mxu0 0
    %6041 = vmatprep.subr.bf16.mxu0 0
    %6042 = vmatpush1.bf16.msra.mxu0 0
    %6043 = vmatprep.subr.bf16.mxu0 0
    %6044 = vmatpush1.bf16.msra.mxu0 0
    %6045 = vmatprep.subr.bf16.mxu0 0
    %6046 = vmatpush1.bf16.msra.mxu0 0
    %6047 = vmatprep.subr.bf16.mxu0 0
    %6048 = vmatpush1.bf16.msra.mxu0 0
    %6049 = vmatprep.subr.bf16.mxu0 0
    %6050 = vmatpush1.bf16.msra.mxu0 0
    %6051 = vmatprep.subr.bf16.mxu0 0
    %6052 = vmatpush1.bf16.msra.mxu0 0
    %6053 = vmatprep.mubr.bf16.mxu0 0
    %6054 = vmatmul.mubr.bf16.gmra.mrb[0].mxu0 %v5979
    %v6055 = vpop.f32.mrb[0].mxu0
    %v6056 = vadd.f32 0.0, %v6055
    %v6057 = vpop.f32.mrb[0].mxu0
    %v6058 = vadd.f32 0.0, %v6057
    %v6059 = vpop.f32.mrb[0].mxu0
    %v6060 = vpop.f32.mrb[0].mxu0
    %6061 = vdwg.mxu0
    %v6062 = vadd.f32 %v5446, %v6015
    %v6063 = vadd.f32 %v5447, %v6017
    %v6064 = vadd.f32 %v5448, %v6056
    %v6065 = vadd.f32 %v5449, %v6058
    %s6066 = sadd.s32 %s5450, 2
    %s6067 = sadd.s32 64, %s4644
    %s6068 = smul.addr %s6067, 8
    %s6069 = scalar_lea.vmem [#allocation3], %s6068
    %v6070 = vld [vmem:[%s6069] sm:$0xff]
    %v6071 = vld [vmem:[%s6069 + $0x8] sm:$0xff]
    %v6072 = vld [vmem:[%s6069 + $0x10] sm:$0xff]
    %v6073 = vld [vmem:[%s6069 + $0x18] sm:$0xff]
    %v6074 = vld [vmem:[%s6069 + $0x20] sm:$0xff]
    %v6075 = vld [vmem:[%s6069 + $0x28] sm:$0xff]
    %v6076 = vld [vmem:[%s6069 + $0x30] sm:$0xff]
    %v6077 = vld [vmem:[%s6069 + $0x38] sm:$0xff]
    %v6078 = vld [vmem:[%s6069 + $0x40] sm:$0xff]
    %v6079 = vld [vmem:[%s6069 + $0x48] sm:$0xff]
    %v6080 = vld [vmem:[%s6069 + $0x50] sm:$0xff]
    %v6081 = vld [vmem:[%s6069 + $0x58] sm:$0xff]
    %v6082 = vld [vmem:[%s6069 + $0x60] sm:$0xff]
    %v6083 = vld [vmem:[%s6069 + $0x68] sm:$0xff]
    %v6084 = vld [vmem:[%s6069 + $0x70] sm:$0xff]
    %v6085 = vld [vmem:[%s6069 + $0x78] sm:$0xff]
    %v6086 = vld [vmem:[%s6069 + $0x80] sm:$0xff]
    %v6087 = vld [vmem:[%s6069 + $0x88] sm:$0xff]
    %v6088 = vld [vmem:[%s6069 + $0x90] sm:$0xff]
    %v6089 = vld [vmem:[%s6069 + $0x98] sm:$0xff]
    %v6090 = vld [vmem:[%s6069 + $0xa0] sm:$0xff]
    %v6091 = vld [vmem:[%s6069 + $0xa8] sm:$0xff]
    %v6092 = vld [vmem:[%s6069 + $0xb0] sm:$0xff]
    %v6093 = vld [vmem:[%s6069 + $0xb8] sm:$0xff]
    %v6094 = vld [vmem:[%s6069 + $0xc0] sm:$0xff]
    %v6095 = vld [vmem:[%s6069 + $0xc8] sm:$0xff]
    %v6096 = vld [vmem:[%s6069 + $0xd0] sm:$0xff]
    %v6097 = vld [vmem:[%s6069 + $0xd8] sm:$0xff]
    %v6098 = vld [vmem:[%s6069 + $0xe0] sm:$0xff]
    %v6099 = vld [vmem:[%s6069 + $0xe8] sm:$0xff]
    %v6100 = vld [vmem:[%s6069 + $0xf0] sm:$0xff]
    %v6101 = vld [vmem:[%s6069 + $0xf8] sm:$0xff]
    %s6102 = smul.u32 %s6066, 8
    %s6103 = sshra.s32 %s6102, 3
    %s6104 = sand.u32 %s6102, 7
    %s6105 = smul.u32 %s6103, 4
    %s6106 = smul.addr %s6105, 8
    %s6107 = scalar_lea.vmem [#allocation2], %s6106
    %v6108 = vld [vmem:[%s6107] sm:$0xff]
    %v6109 = vld [vmem:[%s6107 + $0x8] sm:$0xff]
    %v6110 = vld [vmem:[%s6107 + $0x10] sm:$0xff]
    %v6111 = vld [vmem:[%s6107 + $0x18] sm:$0xff]
    %6112 = vmatprep.subr.mxu0 %v4754
    %6113 = vmatpush1.msra.mxu0 %v4753
    %6114 = vmatprep.subr.mxu0 %v4758
    %6115 = vmatpush1.msra.mxu0 %v4757
    %6116 = vmatprep.subr.mxu0 %v4762
    %6117 = vmatpush1.msra.mxu0 %v4761
    %6118 = vmatprep.subr.mxu0 %v4766
    %6119 = vmatpush1.msra.mxu0 %v4765
    %6120 = vmatprep.subr.mxu0 %v4770
    %6121 = vmatpush1.msra.mxu0 %v4769
    %6122 = vmatprep.subr.mxu0 %v4774
    %6123 = vmatpush1.msra.mxu0 %v4773
    %6124 = vmatprep.subr.mxu0 %v4778
    %6125 = vmatpush1.msra.mxu0 %v4777
    %6126 = vmatprep.subr.mxu0 %v4782
    %6127 = vmatpush1.msra.mxu0 %v4781
    %6128 = vmatprep.subr.mxu0 %v4786
    %6129 = vmatpush1.msra.mxu0 %v4785
    %6130 = vmatprep.subr.mxu0 %v4790
    %6131 = vmatpush1.msra.mxu0 %v4789
    %6132 = vmatprep.subr.mxu0 %v4794
    %6133 = vmatpush1.msra.mxu0 %v4793
    %6134 = vmatprep.subr.mxu0 %v4798
    %6135 = vmatpush1.msra.mxu0 %v4797
    %6136 = vmatprep.subr.mxu0 %v4802
    %6137 = vmatpush1.msra.mxu0 %v4801
    %6138 = vmatprep.subr.mxu0 %v4806
    %6139 = vmatpush1.msra.mxu0 %v4805
    %6140 = vmatprep.subr.mxu0 %v4810
    %6141 = vmatpush1.msra.mxu0 %v4809
    %6142 = vmatprep.subr.mxu0 %v4814
    %6143 = vmatpush1.msra.mxu0 %v4813
    %6144 = vmatprep.subr.mxu0 0.0
    %6145 = vmatpush1.msra.mxu0 0.0
    %6146 = vmatprep.subr.mxu0 0.0
    %6147 = vmatpush1.msra.mxu0 0.0
    %6148 = vmatprep.subr.mxu0 0.0
    %6149 = vmatpush1.msra.mxu0 0.0
    %6150 = vmatprep.subr.mxu0 0.0
    %6151 = vmatpush1.msra.mxu0 0.0
    %6152 = vmatprep.subr.mxu0 0.0
    %6153 = vmatpush1.msra.mxu0 0.0
    %6154 = vmatprep.subr.mxu0 0.0
    %6155 = vmatpush1.msra.mxu0 0.0
    %6156 = vmatprep.subr.mxu0 0.0
    %6157 = vmatpush1.msra.mxu0 0.0
    %6158 = vmatprep.subr.mxu0 0.0
    %6159 = vmatpush1.msra.mxu0 0.0
    %6160 = vmatprep.subr.mxu0 0.0
    %6161 = vmatpush1.msra.mxu0 0.0
    %6162 = vmatprep.subr.mxu0 0.0
    %6163 = vmatpush1.msra.mxu0 0.0
    %6164 = vmatprep.subr.mxu0 0.0
    %6165 = vmatpush1.msra.mxu0 0.0
    %6166 = vmatprep.subr.mxu0 0.0
    %6167 = vmatpush1.msra.mxu0 0.0
    %6168 = vmatprep.subr.mxu0 0.0
    %6169 = vmatpush1.msra.mxu0 0.0
    %6170 = vmatprep.subr.mxu0 0.0
    %6171 = vmatpush1.msra.mxu0 0.0
    %6172 = vmatprep.subr.mxu0 0.0
    %6173 = vmatpush1.msra.mxu0 0.0
    %6174 = vmatprep.subr.mxu0 0.0
    %6175 = vmatpush1.msra.mxu0 0.0
    %6176 = vmatprep.mubr.f32.mxu0 0.0
    %6177 = vmatmul.mubr.f32.gmra.mrb[0].mxu0 %v5666
    %v6178 = vpop.f32.mrb[0].mxu0
    %v6179 = vadd.f32 0.0, %v6178
    %v6180 = vpop.f32.mrb[0].mxu0
    %v6181 = vadd.f32 0.0, %v6180
    %6182 = vdwg.mxu0
    %6183 = vmatprep.subr.mxu0 %v4756
    %6184 = vmatpush1.msra.mxu0 %v4755
    %6185 = vmatprep.subr.mxu0 %v4760
    %6186 = vmatpush1.msra.mxu0 %v4759
    %6187 = vmatprep.subr.mxu0 %v4764
    %6188 = vmatpush1.msra.mxu0 %v4763
    %6189 = vmatprep.subr.mxu0 %v4768
    %6190 = vmatpush1.msra.mxu0 %v4767
    %6191 = vmatprep.subr.mxu0 %v4772
    %6192 = vmatpush1.msra.mxu0 %v4771
    %6193 = vmatprep.subr.mxu0 %v4776
    %6194 = vmatpush1.msra.mxu0 %v4775
    %6195 = vmatprep.subr.mxu0 %v4780
    %6196 = vmatpush1.msra.mxu0 %v4779
    %6197 = vmatprep.subr.mxu0 %v4784
    %6198 = vmatpush1.msra.mxu0 %v4783
    %6199 = vmatprep.subr.mxu0 %v4788
    %6200 = vmatpush1.msra.mxu0 %v4787
    %6201 = vmatprep.subr.mxu0 %v4792
    %6202 = vmatpush1.msra.mxu0 %v4791
    %6203 = vmatprep.subr.mxu0 %v4796
    %6204 = vmatpush1.msra.mxu0 %v4795
    %6205 = vmatprep.subr.mxu0 %v4800
    %6206 = vmatpush1.msra.mxu0 %v4799
    %6207 = vmatprep.subr.mxu0 %v4804
    %6208 = vmatpush1.msra.mxu0 %v4803
    %6209 = vmatprep.subr.mxu0 %v4808
    %6210 = vmatpush1.msra.mxu0 %v4807
    %6211 = vmatprep.subr.mxu0 %v4812
    %6212 = vmatpush1.msra.mxu0 %v4811
    %6213 = vmatprep.subr.mxu0 %v4816
    %6214 = vmatpush1.msra.mxu0 %v4815
    %6215 = vmatprep.subr.mxu0 0.0
    %6216 = vmatpush1.msra.mxu0 0.0
    %6217 = vmatprep.subr.mxu0 0.0
    %6218 = vmatpush1.msra.mxu0 0.0
    %6219 = vmatprep.subr.mxu0 0.0
    %6220 = vmatpush1.msra.mxu0 0.0
    %6221 = vmatprep.subr.mxu0 0.0
    %6222 = vmatpush1.msra.mxu0 0.0
    %6223 = vmatprep.subr.mxu0 0.0
    %6224 = vmatpush1.msra.mxu0 0.0
    %6225 = vmatprep.subr.mxu0 0.0
    %6226 = vmatpush1.msra.mxu0 0.0
    %6227 = vmatprep.subr.mxu0 0.0
    %6228 = vmatpush1.msra.mxu0 0.0
    %6229 = vmatprep.subr.mxu0 0.0
    %6230 = vmatpush1.msra.mxu0 0.0
    %6231 = vmatprep.subr.mxu0 0.0
    %6232 = vmatpush1.msra.mxu0 0.0
    %6233 = vmatprep.subr.mxu0 0.0
    %6234 = vmatpush1.msra.mxu0 0.0
    %6235 = vmatprep.subr.mxu0 0.0
    %6236 = vmatpush1.msra.mxu0 0.0
    %6237 = vmatprep.subr.mxu0 0.0
    %6238 = vmatpush1.msra.mxu0 0.0
    %6239 = vmatprep.subr.mxu0 0.0
    %6240 = vmatpush1.msra.mxu0 0.0
    %6241 = vmatprep.subr.mxu0 0.0
    %6242 = vmatpush1.msra.mxu0 0.0
    %6243 = vmatprep.subr.mxu0 0.0
    %6244 = vmatpush1.msra.mxu0 0.0
    %6245 = vmatprep.subr.mxu0 0.0
    %6246 = vmatpush1.msra.mxu0 0.0
    %6247 = vmatprep.mubr.f32.mxu0 0.0
    %6248 = vmatmul.mubr.f32.gmra.mrb[0].mxu0 %v5666
    %v6249 = vpop.f32.mrb[0].mxu0
    %v6250 = vadd.f32 0.0, %v6249
    %v6251 = vpop.f32.mrb[0].mxu0
    %v6252 = vadd.f32 0.0, %v6251
    %6253 = vdwg.mxu0
    %v6254 = vadd.f32 %v6108, %v6179
    %v6255 = vadd.f32 %v6109, %v6181
    %v6256 = vadd.f32 %v6110, %v6250
    %v6257 = vadd.f32 %v6111, %v6252
    %v6258 = vxor.u32 %v6254, 2147483648
    %v6259 = vmul.f32 %v6258, 1.442695
    %v6260 = vpow.pop %v6259
    %v6261 = vadd.f32 %v6260, 1.0
    %v6262 = vrcp.pop %v6261
    %v6263 = vmul.f32 1.0, %v6262
    %v6264 = vxor.u32 %v6255, 2147483648
    %v6265 = vmul.f32 %v6264, 1.442695
    %v6266 = vpow.pop %v6265
    %v6267 = vadd.f32 %v6266, 1.0
    %v6268 = vrcp.pop %v6267
    %v6269 = vmul.f32 1.0, %v6268
    %v6270 = vtanh.pop %v6256
    %v6271 = vxor.u32 %v6257, 2147483648
    %v6272 = vmul.f32 %v6271, 1.442695
    %v6273 = vpow.pop %v6272
    %v6274 = vadd.f32 %v6273, 1.0
    %v6275 = vrcp.pop %v6274
    %v6276 = vmul.f32 1.0, %v6275
    %v6277 = vmul.f32 %v6269, %v5664
    %v6278 = vmul.f32 %v6263, %v6270
    %v6279 = vadd.f32 %v6277, %v6278
    %v6280 = vtanh.pop %v6279
    %v6281 = vmul.f32 %v6276, %v6280
    %6282 = vmatprep.subr.mxu0 %v4988
    %6283 = vmatpush1.msra.mxu0 %v4987
    %6284 = vmatprep.subr.mxu0 %v4992
    %6285 = vmatpush1.msra.mxu0 %v4991
    %6286 = vmatprep.subr.mxu0 %v4996
    %6287 = vmatpush1.msra.mxu0 %v4995
    %6288 = vmatprep.subr.mxu0 %v5000
    %6289 = vmatpush1.msra.mxu0 %v4999
    %6290 = vmatprep.subr.mxu0 %v5004
    %6291 = vmatpush1.msra.mxu0 %v5003
    %6292 = vmatprep.subr.mxu0 %v5008
    %6293 = vmatpush1.msra.mxu0 %v5007
    %6294 = vmatprep.subr.mxu0 %v5012
    %6295 = vmatpush1.msra.mxu0 %v5011
    %6296 = vmatprep.subr.mxu0 %v5016
    %6297 = vmatpush1.msra.mxu0 %v5015
    %6298 = vmatprep.subr.mxu0 %v5020
    %6299 = vmatpush1.msra.mxu0 %v5019
    %6300 = vmatprep.subr.mxu0 %v5024
    %6301 = vmatpush1.msra.mxu0 %v5023
    %6302 = vmatprep.subr.mxu0 %v5028
    %6303 = vmatpush1.msra.mxu0 %v5027
    %6304 = vmatprep.subr.mxu0 %v5032
    %6305 = vmatpush1.msra.mxu0 %v5031
    %6306 = vmatprep.subr.mxu0 %v5036
    %6307 = vmatpush1.msra.mxu0 %v5035
    %6308 = vmatprep.subr.mxu0 %v5040
    %6309 = vmatpush1.msra.mxu0 %v5039
    %6310 = vmatprep.subr.mxu0 %v5044
    %6311 = vmatpush1.msra.mxu0 %v5043
    %6312 = vmatprep.subr.mxu0 %v5048
    %6313 = vmatpush1.msra.mxu0 %v5047
    %6314 = vmatprep.subr.mxu0 0.0
    %6315 = vmatpush1.msra.mxu0 0.0
    %6316 = vmatprep.subr.mxu0 0.0
    %6317 = vmatpush1.msra.mxu0 0.0
    %6318 = vmatprep.subr.mxu0 0.0
    %6319 = vmatpush1.msra.mxu0 0.0
    %6320 = vmatprep.subr.mxu0 0.0
    %6321 = vmatpush1.msra.mxu0 0.0
    %6322 = vmatprep.subr.mxu0 0.0
    %6323 = vmatpush1.msra.mxu0 0.0
    %6324 = vmatprep.subr.mxu0 0.0
    %6325 = vmatpush1.msra.mxu0 0.0
    %6326 = vmatprep.subr.mxu0 0.0
    %6327 = vmatpush1.msra.mxu0 0.0
    %6328 = vmatprep.subr.mxu0 0.0
    %6329 = vmatpush1.msra.mxu0 0.0
    %6330 = vmatprep.subr.mxu0 0.0
    %6331 = vmatpush1.msra.mxu0 0.0
    %6332 = vmatprep.subr.mxu0 0.0
    %6333 = vmatpush1.msra.mxu0 0.0
    %6334 = vmatprep.subr.mxu0 0.0
    %6335 = vmatpush1.msra.mxu0 0.0
    %6336 = vmatprep.subr.mxu0 0.0
    %6337 = vmatpush1.msra.mxu0 0.0
    %6338 = vmatprep.subr.mxu0 0.0
    %6339 = vmatpush1.msra.mxu0 0.0
    %6340 = vmatprep.subr.mxu0 0.0
    %6341 = vmatpush1.msra.mxu0 0.0
    %6342 = vmatprep.subr.mxu0 0.0
    %6343 = vmatpush1.msra.mxu0 0.0
    %6344 = vmatprep.subr.mxu0 0.0
    %6345 = vmatpush1.msra.mxu0 0.0
    %6346 = vmatprep.mubr.f32.mxu0 0.0
    %6347 = vmatmul.mubr.f32.gmra.mrb[0].mxu0 %v6281
    %v6348 = vpop.f32.mrb[0].mxu0
    %v6349 = vadd.f32 0.0, %v6348
    %v6350 = vpop.f32.mrb[0].mxu0
    %v6351 = vadd.f32 0.0, %v6350
    %6352 = vdwg.mxu0
    %6353 = vmatprep.subr.mxu0 %v4990
    %6354 = vmatpush1.msra.mxu0 %v4989
    %6355 = vmatprep.subr.mxu0 %v4994
    %6356 = vmatpush1.msra.mxu0 %v4993
    %6357 = vmatprep.subr.mxu0 %v4998
    %6358 = vmatpush1.msra.mxu0 %v4997
    %6359 = vmatprep.subr.mxu0 %v5002
    %6360 = vmatpush1.msra.mxu0 %v5001
    %6361 = vmatprep.subr.mxu0 %v5006
    %6362 = vmatpush1.msra.mxu0 %v5005
    %6363 = vmatprep.subr.mxu0 %v5010
    %6364 = vmatpush1.msra.mxu0 %v5009
    %6365 = vmatprep.subr.mxu0 %v5014
    %6366 = vmatpush1.msra.mxu0 %v5013
    %6367 = vmatprep.subr.mxu0 %v5018
    %6368 = vmatpush1.msra.mxu0 %v5017
    %6369 = vmatprep.subr.mxu0 %v5022
    %6370 = vmatpush1.msra.mxu0 %v5021
    %6371 = vmatprep.subr.mxu0 %v5026
    %6372 = vmatpush1.msra.mxu0 %v5025
    %6373 = vmatprep.subr.mxu0 %v5030
    %6374 = vmatpush1.msra.mxu0 %v5029
    %6375 = vmatprep.subr.mxu0 %v5034
    %6376 = vmatpush1.msra.mxu0 %v5033
    %6377 = vmatprep.subr.mxu0 %v5038
    %6378 = vmatpush1.msra.mxu0 %v5037
    %6379 = vmatprep.subr.mxu0 %v5042
    %6380 = vmatpush1.msra.mxu0 %v5041
    %6381 = vmatprep.subr.mxu0 %v5046
    %6382 = vmatpush1.msra.mxu0 %v5045
    %6383 = vmatprep.subr.mxu0 %v5050
    %6384 = vmatpush1.msra.mxu0 %v5049
    %6385 = vmatprep.subr.mxu0 0.0
    %6386 = vmatpush1.msra.mxu0 0.0
    %6387 = vmatprep.subr.mxu0 0.0
    %6388 = vmatpush1.msra.mxu0 0.0
    %6389 = vmatprep.subr.mxu0 0.0
    %6390 = vmatpush1.msra.mxu0 0.0
    %6391 = vmatprep.subr.mxu0 0.0
    %6392 = vmatpush1.msra.mxu0 0.0
    %6393 = vmatprep.subr.mxu0 0.0
    %6394 = vmatpush1.msra.mxu0 0.0
    %6395 = vmatprep.subr.mxu0 0.0
    %6396 = vmatpush1.msra.mxu0 0.0
    %6397 = vmatprep.subr.mxu0 0.0
    %6398 = vmatpush1.msra.mxu0 0.0
    %6399 = vmatprep.subr.mxu0 0.0
    %6400 = vmatpush1.msra.mxu0 0.0
    %6401 = vmatprep.subr.mxu0 0.0
    %6402 = vmatpush1.msra.mxu0 0.0
    %6403 = vmatprep.subr.mxu0 0.0
    %6404 = vmatpush1.msra.mxu0 0.0
    %6405 = vmatprep.subr.mxu0 0.0
    %6406 = vmatpush1.msra.mxu0 0.0
    %6407 = vmatprep.subr.mxu0 0.0
    %6408 = vmatpush1.msra.mxu0 0.0
    %6409 = vmatprep.subr.mxu0 0.0
    %6410 = vmatpush1.msra.mxu0 0.0
    %6411 = vmatprep.subr.mxu0 0.0
    %6412 = vmatpush1.msra.mxu0 0.0
    %6413 = vmatprep.subr.mxu0 0.0
    %6414 = vmatpush1.msra.mxu0 0.0
    %6415 = vmatprep.subr.mxu0 0.0
    %6416 = vmatpush1.msra.mxu0 0.0
    %6417 = vmatprep.mubr.f32.mxu0 0.0
    %6418 = vmatmul.mubr.f32.gmra.mrb[0].mxu0 %v6281
    %v6419 = vpop.f32.mrb[0].mxu0
    %v6420 = vadd.f32 0.0, %v6419
    %v6421 = vpop.f32.mrb[0].mxu0
    %v6422 = vadd.f32 0.0, %v6421
    %6423 = vdwg.mxu0
    %6424 = vmatprep.subr.mxu0 %v4680
    %6425 = vmatpush1.msra.mxu0 %v4679
    %6426 = vmatprep.subr.mxu0 %v4684
    %6427 = vmatpush1.msra.mxu0 %v4683
    %6428 = vmatprep.subr.mxu0 %v4688
    %6429 = vmatpush1.msra.mxu0 %v4687
    %6430 = vmatprep.subr.mxu0 %v4692
    %6431 = vmatpush1.msra.mxu0 %v4691
    %6432 = vmatprep.subr.mxu0 %v4696
    %6433 = vmatpush1.msra.mxu0 %v4695
    %6434 = vmatprep.subr.mxu0 %v4700
    %6435 = vmatpush1.msra.mxu0 %v4699
    %6436 = vmatprep.subr.mxu0 %v4704
    %6437 = vmatpush1.msra.mxu0 %v4703
    %6438 = vmatprep.subr.mxu0 %v4708
    %6439 = vmatpush1.msra.mxu0 %v4707
    %6440 = vmatprep.subr.mxu0 %v4712
    %6441 = vmatpush1.msra.mxu0 %v4711
    %6442 = vmatprep.subr.mxu0 %v4716
    %6443 = vmatpush1.msra.mxu0 %v4715
    %6444 = vmatprep.subr.mxu0 %v4720
    %6445 = vmatpush1.msra.mxu0 %v4719
    %6446 = vmatprep.subr.mxu0 %v4724
    %6447 = vmatpush1.msra.mxu0 %v4723
    %6448 = vmatprep.subr.mxu0 %v4728
    %6449 = vmatpush1.msra.mxu0 %v4727
    %6450 = vmatprep.subr.mxu0 %v4732
    %6451 = vmatpush1.msra.mxu0 %v4731
    %6452 = vmatprep.subr.mxu0 %v4736
    %6453 = vmatpush1.msra.mxu0 %v4735
    %6454 = vmatprep.subr.mxu0 %v4740
    %6455 = vmatpush1.msra.mxu0 %v4739
    %6456 = vmatprep.subr.mxu0 0.0
    %6457 = vmatpush1.msra.mxu0 0.0
    %6458 = vmatprep.subr.mxu0 0.0
    %6459 = vmatpush1.msra.mxu0 0.0
    %6460 = vmatprep.subr.mxu0 0.0
    %6461 = vmatpush1.msra.mxu0 0.0
    %6462 = vmatprep.subr.mxu0 0.0
    %6463 = vmatpush1.msra.mxu0 0.0
    %6464 = vmatprep.subr.mxu0 0.0
    %6465 = vmatpush1.msra.mxu0 0.0
    %6466 = vmatprep.subr.mxu0 0.0
    %6467 = vmatpush1.msra.mxu0 0.0
    %6468 = vmatprep.subr.mxu0 0.0
    %6469 = vmatpush1.msra.mxu0 0.0
    %6470 = vmatprep.subr.mxu0 0.0
    %6471 = vmatpush1.msra.mxu0 0.0
    %6472 = vmatprep.subr.mxu0 0.0
    %6473 = vmatpush1.msra.mxu0 0.0
    %6474 = vmatprep.subr.mxu0 0.0
    %6475 = vmatpush1.msra.mxu0 0.0
    %6476 = vmatprep.subr.mxu0 0.0
    %6477 = vmatpush1.msra.mxu0 0.0
    %6478 = vmatprep.subr.mxu0 0.0
    %6479 = vmatpush1.msra.mxu0 0.0
    %6480 = vmatprep.subr.mxu0 0.0
    %6481 = vmatpush1.msra.mxu0 0.0
    %6482 = vmatprep.subr.mxu0 0.0
    %6483 = vmatpush1.msra.mxu0 0.0
    %6484 = vmatprep.subr.mxu0 0.0
    %6485 = vmatpush1.msra.mxu0 0.0
    %6486 = vmatprep.subr.mxu0 0.0
    %6487 = vmatpush1.msra.mxu0 0.0
    %6488 = vmatprep.mubr.f32.mxu0 0.0
    %6489 = vmatmul.mubr.f32.gmra.mrb[0].mxu0 %v5978
    %v6490 = vpop.f32.mrb[0].mxu0
    %v6491 = vadd.f32 %v6349, %v6490
    %v6492 = vpop.f32.mrb[0].mxu0
    %v6493 = vadd.f32 %v6351, %v6492
    %6494 = vdwg.mxu0
    %6495 = vmatprep.subr.mxu0 %v4682
    %6496 = vmatpush1.msra.mxu0 %v4681
    %6497 = vmatprep.subr.mxu0 %v4686
    %6498 = vmatpush1.msra.mxu0 %v4685
    %6499 = vmatprep.subr.mxu0 %v4690
    %6500 = vmatpush1.msra.mxu0 %v4689
    %6501 = vmatprep.subr.mxu0 %v4694
    %6502 = vmatpush1.msra.mxu0 %v4693
    %6503 = vmatprep.subr.mxu0 %v4698
    %6504 = vmatpush1.msra.mxu0 %v4697
    %6505 = vmatprep.subr.mxu0 %v4702
    %6506 = vmatpush1.msra.mxu0 %v4701
    %6507 = vmatprep.subr.mxu0 %v4706
    %6508 = vmatpush1.msra.mxu0 %v4705
    %6509 = vmatprep.subr.mxu0 %v4710
    %6510 = vmatpush1.msra.mxu0 %v4709
    %6511 = vmatprep.subr.mxu0 %v4714
    %6512 = vmatpush1.msra.mxu0 %v4713
    %6513 = vmatprep.subr.mxu0 %v4718
    %6514 = vmatpush1.msra.mxu0 %v4717
    %6515 = vmatprep.subr.mxu0 %v4722
    %6516 = vmatpush1.msra.mxu0 %v4721
    %6517 = vmatprep.subr.mxu0 %v4726
    %6518 = vmatpush1.msra.mxu0 %v4725
    %6519 = vmatprep.subr.mxu0 %v4730
    %6520 = vmatpush1.msra.mxu0 %v4729
    %6521 = vmatprep.subr.mxu0 %v4734
    %6522 = vmatpush1.msra.mxu0 %v4733
    %6523 = vmatprep.subr.mxu0 %v4738
    %6524 = vmatpush1.msra.mxu0 %v4737
    %6525 = vmatprep.subr.mxu0 %v4742
    %6526 = vmatpush1.msra.mxu0 %v4741
    %6527 = vmatprep.subr.mxu0 0.0
    %6528 = vmatpush1.msra.mxu0 0.0
    %6529 = vmatprep.subr.mxu0 0.0
    %6530 = vmatpush1.msra.mxu0 0.0
    %6531 = vmatprep.subr.mxu0 0.0
    %6532 = vmatpush1.msra.mxu0 0.0
    %6533 = vmatprep.subr.mxu0 0.0
    %6534 = vmatpush1.msra.mxu0 0.0
    %6535 = vmatprep.subr.mxu0 0.0
    %6536 = vmatpush1.msra.mxu0 0.0
    %6537 = vmatprep.subr.mxu0 0.0
    %6538 = vmatpush1.msra.mxu0 0.0
    %6539 = vmatprep.subr.mxu0 0.0
    %6540 = vmatpush1.msra.mxu0 0.0
    %6541 = vmatprep.subr.mxu0 0.0
    %6542 = vmatpush1.msra.mxu0 0.0
    %6543 = vmatprep.subr.mxu0 0.0
    %6544 = vmatpush1.msra.mxu0 0.0
    %6545 = vmatprep.subr.mxu0 0.0
    %6546 = vmatpush1.msra.mxu0 0.0
    %6547 = vmatprep.subr.mxu0 0.0
    %6548 = vmatpush1.msra.mxu0 0.0
    %6549 = vmatprep.subr.mxu0 0.0
    %6550 = vmatpush1.msra.mxu0 0.0
    %6551 = vmatprep.subr.mxu0 0.0
    %6552 = vmatpush1.msra.mxu0 0.0
    %6553 = vmatprep.subr.mxu0 0.0
    %6554 = vmatpush1.msra.mxu0 0.0
    %6555 = vmatprep.subr.mxu0 0.0
    %6556 = vmatpush1.msra.mxu0 0.0
    %6557 = vmatprep.subr.mxu0 0.0
    %6558 = vmatpush1.msra.mxu0 0.0
    %6559 = vmatprep.mubr.f32.mxu0 0.0
    %6560 = vmatmul.mubr.f32.gmra.mrb[0].mxu0 %v5978
    %v6561 = vpop.f32.mrb[0].mxu0
    %v6562 = vadd.f32 %v6420, %v6561
    %v6563 = vpop.f32.mrb[0].mxu0
    %v6564 = vadd.f32 %v6422, %v6563
    %6565 = vdwg.mxu0
    %v6566 = vadd.f32 %v6491, %v2987
    %v6567 = vadd.f32 %v6493, %v2991
    %v6568 = vadd.f32 %v6562, %v2995
    %v6569 = vadd.f32 %v6564, %v2999
    %v6570 = vxor.u32 %v6566, 2147483648
    %v6571 = vmul.f32 %v6570, 1.442695
    %v6572 = vpow.pop %v6571
    %v6573 = vadd.f32 %v6572, 1.0
    %v6574 = vrcp.pop %v6573
    %v6575 = vmul.f32 1.0, %v6574
    %v6576 = vxor.u32 %v6567, 2147483648
    %v6577 = vmul.f32 %v6576, 1.442695
    %v6578 = vpow.pop %v6577
    %v6579 = vadd.f32 %v6578, 1.0
    %v6580 = vrcp.pop %v6579
    %v6581 = vmul.f32 1.0, %v6580
    %v6582 = vtanh.pop %v6568
    %v6583 = vxor.u32 %v6569, 2147483648
    %v6584 = vmul.f32 %v6583, 1.442695
    %v6585 = vpow.pop %v6584
    %v6586 = vadd.f32 %v6585, 1.0
    %v6587 = vrcp.pop %v6586
    %v6588 = vmul.f32 1.0, %v6587
    %v6589 = vmul.f32 %v6581, %v5976
    %v6590 = vmul.f32 %v6575, %v6582
    %v6591 = vadd.f32 %v6589, %v6590
    %v6592 = vtanh.pop %v6591
    %v6593 = vmul.f32 %v6588, %v6592
    %v6594 = vpack.c.bf16 %v6593, %v6593
    %6595 = vmatprep.subr.bf16.mxu0 %v6071
    %6596 = vmatpush1.bf16.msra.mxu0 %v6070
    %6597 = vmatprep.subr.bf16.mxu0 %v6075
    %6598 = vmatpush1.bf16.msra.mxu0 %v6074
    %6599 = vmatprep.subr.bf16.mxu0 %v6079
    %6600 = vmatpush1.bf16.msra.mxu0 %v6078
    %6601 = vmatprep.subr.bf16.mxu0 %v6083
    %6602 = vmatpush1.bf16.msra.mxu0 %v6082
    %6603 = vmatprep.subr.bf16.mxu0 %v6087
    %6604 = vmatpush1.bf16.msra.mxu0 %v6086
    %6605 = vmatprep.subr.bf16.mxu0 %v6091
    %6606 = vmatpush1.bf16.msra.mxu0 %v6090
    %6607 = vmatprep.subr.bf16.mxu0 %v6095
    %6608 = vmatpush1.bf16.msra.mxu0 %v6094
    %6609 = vmatprep.subr.bf16.mxu0 %v6099
    %6610 = vmatpush1.bf16.msra.mxu0 %v6098
    %6611 = vmatprep.subr.bf16.mxu0 0
    %6612 = vmatpush1.bf16.msra.mxu0 0
    %6613 = vmatprep.subr.bf16.mxu0 0
    %6614 = vmatpush1.bf16.msra.mxu0 0
    %6615 = vmatprep.subr.bf16.mxu0 0
    %6616 = vmatpush1.bf16.msra.mxu0 0
    %6617 = vmatprep.subr.bf16.mxu0 0
    %6618 = vmatpush1.bf16.msra.mxu0 0
    %6619 = vmatprep.subr.bf16.mxu0 0
    %6620 = vmatpush1.bf16.msra.mxu0 0
    %6621 = vmatprep.subr.bf16.mxu0 0
    %6622 = vmatpush1.bf16.msra.mxu0 0
    %6623 = vmatprep.subr.bf16.mxu0 0
    %6624 = vmatpush1.bf16.msra.mxu0 0
    %6625 = vmatprep.subr.bf16.mxu0 0
    %6626 = vmatpush1.bf16.msra.mxu0 0
    %6627 = vmatprep.mubr.bf16.mxu0 0
    %6628 = vmatmul.mubr.bf16.gmra.mrb[0].mxu0 %v6594
    %v6629 = vpop.f32.mrb[0].mxu0
    %v6630 = vadd.f32 0.0, %v6629
    %v6631 = vpop.f32.mrb[0].mxu0
    %v6632 = vadd.f32 0.0, %v6631
    %v6633 = vpop.f32.mrb[0].mxu0
    %v6634 = vpop.f32.mrb[0].mxu0
    %6635 = vdwg.mxu0
    %6636 = vmatprep.subr.bf16.mxu0 %v6073
    %6637 = vmatpush1.bf16.msra.mxu0 %v6072
    %6638 = vmatprep.subr.bf16.mxu0 %v6077
    %6639 = vmatpush1.bf16.msra.mxu0 %v6076
    %6640 = vmatprep.subr.bf16.mxu0 %v6081
    %6641 = vmatpush1.bf16.msra.mxu0 %v6080
    %6642 = vmatprep.subr.bf16.mxu0 %v6085
    %6643 = vmatpush1.bf16.msra.mxu0 %v6084
    %6644 = vmatprep.subr.bf16.mxu0 %v6089
    %6645 = vmatpush1.bf16.msra.mxu0 %v6088
    %6646 = vmatprep.subr.bf16.mxu0 %v6093
    %6647 = vmatpush1.bf16.msra.mxu0 %v6092
    %6648 = vmatprep.subr.bf16.mxu0 %v6097
    %6649 = vmatpush1.bf16.msra.mxu0 %v6096
    %6650 = vmatprep.subr.bf16.mxu0 %v6101
    %6651 = vmatpush1.bf16.msra.mxu0 %v6100
    %6652 = vmatprep.subr.bf16.mxu0 0
    %6653 = vmatpush1.bf16.msra.mxu0 0
    %6654 = vmatprep.subr.bf16.mxu0 0
    %6655 = vmatpush1.bf16.msra.mxu0 0
    %6656 = vmatprep.subr.bf16.mxu0 0
    %6657 = vmatpush1.bf16.msra.mxu0 0
    %6658 = vmatprep.subr.bf16.mxu0 0
    %6659 = vmatpush1.bf16.msra.mxu0 0
    %6660 = vmatprep.subr.bf16.mxu0 0
    %6661 = vmatpush1.bf16.msra.mxu0 0
    %6662 = vmatprep.subr.bf16.mxu0 0
    %6663 = vmatpush1.bf16.msra.mxu0 0
    %6664 = vmatprep.subr.bf16.mxu0 0
    %6665 = vmatpush1.bf16.msra.mxu0 0
    %6666 = vmatprep.subr.bf16.mxu0 0
    %6667 = vmatpush1.bf16.msra.mxu0 0
    %6668 = vmatprep.mubr.bf16.mxu0 0
    %6669 = vmatmul.mubr.bf16.gmra.mrb[0].mxu0 %v6594
    %v6670 = vpop.f32.mrb[0].mxu0
    %v6671 = vadd.f32 0.0, %v6670
    %v6672 = vpop.f32.mrb[0].mxu0
    %v6673 = vadd.f32 0.0, %v6672
    %v6674 = vpop.f32.mrb[0].mxu0
    %v6675 = vpop.f32.mrb[0].mxu0
    %6676 = vdwg.mxu0
    %v6677 = vadd.f32 %v6062, %v6630
    %v6678 = vadd.f32 %v6063, %v6632
    %v6679 = vadd.f32 %v6064, %v6671
    %v6680 = vadd.f32 %v6065, %v6673
    %s6681 = sadd.s32 %s5450, 3
    %s6682 = sadd.s32 96, %s4644
    %s6683 = smul.addr %s6682, 8
    %s6684 = scalar_lea.vmem [#allocation3], %s6683
    %v6685 = vld [vmem:[%s6684] sm:$0xff]
    %v6686 = vld [vmem:[%s6684 + $0x8] sm:$0xff]
    %v6687 = vld [vmem:[%s6684 + $0x10] sm:$0xff]
    %v6688 = vld [vmem:[%s6684 + $0x18] sm:$0xff]
    %v6689 = vld [vmem:[%s6684 + $0x20] sm:$0xff]
    %v6690 = vld [vmem:[%s6684 + $0x28] sm:$0xff]
    %v6691 = vld [vmem:[%s6684 + $0x30] sm:$0xff]
    %v6692 = vld [vmem:[%s6684 + $0x38] sm:$0xff]
    %v6693 = vld [vmem:[%s6684 + $0x40] sm:$0xff]
    %v6694 = vld [vmem:[%s6684 + $0x48] sm:$0xff]
    %v6695 = vld [vmem:[%s6684 + $0x50] sm:$0xff]
    %v6696 = vld [vmem:[%s6684 + $0x58] sm:$0xff]
    %v6697 = vld [vmem:[%s6684 + $0x60] sm:$0xff]
    %v6698 = vld [vmem:[%s6684 + $0x68] sm:$0xff]
    %v6699 = vld [vmem:[%s6684 + $0x70] sm:$0xff]
    %v6700 = vld [vmem:[%s6684 + $0x78] sm:$0xff]
    %v6701 = vld [vmem:[%s6684 + $0x80] sm:$0xff]
    %v6702 = vld [vmem:[%s6684 + $0x88] sm:$0xff]
    %v6703 = vld [vmem:[%s6684 + $0x90] sm:$0xff]
    %v6704 = vld [vmem:[%s6684 + $0x98] sm:$0xff]
    %v6705 = vld [vmem:[%s6684 + $0xa0] sm:$0xff]
    %v6706 = vld [vmem:[%s6684 + $0xa8] sm:$0xff]
    %v6707 = vld [vmem:[%s6684 + $0xb0] sm:$0xff]
    %v6708 = vld [vmem:[%s6684 + $0xb8] sm:$0xff]
    %v6709 = vld [vmem:[%s6684 + $0xc0] sm:$0xff]
    %v6710 = vld [vmem:[%s6684 + $0xc8] sm:$0xff]
    %v6711 = vld [vmem:[%s6684 + $0xd0] sm:$0xff]
    %v6712 = vld [vmem:[%s6684 + $0xd8] sm:$0xff]
    %v6713 = vld [vmem:[%s6684 + $0xe0] sm:$0xff]
    %v6714 = vld [vmem:[%s6684 + $0xe8] sm:$0xff]
    %v6715 = vld [vmem:[%s6684 + $0xf0] sm:$0xff]
    %v6716 = vld [vmem:[%s6684 + $0xf8] sm:$0xff]
    %s6717 = smul.u32 %s6681, 8
    %s6718 = sshra.s32 %s6717, 3
    %s6719 = sand.u32 %s6717, 7
    %s6720 = smul.u32 %s6718, 4
    %s6721 = smul.addr %s6720, 8
    %s6722 = scalar_lea.vmem [#allocation2], %s6721
    %v6723 = vld [vmem:[%s6722] sm:$0xff]
    %v6724 = vld [vmem:[%s6722 + $0x8] sm:$0xff]
    %v6725 = vld [vmem:[%s6722 + $0x10] sm:$0xff]
    %v6726 = vld [vmem:[%s6722 + $0x18] sm:$0xff]
    %6727 = vmatprep.subr.mxu0 %v4754
    %6728 = vmatpush1.msra.mxu0 %v4753
    %6729 = vmatprep.subr.mxu0 %v4758
    %6730 = vmatpush1.msra.mxu0 %v4757
    %6731 = vmatprep.subr.mxu0 %v4762
    %6732 = vmatpush1.msra.mxu0 %v4761
    %6733 = vmatprep.subr.mxu0 %v4766
    %6734 = vmatpush1.msra.mxu0 %v4765
    %6735 = vmatprep.subr.mxu0 %v4770
    %6736 = vmatpush1.msra.mxu0 %v4769
    %6737 = vmatprep.subr.mxu0 %v4774
    %6738 = vmatpush1.msra.mxu0 %v4773
    %6739 = vmatprep.subr.mxu0 %v4778
    %6740 = vmatpush1.msra.mxu0 %v4777
    %6741 = vmatprep.subr.mxu0 %v4782
    %6742 = vmatpush1.msra.mxu0 %v4781
    %6743 = vmatprep.subr.mxu0 %v4786
    %6744 = vmatpush1.msra.mxu0 %v4785
    %6745 = vmatprep.subr.mxu0 %v4790
    %6746 = vmatpush1.msra.mxu0 %v4789
    %6747 = vmatprep.subr.mxu0 %v4794
    %6748 = vmatpush1.msra.mxu0 %v4793
    %6749 = vmatprep.subr.mxu0 %v4798
    %6750 = vmatpush1.msra.mxu0 %v4797
    %6751 = vmatprep.subr.mxu0 %v4802
    %6752 = vmatpush1.msra.mxu0 %v4801
    %6753 = vmatprep.subr.mxu0 %v4806
    %6754 = vmatpush1.msra.mxu0 %v4805
    %6755 = vmatprep.subr.mxu0 %v4810
    %6756 = vmatpush1.msra.mxu0 %v4809
    %6757 = vmatprep.subr.mxu0 %v4814
    %6758 = vmatpush1.msra.mxu0 %v4813
    %6759 = vmatprep.subr.mxu0 0.0
    %6760 = vmatpush1.msra.mxu0 0.0
    %6761 = vmatprep.subr.mxu0 0.0
    %6762 = vmatpush1.msra.mxu0 0.0
    %6763 = vmatprep.subr.mxu0 0.0
    %6764 = vmatpush1.msra.mxu0 0.0
    %6765 = vmatprep.subr.mxu0 0.0
    %6766 = vmatpush1.msra.mxu0 0.0
    %6767 = vmatprep.subr.mxu0 0.0
    %6768 = vmatpush1.msra.mxu0 0.0
    %6769 = vmatprep.subr.mxu0 0.0
    %6770 = vmatpush1.msra.mxu0 0.0
    %6771 = vmatprep.subr.mxu0 0.0
    %6772 = vmatpush1.msra.mxu0 0.0
    %6773 = vmatprep.subr.mxu0 0.0
    %6774 = vmatpush1.msra.mxu0 0.0
    %6775 = vmatprep.subr.mxu0 0.0
    %6776 = vmatpush1.msra.mxu0 0.0
    %6777 = vmatprep.subr.mxu0 0.0
    %6778 = vmatpush1.msra.mxu0 0.0
    %6779 = vmatprep.subr.mxu0 0.0
    %6780 = vmatpush1.msra.mxu0 0.0
    %6781 = vmatprep.subr.mxu0 0.0
    %6782 = vmatpush1.msra.mxu0 0.0
    %6783 = vmatprep.subr.mxu0 0.0
    %6784 = vmatpush1.msra.mxu0 0.0
    %6785 = vmatprep.subr.mxu0 0.0
    %6786 = vmatpush1.msra.mxu0 0.0
    %6787 = vmatprep.subr.mxu0 0.0
    %6788 = vmatpush1.msra.mxu0 0.0
    %6789 = vmatprep.subr.mxu0 0.0
    %6790 = vmatpush1.msra.mxu0 0.0
    %6791 = vmatprep.mubr.f32.mxu0 0.0
    %6792 = vmatmul.mubr.f32.gmra.mrb[0].mxu0 %v6281
    %v6793 = vpop.f32.mrb[0].mxu0
    %v6794 = vadd.f32 0.0, %v6793
    %v6795 = vpop.f32.mrb[0].mxu0
    %v6796 = vadd.f32 0.0, %v6795
    %6797 = vdwg.mxu0
    %6798 = vmatprep.subr.mxu0 %v4756
    %6799 = vmatpush1.msra.mxu0 %v4755
    %6800 = vmatprep.subr.mxu0 %v4760
    %6801 = vmatpush1.msra.mxu0 %v4759
    %6802 = vmatprep.subr.mxu0 %v4764
    %6803 = vmatpush1.msra.mxu0 %v4763
    %6804 = vmatprep.subr.mxu0 %v4768
    %6805 = vmatpush1.msra.mxu0 %v4767
    %6806 = vmatprep.subr.mxu0 %v4772
    %6807 = vmatpush1.msra.mxu0 %v4771
    %6808 = vmatprep.subr.mxu0 %v4776
    %6809 = vmatpush1.msra.mxu0 %v4775
    %6810 = vmatprep.subr.mxu0 %v4780
    %6811 = vmatpush1.msra.mxu0 %v4779
    %6812 = vmatprep.subr.mxu0 %v4784
    %6813 = vmatpush1.msra.mxu0 %v4783
    %6814 = vmatprep.subr.mxu0 %v4788
    %6815 = vmatpush1.msra.mxu0 %v4787
    %6816 = vmatprep.subr.mxu0 %v4792
    %6817 = vmatpush1.msra.mxu0 %v4791
    %6818 = vmatprep.subr.mxu0 %v4796
    %6819 = vmatpush1.msra.mxu0 %v4795
    %6820 = vmatprep.subr.mxu0 %v4800
    %6821 = vmatpush1.msra.mxu0 %v4799
    %6822 = vmatprep.subr.mxu0 %v4804
    %6823 = vmatpush1.msra.mxu0 %v4803
    %6824 = vmatprep.subr.mxu0 %v4808
    %6825 = vmatpush1.msra.mxu0 %v4807
    %6826 = vmatprep.subr.mxu0 %v4812
    %6827 = vmatpush1.msra.mxu0 %v4811
    %6828 = vmatprep.subr.mxu0 %v4816
    %6829 = vmatpush1.msra.mxu0 %v4815
    %6830 = vmatprep.subr.mxu0 0.0
    %6831 = vmatpush1.msra.mxu0 0.0
    %6832 = vmatprep.subr.mxu0 0.0
    %6833 = vmatpush1.msra.mxu0 0.0
    %6834 = vmatprep.subr.mxu0 0.0
    %6835 = vmatpush1.msra.mxu0 0.0
    %6836 = vmatprep.subr.mxu0 0.0
    %6837 = vmatpush1.msra.mxu0 0.0
    %6838 = vmatprep.subr.mxu0 0.0
    %6839 = vmatpush1.msra.mxu0 0.0
    %6840 = vmatprep.subr.mxu0 0.0
    %6841 = vmatpush1.msra.mxu0 0.0
    %6842 = vmatprep.subr.mxu0 0.0
    %6843 = vmatpush1.msra.mxu0 0.0
    %6844 = vmatprep.subr.mxu0 0.0
    %6845 = vmatpush1.msra.mxu0 0.0
    %6846 = vmatprep.subr.mxu0 0.0
    %6847 = vmatpush1.msra.mxu0 0.0
    %6848 = vmatprep.subr.mxu0 0.0
    %6849 = vmatpush1.msra.mxu0 0.0
    %6850 = vmatprep.subr.mxu0 0.0
    %6851 = vmatpush1.msra.mxu0 0.0
    %6852 = vmatprep.subr.mxu0 0.0
    %6853 = vmatpush1.msra.mxu0 0.0
    %6854 = vmatprep.subr.mxu0 0.0
    %6855 = vmatpush1.msra.mxu0 0.0
    %6856 = vmatprep.subr.mxu0 0.0
    %6857 = vmatpush1.msra.mxu0 0.0
    %6858 = vmatprep.subr.mxu0 0.0
    %6859 = vmatpush1.msra.mxu0 0.0
    %6860 = vmatprep.subr.mxu0 0.0
    %6861 = vmatpush1.msra.mxu0 0.0
    %6862 = vmatprep.mubr.f32.mxu0 0.0
    %6863 = vmatmul.mubr.f32.gmra.mrb[0].mxu0 %v6281
    %v6864 = vpop.f32.mrb[0].mxu0
    %v6865 = vadd.f32 0.0, %v6864
    %v6866 = vpop.f32.mrb[0].mxu0
    %v6867 = vadd.f32 0.0, %v6866
    %6868 = vdwg.mxu0
    %v6869 = vadd.f32 %v6723, %v6794
    %v6870 = vadd.f32 %v6724, %v6796
    %v6871 = vadd.f32 %v6725, %v6865
    %v6872 = vadd.f32 %v6726, %v6867
    %v6873 = vxor.u32 %v6869, 2147483648
    %v6874 = vmul.f32 %v6873, 1.442695
    %v6875 = vpow.pop %v6874
    %v6876 = vadd.f32 %v6875, 1.0
    %v6877 = vrcp.pop %v6876
    %v6878 = vmul.f32 1.0, %v6877
    %v6879 = vxor.u32 %v6870, 2147483648
    %v6880 = vmul.f32 %v6879, 1.442695
    %v6881 = vpow.pop %v6880
    %v6882 = vadd.f32 %v6881, 1.0
    %v6883 = vrcp.pop %v6882
    %v6884 = vmul.f32 1.0, %v6883
    %v6885 = vtanh.pop %v6871
    %v6886 = vxor.u32 %v6872, 2147483648
    %v6887 = vmul.f32 %v6886, 1.442695
    %v6888 = vpow.pop %v6887
    %v6889 = vadd.f32 %v6888, 1.0
    %v6890 = vrcp.pop %v6889
    %v6891 = vmul.f32 1.0, %v6890
    %v6892 = vmul.f32 %v6884, %v6279
    %v6893 = vmul.f32 %v6878, %v6885
    %v6894 = vadd.f32 %v6892, %v6893
    %v6895 = vtanh.pop %v6894
    %v6896 = vmul.f32 %v6891, %v6895
    %6897 = vmatprep.subr.mxu0 %v4988
    %6898 = vmatpush1.msra.mxu0 %v4987
    %6899 = vmatprep.subr.mxu0 %v4992
    %6900 = vmatpush1.msra.mxu0 %v4991
    %6901 = vmatprep.subr.mxu0 %v4996
    %6902 = vmatpush1.msra.mxu0 %v4995
    %6903 = vmatprep.subr.mxu0 %v5000
    %6904 = vmatpush1.msra.mxu0 %v4999
    %6905 = vmatprep.subr.mxu0 %v5004
    %6906 = vmatpush1.msra.mxu0 %v5003
    %6907 = vmatprep.subr.mxu0 %v5008
    %6908 = vmatpush1.msra.mxu0 %v5007
    %6909 = vmatprep.subr.mxu0 %v5012
    %6910 = vmatpush1.msra.mxu0 %v5011
    %6911 = vmatprep.subr.mxu0 %v5016
    %6912 = vmatpush1.msra.mxu0 %v5015
    %6913 = vmatprep.subr.mxu0 %v5020
    %6914 = vmatpush1.msra.mxu0 %v5019
    %6915 = vmatprep.subr.mxu0 %v5024
    %6916 = vmatpush1.msra.mxu0 %v5023
    %6917 = vmatprep.subr.mxu0 %v5028
    %6918 = vmatpush1.msra.mxu0 %v5027
    %6919 = vmatprep.subr.mxu0 %v5032
    %6920 = vmatpush1.msra.mxu0 %v5031
    %6921 = vmatprep.subr.mxu0 %v5036
    %6922 = vmatpush1.msra.mxu0 %v5035
    %6923 = vmatprep.subr.mxu0 %v5040
    %6924 = vmatpush1.msra.mxu0 %v5039
    %6925 = vmatprep.subr.mxu0 %v5044
    %6926 = vmatpush1.msra.mxu0 %v5043
    %6927 = vmatprep.subr.mxu0 %v5048
    %6928 = vmatpush1.msra.mxu0 %v5047
    %6929 = vmatprep.subr.mxu0 0.0
    %6930 = vmatpush1.msra.mxu0 0.0
    %6931 = vmatprep.subr.mxu0 0.0
    %6932 = vmatpush1.msra.mxu0 0.0
    %6933 = vmatprep.subr.mxu0 0.0
    %6934 = vmatpush1.msra.mxu0 0.0
    %6935 = vmatprep.subr.mxu0 0.0
    %6936 = vmatpush1.msra.mxu0 0.0
    %6937 = vmatprep.subr.mxu0 0.0
    %6938 = vmatpush1.msra.mxu0 0.0
    %6939 = vmatprep.subr.mxu0 0.0
    %6940 = vmatpush1.msra.mxu0 0.0
    %6941 = vmatprep.subr.mxu0 0.0
    %6942 = vmatpush1.msra.mxu0 0.0
    %6943 = vmatprep.subr.mxu0 0.0
    %6944 = vmatpush1.msra.mxu0 0.0
    %6945 = vmatprep.subr.mxu0 0.0
    %6946 = vmatpush1.msra.mxu0 0.0
    %6947 = vmatprep.subr.mxu0 0.0
    %6948 = vmatpush1.msra.mxu0 0.0
    %6949 = vmatprep.subr.mxu0 0.0
    %6950 = vmatpush1.msra.mxu0 0.0
    %6951 = vmatprep.subr.mxu0 0.0
    %6952 = vmatpush1.msra.mxu0 0.0
    %6953 = vmatprep.subr.mxu0 0.0
    %6954 = vmatpush1.msra.mxu0 0.0
    %6955 = vmatprep.subr.mxu0 0.0
    %6956 = vmatpush1.msra.mxu0 0.0
    %6957 = vmatprep.subr.mxu0 0.0
    %6958 = vmatpush1.msra.mxu0 0.0
    %6959 = vmatprep.subr.mxu0 0.0
    %6960 = vmatpush1.msra.mxu0 0.0
    %6961 = vmatprep.mubr.f32.mxu0 0.0
    %6962 = vmatmul.mubr.f32.gmra.mrb[0].mxu0 %v6896
    %v6963 = vpop.f32.mrb[0].mxu0
    %v6964 = vadd.f32 0.0, %v6963
    %v6965 = vpop.f32.mrb[0].mxu0
    %v6966 = vadd.f32 0.0, %v6965
    %6967 = vdwg.mxu0
    %6968 = vmatprep.subr.mxu0 %v4990
    %6969 = vmatpush1.msra.mxu0 %v4989
    %6970 = vmatprep.subr.mxu0 %v4994
    %6971 = vmatpush1.msra.mxu0 %v4993
    %6972 = vmatprep.subr.mxu0 %v4998
    %6973 = vmatpush1.msra.mxu0 %v4997
    %6974 = vmatprep.subr.mxu0 %v5002
    %6975 = vmatpush1.msra.mxu0 %v5001
    %6976 = vmatprep.subr.mxu0 %v5006
    %6977 = vmatpush1.msra.mxu0 %v5005
    %6978 = vmatprep.subr.mxu0 %v5010
    %6979 = vmatpush1.msra.mxu0 %v5009
    %6980 = vmatprep.subr.mxu0 %v5014
    %6981 = vmatpush1.msra.mxu0 %v5013
    %6982 = vmatprep.subr.mxu0 %v5018
    %6983 = vmatpush1.msra.mxu0 %v5017
    %6984 = vmatprep.subr.mxu0 %v5022
    %6985 = vmatpush1.msra.mxu0 %v5021
    %6986 = vmatprep.subr.mxu0 %v5026
    %6987 = vmatpush1.msra.mxu0 %v5025
    %6988 = vmatprep.subr.mxu0 %v5030
    %6989 = vmatpush1.msra.mxu0 %v5029
    %6990 = vmatprep.subr.mxu0 %v5034
    %6991 = vmatpush1.msra.mxu0 %v5033
    %6992 = vmatprep.subr.mxu0 %v5038
    %6993 = vmatpush1.msra.mxu0 %v5037
    %6994 = vmatprep.subr.mxu0 %v5042
    %6995 = vmatpush1.msra.mxu0 %v5041
    %6996 = vmatprep.subr.mxu0 %v5046
    %6997 = vmatpush1.msra.mxu0 %v5045
    %6998 = vmatprep.subr.mxu0 %v5050
    %6999 = vmatpush1.msra.mxu0 %v5049
    %7000 = vmatprep.subr.mxu0 0.0
    %7001 = vmatpush1.msra.mxu0 0.0
    %7002 = vmatprep.subr.mxu0 0.0
    %7003 = vmatpush1.msra.mxu0 0.0
    %7004 = vmatprep.subr.mxu0 0.0
    %7005 = vmatpush1.msra.mxu0 0.0
    %7006 = vmatprep.subr.mxu0 0.0
    %7007 = vmatpush1.msra.mxu0 0.0
    %7008 = vmatprep.subr.mxu0 0.0
    %7009 = vmatpush1.msra.mxu0 0.0
    %7010 = vmatprep.subr.mxu0 0.0
    %7011 = vmatpush1.msra.mxu0 0.0
    %7012 = vmatprep.subr.mxu0 0.0
    %7013 = vmatpush1.msra.mxu0 0.0
    %7014 = vmatprep.subr.mxu0 0.0
    %7015 = vmatpush1.msra.mxu0 0.0
    %7016 = vmatprep.subr.mxu0 0.0
    %7017 = vmatpush1.msra.mxu0 0.0
    %7018 = vmatprep.subr.mxu0 0.0
    %7019 = vmatpush1.msra.mxu0 0.0
    %7020 = vmatprep.subr.mxu0 0.0
    %7021 = vmatpush1.msra.mxu0 0.0
    %7022 = vmatprep.subr.mxu0 0.0
    %7023 = vmatpush1.msra.mxu0 0.0
    %7024 = vmatprep.subr.mxu0 0.0
    %7025 = vmatpush1.msra.mxu0 0.0
    %7026 = vmatprep.subr.mxu0 0.0
    %7027 = vmatpush1.msra.mxu0 0.0
    %7028 = vmatprep.subr.mxu0 0.0
    %7029 = vmatpush1.msra.mxu0 0.0
    %7030 = vmatprep.subr.mxu0 0.0
    %7031 = vmatpush1.msra.mxu0 0.0
    %7032 = vmatprep.mubr.f32.mxu0 0.0
    %7033 = vmatmul.mubr.f32.gmra.mrb[0].mxu0 %v6896
    %v7034 = vpop.f32.mrb[0].mxu0
    %v7035 = vadd.f32 0.0, %v7034
    %v7036 = vpop.f32.mrb[0].mxu0
    %v7037 = vadd.f32 0.0, %v7036
    %7038 = vdwg.mxu0
    %7039 = vmatprep.subr.mxu0 %v4680
    %7040 = vmatpush1.msra.mxu0 %v4679
    %7041 = vmatprep.subr.mxu0 %v4684
    %7042 = vmatpush1.msra.mxu0 %v4683
    %7043 = vmatprep.subr.mxu0 %v4688
    %7044 = vmatpush1.msra.mxu0 %v4687
    %7045 = vmatprep.subr.mxu0 %v4692
    %7046 = vmatpush1.msra.mxu0 %v4691
    %7047 = vmatprep.subr.mxu0 %v4696
    %7048 = vmatpush1.msra.mxu0 %v4695
    %7049 = vmatprep.subr.mxu0 %v4700
    %7050 = vmatpush1.msra.mxu0 %v4699
    %7051 = vmatprep.subr.mxu0 %v4704
    %7052 = vmatpush1.msra.mxu0 %v4703
    %7053 = vmatprep.subr.mxu0 %v4708
    %7054 = vmatpush1.msra.mxu0 %v4707
    %7055 = vmatprep.subr.mxu0 %v4712
    %7056 = vmatpush1.msra.mxu0 %v4711
    %7057 = vmatprep.subr.mxu0 %v4716
    %7058 = vmatpush1.msra.mxu0 %v4715
    %7059 = vmatprep.subr.mxu0 %v4720
    %7060 = vmatpush1.msra.mxu0 %v4719
    %7061 = vmatprep.subr.mxu0 %v4724
    %7062 = vmatpush1.msra.mxu0 %v4723
    %7063 = vmatprep.subr.mxu0 %v4728
    %7064 = vmatpush1.msra.mxu0 %v4727
    %7065 = vmatprep.subr.mxu0 %v4732
    %7066 = vmatpush1.msra.mxu0 %v4731
    %7067 = vmatprep.subr.mxu0 %v4736
    %7068 = vmatpush1.msra.mxu0 %v4735
    %7069 = vmatprep.subr.mxu0 %v4740
    %7070 = vmatpush1.msra.mxu0 %v4739
    %7071 = vmatprep.subr.mxu0 0.0
    %7072 = vmatpush1.msra.mxu0 0.0
    %7073 = vmatprep.subr.mxu0 0.0
    %7074 = vmatpush1.msra.mxu0 0.0
    %7075 = vmatprep.subr.mxu0 0.0
    %7076 = vmatpush1.msra.mxu0 0.0
    %7077 = vmatprep.subr.mxu0 0.0
    %7078 = vmatpush1.msra.mxu0 0.0
    %7079 = vmatprep.subr.mxu0 0.0
    %7080 = vmatpush1.msra.mxu0 0.0
    %7081 = vmatprep.subr.mxu0 0.0
    %7082 = vmatpush1.msra.mxu0 0.0
    %7083 = vmatprep.subr.mxu0 0.0
    %7084 = vmatpush1.msra.mxu0 0.0
    %7085 = vmatprep.subr.mxu0 0.0
    %7086 = vmatpush1.msra.mxu0 0.0
    %7087 = vmatprep.subr.mxu0 0.0
    %7088 = vmatpush1.msra.mxu0 0.0
    %7089 = vmatprep.subr.mxu0 0.0
    %7090 = vmatpush1.msra.mxu0 0.0
    %7091 = vmatprep.subr.mxu0 0.0
    %7092 = vmatpush1.msra.mxu0 0.0
    %7093 = vmatprep.subr.mxu0 0.0
    %7094 = vmatpush1.msra.mxu0 0.0
    %7095 = vmatprep.subr.mxu0 0.0
    %7096 = vmatpush1.msra.mxu0 0.0
    %7097 = vmatprep.subr.mxu0 0.0
    %7098 = vmatpush1.msra.mxu0 0.0
    %7099 = vmatprep.subr.mxu0 0.0
    %7100 = vmatpush1.msra.mxu0 0.0
    %7101 = vmatprep.subr.mxu0 0.0
    %7102 = vmatpush1.msra.mxu0 0.0
    %7103 = vmatprep.mubr.f32.mxu0 0.0
    %7104 = vmatmul.mubr.f32.gmra.mrb[0].mxu0 %v6593
    %v7105 = vpop.f32.mrb[0].mxu0
    %v7106 = vadd.f32 %v6964, %v7105
    %v7107 = vpop.f32.mrb[0].mxu0
    %v7108 = vadd.f32 %v6966, %v7107
    %7109 = vdwg.mxu0
    %7110 = vmatprep.subr.mxu0 %v4682
    %7111 = vmatpush1.msra.mxu0 %v4681
    %7112 = vmatprep.subr.mxu0 %v4686
    %7113 = vmatpush1.msra.mxu0 %v4685
    %7114 = vmatprep.subr.mxu0 %v4690
    %7115 = vmatpush1.msra.mxu0 %v4689
    %7116 = vmatprep.subr.mxu0 %v4694
    %7117 = vmatpush1.msra.mxu0 %v4693
    %7118 = vmatprep.subr.mxu0 %v4698
    %7119 = vmatpush1.msra.mxu0 %v4697
    %7120 = vmatprep.subr.mxu0 %v4702
    %7121 = vmatpush1.msra.mxu0 %v4701
    %7122 = vmatprep.subr.mxu0 %v4706
    %7123 = vmatpush1.msra.mxu0 %v4705
    %7124 = vmatprep.subr.mxu0 %v4710
    %7125 = vmatpush1.msra.mxu0 %v4709
    %7126 = vmatprep.subr.mxu0 %v4714
    %7127 = vmatpush1.msra.mxu0 %v4713
    %7128 = vmatprep.subr.mxu0 %v4718
    %7129 = vmatpush1.msra.mxu0 %v4717
    %7130 = vmatprep.subr.mxu0 %v4722
    %7131 = vmatpush1.msra.mxu0 %v4721
    %7132 = vmatprep.subr.mxu0 %v4726
    %7133 = vmatpush1.msra.mxu0 %v4725
    %7134 = vmatprep.subr.mxu0 %v4730
    %7135 = vmatpush1.msra.mxu0 %v4729
    %7136 = vmatprep.subr.mxu0 %v4734
    %7137 = vmatpush1.msra.mxu0 %v4733
    %7138 = vmatprep.subr.mxu0 %v4738
    %7139 = vmatpush1.msra.mxu0 %v4737
    %7140 = vmatprep.subr.mxu0 %v4742
    %7141 = vmatpush1.msra.mxu0 %v4741
    %7142 = vmatprep.subr.mxu0 0.0
    %7143 = vmatpush1.msra.mxu0 0.0
    %7144 = vmatprep.subr.mxu0 0.0
    %7145 = vmatpush1.msra.mxu0 0.0
    %7146 = vmatprep.subr.mxu0 0.0
    %7147 = vmatpush1.msra.mxu0 0.0
    %7148 = vmatprep.subr.mxu0 0.0
    %7149 = vmatpush1.msra.mxu0 0.0
    %7150 = vmatprep.subr.mxu0 0.0
    %7151 = vmatpush1.msra.mxu0 0.0
    %7152 = vmatprep.subr.mxu0 0.0
    %7153 = vmatpush1.msra.mxu0 0.0
    %7154 = vmatprep.subr.mxu0 0.0
    %7155 = vmatpush1.msra.mxu0 0.0
    %7156 = vmatprep.subr.mxu0 0.0
    %7157 = vmatpush1.msra.mxu0 0.0
    %7158 = vmatprep.subr.mxu0 0.0
    %7159 = vmatpush1.msra.mxu0 0.0
    %7160 = vmatprep.subr.mxu0 0.0
    %7161 = vmatpush1.msra.mxu0 0.0
    %7162 = vmatprep.subr.mxu0 0.0
    %7163 = vmatpush1.msra.mxu0 0.0
    %7164 = vmatprep.subr.mxu0 0.0
    %7165 = vmatpush1.msra.mxu0 0.0
    %7166 = vmatprep.subr.mxu0 0.0
    %7167 = vmatpush1.msra.mxu0 0.0
    %7168 = vmatprep.subr.mxu0 0.0
    %7169 = vmatpush1.msra.mxu0 0.0
    %7170 = vmatprep.subr.mxu0 0.0
    %7171 = vmatpush1.msra.mxu0 0.0
    %7172 = vmatprep.subr.mxu0 0.0
    %7173 = vmatpush1.msra.mxu0 0.0
    %7174 = vmatprep.mubr.f32.mxu0 0.0
    %7175 = vmatmul.mubr.f32.gmra.mrb[0].mxu0 %v6593
    %v7176 = vpop.f32.mrb[0].mxu0
    %v7177 = vadd.f32 %v7035, %v7176
    %v7178 = vpop.f32.mrb[0].mxu0
    %v7179 = vadd.f32 %v7037, %v7178
    %7180 = vdwg.mxu0
    %v7181 = vadd.f32 %v7106, %v2987
    %v7182 = vadd.f32 %v7108, %v2991
    %v7183 = vadd.f32 %v7177, %v2995
    %v7184 = vadd.f32 %v7179, %v2999
    %v7185 = vxor.u32 %v7181, 2147483648
    %v7186 = vmul.f32 %v7185, 1.442695
    %v7187 = vpow.pop %v7186
    %v7188 = vadd.f32 %v7187, 1.0
    %v7189 = vrcp.pop %v7188
    %v7190 = vmul.f32 1.0, %v7189
    %v7191 = vxor.u32 %v7182, 2147483648
    %v7192 = vmul.f32 %v7191, 1.442695
    %v7193 = vpow.pop %v7192
    %v7194 = vadd.f32 %v7193, 1.0
    %v7195 = vrcp.pop %v7194
    %v7196 = vmul.f32 1.0, %v7195
    %v7197 = vtanh.pop %v7183
    %v7198 = vxor.u32 %v7184, 2147483648
    %v7199 = vmul.f32 %v7198, 1.442695
    %v7200 = vpow.pop %v7199
    %v7201 = vadd.f32 %v7200, 1.0
    %v7202 = vrcp.pop %v7201
    %v7203 = vmul.f32 1.0, %v7202
    %v7204 = vmul.f32 %v7196, %v6591
    %v7205 = vmul.f32 %v7190, %v7197
    %v7206 = vadd.f32 %v7204, %v7205
    %v7207 = vtanh.pop %v7206
    %v7208 = vmul.f32 %v7203, %v7207
    %v7209 = vpack.c.bf16 %v7208, %v7208
    %7210 = vmatprep.subr.bf16.mxu0 %v6686
    %7211 = vmatpush1.bf16.msra.mxu0 %v6685
    %7212 = vmatprep.subr.bf16.mxu0 %v6690
    %7213 = vmatpush1.bf16.msra.mxu0 %v6689
    %7214 = vmatprep.subr.bf16.mxu0 %v6694
    %7215 = vmatpush1.bf16.msra.mxu0 %v6693
    %7216 = vmatprep.subr.bf16.mxu0 %v6698
    %7217 = vmatpush1.bf16.msra.mxu0 %v6697
    %7218 = vmatprep.subr.bf16.mxu0 %v6702
    %7219 = vmatpush1.bf16.msra.mxu0 %v6701
    %7220 = vmatprep.subr.bf16.mxu0 %v6706
    %7221 = vmatpush1.bf16.msra.mxu0 %v6705
    %7222 = vmatprep.subr.bf16.mxu0 %v6710
    %7223 = vmatpush1.bf16.msra.mxu0 %v6709
    %7224 = vmatprep.subr.bf16.mxu0 %v6714
    %7225 = vmatpush1.bf16.msra.mxu0 %v6713
    %7226 = vmatprep.subr.bf16.mxu0 0
    %7227 = vmatpush1.bf16.msra.mxu0 0
    %7228 = vmatprep.subr.bf16.mxu0 0
    %7229 = vmatpush1.bf16.msra.mxu0 0
    %7230 = vmatprep.subr.bf16.mxu0 0
    %7231 = vmatpush1.bf16.msra.mxu0 0
    %7232 = vmatprep.subr.bf16.mxu0 0
    %7233 = vmatpush1.bf16.msra.mxu0 0
    %7234 = vmatprep.subr.bf16.mxu0 0
    %7235 = vmatpush1.bf16.msra.mxu0 0
    %7236 = vmatprep.subr.bf16.mxu0 0
    %7237 = vmatpush1.bf16.msra.mxu0 0
    %7238 = vmatprep.subr.bf16.mxu0 0
    %7239 = vmatpush1.bf16.msra.mxu0 0
    %7240 = vmatprep.subr.bf16.mxu0 0
    %7241 = vmatpush1.bf16.msra.mxu0 0
    %7242 = vmatprep.mubr.bf16.mxu0 0
    %7243 = vmatmul.mubr.bf16.gmra.mrb[0].mxu0 %v7209
    %v7244 = vpop.f32.mrb[0].mxu0
    %v7245 = vadd.f32 0.0, %v7244
    %v7246 = vpop.f32.mrb[0].mxu0
    %v7247 = vadd.f32 0.0, %v7246
    %v7248 = vpop.f32.mrb[0].mxu0
    %v7249 = vpop.f32.mrb[0].mxu0
    %7250 = vdwg.mxu0
    %7251 = vmatprep.subr.bf16.mxu0 %v6688
    %7252 = vmatpush1.bf16.msra.mxu0 %v6687
    %7253 = vmatprep.subr.bf16.mxu0 %v6692
    %7254 = vmatpush1.bf16.msra.mxu0 %v6691
    %7255 = vmatprep.subr.bf16.mxu0 %v6696
    %7256 = vmatpush1.bf16.msra.mxu0 %v6695
    %7257 = vmatprep.subr.bf16.mxu0 %v6700
    %7258 = vmatpush1.bf16.msra.mxu0 %v6699
    %7259 = vmatprep.subr.bf16.mxu0 %v6704
    %7260 = vmatpush1.bf16.msra.mxu0 %v6703
    %7261 = vmatprep.subr.bf16.mxu0 %v6708
    %7262 = vmatpush1.bf16.msra.mxu0 %v6707
    %7263 = vmatprep.subr.bf16.mxu0 %v6712
    %7264 = vmatpush1.bf16.msra.mxu0 %v6711
    %7265 = vmatprep.subr.bf16.mxu0 %v6716
    %7266 = vmatpush1.bf16.msra.mxu0 %v6715
    %7267 = vmatprep.subr.bf16.mxu0 0
    %7268 = vmatpush1.bf16.msra.mxu0 0
    %7269 = vmatprep.subr.bf16.mxu0 0
    %7270 = vmatpush1.bf16.msra.mxu0 0
    %7271 = vmatprep.subr.bf16.mxu0 0
    %7272 = vmatpush1.bf16.msra.mxu0 0
    %7273 = vmatprep.subr.bf16.mxu0 0
    %7274 = vmatpush1.bf16.msra.mxu0 0
    %7275 = vmatprep.subr.bf16.mxu0 0
    %7276 = vmatpush1.bf16.msra.mxu0 0
    %7277 = vmatprep.subr.bf16.mxu0 0
    %7278 = vmatpush1.bf16.msra.mxu0 0
    %7279 = vmatprep.subr.bf16.mxu0 0
    %7280 = vmatpush1.bf16.msra.mxu0 0
    %7281 = vmatprep.subr.bf16.mxu0 0
    %7282 = vmatpush1.bf16.msra.mxu0 0
    %7283 = vmatprep.mubr.bf16.mxu0 0
    %7284 = vmatmul.mubr.bf16.gmra.mrb[0].mxu0 %v7209
    %v7285 = vpop.f32.mrb[0].mxu0
    %v7286 = vadd.f32 0.0, %v7285
    %v7287 = vpop.f32.mrb[0].mxu0
    %v7288 = vadd.f32 0.0, %v7287
    %v7289 = vpop.f32.mrb[0].mxu0
    %v7290 = vpop.f32.mrb[0].mxu0
    %7291 = vdwg.mxu0
    %v7292 = vadd.f32 %v6677, %v7245
    %v7293 = vadd.f32 %v6678, %v7247
    %v7294 = vadd.f32 %v6679, %v7286
    %v7295 = vadd.f32 %v6680, %v7288
    %s7296 = sadd.s32 %s5450, 4
    %s7297 = sadd.s32 128, %s4644
    %s7298 = smul.addr %s7297, 8
    %s7299 = scalar_lea.vmem [#allocation3], %s7298
    %v7300 = vld [vmem:[%s7299] sm:$0xff]
    %v7301 = vld [vmem:[%s7299 + $0x8] sm:$0xff]
    %v7302 = vld [vmem:[%s7299 + $0x10] sm:$0xff]
    %v7303 = vld [vmem:[%s7299 + $0x18] sm:$0xff]
    %v7304 = vld [vmem:[%s7299 + $0x20] sm:$0xff]
    %v7305 = vld [vmem:[%s7299 + $0x28] sm:$0xff]
    %v7306 = vld [vmem:[%s7299 + $0x30] sm:$0xff]
    %v7307 = vld [vmem:[%s7299 + $0x38] sm:$0xff]
    %v7308 = vld [vmem:[%s7299 + $0x40] sm:$0xff]
    %v7309 = vld [vmem:[%s7299 + $0x48] sm:$0xff]
    %v7310 = vld [vmem:[%s7299 + $0x50] sm:$0xff]
    %v7311 = vld [vmem:[%s7299 + $0x58] sm:$0xff]
    %v7312 = vld [vmem:[%s7299 + $0x60] sm:$0xff]
    %v7313 = vld [vmem:[%s7299 + $0x68] sm:$0xff]
    %v7314 = vld [vmem:[%s7299 + $0x70] sm:$0xff]
    %v7315 = vld [vmem:[%s7299 + $0x78] sm:$0xff]
    %v7316 = vld [vmem:[%s7299 + $0x80] sm:$0xff]
    %v7317 = vld [vmem:[%s7299 + $0x88] sm:$0xff]
    %v7318 = vld [vmem:[%s7299 + $0x90] sm:$0xff]
    %v7319 = vld [vmem:[%s7299 + $0x98] sm:$0xff]
    %v7320 = vld [vmem:[%s7299 + $0xa0] sm:$0xff]
    %v7321 = vld [vmem:[%s7299 + $0xa8] sm:$0xff]
    %v7322 = vld [vmem:[%s7299 + $0xb0] sm:$0xff]
    %v7323 = vld [vmem:[%s7299 + $0xb8] sm:$0xff]
    %v7324 = vld [vmem:[%s7299 + $0xc0] sm:$0xff]
    %v7325 = vld [vmem:[%s7299 + $0xc8] sm:$0xff]
    %v7326 = vld [vmem:[%s7299 + $0xd0] sm:$0xff]
    %v7327 = vld [vmem:[%s7299 + $0xd8] sm:$0xff]
    %v7328 = vld [vmem:[%s7299 + $0xe0] sm:$0xff]
    %v7329 = vld [vmem:[%s7299 + $0xe8] sm:$0xff]
    %v7330 = vld [vmem:[%s7299 + $0xf0] sm:$0xff]
    %v7331 = vld [vmem:[%s7299 + $0xf8] sm:$0xff]
    %s7332 = smul.u32 %s7296, 8
    %s7333 = sshra.s32 %s7332, 3
    %s7334 = sand.u32 %s7332, 7
    %s7335 = smul.u32 %s7333, 4
    %s7336 = smul.addr %s7335, 8
    %s7337 = scalar_lea.vmem [#allocation2], %s7336
    %v7338 = vld [vmem:[%s7337] sm:$0xff]
    %v7339 = vld [vmem:[%s7337 + $0x8] sm:$0xff]
    %v7340 = vld [vmem:[%s7337 + $0x10] sm:$0xff]
    %v7341 = vld [vmem:[%s7337 + $0x18] sm:$0xff]
    %7342 = vmatprep.subr.mxu0 %v4754
    %7343 = vmatpush1.msra.mxu0 %v4753
    %7344 = vmatprep.subr.mxu0 %v4758
    %7345 = vmatpush1.msra.mxu0 %v4757
    %7346 = vmatprep.subr.mxu0 %v4762
    %7347 = vmatpush1.msra.mxu0 %v4761
    %7348 = vmatprep.subr.mxu0 %v4766
    %7349 = vmatpush1.msra.mxu0 %v4765
    %7350 = vmatprep.subr.mxu0 %v4770
    %7351 = vmatpush1.msra.mxu0 %v4769
    %7352 = vmatprep.subr.mxu0 %v4774
    %7353 = vmatpush1.msra.mxu0 %v4773
    %7354 = vmatprep.subr.mxu0 %v4778
    %7355 = vmatpush1.msra.mxu0 %v4777
    %7356 = vmatprep.subr.mxu0 %v4782
    %7357 = vmatpush1.msra.mxu0 %v4781
    %7358 = vmatprep.subr.mxu0 %v4786
    %7359 = vmatpush1.msra.mxu0 %v4785
    %7360 = vmatprep.subr.mxu0 %v4790
    %7361 = vmatpush1.msra.mxu0 %v4789
    %7362 = vmatprep.subr.mxu0 %v4794
    %7363 = vmatpush1.msra.mxu0 %v4793
    %7364 = vmatprep.subr.mxu0 %v4798
    %7365 = vmatpush1.msra.mxu0 %v4797
    %7366 = vmatprep.subr.mxu0 %v4802
    %7367 = vmatpush1.msra.mxu0 %v4801
    %7368 = vmatprep.subr.mxu0 %v4806
    %7369 = vmatpush1.msra.mxu0 %v4805
    %7370 = vmatprep.subr.mxu0 %v4810
    %7371 = vmatpush1.msra.mxu0 %v4809
    %7372 = vmatprep.subr.mxu0 %v4814
    %7373 = vmatpush1.msra.mxu0 %v4813
    %7374 = vmatprep.subr.mxu0 0.0
    %7375 = vmatpush1.msra.mxu0 0.0
    %7376 = vmatprep.subr.mxu0 0.0
    %7377 = vmatpush1.msra.mxu0 0.0
    %7378 = vmatprep.subr.mxu0 0.0
    %7379 = vmatpush1.msra.mxu0 0.0
    %7380 = vmatprep.subr.mxu0 0.0
    %7381 = vmatpush1.msra.mxu0 0.0
    %7382 = vmatprep.subr.mxu0 0.0
    %7383 = vmatpush1.msra.mxu0 0.0
    %7384 = vmatprep.subr.mxu0 0.0
    %7385 = vmatpush1.msra.mxu0 0.0
    %7386 = vmatprep.subr.mxu0 0.0
    %7387 = vmatpush1.msra.mxu0 0.0
    %7388 = vmatprep.subr.mxu0 0.0
    %7389 = vmatpush1.msra.mxu0 0.0
    %7390 = vmatprep.subr.mxu0 0.0
    %7391 = vmatpush1.msra.mxu0 0.0
    %7392 = vmatprep.subr.mxu0 0.0
    %7393 = vmatpush1.msra.mxu0 0.0
    %7394 = vmatprep.subr.mxu0 0.0
    %7395 = vmatpush1.msra.mxu0 0.0
    %7396 = vmatprep.subr.mxu0 0.0
    %7397 = vmatpush1.msra.mxu0 0.0
    %7398 = vmatprep.subr.mxu0 0.0
    %7399 = vmatpush1.msra.mxu0 0.0
    %7400 = vmatprep.subr.mxu0 0.0
    %7401 = vmatpush1.msra.mxu0 0.0
    %7402 = vmatprep.subr.mxu0 0.0
    %7403 = vmatpush1.msra.mxu0 0.0
    %7404 = vmatprep.subr.mxu0 0.0
    %7405 = vmatpush1.msra.mxu0 0.0
    %7406 = vmatprep.mubr.f32.mxu0 0.0
    %7407 = vmatmul.mubr.f32.gmra.mrb[0].mxu0 %v6896
    %v7408 = vpop.f32.mrb[0].mxu0
    %v7409 = vadd.f32 0.0, %v7408
    %v7410 = vpop.f32.mrb[0].mxu0
    %v7411 = vadd.f32 0.0, %v7410
    %7412 = vdwg.mxu0
    %7413 = vmatprep.subr.mxu0 %v4756
    %7414 = vmatpush1.msra.mxu0 %v4755
    %7415 = vmatprep.subr.mxu0 %v4760
    %7416 = vmatpush1.msra.mxu0 %v4759
    %7417 = vmatprep.subr.mxu0 %v4764
    %7418 = vmatpush1.msra.mxu0 %v4763
    %7419 = vmatprep.subr.mxu0 %v4768
    %7420 = vmatpush1.msra.mxu0 %v4767
    %7421 = vmatprep.subr.mxu0 %v4772
    %7422 = vmatpush1.msra.mxu0 %v4771
    %7423 = vmatprep.subr.mxu0 %v4776
    %7424 = vmatpush1.msra.mxu0 %v4775
    %7425 = vmatprep.subr.mxu0 %v4780
    %7426 = vmatpush1.msra.mxu0 %v4779
    %7427 = vmatprep.subr.mxu0 %v4784
    %7428 = vmatpush1.msra.mxu0 %v4783
    %7429 = vmatprep.subr.mxu0 %v4788
    %7430 = vmatpush1.msra.mxu0 %v4787
    %7431 = vmatprep.subr.mxu0 %v4792
    %7432 = vmatpush1.msra.mxu0 %v4791
    %7433 = vmatprep.subr.mxu0 %v4796
    %7434 = vmatpush1.msra.mxu0 %v4795
    %7435 = vmatprep.subr.mxu0 %v4800
    %7436 = vmatpush1.msra.mxu0 %v4799
    %7437 = vmatprep.subr.mxu0 %v4804
    %7438 = vmatpush1.msra.mxu0 %v4803
    %7439 = vmatprep.subr.mxu0 %v4808
    %7440 = vmatpush1.msra.mxu0 %v4807
    %7441 = vmatprep.subr.mxu0 %v4812
    %7442 = vmatpush1.msra.mxu0 %v4811
    %7443 = vmatprep.subr.mxu0 %v4816
    %7444 = vmatpush1.msra.mxu0 %v4815
    %7445 = vmatprep.subr.mxu0 0.0
    %7446 = vmatpush1.msra.mxu0 0.0
    %7447 = vmatprep.subr.mxu0 0.0
    %7448 = vmatpush1.msra.mxu0 0.0
    %7449 = vmatprep.subr.mxu0 0.0
    %7450 = vmatpush1.msra.mxu0 0.0
    %7451 = vmatprep.subr.mxu0 0.0
    %7452 = vmatpush1.msra.mxu0 0.0
    %7453 = vmatprep.subr.mxu0 0.0
    %7454 = vmatpush1.msra.mxu0 0.0
    %7455 = vmatprep.subr.mxu0 0.0
    %7456 = vmatpush1.msra.mxu0 0.0
    %7457 = vmatprep.subr.mxu0 0.0
    %7458 = vmatpush1.msra.mxu0 0.0
    %7459 = vmatprep.subr.mxu0 0.0
    %7460 = vmatpush1.msra.mxu0 0.0
    %7461 = vmatprep.subr.mxu0 0.0
    %7462 = vmatpush1.msra.mxu0 0.0
    %7463 = vmatprep.subr.mxu0 0.0
    %7464 = vmatpush1.msra.mxu0 0.0
    %7465 = vmatprep.subr.mxu0 0.0
    %7466 = vmatpush1.msra.mxu0 0.0
    %7467 = vmatprep.subr.mxu0 0.0
    %7468 = vmatpush1.msra.mxu0 0.0
    %7469 = vmatprep.subr.mxu0 0.0
    %7470 = vmatpush1.msra.mxu0 0.0
    %7471 = vmatprep.subr.mxu0 0.0
    %7472 = vmatpush1.msra.mxu0 0.0
    %7473 = vmatprep.subr.mxu0 0.0
    %7474 = vmatpush1.msra.mxu0 0.0
    %7475 = vmatprep.subr.mxu0 0.0
    %7476 = vmatpush1.msra.mxu0 0.0
    %7477 = vmatprep.mubr.f32.mxu0 0.0
    %7478 = vmatmul.mubr.f32.gmra.mrb[0].mxu0 %v6896
    %v7479 = vpop.f32.mrb[0].mxu0
    %v7480 = vadd.f32 0.0, %v7479
    %v7481 = vpop.f32.mrb[0].mxu0
    %v7482 = vadd.f32 0.0, %v7481
    %7483 = vdwg.mxu0
    %v7484 = vadd.f32 %v7338, %v7409
    %v7485 = vadd.f32 %v7339, %v7411
    %v7486 = vadd.f32 %v7340, %v7480
    %v7487 = vadd.f32 %v7341, %v7482
    %v7488 = vxor.u32 %v7484, 2147483648
    %v7489 = vmul.f32 %v7488, 1.442695
    %v7490 = vpow.pop %v7489
    %v7491 = vadd.f32 %v7490, 1.0
    %v7492 = vrcp.pop %v7491
    %v7493 = vmul.f32 1.0, %v7492
    %v7494 = vxor.u32 %v7485, 2147483648
    %v7495 = vmul.f32 %v7494, 1.442695
    %v7496 = vpow.pop %v7495
    %v7497 = vadd.f32 %v7496, 1.0
    %v7498 = vrcp.pop %v7497
    %v7499 = vmul.f32 1.0, %v7498
    %v7500 = vtanh.pop %v7486
    %v7501 = vxor.u32 %v7487, 2147483648
    %v7502 = vmul.f32 %v7501, 1.442695
    %v7503 = vpow.pop %v7502
    %v7504 = vadd.f32 %v7503, 1.0
    %v7505 = vrcp.pop %v7504
    %v7506 = vmul.f32 1.0, %v7505
    %v7507 = vmul.f32 %v7499, %v6894
    %v7508 = vmul.f32 %v7493, %v7500
    %v7509 = vadd.f32 %v7507, %v7508
    %v7510 = vtanh.pop %v7509
    %v7511 = vmul.f32 %v7506, %v7510
    %7512 = vmatprep.subr.mxu0 %v4988
    %7513 = vmatpush1.msra.mxu0 %v4987
    %7514 = vmatprep.subr.mxu0 %v4992
    %7515 = vmatpush1.msra.mxu0 %v4991
    %7516 = vmatprep.subr.mxu0 %v4996
    %7517 = vmatpush1.msra.mxu0 %v4995
    %7518 = vmatprep.subr.mxu0 %v5000
    %7519 = vmatpush1.msra.mxu0 %v4999
    %7520 = vmatprep.subr.mxu0 %v5004
    %7521 = vmatpush1.msra.mxu0 %v5003
    %7522 = vmatprep.subr.mxu0 %v5008
    %7523 = vmatpush1.msra.mxu0 %v5007
    %7524 = vmatprep.subr.mxu0 %v5012
    %7525 = vmatpush1.msra.mxu0 %v5011
    %7526 = vmatprep.subr.mxu0 %v5016
    %7527 = vmatpush1.msra.mxu0 %v5015
    %7528 = vmatprep.subr.mxu0 %v5020
    %7529 = vmatpush1.msra.mxu0 %v5019
    %7530 = vmatprep.subr.mxu0 %v5024
    %7531 = vmatpush1.msra.mxu0 %v5023
    %7532 = vmatprep.subr.mxu0 %v5028
    %7533 = vmatpush1.msra.mxu0 %v5027
    %7534 = vmatprep.subr.mxu0 %v5032
    %7535 = vmatpush1.msra.mxu0 %v5031
    %7536 = vmatprep.subr.mxu0 %v5036
    %7537 = vmatpush1.msra.mxu0 %v5035
    %7538 = vmatprep.subr.mxu0 %v5040
    %7539 = vmatpush1.msra.mxu0 %v5039
    %7540 = vmatprep.subr.mxu0 %v5044
    %7541 = vmatpush1.msra.mxu0 %v5043
    %7542 = vmatprep.subr.mxu0 %v5048
    %7543 = vmatpush1.msra.mxu0 %v5047
    %7544 = vmatprep.subr.mxu0 0.0
    %7545 = vmatpush1.msra.mxu0 0.0
    %7546 = vmatprep.subr.mxu0 0.0
    %7547 = vmatpush1.msra.mxu0 0.0
    %7548 = vmatprep.subr.mxu0 0.0
    %7549 = vmatpush1.msra.mxu0 0.0
    %7550 = vmatprep.subr.mxu0 0.0
    %7551 = vmatpush1.msra.mxu0 0.0
    %7552 = vmatprep.subr.mxu0 0.0
    %7553 = vmatpush1.msra.mxu0 0.0
    %7554 = vmatprep.subr.mxu0 0.0
    %7555 = vmatpush1.msra.mxu0 0.0
    %7556 = vmatprep.subr.mxu0 0.0
    %7557 = vmatpush1.msra.mxu0 0.0
    %7558 = vmatprep.subr.mxu0 0.0
    %7559 = vmatpush1.msra.mxu0 0.0
    %7560 = vmatprep.subr.mxu0 0.0
    %7561 = vmatpush1.msra.mxu0 0.0
    %7562 = vmatprep.subr.mxu0 0.0
    %7563 = vmatpush1.msra.mxu0 0.0
    %7564 = vmatprep.subr.mxu0 0.0
    %7565 = vmatpush1.msra.mxu0 0.0
    %7566 = vmatprep.subr.mxu0 0.0
    %7567 = vmatpush1.msra.mxu0 0.0
    %7568 = vmatprep.subr.mxu0 0.0
    %7569 = vmatpush1.msra.mxu0 0.0
    %7570 = vmatprep.subr.mxu0 0.0
    %7571 = vmatpush1.msra.mxu0 0.0
    %7572 = vmatprep.subr.mxu0 0.0
    %7573 = vmatpush1.msra.mxu0 0.0
    %7574 = vmatprep.subr.mxu0 0.0
    %7575 = vmatpush1.msra.mxu0 0.0
    %7576 = vmatprep.mubr.f32.mxu0 0.0
    %7577 = vmatmul.mubr.f32.gmra.mrb[0].mxu0 %v7511
    %v7578 = vpop.f32.mrb[0].mxu0
    %v7579 = vadd.f32 0.0, %v7578
    %v7580 = vpop.f32.mrb[0].mxu0
    %v7581 = vadd.f32 0.0, %v7580
    %7582 = vdwg.mxu0
    %7583 = vmatprep.subr.mxu0 %v4990
    %7584 = vmatpush1.msra.mxu0 %v4989
    %7585 = vmatprep.subr.mxu0 %v4994
    %7586 = vmatpush1.msra.mxu0 %v4993
    %7587 = vmatprep.subr.mxu0 %v4998
    %7588 = vmatpush1.msra.mxu0 %v4997
    %7589 = vmatprep.subr.mxu0 %v5002
    %7590 = vmatpush1.msra.mxu0 %v5001
    %7591 = vmatprep.subr.mxu0 %v5006
    %7592 = vmatpush1.msra.mxu0 %v5005
    %7593 = vmatprep.subr.mxu0 %v5010
    %7594 = vmatpush1.msra.mxu0 %v5009
    %7595 = vmatprep.subr.mxu0 %v5014
    %7596 = vmatpush1.msra.mxu0 %v5013
    %7597 = vmatprep.subr.mxu0 %v5018
    %7598 = vmatpush1.msra.mxu0 %v5017
    %7599 = vmatprep.subr.mxu0 %v5022
    %7600 = vmatpush1.msra.mxu0 %v5021
    %7601 = vmatprep.subr.mxu0 %v5026
    %7602 = vmatpush1.msra.mxu0 %v5025
    %7603 = vmatprep.subr.mxu0 %v5030
    %7604 = vmatpush1.msra.mxu0 %v5029
    %7605 = vmatprep.subr.mxu0 %v5034
    %7606 = vmatpush1.msra.mxu0 %v5033
    %7607 = vmatprep.subr.mxu0 %v5038
    %7608 = vmatpush1.msra.mxu0 %v5037
    %7609 = vmatprep.subr.mxu0 %v5042
    %7610 = vmatpush1.msra.mxu0 %v5041
    %7611 = vmatprep.subr.mxu0 %v5046
    %7612 = vmatpush1.msra.mxu0 %v5045
    %7613 = vmatprep.subr.mxu0 %v5050
    %7614 = vmatpush1.msra.mxu0 %v5049
    %7615 = vmatprep.subr.mxu0 0.0
    %7616 = vmatpush1.msra.mxu0 0.0
    %7617 = vmatprep.subr.mxu0 0.0
    %7618 = vmatpush1.msra.mxu0 0.0
    %7619 = vmatprep.subr.mxu0 0.0
    %7620 = vmatpush1.msra.mxu0 0.0
    %7621 = vmatprep.subr.mxu0 0.0
    %7622 = vmatpush1.msra.mxu0 0.0
    %7623 = vmatprep.subr.mxu0 0.0
    %7624 = vmatpush1.msra.mxu0 0.0
    %7625 = vmatprep.subr.mxu0 0.0
    %7626 = vmatpush1.msra.mxu0 0.0
    %7627 = vmatprep.subr.mxu0 0.0
    %7628 = vmatpush1.msra.mxu0 0.0
    %7629 = vmatprep.subr.mxu0 0.0
    %7630 = vmatpush1.msra.mxu0 0.0
    %7631 = vmatprep.subr.mxu0 0.0
    %7632 = vmatpush1.msra.mxu0 0.0
    %7633 = vmatprep.subr.mxu0 0.0
    %7634 = vmatpush1.msra.mxu0 0.0
    %7635 = vmatprep.subr.mxu0 0.0
    %7636 = vmatpush1.msra.mxu0 0.0
    %7637 = vmatprep.subr.mxu0 0.0
    %7638 = vmatpush1.msra.mxu0 0.0
    %7639 = vmatprep.subr.mxu0 0.0
    %7640 = vmatpush1.msra.mxu0 0.0
    %7641 = vmatprep.subr.mxu0 0.0
    %7642 = vmatpush1.msra.mxu0 0.0
    %7643 = vmatprep.subr.mxu0 0.0
    %7644 = vmatpush1.msra.mxu0 0.0
    %7645 = vmatprep.subr.mxu0 0.0
    %7646 = vmatpush1.msra.mxu0 0.0
    %7647 = vmatprep.mubr.f32.mxu0 0.0
    %7648 = vmatmul.mubr.f32.gmra.mrb[0].mxu0 %v7511
    %v7649 = vpop.f32.mrb[0].mxu0
    %v7650 = vadd.f32 0.0, %v7649
    %v7651 = vpop.f32.mrb[0].mxu0
    %v7652 = vadd.f32 0.0, %v7651
    %7653 = vdwg.mxu0
    %7654 = vmatprep.subr.mxu0 %v4680
    %7655 = vmatpush1.msra.mxu0 %v4679
    %7656 = vmatprep.subr.mxu0 %v4684
    %7657 = vmatpush1.msra.mxu0 %v4683
    %7658 = vmatprep.subr.mxu0 %v4688
    %7659 = vmatpush1.msra.mxu0 %v4687
    %7660 = vmatprep.subr.mxu0 %v4692
    %7661 = vmatpush1.msra.mxu0 %v4691
    %7662 = vmatprep.subr.mxu0 %v4696
    %7663 = vmatpush1.msra.mxu0 %v4695
    %7664 = vmatprep.subr.mxu0 %v4700
    %7665 = vmatpush1.msra.mxu0 %v4699
    %7666 = vmatprep.subr.mxu0 %v4704
    %7667 = vmatpush1.msra.mxu0 %v4703
    %7668 = vmatprep.subr.mxu0 %v4708
    %7669 = vmatpush1.msra.mxu0 %v4707
    %7670 = vmatprep.subr.mxu0 %v4712
    %7671 = vmatpush1.msra.mxu0 %v4711
    %7672 = vmatprep.subr.mxu0 %v4716
    %7673 = vmatpush1.msra.mxu0 %v4715
    %7674 = vmatprep.subr.mxu0 %v4720
    %7675 = vmatpush1.msra.mxu0 %v4719
    %7676 = vmatprep.subr.mxu0 %v4724
    %7677 = vmatpush1.msra.mxu0 %v4723
    %7678 = vmatprep.subr.mxu0 %v4728
    %7679 = vmatpush1.msra.mxu0 %v4727
    %7680 = vmatprep.subr.mxu0 %v4732
    %7681 = vmatpush1.msra.mxu0 %v4731
    %7682 = vmatprep.subr.mxu0 %v4736
    %7683 = vmatpush1.msra.mxu0 %v4735
    %7684 = vmatprep.subr.mxu0 %v4740
    %7685 = vmatpush1.msra.mxu0 %v4739
    %7686 = vmatprep.subr.mxu0 0.0
    %7687 = vmatpush1.msra.mxu0 0.0
    %7688 = vmatprep.subr.mxu0 0.0
    %7689 = vmatpush1.msra.mxu0 0.0
    %7690 = vmatprep.subr.mxu0 0.0
    %7691 = vmatpush1.msra.mxu0 0.0
    %7692 = vmatprep.subr.mxu0 0.0
    %7693 = vmatpush1.msra.mxu0 0.0
    %7694 = vmatprep.subr.mxu0 0.0
    %7695 = vmatpush1.msra.mxu0 0.0
    %7696 = vmatprep.subr.mxu0 0.0
    %7697 = vmatpush1.msra.mxu0 0.0
    %7698 = vmatprep.subr.mxu0 0.0
    %7699 = vmatpush1.msra.mxu0 0.0
    %7700 = vmatprep.subr.mxu0 0.0
    %7701 = vmatpush1.msra.mxu0 0.0
    %7702 = vmatprep.subr.mxu0 0.0
    %7703 = vmatpush1.msra.mxu0 0.0
    %7704 = vmatprep.subr.mxu0 0.0
    %7705 = vmatpush1.msra.mxu0 0.0
    %7706 = vmatprep.subr.mxu0 0.0
    %7707 = vmatpush1.msra.mxu0 0.0
    %7708 = vmatprep.subr.mxu0 0.0
    %7709 = vmatpush1.msra.mxu0 0.0
    %7710 = vmatprep.subr.mxu0 0.0
    %7711 = vmatpush1.msra.mxu0 0.0
    %7712 = vmatprep.subr.mxu0 0.0
    %7713 = vmatpush1.msra.mxu0 0.0
    %7714 = vmatprep.subr.mxu0 0.0
    %7715 = vmatpush1.msra.mxu0 0.0
    %7716 = vmatprep.subr.mxu0 0.0
    %7717 = vmatpush1.msra.mxu0 0.0
    %7718 = vmatprep.mubr.f32.mxu0 0.0
    %7719 = vmatmul.mubr.f32.gmra.mrb[0].mxu0 %v7208
    %v7720 = vpop.f32.mrb[0].mxu0
    %v7721 = vadd.f32 %v7579, %v7720
    %v7722 = vpop.f32.mrb[0].mxu0
    %v7723 = vadd.f32 %v7581, %v7722
    %7724 = vdwg.mxu0
    %7725 = vmatprep.subr.mxu0 %v4682
    %7726 = vmatpush1.msra.mxu0 %v4681
    %7727 = vmatprep.subr.mxu0 %v4686
    %7728 = vmatpush1.msra.mxu0 %v4685
    %7729 = vmatprep.subr.mxu0 %v4690
    %7730 = vmatpush1.msra.mxu0 %v4689
    %7731 = vmatprep.subr.mxu0 %v4694
    %7732 = vmatpush1.msra.mxu0 %v4693
    %7733 = vmatprep.subr.mxu0 %v4698
    %7734 = vmatpush1.msra.mxu0 %v4697
    %7735 = vmatprep.subr.mxu0 %v4702
    %7736 = vmatpush1.msra.mxu0 %v4701
    %7737 = vmatprep.subr.mxu0 %v4706
    %7738 = vmatpush1.msra.mxu0 %v4705
    %7739 = vmatprep.subr.mxu0 %v4710
    %7740 = vmatpush1.msra.mxu0 %v4709
    %7741 = vmatprep.subr.mxu0 %v4714
    %7742 = vmatpush1.msra.mxu0 %v4713
    %7743 = vmatprep.subr.mxu0 %v4718
    %7744 = vmatpush1.msra.mxu0 %v4717
    %7745 = vmatprep.subr.mxu0 %v4722
    %7746 = vmatpush1.msra.mxu0 %v4721
    %7747 = vmatprep.subr.mxu0 %v4726
    %7748 = vmatpush1.msra.mxu0 %v4725
    %7749 = vmatprep.subr.mxu0 %v4730
    %7750 = vmatpush1.msra.mxu0 %v4729
    %7751 = vmatprep.subr.mxu0 %v4734
    %7752 = vmatpush1.msra.mxu0 %v4733
    %7753 = vmatprep.subr.mxu0 %v4738
    %7754 = vmatpush1.msra.mxu0 %v4737
    %7755 = vmatprep.subr.mxu0 %v4742
    %7756 = vmatpush1.msra.mxu0 %v4741
    %7757 = vmatprep.subr.mxu0 0.0
    %7758 = vmatpush1.msra.mxu0 0.0
    %7759 = vmatprep.subr.mxu0 0.0
    %7760 = vmatpush1.msra.mxu0 0.0
    %7761 = vmatprep.subr.mxu0 0.0
    %7762 = vmatpush1.msra.mxu0 0.0
    %7763 = vmatprep.subr.mxu0 0.0
    %7764 = vmatpush1.msra.mxu0 0.0
    %7765 = vmatprep.subr.mxu0 0.0
    %7766 = vmatpush1.msra.mxu0 0.0
    %7767 = vmatprep.subr.mxu0 0.0
    %7768 = vmatpush1.msra.mxu0 0.0
    %7769 = vmatprep.subr.mxu0 0.0
    %7770 = vmatpush1.msra.mxu0 0.0
    %7771 = vmatprep.subr.mxu0 0.0
    %7772 = vmatpush1.msra.mxu0 0.0
    %7773 = vmatprep.subr.mxu0 0.0
    %7774 = vmatpush1.msra.mxu0 0.0
    %7775 = vmatprep.subr.mxu0 0.0
    %7776 = vmatpush1.msra.mxu0 0.0
    %7777 = vmatprep.subr.mxu0 0.0
    %7778 = vmatpush1.msra.mxu0 0.0
    %7779 = vmatprep.subr.mxu0 0.0
    %7780 = vmatpush1.msra.mxu0 0.0
    %7781 = vmatprep.subr.mxu0 0.0
    %7782 = vmatpush1.msra.mxu0 0.0
    %7783 = vmatprep.subr.mxu0 0.0
    %7784 = vmatpush1.msra.mxu0 0.0
    %7785 = vmatprep.subr.mxu0 0.0
    %7786 = vmatpush1.msra.mxu0 0.0
    %7787 = vmatprep.subr.mxu0 0.0
    %7788 = vmatpush1.msra.mxu0 0.0
    %7789 = vmatprep.mubr.f32.mxu0 0.0
    %7790 = vmatmul.mubr.f32.gmra.mrb[0].mxu0 %v7208
    %v7791 = vpop.f32.mrb[0].mxu0
    %v7792 = vadd.f32 %v7650, %v7791
    %v7793 = vpop.f32.mrb[0].mxu0
    %v7794 = vadd.f32 %v7652, %v7793
    %7795 = vdwg.mxu0
    %v7796 = vadd.f32 %v7721, %v2987
    %v7797 = vadd.f32 %v7723, %v2991
    %v7798 = vadd.f32 %v7792, %v2995
    %v7799 = vadd.f32 %v7794, %v2999
    %v7800 = vxor.u32 %v7796, 2147483648
    %v7801 = vmul.f32 %v7800, 1.442695
    %v7802 = vpow.pop %v7801
    %v7803 = vadd.f32 %v7802, 1.0
    %v7804 = vrcp.pop %v7803
    %v7805 = vmul.f32 1.0, %v7804
    %v7806 = vxor.u32 %v7797, 2147483648
    %v7807 = vmul.f32 %v7806, 1.442695
    %v7808 = vpow.pop %v7807
    %v7809 = vadd.f32 %v7808, 1.0
    %v7810 = vrcp.pop %v7809
    %v7811 = vmul.f32 1.0, %v7810
    %v7812 = vtanh.pop %v7798
    %v7813 = vxor.u32 %v7799, 2147483648
    %v7814 = vmul.f32 %v7813, 1.442695
    %v7815 = vpow.pop %v7814
    %v7816 = vadd.f32 %v7815, 1.0
    %v7817 = vrcp.pop %v7816
    %v7818 = vmul.f32 1.0, %v7817
    %v7819 = vmul.f32 %v7811, %v7206
    %v7820 = vmul.f32 %v7805, %v7812
    %v7821 = vadd.f32 %v7819, %v7820
    %v7822 = vtanh.pop %v7821
    %v7823 = vmul.f32 %v7818, %v7822
    %v7824 = vpack.c.bf16 %v7823, %v7823
    %7825 = vmatprep.subr.bf16.mxu0 %v7301
    %7826 = vmatpush1.bf16.msra.mxu0 %v7300
    %7827 = vmatprep.subr.bf16.mxu0 %v7305
    %7828 = vmatpush1.bf16.msra.mxu0 %v7304
    %7829 = vmatprep.subr.bf16.mxu0 %v7309
    %7830 = vmatpush1.bf16.msra.mxu0 %v7308
    %7831 = vmatprep.subr.bf16.mxu0 %v7313
    %7832 = vmatpush1.bf16.msra.mxu0 %v7312
    %7833 = vmatprep.subr.bf16.mxu0 %v7317
    %7834 = vmatpush1.bf16.msra.mxu0 %v7316
    %7835 = vmatprep.subr.bf16.mxu0 %v7321
    %7836 = vmatpush1.bf16.msra.mxu0 %v7320
    %7837 = vmatprep.subr.bf16.mxu0 %v7325
    %7838 = vmatpush1.bf16.msra.mxu0 %v7324
    %7839 = vmatprep.subr.bf16.mxu0 %v7329
    %7840 = vmatpush1.bf16.msra.mxu0 %v7328
    %7841 = vmatprep.subr.bf16.mxu0 0
    %7842 = vmatpush1.bf16.msra.mxu0 0
    %7843 = vmatprep.subr.bf16.mxu0 0
    %7844 = vmatpush1.bf16.msra.mxu0 0
    %7845 = vmatprep.subr.bf16.mxu0 0
    %7846 = vmatpush1.bf16.msra.mxu0 0
    %7847 = vmatprep.subr.bf16.mxu0 0
    %7848 = vmatpush1.bf16.msra.mxu0 0
    %7849 = vmatprep.subr.bf16.mxu0 0
    %7850 = vmatpush1.bf16.msra.mxu0 0
    %7851 = vmatprep.subr.bf16.mxu0 0
    %7852 = vmatpush1.bf16.msra.mxu0 0
    %7853 = vmatprep.subr.bf16.mxu0 0
    %7854 = vmatpush1.bf16.msra.mxu0 0
    %7855 = vmatprep.subr.bf16.mxu0 0
    %7856 = vmatpush1.bf16.msra.mxu0 0
    %7857 = vmatprep.mubr.bf16.mxu0 0
    %7858 = vmatmul.mubr.bf16.gmra.mrb[0].mxu0 %v7824
    %v7859 = vpop.f32.mrb[0].mxu0
    %v7860 = vadd.f32 0.0, %v7859
    %v7861 = vpop.f32.mrb[0].mxu0
    %v7862 = vadd.f32 0.0, %v7861
    %v7863 = vpop.f32.mrb[0].mxu0
    %v7864 = vpop.f32.mrb[0].mxu0
    %7865 = vdwg.mxu0
    %7866 = vmatprep.subr.bf16.mxu0 %v7303
    %7867 = vmatpush1.bf16.msra.mxu0 %v7302
    %7868 = vmatprep.subr.bf16.mxu0 %v7307
    %7869 = vmatpush1.bf16.msra.mxu0 %v7306
    %7870 = vmatprep.subr.bf16.mxu0 %v7311
    %7871 = vmatpush1.bf16.msra.mxu0 %v7310
    %7872 = vmatprep.subr.bf16.mxu0 %v7315
    %7873 = vmatpush1.bf16.msra.mxu0 %v7314
    %7874 = vmatprep.subr.bf16.mxu0 %v7319
    %7875 = vmatpush1.bf16.msra.mxu0 %v7318
    %7876 = vmatprep.subr.bf16.mxu0 %v7323
    %7877 = vmatpush1.bf16.msra.mxu0 %v7322
    %7878 = vmatprep.subr.bf16.mxu0 %v7327
    %7879 = vmatpush1.bf16.msra.mxu0 %v7326
    %7880 = vmatprep.subr.bf16.mxu0 %v7331
    %7881 = vmatpush1.bf16.msra.mxu0 %v7330
    %7882 = vmatprep.subr.bf16.mxu0 0
    %7883 = vmatpush1.bf16.msra.mxu0 0
    %7884 = vmatprep.subr.bf16.mxu0 0
    %7885 = vmatpush1.bf16.msra.mxu0 0
    %7886 = vmatprep.subr.bf16.mxu0 0
    %7887 = vmatpush1.bf16.msra.mxu0 0
    %7888 = vmatprep.subr.bf16.mxu0 0
    %7889 = vmatpush1.bf16.msra.mxu0 0
    %7890 = vmatprep.subr.bf16.mxu0 0
    %7891 = vmatpush1.bf16.msra.mxu0 0
    %7892 = vmatprep.subr.bf16.mxu0 0
    %7893 = vmatpush1.bf16.msra.mxu0 0
    %7894 = vmatprep.subr.bf16.mxu0 0
    %7895 = vmatpush1.bf16.msra.mxu0 0
    %7896 = vmatprep.subr.bf16.mxu0 0
    %7897 = vmatpush1.bf16.msra.mxu0 0
    %7898 = vmatprep.mubr.bf16.mxu0 0
    %7899 = vmatmul.mubr.bf16.gmra.mrb[0].mxu0 %v7824
    %v7900 = vpop.f32.mrb[0].mxu0
    %v7901 = vadd.f32 0.0, %v7900
    %v7902 = vpop.f32.mrb[0].mxu0
    %v7903 = vadd.f32 0.0, %v7902
    %v7904 = vpop.f32.mrb[0].mxu0
    %v7905 = vpop.f32.mrb[0].mxu0
    %7906 = vdwg.mxu0
    %v7907 = vadd.f32 %v7292, %v7860
    %v7908 = vadd.f32 %v7293, %v7862
    %v7909 = vadd.f32 %v7294, %v7901
    %v7910 = vadd.f32 %v7295, %v7903
    %s7911 = sadd.s32 %s5450, 5
    %s7912 = sadd.s32 160, %s4644
    %s7913 = smul.addr %s7912, 8
    %s7914 = scalar_lea.vmem [#allocation3], %s7913
    %v7915 = vld [vmem:[%s7914] sm:$0xff]
    %v7916 = vld [vmem:[%s7914 + $0x8] sm:$0xff]
    %v7917 = vld [vmem:[%s7914 + $0x10] sm:$0xff]
    %v7918 = vld [vmem:[%s7914 + $0x18] sm:$0xff]
    %v7919 = vld [vmem:[%s7914 + $0x20] sm:$0xff]
    %v7920 = vld [vmem:[%s7914 + $0x28] sm:$0xff]
    %v7921 = vld [vmem:[%s7914 + $0x30] sm:$0xff]
    %v7922 = vld [vmem:[%s7914 + $0x38] sm:$0xff]
    %v7923 = vld [vmem:[%s7914 + $0x40] sm:$0xff]
    %v7924 = vld [vmem:[%s7914 + $0x48] sm:$0xff]
    %v7925 = vld [vmem:[%s7914 + $0x50] sm:$0xff]
    %v7926 = vld [vmem:[%s7914 + $0x58] sm:$0xff]
    %v7927 = vld [vmem:[%s7914 + $0x60] sm:$0xff]
    %v7928 = vld [vmem:[%s7914 + $0x68] sm:$0xff]
    %v7929 = vld [vmem:[%s7914 + $0x70] sm:$0xff]
    %v7930 = vld [vmem:[%s7914 + $0x78] sm:$0xff]
    %v7931 = vld [vmem:[%s7914 + $0x80] sm:$0xff]
    %v7932 = vld [vmem:[%s7914 + $0x88] sm:$0xff]
    %v7933 = vld [vmem:[%s7914 + $0x90] sm:$0xff]
    %v7934 = vld [vmem:[%s7914 + $0x98] sm:$0xff]
    %v7935 = vld [vmem:[%s7914 + $0xa0] sm:$0xff]
    %v7936 = vld [vmem:[%s7914 + $0xa8] sm:$0xff]
    %v7937 = vld [vmem:[%s7914 + $0xb0] sm:$0xff]
    %v7938 = vld [vmem:[%s7914 + $0xb8] sm:$0xff]
    %v7939 = vld [vmem:[%s7914 + $0xc0] sm:$0xff]
    %v7940 = vld [vmem:[%s7914 + $0xc8] sm:$0xff]
    %v7941 = vld [vmem:[%s7914 + $0xd0] sm:$0xff]
    %v7942 = vld [vmem:[%s7914 + $0xd8] sm:$0xff]
    %v7943 = vld [vmem:[%s7914 + $0xe0] sm:$0xff]
    %v7944 = vld [vmem:[%s7914 + $0xe8] sm:$0xff]
    %v7945 = vld [vmem:[%s7914 + $0xf0] sm:$0xff]
    %v7946 = vld [vmem:[%s7914 + $0xf8] sm:$0xff]
    %s7947 = smul.u32 %s7911, 8
    %s7948 = sshra.s32 %s7947, 3
    %s7949 = sand.u32 %s7947, 7
    %s7950 = smul.u32 %s7948, 4
    %s7951 = smul.addr %s7950, 8
    %s7952 = scalar_lea.vmem [#allocation2], %s7951
    %v7953 = vld [vmem:[%s7952] sm:$0xff]
    %v7954 = vld [vmem:[%s7952 + $0x8] sm:$0xff]
    %v7955 = vld [vmem:[%s7952 + $0x10] sm:$0xff]
    %v7956 = vld [vmem:[%s7952 + $0x18] sm:$0xff]
    %7957 = vmatprep.subr.mxu0 %v4754
    %7958 = vmatpush1.msra.mxu0 %v4753
    %7959 = vmatprep.subr.mxu0 %v4758
    %7960 = vmatpush1.msra.mxu0 %v4757
    %7961 = vmatprep.subr.mxu0 %v4762
    %7962 = vmatpush1.msra.mxu0 %v4761
    %7963 = vmatprep.subr.mxu0 %v4766
    %7964 = vmatpush1.msra.mxu0 %v4765
    %7965 = vmatprep.subr.mxu0 %v4770
    %7966 = vmatpush1.msra.mxu0 %v4769
    %7967 = vmatprep.subr.mxu0 %v4774
    %7968 = vmatpush1.msra.mxu0 %v4773
    %7969 = vmatprep.subr.mxu0 %v4778
    %7970 = vmatpush1.msra.mxu0 %v4777
    %7971 = vmatprep.subr.mxu0 %v4782
    %7972 = vmatpush1.msra.mxu0 %v4781
    %7973 = vmatprep.subr.mxu0 %v4786
    %7974 = vmatpush1.msra.mxu0 %v4785
    %7975 = vmatprep.subr.mxu0 %v4790
    %7976 = vmatpush1.msra.mxu0 %v4789
    %7977 = vmatprep.subr.mxu0 %v4794
    %7978 = vmatpush1.msra.mxu0 %v4793
    %7979 = vmatprep.subr.mxu0 %v4798
    %7980 = vmatpush1.msra.mxu0 %v4797
    %7981 = vmatprep.subr.mxu0 %v4802
    %7982 = vmatpush1.msra.mxu0 %v4801
    %7983 = vmatprep.subr.mxu0 %v4806
    %7984 = vmatpush1.msra.mxu0 %v4805
    %7985 = vmatprep.subr.mxu0 %v4810
    %7986 = vmatpush1.msra.mxu0 %v4809
    %7987 = vmatprep.subr.mxu0 %v4814
    %7988 = vmatpush1.msra.mxu0 %v4813
    %7989 = vmatprep.subr.mxu0 0.0
    %7990 = vmatpush1.msra.mxu0 0.0
    %7991 = vmatprep.subr.mxu0 0.0
    %7992 = vmatpush1.msra.mxu0 0.0
    %7993 = vmatprep.subr.mxu0 0.0
    %7994 = vmatpush1.msra.mxu0 0.0
    %7995 = vmatprep.subr.mxu0 0.0
    %7996 = vmatpush1.msra.mxu0 0.0
    %7997 = vmatprep.subr.mxu0 0.0
    %7998 = vmatpush1.msra.mxu0 0.0
    %7999 = vmatprep.subr.mxu0 0.0
    %8000 = vmatpush1.msra.mxu0 0.0
    %8001 = vmatprep.subr.mxu0 0.0
    %8002 = vmatpush1.msra.mxu0 0.0
    %8003 = vmatprep.subr.mxu0 0.0
    %8004 = vmatpush1.msra.mxu0 0.0
    %8005 = vmatprep.subr.mxu0 0.0
    %8006 = vmatpush1.msra.mxu0 0.0
    %8007 = vmatprep.subr.mxu0 0.0
    %8008 = vmatpush1.msra.mxu0 0.0
    %8009 = vmatprep.subr.mxu0 0.0
    %8010 = vmatpush1.msra.mxu0 0.0
    %8011 = vmatprep.subr.mxu0 0.0
    %8012 = vmatpush1.msra.mxu0 0.0
    %8013 = vmatprep.subr.mxu0 0.0
    %8014 = vmatpush1.msra.mxu0 0.0
    %8015 = vmatprep.subr.mxu0 0.0
    %8016 = vmatpush1.msra.mxu0 0.0
    %8017 = vmatprep.subr.mxu0 0.0
    %8018 = vmatpush1.msra.mxu0 0.0
    %8019 = vmatprep.subr.mxu0 0.0
    %8020 = vmatpush1.msra.mxu0 0.0
    %8021 = vmatprep.mubr.f32.mxu0 0.0
    %8022 = vmatmul.mubr.f32.gmra.mrb[0].mxu0 %v7511
    %v8023 = vpop.f32.mrb[0].mxu0
    %v8024 = vadd.f32 0.0, %v8023
    %v8025 = vpop.f32.mrb[0].mxu0
    %v8026 = vadd.f32 0.0, %v8025
    %8027 = vdwg.mxu0
    %8028 = vmatprep.subr.mxu0 %v4756
    %8029 = vmatpush1.msra.mxu0 %v4755
    %8030 = vmatprep.subr.mxu0 %v4760
    %8031 = vmatpush1.msra.mxu0 %v4759
    %8032 = vmatprep.subr.mxu0 %v4764
    %8033 = vmatpush1.msra.mxu0 %v4763
    %8034 = vmatprep.subr.mxu0 %v4768
    %8035 = vmatpush1.msra.mxu0 %v4767
    %8036 = vmatprep.subr.mxu0 %v4772
    %8037 = vmatpush1.msra.mxu0 %v4771
    %8038 = vmatprep.subr.mxu0 %v4776
    %8039 = vmatpush1.msra.mxu0 %v4775
    %8040 = vmatprep.subr.mxu0 %v4780
    %8041 = vmatpush1.msra.mxu0 %v4779
    %8042 = vmatprep.subr.mxu0 %v4784
    %8043 = vmatpush1.msra.mxu0 %v4783
    %8044 = vmatprep.subr.mxu0 %v4788
    %8045 = vmatpush1.msra.mxu0 %v4787
    %8046 = vmatprep.subr.mxu0 %v4792
    %8047 = vmatpush1.msra.mxu0 %v4791
    %8048 = vmatprep.subr.mxu0 %v4796
    %8049 = vmatpush1.msra.mxu0 %v4795
    %8050 = vmatprep.subr.mxu0 %v4800
    %8051 = vmatpush1.msra.mxu0 %v4799
    %8052 = vmatprep.subr.mxu0 %v4804
    %8053 = vmatpush1.msra.mxu0 %v4803
    %8054 = vmatprep.subr.mxu0 %v4808
    %8055 = vmatpush1.msra.mxu0 %v4807
    %8056 = vmatprep.subr.mxu0 %v4812
    %8057 = vmatpush1.msra.mxu0 %v4811
    %8058 = vmatprep.subr.mxu0 %v4816
    %8059 = vmatpush1.msra.mxu0 %v4815
    %8060 = vmatprep.subr.mxu0 0.0
    %8061 = vmatpush1.msra.mxu0 0.0
    %8062 = vmatprep.subr.mxu0 0.0
    %8063 = vmatpush1.msra.mxu0 0.0
    %8064 = vmatprep.subr.mxu0 0.0
    %8065 = vmatpush1.msra.mxu0 0.0
    %8066 = vmatprep.subr.mxu0 0.0
    %8067 = vmatpush1.msra.mxu0 0.0
    %8068 = vmatprep.subr.mxu0 0.0
    %8069 = vmatpush1.msra.mxu0 0.0
    %8070 = vmatprep.subr.mxu0 0.0
    %8071 = vmatpush1.msra.mxu0 0.0
    %8072 = vmatprep.subr.mxu0 0.0
    %8073 = vmatpush1.msra.mxu0 0.0
    %8074 = vmatprep.subr.mxu0 0.0
    %8075 = vmatpush1.msra.mxu0 0.0
    %8076 = vmatprep.subr.mxu0 0.0
    %8077 = vmatpush1.msra.mxu0 0.0
    %8078 = vmatprep.subr.mxu0 0.0
    %8079 = vmatpush1.msra.mxu0 0.0
    %8080 = vmatprep.subr.mxu0 0.0
    %8081 = vmatpush1.msra.mxu0 0.0
    %8082 = vmatprep.subr.mxu0 0.0
    %8083 = vmatpush1.msra.mxu0 0.0
    %8084 = vmatprep.subr.mxu0 0.0
    %8085 = vmatpush1.msra.mxu0 0.0
    %8086 = vmatprep.subr.mxu0 0.0
    %8087 = vmatpush1.msra.mxu0 0.0
    %8088 = vmatprep.subr.mxu0 0.0
    %8089 = vmatpush1.msra.mxu0 0.0
    %8090 = vmatprep.subr.mxu0 0.0
    %8091 = vmatpush1.msra.mxu0 0.0
    %8092 = vmatprep.mubr.f32.mxu0 0.0
    %8093 = vmatmul.mubr.f32.gmra.mrb[0].mxu0 %v7511
    %v8094 = vpop.f32.mrb[0].mxu0
    %v8095 = vadd.f32 0.0, %v8094
    %v8096 = vpop.f32.mrb[0].mxu0
    %v8097 = vadd.f32 0.0, %v8096
    %8098 = vdwg.mxu0
    %v8099 = vadd.f32 %v7953, %v8024
    %v8100 = vadd.f32 %v7954, %v8026
    %v8101 = vadd.f32 %v7955, %v8095
    %v8102 = vadd.f32 %v7956, %v8097
    %v8103 = vxor.u32 %v8099, 2147483648
    %v8104 = vmul.f32 %v8103, 1.442695
    %v8105 = vpow.pop %v8104
    %v8106 = vadd.f32 %v8105, 1.0
    %v8107 = vrcp.pop %v8106
    %v8108 = vmul.f32 1.0, %v8107
    %v8109 = vxor.u32 %v8100, 2147483648
    %v8110 = vmul.f32 %v8109, 1.442695
    %v8111 = vpow.pop %v8110
    %v8112 = vadd.f32 %v8111, 1.0
    %v8113 = vrcp.pop %v8112
    %v8114 = vmul.f32 1.0, %v8113
    %v8115 = vtanh.pop %v8101
    %v8116 = vxor.u32 %v8102, 2147483648
    %v8117 = vmul.f32 %v8116, 1.442695
    %v8118 = vpow.pop %v8117
    %v8119 = vadd.f32 %v8118, 1.0
    %v8120 = vrcp.pop %v8119
    %v8121 = vmul.f32 1.0, %v8120
    %v8122 = vmul.f32 %v8114, %v7509
    %v8123 = vmul.f32 %v8108, %v8115
    %v8124 = vadd.f32 %v8122, %v8123
    %v8125 = vtanh.pop %v8124
    %v8126 = vmul.f32 %v8121, %v8125
    %8127 = vmatprep.subr.mxu0 %v4988
    %8128 = vmatpush1.msra.mxu0 %v4987
    %8129 = vmatprep.subr.mxu0 %v4992
    %8130 = vmatpush1.msra.mxu0 %v4991
    %8131 = vmatprep.subr.mxu0 %v4996
    %8132 = vmatpush1.msra.mxu0 %v4995
    %8133 = vmatprep.subr.mxu0 %v5000
    %8134 = vmatpush1.msra.mxu0 %v4999
    %8135 = vmatprep.subr.mxu0 %v5004
    %8136 = vmatpush1.msra.mxu0 %v5003
    %8137 = vmatprep.subr.mxu0 %v5008
    %8138 = vmatpush1.msra.mxu0 %v5007
    %8139 = vmatprep.subr.mxu0 %v5012
    %8140 = vmatpush1.msra.mxu0 %v5011
    %8141 = vmatprep.subr.mxu0 %v5016
    %8142 = vmatpush1.msra.mxu0 %v5015
    %8143 = vmatprep.subr.mxu0 %v5020
    %8144 = vmatpush1.msra.mxu0 %v5019
    %8145 = vmatprep.subr.mxu0 %v5024
    %8146 = vmatpush1.msra.mxu0 %v5023
    %8147 = vmatprep.subr.mxu0 %v5028
    %8148 = vmatpush1.msra.mxu0 %v5027
    %8149 = vmatprep.subr.mxu0 %v5032
    %8150 = vmatpush1.msra.mxu0 %v5031
    %8151 = vmatprep.subr.mxu0 %v5036
    %8152 = vmatpush1.msra.mxu0 %v5035
    %8153 = vmatprep.subr.mxu0 %v5040
    %8154 = vmatpush1.msra.mxu0 %v5039
    %8155 = vmatprep.subr.mxu0 %v5044
    %8156 = vmatpush1.msra.mxu0 %v5043
    %8157 = vmatprep.subr.mxu0 %v5048
    %8158 = vmatpush1.msra.mxu0 %v5047
    %8159 = vmatprep.subr.mxu0 0.0
    %8160 = vmatpush1.msra.mxu0 0.0
    %8161 = vmatprep.subr.mxu0 0.0
    %8162 = vmatpush1.msra.mxu0 0.0
    %8163 = vmatprep.subr.mxu0 0.0
    %8164 = vmatpush1.msra.mxu0 0.0
    %8165 = vmatprep.subr.mxu0 0.0
    %8166 = vmatpush1.msra.mxu0 0.0
    %8167 = vmatprep.subr.mxu0 0.0
    %8168 = vmatpush1.msra.mxu0 0.0
    %8169 = vmatprep.subr.mxu0 0.0
    %8170 = vmatpush1.msra.mxu0 0.0
    %8171 = vmatprep.subr.mxu0 0.0
    %8172 = vmatpush1.msra.mxu0 0.0
    %8173 = vmatprep.subr.mxu0 0.0
    %8174 = vmatpush1.msra.mxu0 0.0
    %8175 = vmatprep.subr.mxu0 0.0
    %8176 = vmatpush1.msra.mxu0 0.0
    %8177 = vmatprep.subr.mxu0 0.0
    %8178 = vmatpush1.msra.mxu0 0.0
    %8179 = vmatprep.subr.mxu0 0.0
    %8180 = vmatpush1.msra.mxu0 0.0
    %8181 = vmatprep.subr.mxu0 0.0
    %8182 = vmatpush1.msra.mxu0 0.0
    %8183 = vmatprep.subr.mxu0 0.0
    %8184 = vmatpush1.msra.mxu0 0.0
    %8185 = vmatprep.subr.mxu0 0.0
    %8186 = vmatpush1.msra.mxu0 0.0
    %8187 = vmatprep.subr.mxu0 0.0
    %8188 = vmatpush1.msra.mxu0 0.0
    %8189 = vmatprep.subr.mxu0 0.0
    %8190 = vmatpush1.msra.mxu0 0.0
    %8191 = vmatprep.mubr.f32.mxu0 0.0
    %8192 = vmatmul.mubr.f32.gmra.mrb[0].mxu0 %v8126
    %v8193 = vpop.f32.mrb[0].mxu0
    %v8194 = vadd.f32 0.0, %v8193
    %v8195 = vpop.f32.mrb[0].mxu0
    %v8196 = vadd.f32 0.0, %v8195
    %8197 = vdwg.mxu0
    %8198 = vmatprep.subr.mxu0 %v4990
    %8199 = vmatpush1.msra.mxu0 %v4989
    %8200 = vmatprep.subr.mxu0 %v4994
    %8201 = vmatpush1.msra.mxu0 %v4993
    %8202 = vmatprep.subr.mxu0 %v4998
    %8203 = vmatpush1.msra.mxu0 %v4997
    %8204 = vmatprep.subr.mxu0 %v5002
    %8205 = vmatpush1.msra.mxu0 %v5001
    %8206 = vmatprep.subr.mxu0 %v5006
    %8207 = vmatpush1.msra.mxu0 %v5005
    %8208 = vmatprep.subr.mxu0 %v5010
    %8209 = vmatpush1.msra.mxu0 %v5009
    %8210 = vmatprep.subr.mxu0 %v5014
    %8211 = vmatpush1.msra.mxu0 %v5013
    %8212 = vmatprep.subr.mxu0 %v5018
    %8213 = vmatpush1.msra.mxu0 %v5017
    %8214 = vmatprep.subr.mxu0 %v5022
    %8215 = vmatpush1.msra.mxu0 %v5021
    %8216 = vmatprep.subr.mxu0 %v5026
    %8217 = vmatpush1.msra.mxu0 %v5025
    %8218 = vmatprep.subr.mxu0 %v5030
    %8219 = vmatpush1.msra.mxu0 %v5029
    %8220 = vmatprep.subr.mxu0 %v5034
    %8221 = vmatpush1.msra.mxu0 %v5033
    %8222 = vmatprep.subr.mxu0 %v5038
    %8223 = vmatpush1.msra.mxu0 %v5037
    %8224 = vmatprep.subr.mxu0 %v5042
    %8225 = vmatpush1.msra.mxu0 %v5041
    %8226 = vmatprep.subr.mxu0 %v5046
    %8227 = vmatpush1.msra.mxu0 %v5045
    %8228 = vmatprep.subr.mxu0 %v5050
    %8229 = vmatpush1.msra.mxu0 %v5049
    %8230 = vmatprep.subr.mxu0 0.0
    %8231 = vmatpush1.msra.mxu0 0.0
    %8232 = vmatprep.subr.mxu0 0.0
    %8233 = vmatpush1.msra.mxu0 0.0
    %8234 = vmatprep.subr.mxu0 0.0
    %8235 = vmatpush1.msra.mxu0 0.0
    %8236 = vmatprep.subr.mxu0 0.0
    %8237 = vmatpush1.msra.mxu0 0.0
    %8238 = vmatprep.subr.mxu0 0.0
    %8239 = vmatpush1.msra.mxu0 0.0
    %8240 = vmatprep.subr.mxu0 0.0
    %8241 = vmatpush1.msra.mxu0 0.0
    %8242 = vmatprep.subr.mxu0 0.0
    %8243 = vmatpush1.msra.mxu0 0.0
    %8244 = vmatprep.subr.mxu0 0.0
    %8245 = vmatpush1.msra.mxu0 0.0
    %8246 = vmatprep.subr.mxu0 0.0
    %8247 = vmatpush1.msra.mxu0 0.0
    %8248 = vmatprep.subr.mxu0 0.0
    %8249 = vmatpush1.msra.mxu0 0.0
    %8250 = vmatprep.subr.mxu0 0.0
    %8251 = vmatpush1.msra.mxu0 0.0
    %8252 = vmatprep.subr.mxu0 0.0
    %8253 = vmatpush1.msra.mxu0 0.0
    %8254 = vmatprep.subr.mxu0 0.0
    %8255 = vmatpush1.msra.mxu0 0.0
    %8256 = vmatprep.subr.mxu0 0.0
    %8257 = vmatpush1.msra.mxu0 0.0
    %8258 = vmatprep.subr.mxu0 0.0
    %8259 = vmatpush1.msra.mxu0 0.0
    %8260 = vmatprep.subr.mxu0 0.0
    %8261 = vmatpush1.msra.mxu0 0.0
    %8262 = vmatprep.mubr.f32.mxu0 0.0
    %8263 = vmatmul.mubr.f32.gmra.mrb[0].mxu0 %v8126
    %v8264 = vpop.f32.mrb[0].mxu0
    %v8265 = vadd.f32 0.0, %v8264
    %v8266 = vpop.f32.mrb[0].mxu0
    %v8267 = vadd.f32 0.0, %v8266
    %8268 = vdwg.mxu0
    %8269 = vmatprep.subr.mxu0 %v4680
    %8270 = vmatpush1.msra.mxu0 %v4679
    %8271 = vmatprep.subr.mxu0 %v4684
    %8272 = vmatpush1.msra.mxu0 %v4683
    %8273 = vmatprep.subr.mxu0 %v4688
    %8274 = vmatpush1.msra.mxu0 %v4687
    %8275 = vmatprep.subr.mxu0 %v4692
    %8276 = vmatpush1.msra.mxu0 %v4691
    %8277 = vmatprep.subr.mxu0 %v4696
    %8278 = vmatpush1.msra.mxu0 %v4695
    %8279 = vmatprep.subr.mxu0 %v4700
    %8280 = vmatpush1.msra.mxu0 %v4699
    %8281 = vmatprep.subr.mxu0 %v4704
    %8282 = vmatpush1.msra.mxu0 %v4703
    %8283 = vmatprep.subr.mxu0 %v4708
    %8284 = vmatpush1.msra.mxu0 %v4707
    %8285 = vmatprep.subr.mxu0 %v4712
    %8286 = vmatpush1.msra.mxu0 %v4711
    %8287 = vmatprep.subr.mxu0 %v4716
    %8288 = vmatpush1.msra.mxu0 %v4715
    %8289 = vmatprep.subr.mxu0 %v4720
    %8290 = vmatpush1.msra.mxu0 %v4719
    %8291 = vmatprep.subr.mxu0 %v4724
    %8292 = vmatpush1.msra.mxu0 %v4723
    %8293 = vmatprep.subr.mxu0 %v4728
    %8294 = vmatpush1.msra.mxu0 %v4727
    %8295 = vmatprep.subr.mxu0 %v4732
    %8296 = vmatpush1.msra.mxu0 %v4731
    %8297 = vmatprep.subr.mxu0 %v4736
    %8298 = vmatpush1.msra.mxu0 %v4735
    %8299 = vmatprep.subr.mxu0 %v4740
    %8300 = vmatpush1.msra.mxu0 %v4739
    %8301 = vmatprep.subr.mxu0 0.0
    %8302 = vmatpush1.msra.mxu0 0.0
    %8303 = vmatprep.subr.mxu0 0.0
    %8304 = vmatpush1.msra.mxu0 0.0
    %8305 = vmatprep.subr.mxu0 0.0
    %8306 = vmatpush1.msra.mxu0 0.0
    %8307 = vmatprep.subr.mxu0 0.0
    %8308 = vmatpush1.msra.mxu0 0.0
    %8309 = vmatprep.subr.mxu0 0.0
    %8310 = vmatpush1.msra.mxu0 0.0
    %8311 = vmatprep.subr.mxu0 0.0
    %8312 = vmatpush1.msra.mxu0 0.0
    %8313 = vmatprep.subr.mxu0 0.0
    %8314 = vmatpush1.msra.mxu0 0.0
    %8315 = vmatprep.subr.mxu0 0.0
    %8316 = vmatpush1.msra.mxu0 0.0
    %8317 = vmatprep.subr.mxu0 0.0
    %8318 = vmatpush1.msra.mxu0 0.0
    %8319 = vmatprep.subr.mxu0 0.0
    %8320 = vmatpush1.msra.mxu0 0.0
    %8321 = vmatprep.subr.mxu0 0.0
    %8322 = vmatpush1.msra.mxu0 0.0
    %8323 = vmatprep.subr.mxu0 0.0
    %8324 = vmatpush1.msra.mxu0 0.0
    %8325 = vmatprep.subr.mxu0 0.0
    %8326 = vmatpush1.msra.mxu0 0.0
    %8327 = vmatprep.subr.mxu0 0.0
    %8328 = vmatpush1.msra.mxu0 0.0
    %8329 = vmatprep.subr.mxu0 0.0
    %8330 = vmatpush1.msra.mxu0 0.0
    %8331 = vmatprep.subr.mxu0 0.0
    %8332 = vmatpush1.msra.mxu0 0.0
    %8333 = vmatprep.mubr.f32.mxu0 0.0
    %8334 = vmatmul.mubr.f32.gmra.mrb[0].mxu0 %v7823
    %v8335 = vpop.f32.mrb[0].mxu0
    %v8336 = vadd.f32 %v8194, %v8335
    %v8337 = vpop.f32.mrb[0].mxu0
    %v8338 = vadd.f32 %v8196, %v8337
    %8339 = vdwg.mxu0
    %8340 = vmatprep.subr.mxu0 %v4682
    %8341 = vmatpush1.msra.mxu0 %v4681
    %8342 = vmatprep.subr.mxu0 %v4686
    %8343 = vmatpush1.msra.mxu0 %v4685
    %8344 = vmatprep.subr.mxu0 %v4690
    %8345 = vmatpush1.msra.mxu0 %v4689
    %8346 = vmatprep.subr.mxu0 %v4694
    %8347 = vmatpush1.msra.mxu0 %v4693
    %8348 = vmatprep.subr.mxu0 %v4698
    %8349 = vmatpush1.msra.mxu0 %v4697
    %8350 = vmatprep.subr.mxu0 %v4702
    %8351 = vmatpush1.msra.mxu0 %v4701
    %8352 = vmatprep.subr.mxu0 %v4706
    %8353 = vmatpush1.msra.mxu0 %v4705
    %8354 = vmatprep.subr.mxu0 %v4710
    %8355 = vmatpush1.msra.mxu0 %v4709
    %8356 = vmatprep.subr.mxu0 %v4714
    %8357 = vmatpush1.msra.mxu0 %v4713
    %8358 = vmatprep.subr.mxu0 %v4718
    %8359 = vmatpush1.msra.mxu0 %v4717
    %8360 = vmatprep.subr.mxu0 %v4722
    %8361 = vmatpush1.msra.mxu0 %v4721
    %8362 = vmatprep.subr.mxu0 %v4726
    %8363 = vmatpush1.msra.mxu0 %v4725
    %8364 = vmatprep.subr.mxu0 %v4730
    %8365 = vmatpush1.msra.mxu0 %v4729
    %8366 = vmatprep.subr.mxu0 %v4734
    %8367 = vmatpush1.msra.mxu0 %v4733
    %8368 = vmatprep.subr.mxu0 %v4738
    %8369 = vmatpush1.msra.mxu0 %v4737
    %8370 = vmatprep.subr.mxu0 %v4742
    %8371 = vmatpush1.msra.mxu0 %v4741
    %8372 = vmatprep.subr.mxu0 0.0
    %8373 = vmatpush1.msra.mxu0 0.0
    %8374 = vmatprep.subr.mxu0 0.0
    %8375 = vmatpush1.msra.mxu0 0.0
    %8376 = vmatprep.subr.mxu0 0.0
    %8377 = vmatpush1.msra.mxu0 0.0
    %8378 = vmatprep.subr.mxu0 0.0
    %8379 = vmatpush1.msra.mxu0 0.0
    %8380 = vmatprep.subr.mxu0 0.0
    %8381 = vmatpush1.msra.mxu0 0.0
    %8382 = vmatprep.subr.mxu0 0.0
    %8383 = vmatpush1.msra.mxu0 0.0
    %8384 = vmatprep.subr.mxu0 0.0
    %8385 = vmatpush1.msra.mxu0 0.0
    %8386 = vmatprep.subr.mxu0 0.0
    %8387 = vmatpush1.msra.mxu0 0.0
    %8388 = vmatprep.subr.mxu0 0.0
    %8389 = vmatpush1.msra.mxu0 0.0
    %8390 = vmatprep.subr.mxu0 0.0
    %8391 = vmatpush1.msra.mxu0 0.0
    %8392 = vmatprep.subr.mxu0 0.0
    %8393 = vmatpush1.msra.mxu0 0.0
    %8394 = vmatprep.subr.mxu0 0.0
    %8395 = vmatpush1.msra.mxu0 0.0
    %8396 = vmatprep.subr.mxu0 0.0
    %8397 = vmatpush1.msra.mxu0 0.0
    %8398 = vmatprep.subr.mxu0 0.0
    %8399 = vmatpush1.msra.mxu0 0.0
    %8400 = vmatprep.subr.mxu0 0.0
    %8401 = vmatpush1.msra.mxu0 0.0
    %8402 = vmatprep.subr.mxu0 0.0
    %8403 = vmatpush1.msra.mxu0 0.0
    %8404 = vmatprep.mubr.f32.mxu0 0.0
    %8405 = vmatmul.mubr.f32.gmra.mrb[0].mxu0 %v7823
    %v8406 = vpop.f32.mrb[0].mxu0
    %v8407 = vadd.f32 %v8265, %v8406
    %v8408 = vpop.f32.mrb[0].mxu0
    %v8409 = vadd.f32 %v8267, %v8408
    %8410 = vdwg.mxu0
    %v8411 = vadd.f32 %v8336, %v2987
    %v8412 = vadd.f32 %v8338, %v2991
    %v8413 = vadd.f32 %v8407, %v2995
    %v8414 = vadd.f32 %v8409, %v2999
    %v8415 = vxor.u32 %v8411, 2147483648
    %v8416 = vmul.f32 %v8415, 1.442695
    %v8417 = vpow.pop %v8416
    %v8418 = vadd.f32 %v8417, 1.0
    %v8419 = vrcp.pop %v8418
    %v8420 = vmul.f32 1.0, %v8419
    %v8421 = vxor.u32 %v8412, 2147483648
    %v8422 = vmul.f32 %v8421, 1.442695
    %v8423 = vpow.pop %v8422
    %v8424 = vadd.f32 %v8423, 1.0
    %v8425 = vrcp.pop %v8424
    %v8426 = vmul.f32 1.0, %v8425
    %v8427 = vtanh.pop %v8413
    %v8428 = vxor.u32 %v8414, 2147483648
    %v8429 = vmul.f32 %v8428, 1.442695
    %v8430 = vpow.pop %v8429
    %v8431 = vadd.f32 %v8430, 1.0
    %v8432 = vrcp.pop %v8431
    %v8433 = vmul.f32 1.0, %v8432
    %v8434 = vmul.f32 %v8426, %v7821
    %v8435 = vmul.f32 %v8420, %v8427
    %v8436 = vadd.f32 %v8434, %v8435
    %v8437 = vtanh.pop %v8436
    %v8438 = vmul.f32 %v8433, %v8437
    %v8439 = vpack.c.bf16 %v8438, %v8438
    %8440 = vmatprep.subr.bf16.mxu0 %v7916
    %8441 = vmatpush1.bf16.msra.mxu0 %v7915
    %8442 = vmatprep.subr.bf16.mxu0 %v7920
    %8443 = vmatpush1.bf16.msra.mxu0 %v7919
    %8444 = vmatprep.subr.bf16.mxu0 %v7924
    %8445 = vmatpush1.bf16.msra.mxu0 %v7923
    %8446 = vmatprep.subr.bf16.mxu0 %v7928
    %8447 = vmatpush1.bf16.msra.mxu0 %v7927
    %8448 = vmatprep.subr.bf16.mxu0 %v7932
    %8449 = vmatpush1.bf16.msra.mxu0 %v7931
    %8450 = vmatprep.subr.bf16.mxu0 %v7936
    %8451 = vmatpush1.bf16.msra.mxu0 %v7935
    %8452 = vmatprep.subr.bf16.mxu0 %v7940
    %8453 = vmatpush1.bf16.msra.mxu0 %v7939
    %8454 = vmatprep.subr.bf16.mxu0 %v7944
    %8455 = vmatpush1.bf16.msra.mxu0 %v7943
    %8456 = vmatprep.subr.bf16.mxu0 0
    %8457 = vmatpush1.bf16.msra.mxu0 0
    %8458 = vmatprep.subr.bf16.mxu0 0
    %8459 = vmatpush1.bf16.msra.mxu0 0
    %8460 = vmatprep.subr.bf16.mxu0 0
    %8461 = vmatpush1.bf16.msra.mxu0 0
    %8462 = vmatprep.subr.bf16.mxu0 0
    %8463 = vmatpush1.bf16.msra.mxu0 0
    %8464 = vmatprep.subr.bf16.mxu0 0
    %8465 = vmatpush1.bf16.msra.mxu0 0
    %8466 = vmatprep.subr.bf16.mxu0 0
    %8467 = vmatpush1.bf16.msra.mxu0 0
    %8468 = vmatprep.subr.bf16.mxu0 0
    %8469 = vmatpush1.bf16.msra.mxu0 0
    %8470 = vmatprep.subr.bf16.mxu0 0
    %8471 = vmatpush1.bf16.msra.mxu0 0
    %8472 = vmatprep.mubr.bf16.mxu0 0
    %8473 = vmatmul.mubr.bf16.gmra.mrb[0].mxu0 %v8439
    %v8474 = vpop.f32.mrb[0].mxu0
    %v8475 = vadd.f32 0.0, %v8474
    %v8476 = vpop.f32.mrb[0].mxu0
    %v8477 = vadd.f32 0.0, %v8476
    %v8478 = vpop.f32.mrb[0].mxu0
    %v8479 = vpop.f32.mrb[0].mxu0
    %8480 = vdwg.mxu0
    %8481 = vmatprep.subr.bf16.mxu0 %v7918
    %8482 = vmatpush1.bf16.msra.mxu0 %v7917
    %8483 = vmatprep.subr.bf16.mxu0 %v7922
    %8484 = vmatpush1.bf16.msra.mxu0 %v7921
    %8485 = vmatprep.subr.bf16.mxu0 %v7926
    %8486 = vmatpush1.bf16.msra.mxu0 %v7925
    %8487 = vmatprep.subr.bf16.mxu0 %v7930
    %8488 = vmatpush1.bf16.msra.mxu0 %v7929
    %8489 = vmatprep.subr.bf16.mxu0 %v7934
    %8490 = vmatpush1.bf16.msra.mxu0 %v7933
    %8491 = vmatprep.subr.bf16.mxu0 %v7938
    %8492 = vmatpush1.bf16.msra.mxu0 %v7937
    %8493 = vmatprep.subr.bf16.mxu0 %v7942
    %8494 = vmatpush1.bf16.msra.mxu0 %v7941
    %8495 = vmatprep.subr.bf16.mxu0 %v7946
    %8496 = vmatpush1.bf16.msra.mxu0 %v7945
    %8497 = vmatprep.subr.bf16.mxu0 0
    %8498 = vmatpush1.bf16.msra.mxu0 0
    %8499 = vmatprep.subr.bf16.mxu0 0
    %8500 = vmatpush1.bf16.msra.mxu0 0
    %8501 = vmatprep.subr.bf16.mxu0 0
    %8502 = vmatpush1.bf16.msra.mxu0 0
    %8503 = vmatprep.subr.bf16.mxu0 0
    %8504 = vmatpush1.bf16.msra.mxu0 0
    %8505 = vmatprep.subr.bf16.mxu0 0
    %8506 = vmatpush1.bf16.msra.mxu0 0
    %8507 = vmatprep.subr.bf16.mxu0 0
    %8508 = vmatpush1.bf16.msra.mxu0 0
    %8509 = vmatprep.subr.bf16.mxu0 0
    %8510 = vmatpush1.bf16.msra.mxu0 0
    %8511 = vmatprep.subr.bf16.mxu0 0
    %8512 = vmatpush1.bf16.msra.mxu0 0
    %8513 = vmatprep.mubr.bf16.mxu0 0
    %8514 = vmatmul.mubr.bf16.gmra.mrb[0].mxu0 %v8439
    %v8515 = vpop.f32.mrb[0].mxu0
    %v8516 = vadd.f32 0.0, %v8515
    %v8517 = vpop.f32.mrb[0].mxu0
    %v8518 = vadd.f32 0.0, %v8517
    %v8519 = vpop.f32.mrb[0].mxu0
    %v8520 = vpop.f32.mrb[0].mxu0
    %8521 = vdwg.mxu0
    %v8522 = vadd.f32 %v7907, %v8475
    %v8523 = vadd.f32 %v7908, %v8477
    %v8524 = vadd.f32 %v7909, %v8516
    %v8525 = vadd.f32 %v7910, %v8518
  $region83: #{lstm_model_forward.1} parent=0 // loop_footer
    %s3031 = sadd.s32 1, %s3027
  $region84: #{lstm_model_forward.1} parent=0 // loop_footer_branch
    %3026 = sbr.rel target = $region80
  $region85: #{lstm_model_forward.1} parent=0 // loop_exit
    _
  %v8526 = vld [vmem:[%s9] sm:$0xff]
  %v8527 = vld [vmem:[%s9 + $0x8] sm:$0xff]
  %v8528 = vld [vmem:[%s9 + $0x10] sm:$0xff]
  %v8529 = vld [vmem:[%s9 + $0x18] sm:$0xff]
  %v8530 = vld [vmem:[%s9 + $0x20] sm:$0xff]
  %v8531 = vld [vmem:[%s9 + $0x28] sm:$0xff]
  %v8532 = vld [vmem:[%s9 + $0x30] sm:$0xff]
  %v8533 = vld [vmem:[%s9 + $0x38] sm:$0xff]
  %v8534 = vld [vmem:[%s9 + $0x40] sm:$0xff]
  %v8535 = vld [vmem:[%s9 + $0x48] sm:$0xff]
  %v8536 = vld [vmem:[%s9 + $0x50] sm:$0xff]
  %v8537 = vld [vmem:[%s9 + $0x58] sm:$0xff]
  %v8538 = vld [vmem:[%s9 + $0x60] sm:$0xff]
  %v8539 = vld [vmem:[%s9 + $0x68] sm:$0xff]
  %v8540 = vld [vmem:[%s9 + $0x70] sm:$0xff]
  %v8541 = vld [vmem:[%s9 + $0x78] sm:$0xff]
  %v8542 = vld [vmem:[%s9 + $0x80] sm:$0xff]
  %v8543 = vld [vmem:[%s9 + $0x88] sm:$0xff]
  %v8544 = vld [vmem:[%s9 + $0x90] sm:$0xff]
  %v8545 = vld [vmem:[%s9 + $0x98] sm:$0xff]
  %v8546 = vld [vmem:[%s9 + $0xa0] sm:$0xff]
  %v8547 = vld [vmem:[%s9 + $0xa8] sm:$0xff]
  %v8548 = vld [vmem:[%s9 + $0xb0] sm:$0xff]
  %v8549 = vld [vmem:[%s9 + $0xb8] sm:$0xff]
  %v8550 = vld [vmem:[%s9 + $0xc0] sm:$0xff]
  %v8551 = vld [vmem:[%s9 + $0xc8] sm:$0xff]
  %v8552 = vld [vmem:[%s9 + $0xd0] sm:$0xff]
  %v8553 = vld [vmem:[%s9 + $0xd8] sm:$0xff]
  %v8554 = vld [vmem:[%s9 + $0xe0] sm:$0xff]
  %v8555 = vld [vmem:[%s9 + $0xe8] sm:$0xff]
  %v8556 = vld [vmem:[%s9 + $0xf0] sm:$0xff]
  %v8557 = vld [vmem:[%s9 + $0xf8] sm:$0xff]
  %v8558 = vld [vmem:[%s9 + $0x100] sm:$0xff]
  %v8559 = vld [vmem:[%s9 + $0x108] sm:$0xff]
  %v8560 = vld [vmem:[%s9 + $0x110] sm:$0xff]
  %v8561 = vld [vmem:[%s9 + $0x118] sm:$0xff]
  %v8562 = vld [vmem:[%s9 + $0x120] sm:$0xff]
  %v8563 = vld [vmem:[%s9 + $0x128] sm:$0xff]
  %v8564 = vld [vmem:[%s9 + $0x130] sm:$0xff]
  %v8565 = vld [vmem:[%s9 + $0x138] sm:$0xff]
  %v8566 = vld [vmem:[%s9 + $0x140] sm:$0xff]
  %v8567 = vld [vmem:[%s9 + $0x148] sm:$0xff]
  %v8568 = vld [vmem:[%s9 + $0x150] sm:$0xff]
  %v8569 = vld [vmem:[%s9 + $0x158] sm:$0xff]
  %v8570 = vld [vmem:[%s9 + $0x160] sm:$0xff]
  %v8571 = vld [vmem:[%s9 + $0x168] sm:$0xff]
  %v8572 = vld [vmem:[%s9 + $0x170] sm:$0xff]
  %v8573 = vld [vmem:[%s9 + $0x178] sm:$0xff]
  %v8574 = vld [vmem:[%s9 + $0x180] sm:$0xff]
  %v8575 = vld [vmem:[%s9 + $0x188] sm:$0xff]
  %v8576 = vld [vmem:[%s9 + $0x190] sm:$0xff]
  %v8577 = vld [vmem:[%s9 + $0x198] sm:$0xff]
  %v8578 = vld [vmem:[%s9 + $0x1a0] sm:$0xff]
  %v8579 = vld [vmem:[%s9 + $0x1a8] sm:$0xff]
  %v8580 = vld [vmem:[%s9 + $0x1b0] sm:$0xff]
  %v8581 = vld [vmem:[%s9 + $0x1b8] sm:$0xff]
  %v8582 = vld [vmem:[%s9 + $0x1c0] sm:$0xff]
  %v8583 = vld [vmem:[%s9 + $0x1c8] sm:$0xff]
  %v8584 = vld [vmem:[%s9 + $0x1d0] sm:$0xff]
  %v8585 = vld [vmem:[%s9 + $0x1d8] sm:$0xff]
  %v8586 = vld [vmem:[%s9 + $0x1e0] sm:$0xff]
  %v8587 = vld [vmem:[%s9 + $0x1e8] sm:$0xff]
  %v8588 = vld [vmem:[%s9 + $0x1f0] sm:$0xff]
  %v8589 = vld [vmem:[%s9 + $0x1f8] sm:$0xff]
  %v8590 = vld [vmem:[%s10] sm:$0x1]
  %v8592 = vlaneseq
  %v8593 = vshrl.u32 %v8592, 7
  %v8594 = vsub.s32 0, %v8593
  %v8595 = vrot.slane %v8590, %v8594
  %8597 = vmatprep.subr.mxu0 0.0
  %8598 = vmatpush1.msra.mxu0 %v8526
  %8599 = vmatprep.subr.mxu0 0.0
  %8600 = vmatpush1.msra.mxu0 %v8527
  %8601 = vmatprep.subr.mxu0 0.0
  %8602 = vmatpush1.msra.mxu0 %v8528
  %8603 = vmatprep.subr.mxu0 0.0
  %8604 = vmatpush1.msra.mxu0 %v8529
  %8605 = vmatprep.subr.mxu0 0.0
  %8606 = vmatpush1.msra.mxu0 %v8530
  %8607 = vmatprep.subr.mxu0 0.0
  %8608 = vmatpush1.msra.mxu0 %v8531
  %8609 = vmatprep.subr.mxu0 0.0
  %8610 = vmatpush1.msra.mxu0 %v8532
  %8611 = vmatprep.subr.mxu0 0.0
  %8612 = vmatpush1.msra.mxu0 %v8533
  %8613 = vmatprep.subr.mxu0 0.0
  %8614 = vmatpush1.msra.mxu0 %v8534
  %8615 = vmatprep.subr.mxu0 0.0
  %8616 = vmatpush1.msra.mxu0 %v8535
  %8617 = vmatprep.subr.mxu0 0.0
  %8618 = vmatpush1.msra.mxu0 %v8536
  %8619 = vmatprep.subr.mxu0 0.0
  %8620 = vmatpush1.msra.mxu0 %v8537
  %8621 = vmatprep.subr.mxu0 0.0
  %8622 = vmatpush1.msra.mxu0 %v8538
  %8623 = vmatprep.subr.mxu0 0.0
  %8624 = vmatpush1.msra.mxu0 %v8539
  %8625 = vmatprep.subr.mxu0 0.0
  %8626 = vmatpush1.msra.mxu0 %v8540
  %8627 = vmatprep.subr.mxu0 0.0
  %8628 = vmatpush1.msra.mxu0 %v8541
  %8629 = vmatprep.subr.mxu0 0.0
  %8630 = vmatpush1.msra.mxu0 %v8542
  %8631 = vmatprep.subr.mxu0 0.0
  %8632 = vmatpush1.msra.mxu0 %v8543
  %8633 = vmatprep.subr.mxu0 0.0
  %8634 = vmatpush1.msra.mxu0 %v8544
  %8635 = vmatprep.subr.mxu0 0.0
  %8636 = vmatpush1.msra.mxu0 %v8545
  %8637 = vmatprep.subr.mxu0 0.0
  %8638 = vmatpush1.msra.mxu0 %v8546
  %8639 = vmatprep.subr.mxu0 0.0
  %8640 = vmatpush1.msra.mxu0 %v8547
  %8641 = vmatprep.subr.mxu0 0.0
  %8642 = vmatpush1.msra.mxu0 %v8548
  %8643 = vmatprep.subr.mxu0 0.0
  %8644 = vmatpush1.msra.mxu0 %v8549
  %8645 = vmatprep.subr.mxu0 0.0
  %8646 = vmatpush1.msra.mxu0 %v8550
  %8647 = vmatprep.subr.mxu0 0.0
  %8648 = vmatpush1.msra.mxu0 %v8551
  %8649 = vmatprep.subr.mxu0 0.0
  %8650 = vmatpush1.msra.mxu0 %v8552
  %8651 = vmatprep.subr.mxu0 0.0
  %8652 = vmatpush1.msra.mxu0 %v8553
  %8653 = vmatprep.subr.mxu0 0.0
  %8654 = vmatpush1.msra.mxu0 %v8554
  %8655 = vmatprep.subr.mxu0 0.0
  %8656 = vmatpush1.msra.mxu0 %v8555
  %8657 = vmatprep.subr.mxu0 0.0
  %8658 = vmatpush1.msra.mxu0 %v8556
  %8659 = vmatprep.subr.mxu0 0.0
  %8660 = vmatpush1.msra.mxu0 %v8557
  %8661 = vmatprep.mubr.f32.mxu0 %v3037
  %8662 = vmatmul.mubr.f32.gmra.mrb[0].mxu0 %v3036
  %v8663 = vpop.f32.mrb[0].mxu0
  %v8664 = vadd.f32 %v8595, %v8663
  %v8665 = vpop.f32.mrb[0].mxu0
  %8666 = vdwg.mxu0
  %8667 = vmatprep.subr.mxu0 0.0
  %8668 = vmatpush1.msra.mxu0 %v8558
  %8669 = vmatprep.subr.mxu0 0.0
  %8670 = vmatpush1.msra.mxu0 %v8559
  %8671 = vmatprep.subr.mxu0 0.0
  %8672 = vmatpush1.msra.mxu0 %v8560
  %8673 = vmatprep.subr.mxu0 0.0
  %8674 = vmatpush1.msra.mxu0 %v8561
  %8675 = vmatprep.subr.mxu0 0.0
  %8676 = vmatpush1.msra.mxu0 %v8562
  %8677 = vmatprep.subr.mxu0 0.0
  %8678 = vmatpush1.msra.mxu0 %v8563
  %8679 = vmatprep.subr.mxu0 0.0
  %8680 = vmatpush1.msra.mxu0 %v8564
  %8681 = vmatprep.subr.mxu0 0.0
  %8682 = vmatpush1.msra.mxu0 %v8565
  %8683 = vmatprep.subr.mxu0 0.0
  %8684 = vmatpush1.msra.mxu0 %v8566
  %8685 = vmatprep.subr.mxu0 0.0
  %8686 = vmatpush1.msra.mxu0 %v8567
  %8687 = vmatprep.subr.mxu0 0.0
  %8688 = vmatpush1.msra.mxu0 %v8568
  %8689 = vmatprep.subr.mxu0 0.0
  %8690 = vmatpush1.msra.mxu0 %v8569
  %8691 = vmatprep.subr.mxu0 0.0
  %8692 = vmatpush1.msra.mxu0 %v8570
  %8693 = vmatprep.subr.mxu0 0.0
  %8694 = vmatpush1.msra.mxu0 %v8571
  %8695 = vmatprep.subr.mxu0 0.0
  %8696 = vmatpush1.msra.mxu0 %v8572
  %8697 = vmatprep.subr.mxu0 0.0
  %8698 = vmatpush1.msra.mxu0 %v8573
  %8699 = vmatprep.subr.mxu0 0.0
  %8700 = vmatpush1.msra.mxu0 %v8574
  %8701 = vmatprep.subr.mxu0 0.0
  %8702 = vmatpush1.msra.mxu0 %v8575
  %8703 = vmatprep.subr.mxu0 0.0
  %8704 = vmatpush1.msra.mxu0 %v8576
  %8705 = vmatprep.subr.mxu0 0.0
  %8706 = vmatpush1.msra.mxu0 %v8577
  %8707 = vmatprep.subr.mxu0 0.0
  %8708 = vmatpush1.msra.mxu0 %v8578
  %8709 = vmatprep.subr.mxu0 0.0
  %8710 = vmatpush1.msra.mxu0 %v8579
  %8711 = vmatprep.subr.mxu0 0.0
  %8712 = vmatpush1.msra.mxu0 %v8580
  %8713 = vmatprep.subr.mxu0 0.0
  %8714 = vmatpush1.msra.mxu0 %v8581
  %8715 = vmatprep.subr.mxu0 0.0
  %8716 = vmatpush1.msra.mxu0 %v8582
  %8717 = vmatprep.subr.mxu0 0.0
  %8718 = vmatpush1.msra.mxu0 %v8583
  %8719 = vmatprep.subr.mxu0 0.0
  %8720 = vmatpush1.msra.mxu0 %v8584
  %8721 = vmatprep.subr.mxu0 0.0
  %8722 = vmatpush1.msra.mxu0 %v8585
  %8723 = vmatprep.subr.mxu0 0.0
  %8724 = vmatpush1.msra.mxu0 %v8586
  %8725 = vmatprep.subr.mxu0 0.0
  %8726 = vmatpush1.msra.mxu0 %v8587
  %8727 = vmatprep.subr.mxu0 0.0
  %8728 = vmatpush1.msra.mxu0 %v8588
  %8729 = vmatprep.subr.mxu0 0.0
  %8730 = vmatpush1.msra.mxu0 %v8589
  %8731 = vmatprep.mubr.f32.mxu0 %v3039
  %8732 = vmatmul.mubr.f32.gmra.mrb[0].mxu0 %v3038
  %v8733 = vpop.f32.mrb[0].mxu0
  %v8734 = vadd.f32 %v8664, %v8733
  %v8735 = vpop.f32.mrb[0].mxu0
  %8736 = vdwg.mxu0
  %vm8737 = vcmask 195584
  %8738 = vst.msk [vmem:[%s11] sm:$0xff] %vm8737, %v8734
  // Predicated region
  $region127: #{lstm_model_forward.1} parent=0 // pred_check
    _
  $region128: #{lstm_model_forward.1} parent=0 // pred_check_branch
    %8740 = sbr.rel (0) target = $region130
  $region129: #{lstm_model_forward.1} parent=0 // pred_region
    _
  $region130: #{lstm_model_forward.1} parent=0 // pred_fallthru
    _
  // Predicated region
  $region131: #{lstm_model_forward.1} parent=0 // pred_check
    _
  $region132: #{lstm_model_forward.1} parent=0 // pred_check_branch
    %8742 = sbr.rel (0) target = $region134
  $region133: #{lstm_model_forward.1} parent=0 // pred_region
    _
  $region134: #{lstm_model_forward.1} parent=0 // pred_fallthru
    _
  %8743 = vsyncmov [#allocation4]
  %s8744 = vpop.sfrf %8743
  %p8745 = scmp.eq.s32.totalorder %s8744, 0
  %p8746 = pneg %p8745
  %8748 = shalt.err (%p8746)
  %s8749 = scalar_lea.sflag [#allocation4], 1
  %8750 = vsyncmov %s8749
  %s8751 = vpop.sfrf %8750
  %p8752 = scmp.eq.s32.totalorder %s8751, 0
  %p8753 = pneg %p8752
  %8755 = shalt.err (%p8753)

</llo_original>
